<compile_context>
chip_gen: v7x
topology: tpu7x:2x2x1
jax: 0.10.0
libtpu: 0.0.40
codegen_flags: <defaults>
</compile_context>

<pallas_src>
import math

import jax
import jax.numpy as jnp
from jax import lax
from jax.experimental import pallas as pl
from jax.experimental.pallas import tpu as pltpu

# ----------------------------- scaled-down config ---------------------------
BATCH = 1                      # forward() does .view(1, -1) => batch must be 1
CHANNELS = 3
IMAGE = 32
PATCH = 16
HIDDEN = 32                    # stands in for 768
LAYERS = 2                     # stands in for 12
HEADS = 4                      # stands in for 12
HEAD_DIM = HIDDEN // HEADS
MLP = 4 * HIDDEN               # intermediate size (4x, as in ViT)
NUM_PATCHES = (IMAGE // PATCH) ** 2
SEQ = NUM_PATCHES + 1          # +1 CLS token
SEQ_PAD = 8                    # sublane-aligned sequence length
FLAT = SEQ * HIDDEN            # stands in for 151296 = 197 * 768
HEAD_HIDDEN = 128              # stands in for 4096
YOLO_OUT = 1470                # kept exact so the final .view(-1, 7, 7, 30) works
YOLO_PAD = 1536                # 12 * 128 lane-dense padded head output
LN_EPS = 1e-12                 # HF ViT layer_norm_eps
CPP = CHANNELS * PATCH * PATCH  # flattened patch size = 768


# ------------------------------- Pallas kernel -------------------------------
def _ln(x, g, b):
    mu = jnp.mean(x, axis=-1, keepdims=True)
    var = jnp.mean((x - mu) * (x - mu), axis=-1, keepdims=True)
    return (x - mu) * lax.rsqrt(var + LN_EPS) * g + b


def _gelu(x):  # exact (erf-based) GELU, as in HF ViT
    return 0.5 * x * (1.0 + lax.erf(x * (1.0 / math.sqrt(2.0))))


def _bf16(x):
    return x.astype(jnp.bfloat16)


def _vit_yolo_kernel(
    patches_ref,   # (SEQ_PAD, CPP) bf16     row 0 and pad rows are zero
    patch_w_ref,   # (CPP, HIDDEN) bf16
    addend_ref,    # (SEQ_PAD, HIDDEN) f32   cls/pos/patch-bias folded, pad rows zero
    key_mask_ref,  # (SEQ_PAD, SEQ_PAD) f32  0 for real keys, -1e30 for padding keys
    ln1_g_ref, ln1_b_ref,        # (L, 1, HIDDEN) f32
    wqkv_ref, bqkv_ref,          # (L, HIDDEN, 3*HIDDEN) bf16, (L, 1, 3*HIDDEN) f32
    wo_ref, bo_ref,              # (L, HEADS, HEAD_DIM, HIDDEN) bf16, (L, 1, HIDDEN) f32
    ln2_g_ref, ln2_b_ref,        # (L, 1, HIDDEN) f32
    w1_ref, b1_ref,              # (L, HIDDEN, MLP) bf16, (L, 1, MLP) f32
    w2_ref, b2_ref,              # (L, MLP, HIDDEN) bf16, (L, 1, HIDDEN) f32
    lnf_g_ref, lnf_b_ref,        # (1, HIDDEN) f32
    hw1_ref, hb1_ref,            # (SEQ, HIDDEN, HEAD_HIDDEN) bf16, (1, HEAD_HIDDEN) f32
    hb2_ref,                     # (1, YOLO_PAD) f32
    hw2_hbm_ref,                 # (HEAD_HIDDEN, YOLO_PAD) bf16, memory_space=ANY
    out_ref,                     # (1, YOLO_PAD) f32
    hw2_vmem,                    # scratch: (HEAD_HIDDEN, YOLO_PAD) bf16
    hw2_sem,                     # scratch: DMA semaphore
):
    # Start streaming the biggest weight (YOLO head W2) now; it is consumed
    # last, so the DMA overlaps the patch embed + transformer compute.
    hw2_cp = pltpu.make_async_copy(hw2_hbm_ref, hw2_vmem, hw2_sem)
    hw2_cp.start()

    scale = 1.0 / math.sqrt(HEAD_DIM)

    # --- patch embedding + CLS token + positional embedding (fused add) ---
    x = jnp.dot(patches_ref[...], patch_w_ref[...],
                preferred_element_type=jnp.float32) + addend_ref[...]
    key_mask = key_mask_ref[...]

    for l in range(LAYERS):
        # ---------------- self attention (pre-LN), fused ----------------
        h = _ln(x, ln1_g_ref[l], ln1_b_ref[l])
        qkv = jnp.dot(_bf16(h), wqkv_ref[l],
                      preferred_element_type=jnp.float32) + bqkv_ref[l]
        attn = bo_ref[l]                      # (1, HIDDEN), broadcasts over rows
        for hd in range(HEADS):
            lo = hd * HEAD_DIM
            q_h = _bf16(qkv[:, lo:lo + HEAD_DIM])
            k_h = _bf16(qkv[:, HIDDEN + lo:HIDDEN + lo + HEAD_DIM])
            v_h = _bf16(qkv[:, 2 * HIDDEN + lo:2 * HIDDEN + lo + HEAD_DIM])
            # scores = q_h @ k_h^T  (contract last dims), masked for pad keys
            s = lax.dot_general(
                q_h, k_h, (((1,), (1,)), ((), ())),
                preferred_element_type=jnp.float32) * scale + key_mask
            m = jnp.max(s, axis=-1, keepdims=True)
            p = jnp.exp(s - m)
            p = p * pl.reciprocal(jnp.sum(p, axis=-1, keepdims=True), approx=True)
            ctx_h = jnp.dot(_bf16(p), v_h, preferred_element_type=jnp.float32)
            # head merge + output projection folded: ctx @ Wo = sum_h ctx_h @ Wo[h]
            attn = attn + jnp.dot(_bf16(ctx_h), wo_ref[l, hd],
                                  preferred_element_type=jnp.float32)
        x = x + attn                                          # residual (fused)

        # ------------------------ MLP (pre-LN), fused --------------------
        h2 = _ln(x, ln2_g_ref[l], ln2_b_ref[l])
        m1 = jnp.dot(_bf16(h2), w1_ref[l],
                     preferred_element_type=jnp.float32) + b1_ref[l]
        m1 = _gelu(m1)
        m2 = jnp.dot(_bf16(m1), w2_ref[l],
                     preferred_element_type=jnp.float32) + b2_ref[l]
        x = x + m2                                            # residual (fused)

    # --------------------------- final LayerNorm -------------------------
    xf = _ln(x, lnf_g_ref[...], lnf_b_ref[...])

    # --- YOLO head on last_hidden_state.view(1, -1): Linear -> ReLU -> Linear ---
    # flat @ W1 == sum_s xf[s, :] @ W1[s*HIDDEN:(s+1)*HIDDEN, :]
    hid = hb1_ref[...]                                        # (1, HEAD_HIDDEN) f32
    for s_i in range(SEQ):
        hid = hid + jnp.dot(_bf16(xf[s_i:s_i + 1, :]), hw1_ref[s_i],
                            preferred_element_type=jnp.float32)
    hid = jnp.maximum(hid, 0.0)                               # ReLU

    hw2_cp.wait()                                             # W2 is now in VMEM
    out_ref[...] = jnp.dot(_bf16(hid), hw2_vmem[...],
                           preferred_element_type=jnp.float32) + hb2_ref[...]


# ------------------------------ parameter setup ------------------------------
def init_params(key):
    def nrm(k, shape, scale=0.02):
        return (scale * jax.random.normal(k, shape)).astype(jnp.float32)

    keys = iter(jax.random.split(key, 16 + 12 * LAYERS))
    params = {
        # patch embedding == Conv2d(C, HIDDEN, PATCH, stride=PATCH) as a matmul
        "patch_w": nrm(next(keys), (CPP, HIDDEN)),
        "patch_b": jnp.zeros((HIDDEN,), jnp.float32),
        "cls": nrm(next(keys), (1, HIDDEN)),
        "pos": nrm(next(keys), (SEQ, HIDDEN)),
        "lnf_g": jnp.ones((HIDDEN,), jnp.float32),
        "lnf_b": jnp.zeros((HIDDEN,), jnp.float32),
        "head_w1": nrm(next(keys), (FLAT, HEAD_HIDDEN)),
        "head_b1": jnp.zeros((HEAD_HIDDEN,), jnp.float32),
        "head_w2": nrm(next(keys), (HEAD_HIDDEN, YOLO_OUT)),
        "head_b2": jnp.zeros((YOLO_OUT,), jnp.float32),
        "layers": [],
    }
    for _ in range(LAYERS):
        params["layers"].append({
            "ln1_g": jnp.ones((HIDDEN,), jnp.float32),
            "ln1_b": jnp.zeros((HIDDEN,), jnp.float32),
            "wq": nrm(next(keys), (HIDDEN, HIDDEN)),
            "bq": jnp.zeros((HIDDEN,), jnp.float32),
            "wk": nrm(next(keys), (HIDDEN, HIDDEN)),
            "bk": jnp.zeros((HIDDEN,), jnp.float32),
            "wv": nrm(next(keys), (HIDDEN, HIDDEN)),
            "bv": jnp.zeros((HIDDEN,), jnp.float32),
            "wo": nrm(next(keys), (HIDDEN, HIDDEN)),
            "bo": jnp.zeros((HIDDEN,), jnp.float32),
            "ln2_g": jnp.ones((HIDDEN,), jnp.float32),
            "ln2_b": jnp.zeros((HIDDEN,), jnp.float32),
            "w1": nrm(next(keys), (HIDDEN, MLP)),
            "b1": jnp.zeros((MLP,), jnp.float32),
            "w2": nrm(next(keys), (MLP, HIDDEN)),
            "b2": jnp.zeros((HIDDEN,), jnp.float32),
        })
    return params


def prepare_params(params):
    """One-time packing: stacking, QKV fusion, padding, bf16 casts.

    Runs once (eagerly), so none of this HBM->HBM glue sits in the per-call
    jitted forward path anymore."""
    bf16 = jnp.bfloat16
    L = params["layers"]

    def stack_vec(name):       # (L, 1, N) f32
        return jnp.stack([lyr[name][None, :] for lyr in L])

    def stack_mat(name):       # (L, K, N) bf16
        return jnp.stack([lyr[name] for lyr in L]).astype(bf16)

    wqkv = jnp.stack([jnp.concatenate([lyr["wq"], lyr["wk"], lyr["wv"]], axis=1)
                      for lyr in L]).astype(bf16)
    bqkv = jnp.stack([jnp.concatenate([lyr["bq"], lyr["bk"], lyr["bv"]])[None, :]
                      for lyr in L])
    # Wo pre-split per head: kernel indexes wo[l, h] -> (HEAD_DIM, HIDDEN),
    # avoiding packed-dtype sublane slices inside the kernel.
    wo = jnp.stack([lyr["wo"].reshape(HEADS, HEAD_DIM, HIDDEN) for lyr in L]).astype(bf16)

    # cls token, positional embedding and patch bias folded into one addend
    addend = jnp.zeros((SEQ_PAD, HIDDEN), jnp.float32)
    addend = addend.at[0].set(params["cls"][0] + params["pos"][0])
    addend = addend.at[1:SEQ].set(params["pos"][1:SEQ] + params["patch_b"][None, :])

    # additive key mask: padding key columns (>= SEQ) contribute -1e30 to scores
    key_mask = jnp.broadcast_to(
        jnp.where(jnp.arange(SEQ_PAD) < SEQ, 0.0, -1e30).astype(jnp.float32),
        (SEQ_PAD, SEQ_PAD))

    # YOLO head: W1 reshaped to (SEQ, HIDDEN, HEAD_HIDDEN) (matches row-major
    # .view(1,-1) flatten); W2/b2 zero-padded to 1536 lanes (lane-dense stores).
    hw1 = params["head_w1"].reshape(SEQ, HIDDEN, HEAD_HIDDEN).astype(bf16)
    hb1 = params["head_b1"][None, :]
    hw2 = jnp.zeros((HEAD_HIDDEN, YOLO_PAD), bf16)
    hw2 = hw2.at[:, :YOLO_OUT].set(params["head_w2"].astype(bf16))
    hb2 = jnp.zeros((1, YOLO_PAD), jnp.float32)
    hb2 = hb2.at[0, :YOLO_OUT].set(params["head_b2"])

    # NOTE: hw2 must stay LAST (it gets the memory_space=pl.ANY spec).
    packed = (
        params["patch_w"].astype(bf16), addend, key_mask,
        stack_vec("ln1_g"), stack_vec("ln1_b"),
        wqkv, bqkv,
        wo, stack_vec("bo"),
        stack_vec("ln2_g"), stack_vec("ln2_b"),
        stack_mat("w1"), stack_vec("b1"),
        stack_mat("w2"), stack_vec("b2"),
        params["lnf_g"][None, :], params["lnf_b"][None, :],
        hw1, hb1, hb2, hw2,
    )
    return packed


# --------------------------------- forward -----------------------------------
@jax.jit
def vit_yolo_forward(pixel_values, packed):
    b, c, h, w = pixel_values.shape
    assert b == 1, "forward() does .view(1, -1) => batch must be 1"
    gh, gw = h // PATCH, w // PATCH

    # --- patchify (NCHW, stride==kernel conv as matmul) + SEQ padding ---
    px = pixel_values[0]
    patches = px.reshape(c, gh, PATCH, gw, PATCH)
    patches = patches.transpose(1, 3, 0, 2, 4).reshape(gh * gw, c * PATCH * PATCH)
    # row 0 (CLS slot) and rows SEQ..SEQ_PAD-1 are zero
    patches_pad = jnp.pad(
        patches, ((1, SEQ_PAD - SEQ), (0, 0))).astype(jnp.bfloat16)

    # Whole-array VMEM residency (no grid -> no pointless double-buffering);
    # hw2 (last input) stays in ANY/HBM and is streamed manually in-kernel.
    in_specs = ([pl.BlockSpec(memory_space=pltpu.MemorySpace.VMEM)] * len(packed)
                + [pl.BlockSpec(memory_space=pl.ANY)])

    out_pad = pl.pallas_call(
        _vit_yolo_kernel,
        out_shape=jax.ShapeDtypeStruct((1, YOLO_PAD), jnp.float32),
        in_specs=in_specs,
        out_specs=pl.BlockSpec(memory_space=pltpu.MemorySpace.VMEM),
        scratch_shapes=[
            pltpu.VMEM((HEAD_HIDDEN, YOLO_PAD), jnp.bfloat16),
            pltpu.SemaphoreType.DMA,
        ],
    )(patches_pad, *packed)

    return out_pad[:, :YOLO_OUT].reshape(-1, 7, 7, 30)


# ----------------------------------- main -------------------------------------
if __name__ == "__main__":
    key = jax.random.PRNGKey(0)
    k_params, k_input = jax.random.split(key)
    params = init_params(k_params)
    packed = prepare_params(params)          # one-time packing (hoisted out of forward)
    pixel_values = jax.random.normal(
        k_input, (BATCH, CHANNELS, IMAGE, IMAGE), dtype=jnp.float32)

    out = vit_yolo_forward(pixel_values, packed)
    out = jax.block_until_ready(out)
    assert out.shape == (1, 7, 7, 30), out.shape
    assert jnp.all(jnp.isfinite(out))
    print("KERNEL_OK")
</pallas_src>

<mosaic_0001>
module attributes {stable_mosaic.version = 11 : i64} {
  func.func @_vit_yolo_kernel(%arg0: memref<8x768xbf16, #tpu.memory_space<vmem>>, %arg1: memref<768x32xbf16, #tpu.memory_space<vmem>>, %arg2: memref<8x32xf32, #tpu.memory_space<vmem>>, %arg3: memref<8x8xf32, #tpu.memory_space<vmem>>, %arg4: memref<2x1x32xf32, #tpu.memory_space<vmem>>, %arg5: memref<2x1x32xf32, #tpu.memory_space<vmem>>, %arg6: memref<2x32x96xbf16, #tpu.memory_space<vmem>>, %arg7: memref<2x1x96xf32, #tpu.memory_space<vmem>>, %arg8: memref<2x4x8x32xbf16, #tpu.memory_space<vmem>>, %arg9: memref<2x1x32xf32, #tpu.memory_space<vmem>>, %arg10: memref<2x1x32xf32, #tpu.memory_space<vmem>>, %arg11: memref<2x1x32xf32, #tpu.memory_space<vmem>>, %arg12: memref<2x32x128xbf16, #tpu.memory_space<vmem>>, %arg13: memref<2x1x128xf32, #tpu.memory_space<vmem>>, %arg14: memref<2x128x32xbf16, #tpu.memory_space<vmem>>, %arg15: memref<2x1x32xf32, #tpu.memory_space<vmem>>, %arg16: memref<1x32xf32, #tpu.memory_space<vmem>>, %arg17: memref<1x32xf32, #tpu.memory_space<vmem>>, %arg18: memref<5x32x128xbf16, #tpu.memory_space<vmem>>, %arg19: memref<1x128xf32, #tpu.memory_space<vmem>>, %arg20: memref<1x1536xf32, #tpu.memory_space<vmem>>, %arg21: memref<128x1536xbf16, #tpu.memory_space<any>>, %arg22: memref<1x1536xf32, #tpu.memory_space<vmem>>, %arg23: memref<128x1536xbf16, #tpu.memory_space<vmem>>, %arg24: memref<!tpu.dma_semaphore, #tpu.memory_space<semaphore_mem>>) attributes {dimension_semantics = [], scalar_prefetch = 0 : i64, scratch_operands = 2 : i64, tpu.core_type = #tpu.core_type<tc>} {
    tpu.enqueue_dma source(%arg21 : memref<128x1536xbf16, #tpu.memory_space<any>>) target(%arg23 : memref<128x1536xbf16, #tpu.memory_space<vmem>>) target_semaphore(%arg24 : memref<!tpu.dma_semaphore, #tpu.memory_space<semaphore_mem>>)
    %c0 = arith.constant 0 : index
    %c0_0 = arith.constant 0 : index
    %0 = vector.load %arg0[%c0, %c0_0] : memref<8x768xbf16, #tpu.memory_space<vmem>>, vector<8x768xbf16>
    %c0_1 = arith.constant 0 : index
    %c0_2 = arith.constant 0 : index
    %1 = vector.load %arg1[%c0_1, %c0_2] : memref<768x32xbf16, #tpu.memory_space<vmem>>, vector<768x32xbf16>
    %cst = arith.constant dense<0.000000e+00> : vector<8x32xf32>
    %2 = tpu.matmul %0, %1, %cst {dimension_numbers = #tpu.dot_dimension_numbers<[1], [0], [0], [1], [0, 0, 1, 1], [], []>} : vector<8x768xbf16>, vector<768x32xbf16>, vector<8x32xf32> -> vector<8x32xf32>
    %c0_3 = arith.constant 0 : index
    %c0_4 = arith.constant 0 : index
    %3 = vector.load %arg2[%c0_3, %c0_4] : memref<8x32xf32, #tpu.memory_space<vmem>>, vector<8x32xf32>
    %4 = arith.addf %2, %3 : vector<8x32xf32>
    %c0_5 = arith.constant 0 : index
    %c0_6 = arith.constant 0 : index
    %5 = vector.load %arg3[%c0_5, %c0_6] : memref<8x8xf32, #tpu.memory_space<vmem>>, vector<8x8xf32>
    %c0_7 = arith.constant 0 : index
    %c0_8 = arith.constant 0 : index
    %c0_9 = arith.constant 0 : index
    %6 = vector.load %arg4[%c0_7, %c0_8, %c0_9] : memref<2x1x32xf32, #tpu.memory_space<vmem>>, vector<1x1x32xf32>
    %7 = vector.shape_cast %6 : vector<1x1x32xf32> to vector<1x32xf32>
    %c0_10 = arith.constant 0 : index
    %c0_11 = arith.constant 0 : index
    %c0_12 = arith.constant 0 : index
    %8 = vector.load %arg5[%c0_10, %c0_11, %c0_12] : memref<2x1x32xf32, #tpu.memory_space<vmem>>, vector<1x1x32xf32>
    %9 = vector.shape_cast %8 : vector<1x1x32xf32> to vector<1x32xf32>
    %cst_13 = arith.constant dense<0.000000e+00> : vector<8xf32>
    %10 = vector.multi_reduction <add>, %4, %cst_13 [1] : vector<8x32xf32> to vector<8xf32>
    %11 = vector.shape_cast %10 : vector<8xf32> to vector<8x1xf32>
    %cst_14 = arith.constant 3.200000e+01 : f32
    %12 = vector.broadcast %cst_14 : f32 to vector<8x1xf32>
    %13 = arith.divf %11, %12 : vector<8x1xf32>
    %14 = vector.broadcast %13 : vector<8x1xf32> to vector<8x32xf32>
    %15 = arith.subf %4, %14 : vector<8x32xf32>
    %16 = vector.broadcast %13 : vector<8x1xf32> to vector<8x32xf32>
    %17 = arith.subf %4, %16 : vector<8x32xf32>
    %18 = arith.mulf %15, %17 : vector<8x32xf32>
    %cst_15 = arith.constant dense<0.000000e+00> : vector<8xf32>
    %19 = vector.multi_reduction <add>, %18, %cst_15 [1] : vector<8x32xf32> to vector<8xf32>
    %20 = vector.shape_cast %19 : vector<8xf32> to vector<8x1xf32>
    %cst_16 = arith.constant 3.200000e+01 : f32
    %21 = vector.broadcast %cst_16 : f32 to vector<8x1xf32>
    %22 = arith.divf %20, %21 : vector<8x1xf32>
    %23 = vector.broadcast %13 : vector<8x1xf32> to vector<8x32xf32>
    %24 = arith.subf %4, %23 : vector<8x32xf32>
    %cst_17 = arith.constant 9.99999996E-13 : f32
    %25 = vector.broadcast %cst_17 : f32 to vector<8x1xf32>
    %26 = arith.addf %22, %25 : vector<8x1xf32>
    %27 = math.rsqrt %26 : vector<8x1xf32>
    %28 = vector.broadcast %27 : vector<8x1xf32> to vector<8x32xf32>
    %29 = arith.mulf %24, %28 : vector<8x32xf32>
    %30 = vector.broadcast %7 : vector<1x32xf32> to vector<8x32xf32>
    %31 = arith.mulf %29, %30 : vector<8x32xf32>
    %32 = vector.broadcast %9 : vector<1x32xf32> to vector<8x32xf32>
    %33 = arith.addf %31, %32 : vector<8x32xf32>
    %34 = arith.truncf %33 : vector<8x32xf32> to vector<8x32xbf16>
    %c0_18 = arith.constant 0 : index
    %c0_19 = arith.constant 0 : index
    %c0_20 = arith.constant 0 : index
    %35 = vector.load %arg6[%c0_18, %c0_19, %c0_20] : memref<2x32x96xbf16, #tpu.memory_space<vmem>>, vector<1x32x96xbf16>
    %36 = vector.shape_cast %35 : vector<1x32x96xbf16> to vector<32x96xbf16>
    %cst_21 = arith.constant dense<0.000000e+00> : vector<8x96xf32>
    %37 = tpu.matmul %34, %36, %cst_21 {dimension_numbers = #tpu.dot_dimension_numbers<[1], [0], [0], [1], [0, 0, 1, 1], [], []>} : vector<8x32xbf16>, vector<32x96xbf16>, vector<8x96xf32> -> vector<8x96xf32>
    %c0_22 = arith.constant 0 : index
    %c0_23 = arith.constant 0 : index
    %c0_24 = arith.constant 0 : index
    %38 = vector.load %arg7[%c0_22, %c0_23, %c0_24] : memref<2x1x96xf32, #tpu.memory_space<vmem>>, vector<1x1x96xf32>
    %39 = vector.shape_cast %38 : vector<1x1x96xf32> to vector<1x96xf32>
    %40 = vector.broadcast %39 : vector<1x96xf32> to vector<8x96xf32>
    %41 = arith.addf %37, %40 : vector<8x96xf32>
    %c0_25 = arith.constant 0 : index
    %c0_26 = arith.constant 0 : index
    %c0_27 = arith.constant 0 : index
    %42 = vector.load %arg9[%c0_25, %c0_26, %c0_27] : memref<2x1x32xf32, #tpu.memory_space<vmem>>, vector<1x1x32xf32>
    %43 = vector.shape_cast %42 : vector<1x1x32xf32> to vector<1x32xf32>
    %44 = vector.extract_strided_slice %41 {offsets = [0, 0], sizes = [8, 8], strides = [1, 1]} : vector<8x96xf32> to vector<8x8xf32>
    %45 = arith.truncf %44 : vector<8x8xf32> to vector<8x8xbf16>
    %46 = vector.extract_strided_slice %41 {offsets = [0, 32], sizes = [8, 8], strides = [1, 1]} : vector<8x96xf32> to vector<8x8xf32>
    %47 = arith.truncf %46 : vector<8x8xf32> to vector<8x8xbf16>
    %48 = vector.extract_strided_slice %41 {offsets = [0, 64], sizes = [8, 8], strides = [1, 1]} : vector<8x96xf32> to vector<8x8xf32>
    %49 = arith.truncf %48 : vector<8x8xf32> to vector<8x8xbf16>
    %cst_28 = arith.constant dense<0.000000e+00> : vector<8x8xf32>
    %50 = tpu.matmul %45, %47, %cst_28 {dimension_numbers = #tpu.dot_dimension_numbers<[1], [1], [0], [0], [0, 0, 1, 0], [], []>} : vector<8x8xbf16>, vector<8x8xbf16>, vector<8x8xf32> -> vector<8x8xf32>
    %cst_29 = arith.constant 0.353553385 : f32
    %51 = vector.broadcast %cst_29 : f32 to vector<8x8xf32>
    %52 = arith.mulf %50, %51 : vector<8x8xf32>
    %53 = arith.addf %52, %5 : vector<8x8xf32>
    %cst_30 = arith.constant dense<0xFF800000> : vector<8xf32>
    %54 = vector.multi_reduction <maximumf>, %53, %cst_30 [1] : vector<8x8xf32> to vector<8xf32>
    %55 = vector.shape_cast %54 : vector<8xf32> to vector<8x1xf32>
    %56 = vector.broadcast %55 : vector<8x1xf32> to vector<8x8xf32>
    %57 = arith.subf %53, %56 : vector<8x8xf32>
    %58 = math.exp %57 : vector<8x8xf32>
    %cst_31 = arith.constant dense<0.000000e+00> : vector<8xf32>
    %59 = vector.multi_reduction <add>, %58, %cst_31 [1] : vector<8x8xf32> to vector<8xf32>
    %60 = vector.shape_cast %59 : vector<8xf32> to vector<8x1xf32>
    %61 = tpu.reciprocal %60 {approx = true} : vector<8x1xf32> -> vector<8x1xf32>
    %62 = vector.broadcast %61 : vector<8x1xf32> to vector<8x8xf32>
    %63 = arith.mulf %58, %62 : vector<8x8xf32>
    %64 = arith.truncf %63 : vector<8x8xf32> to vector<8x8xbf16>
    %cst_32 = arith.constant dense<0.000000e+00> : vector<8x8xf32>
    %65 = tpu.matmul %64, %49, %cst_32 {dimension_numbers = #tpu.dot_dimension_numbers<[1], [0], [0], [1], [0, 0, 1, 1], [], []>} : vector<8x8xbf16>, vector<8x8xbf16>, vector<8x8xf32> -> vector<8x8xf32>
    %66 = arith.truncf %65 : vector<8x8xf32> to vector<8x8xbf16>
    %c0_33 = arith.constant 0 : index
    %c0_34 = arith.constant 0 : index
    %c0_35 = arith.constant 0 : index
    %c0_36 = arith.constant 0 : index
    %67 = vector.load %arg8[%c0_33, %c0_34, %c0_35, %c0_36] : memref<2x4x8x32xbf16, #tpu.memory_space<vmem>>, vector<1x1x8x32xbf16>
    %68 = vector.shape_cast %67 : vector<1x1x8x32xbf16> to vector<8x32xbf16>
    %cst_37 = arith.constant dense<0.000000e+00> : vector<8x32xf32>
    %69 = tpu.matmul %66, %68, %cst_37 {dimension_numbers = #tpu.dot_dimension_numbers<[1], [0], [0], [1], [0, 0, 1, 1], [], []>} : vector<8x8xbf16>, vector<8x32xbf16>, vector<8x32xf32> -> vector<8x32xf32>
    %70 = vector.broadcast %43 : vector<1x32xf32> to vector<8x32xf32>
    %71 = arith.addf %70, %69 : vector<8x32xf32>
    %72 = vector.extract_strided_slice %41 {offsets = [0, 8], sizes = [8, 8], strides = [1, 1]} : vector<8x96xf32> to vector<8x8xf32>
    %73 = arith.truncf %72 : vector<8x8xf32> to vector<8x8xbf16>
    %74 = vector.extract_strided_slice %41 {offsets = [0, 40], sizes = [8, 8], strides = [1, 1]} : vector<8x96xf32> to vector<8x8xf32>
    %75 = arith.truncf %74 : vector<8x8xf32> to vector<8x8xbf16>
    %76 = vector.extract_strided_slice %41 {offsets = [0, 72], sizes = [8, 8], strides = [1, 1]} : vector<8x96xf32> to vector<8x8xf32>
    %77 = arith.truncf %76 : vector<8x8xf32> to vector<8x8xbf16>
    %cst_38 = arith.constant dense<0.000000e+00> : vector<8x8xf32>
    %78 = tpu.matmul %73, %75, %cst_38 {dimension_numbers = #tpu.dot_dimension_numbers<[1], [1], [0], [0], [0, 0, 1, 0], [], []>} : vector<8x8xbf16>, vector<8x8xbf16>, vector<8x8xf32> -> vector<8x8xf32>
    %cst_39 = arith.constant 0.353553385 : f32
    %79 = vector.broadcast %cst_39 : f32 to vector<8x8xf32>
    %80 = arith.mulf %78, %79 : vector<8x8xf32>
    %81 = arith.addf %80, %5 : vector<8x8xf32>
    %cst_40 = arith.constant dense<0xFF800000> : vector<8xf32>
    %82 = vector.multi_reduction <maximumf>, %81, %cst_40 [1] : vector<8x8xf32> to vector<8xf32>
    %83 = vector.shape_cast %82 : vector<8xf32> to vector<8x1xf32>
    %84 = vector.broadcast %83 : vector<8x1xf32> to vector<8x8xf32>
    %85 = arith.subf %81, %84 : vector<8x8xf32>
    %86 = math.exp %85 : vector<8x8xf32>
    %cst_41 = arith.constant dense<0.000000e+00> : vector<8xf32>
    %87 = vector.multi_reduction <add>, %86, %cst_41 [1] : vector<8x8xf32> to vector<8xf32>
    %88 = vector.shape_cast %87 : vector<8xf32> to vector<8x1xf32>
    %89 = tpu.reciprocal %88 {approx = true} : vector<8x1xf32> -> vector<8x1xf32>
    %90 = vector.broadcast %89 : vector<8x1xf32> to vector<8x8xf32>
    %91 = arith.mulf %86, %90 : vector<8x8xf32>
    %92 = arith.truncf %91 : vector<8x8xf32> to vector<8x8xbf16>
    %cst_42 = arith.constant dense<0.000000e+00> : vector<8x8xf32>
    %93 = tpu.matmul %92, %77, %cst_42 {dimension_numbers = #tpu.dot_dimension_numbers<[1], [0], [0], [1], [0, 0, 1, 1], [], []>} : vector<8x8xbf16>, vector<8x8xbf16>, vector<8x8xf32> -> vector<8x8xf32>
    %94 = arith.truncf %93 : vector<8x8xf32> to vector<8x8xbf16>
    %c0_43 = arith.constant 0 : index
    %c1 = arith.constant 1 : index
    %c0_44 = arith.constant 0 : index
    %c0_45 = arith.constant 0 : index
    %95 = vector.load %arg8[%c0_43, %c1, %c0_44, %c0_45] : memref<2x4x8x32xbf16, #tpu.memory_space<vmem>>, vector<1x1x8x32xbf16>
    %96 = vector.shape_cast %95 : vector<1x1x8x32xbf16> to vector<8x32xbf16>
    %cst_46 = arith.constant dense<0.000000e+00> : vector<8x32xf32>
    %97 = tpu.matmul %94, %96, %cst_46 {dimension_numbers = #tpu.dot_dimension_numbers<[1], [0], [0], [1], [0, 0, 1, 1], [], []>} : vector<8x8xbf16>, vector<8x32xbf16>, vector<8x32xf32> -> vector<8x32xf32>
    %98 = arith.addf %71, %97 : vector<8x32xf32>
    %99 = vector.extract_strided_slice %41 {offsets = [0, 16], sizes = [8, 8], strides = [1, 1]} : vector<8x96xf32> to vector<8x8xf32>
    %100 = arith.truncf %99 : vector<8x8xf32> to vector<8x8xbf16>
    %101 = vector.extract_strided_slice %41 {offsets = [0, 48], sizes = [8, 8], strides = [1, 1]} : vector<8x96xf32> to vector<8x8xf32>
    %102 = arith.truncf %101 : vector<8x8xf32> to vector<8x8xbf16>
    %103 = vector.extract_strided_slice %41 {offsets = [0, 80], sizes = [8, 8], strides = [1, 1]} : vector<8x96xf32> to vector<8x8xf32>
    %104 = arith.truncf %103 : vector<8x8xf32> to vector<8x8xbf16>
    %cst_47 = arith.constant dense<0.000000e+00> : vector<8x8xf32>
    %105 = tpu.matmul %100, %102, %cst_47 {dimension_numbers = #tpu.dot_dimension_numbers<[1], [1], [0], [0], [0, 0, 1, 0], [], []>} : vector<8x8xbf16>, vector<8x8xbf16>, vector<8x8xf32> -> vector<8x8xf32>
    %cst_48 = arith.constant 0.353553385 : f32
    %106 = vector.broadcast %cst_48 : f32 to vector<8x8xf32>
    %107 = arith.mulf %105, %106 : vector<8x8xf32>
    %108 = arith.addf %107, %5 : vector<8x8xf32>
    %cst_49 = arith.constant dense<0xFF800000> : vector<8xf32>
    %109 = vector.multi_reduction <maximumf>, %108, %cst_49 [1] : vector<8x8xf32> to vector<8xf32>
    %110 = vector.shape_cast %109 : vector<8xf32> to vector<8x1xf32>
    %111 = vector.broadcast %110 : vector<8x1xf32> to vector<8x8xf32>
    %112 = arith.subf %108, %111 : vector<8x8xf32>
    %113 = math.exp %112 : vector<8x8xf32>
    %cst_50 = arith.constant dense<0.000000e+00> : vector<8xf32>
    %114 = vector.multi_reduction <add>, %113, %cst_50 [1] : vector<8x8xf32> to vector<8xf32>
    %115 = vector.shape_cast %114 : vector<8xf32> to vector<8x1xf32>
    %116 = tpu.reciprocal %115 {approx = true} : vector<8x1xf32> -> vector<8x1xf32>
    %117 = vector.broadcast %116 : vector<8x1xf32> to vector<8x8xf32>
    %118 = arith.mulf %113, %117 : vector<8x8xf32>
    %119 = arith.truncf %118 : vector<8x8xf32> to vector<8x8xbf16>
    %cst_51 = arith.constant dense<0.000000e+00> : vector<8x8xf32>
    %120 = tpu.matmul %119, %104, %cst_51 {dimension_numbers = #tpu.dot_dimension_numbers<[1], [0], [0], [1], [0, 0, 1, 1], [], []>} : vector<8x8xbf16>, vector<8x8xbf16>, vector<8x8xf32> -> vector<8x8xf32>
    %121 = arith.truncf %120 : vector<8x8xf32> to vector<8x8xbf16>
    %c0_52 = arith.constant 0 : index
    %c2 = arith.constant 2 : index
    %c0_53 = arith.constant 0 : index
    %c0_54 = arith.constant 0 : index
    %122 = vector.load %arg8[%c0_52, %c2, %c0_53, %c0_54] : memref<2x4x8x32xbf16, #tpu.memory_space<vmem>>, vector<1x1x8x32xbf16>
    %123 = vector.shape_cast %122 : vector<1x1x8x32xbf16> to vector<8x32xbf16>
    %cst_55 = arith.constant dense<0.000000e+00> : vector<8x32xf32>
    %124 = tpu.matmul %121, %123, %cst_55 {dimension_numbers = #tpu.dot_dimension_numbers<[1], [0], [0], [1], [0, 0, 1, 1], [], []>} : vector<8x8xbf16>, vector<8x32xbf16>, vector<8x32xf32> -> vector<8x32xf32>
    %125 = arith.addf %98, %124 : vector<8x32xf32>
    %126 = vector.extract_strided_slice %41 {offsets = [0, 24], sizes = [8, 8], strides = [1, 1]} : vector<8x96xf32> to vector<8x8xf32>
    %127 = arith.truncf %126 : vector<8x8xf32> to vector<8x8xbf16>
    %128 = vector.extract_strided_slice %41 {offsets = [0, 56], sizes = [8, 8], strides = [1, 1]} : vector<8x96xf32> to vector<8x8xf32>
    %129 = arith.truncf %128 : vector<8x8xf32> to vector<8x8xbf16>
    %130 = vector.extract_strided_slice %41 {offsets = [0, 88], sizes = [8, 8], strides = [1, 1]} : vector<8x96xf32> to vector<8x8xf32>
    %131 = arith.truncf %130 : vector<8x8xf32> to vector<8x8xbf16>
    %cst_56 = arith.constant dense<0.000000e+00> : vector<8x8xf32>
    %132 = tpu.matmul %127, %129, %cst_56 {dimension_numbers = #tpu.dot_dimension_numbers<[1], [1], [0], [0], [0, 0, 1, 0], [], []>} : vector<8x8xbf16>, vector<8x8xbf16>, vector<8x8xf32> -> vector<8x8xf32>
    %cst_57 = arith.constant 0.353553385 : f32
    %133 = vector.broadcast %cst_57 : f32 to vector<8x8xf32>
    %134 = arith.mulf %132, %133 : vector<8x8xf32>
    %135 = arith.addf %134, %5 : vector<8x8xf32>
    %cst_58 = arith.constant dense<0xFF800000> : vector<8xf32>
    %136 = vector.multi_reduction <maximumf>, %135, %cst_58 [1] : vector<8x8xf32> to vector<8xf32>
    %137 = vector.shape_cast %136 : vector<8xf32> to vector<8x1xf32>
    %138 = vector.broadcast %137 : vector<8x1xf32> to vector<8x8xf32>
    %139 = arith.subf %135, %138 : vector<8x8xf32>
    %140 = math.exp %139 : vector<8x8xf32>
    %cst_59 = arith.constant dense<0.000000e+00> : vector<8xf32>
    %141 = vector.multi_reduction <add>, %140, %cst_59 [1] : vector<8x8xf32> to vector<8xf32>
    %142 = vector.shape_cast %141 : vector<8xf32> to vector<8x1xf32>
    %143 = tpu.reciprocal %142 {approx = true} : vector<8x1xf32> -> vector<8x1xf32>
    %144 = vector.broadcast %143 : vector<8x1xf32> to vector<8x8xf32>
    %145 = arith.mulf %140, %144 : vector<8x8xf32>
    %146 = arith.truncf %145 : vector<8x8xf32> to vector<8x8xbf16>
    %cst_60 = arith.constant dense<0.000000e+00> : vector<8x8xf32>
    %147 = tpu.matmul %146, %131, %cst_60 {dimension_numbers = #tpu.dot_dimension_numbers<[1], [0], [0], [1], [0, 0, 1, 1], [], []>} : vector<8x8xbf16>, vector<8x8xbf16>, vector<8x8xf32> -> vector<8x8xf32>
    %148 = arith.truncf %147 : vector<8x8xf32> to vector<8x8xbf16>
    %c0_61 = arith.constant 0 : index
    %c3 = arith.constant 3 : index
    %c0_62 = arith.constant 0 : index
    %c0_63 = arith.constant 0 : index
    %149 = vector.load %arg8[%c0_61, %c3, %c0_62, %c0_63] : memref<2x4x8x32xbf16, #tpu.memory_space<vmem>>, vector<1x1x8x32xbf16>
    %150 = vector.shape_cast %149 : vector<1x1x8x32xbf16> to vector<8x32xbf16>
    %cst_64 = arith.constant dense<0.000000e+00> : vector<8x32xf32>
    %151 = tpu.matmul %148, %150, %cst_64 {dimension_numbers = #tpu.dot_dimension_numbers<[1], [0], [0], [1], [0, 0, 1, 1], [], []>} : vector<8x8xbf16>, vector<8x32xbf16>, vector<8x32xf32> -> vector<8x32xf32>
    %152 = arith.addf %125, %151 : vector<8x32xf32>
    %153 = arith.addf %4, %152 : vector<8x32xf32>
    %c0_65 = arith.constant 0 : index
    %c0_66 = arith.constant 0 : index
    %c0_67 = arith.constant 0 : index
    %154 = vector.load %arg10[%c0_65, %c0_66, %c0_67] : memref<2x1x32xf32, #tpu.memory_space<vmem>>, vector<1x1x32xf32>
    %155 = vector.shape_cast %154 : vector<1x1x32xf32> to vector<1x32xf32>
    %c0_68 = arith.constant 0 : index
    %c0_69 = arith.constant 0 : index
    %c0_70 = arith.constant 0 : index
    %156 = vector.load %arg11[%c0_68, %c0_69, %c0_70] : memref<2x1x32xf32, #tpu.memory_space<vmem>>, vector<1x1x32xf32>
    %157 = vector.shape_cast %156 : vector<1x1x32xf32> to vector<1x32xf32>
    %cst_71 = arith.constant dense<0.000000e+00> : vector<8xf32>
    %158 = vector.multi_reduction <add>, %153, %cst_71 [1] : vector<8x32xf32> to vector<8xf32>
    %159 = vector.shape_cast %158 : vector<8xf32> to vector<8x1xf32>
    %cst_72 = arith.constant 3.200000e+01 : f32
    %160 = vector.broadcast %cst_72 : f32 to vector<8x1xf32>
    %161 = arith.divf %159, %160 : vector<8x1xf32>
    %162 = vector.broadcast %161 : vector<8x1xf32> to vector<8x32xf32>
    %163 = arith.subf %153, %162 : vector<8x32xf32>
    %164 = vector.broadcast %161 : vector<8x1xf32> to vector<8x32xf32>
    %165 = arith.subf %153, %164 : vector<8x32xf32>
    %166 = arith.mulf %163, %165 : vector<8x32xf32>
    %cst_73 = arith.constant dense<0.000000e+00> : vector<8xf32>
    %167 = vector.multi_reduction <add>, %166, %cst_73 [1] : vector<8x32xf32> to vector<8xf32>
    %168 = vector.shape_cast %167 : vector<8xf32> to vector<8x1xf32>
    %cst_74 = arith.constant 3.200000e+01 : f32
    %169 = vector.broadcast %cst_74 : f32 to vector<8x1xf32>
    %170 = arith.divf %168, %169 : vector<8x1xf32>
    %171 = vector.broadcast %161 : vector<8x1xf32> to vector<8x32xf32>
    %172 = arith.subf %153, %171 : vector<8x32xf32>
    %cst_75 = arith.constant 9.99999996E-13 : f32
    %173 = vector.broadcast %cst_75 : f32 to vector<8x1xf32>
    %174 = arith.addf %170, %173 : vector<8x1xf32>
    %175 = math.rsqrt %174 : vector<8x1xf32>
    %176 = vector.broadcast %175 : vector<8x1xf32> to vector<8x32xf32>
    %177 = arith.mulf %172, %176 : vector<8x32xf32>
    %178 = vector.broadcast %155 : vector<1x32xf32> to vector<8x32xf32>
    %179 = arith.mulf %177, %178 : vector<8x32xf32>
    %180 = vector.broadcast %157 : vector<1x32xf32> to vector<8x32xf32>
    %181 = arith.addf %179, %180 : vector<8x32xf32>
    %182 = arith.truncf %181 : vector<8x32xf32> to vector<8x32xbf16>
    %c0_76 = arith.constant 0 : index
    %c0_77 = arith.constant 0 : index
    %c0_78 = arith.constant 0 : index
    %183 = vector.load %arg12[%c0_76, %c0_77, %c0_78] : memref<2x32x128xbf16, #tpu.memory_space<vmem>>, vector<1x32x128xbf16>
    %184 = vector.shape_cast %183 : vector<1x32x128xbf16> to vector<32x128xbf16>
    %cst_79 = arith.constant dense<0.000000e+00> : vector<8x128xf32>
    %185 = tpu.matmul %182, %184, %cst_79 {dimension_numbers = #tpu.dot_dimension_numbers<[1], [0], [0], [1], [0, 0, 1, 1], [], []>} : vector<8x32xbf16>, vector<32x128xbf16>, vector<8x128xf32> -> vector<8x128xf32>
    %c0_80 = arith.constant 0 : index
    %c0_81 = arith.constant 0 : index
    %c0_82 = arith.constant 0 : index
    %186 = vector.load %arg13[%c0_80, %c0_81, %c0_82] : memref<2x1x128xf32, #tpu.memory_space<vmem>>, vector<1x1x128xf32>
    %187 = vector.shape_cast %186 : vector<1x1x128xf32> to vector<1x128xf32>
    %188 = vector.broadcast %187 : vector<1x128xf32> to vector<8x128xf32>
    %189 = arith.addf %185, %188 : vector<8x128xf32>
    %cst_83 = arith.constant 5.000000e-01 : f32
    %190 = vector.broadcast %cst_83 : f32 to vector<8x128xf32>
    %191 = arith.mulf %190, %189 : vector<8x128xf32>
    %cst_84 = arith.constant 0.707106769 : f32
    %192 = vector.broadcast %cst_84 : f32 to vector<8x128xf32>
    %193 = arith.mulf %189, %192 : vector<8x128xf32>
    %194 = math.erf %193 : vector<8x128xf32>
    %cst_85 = arith.constant 1.000000e+00 : f32
    %195 = vector.broadcast %cst_85 : f32 to vector<8x128xf32>
    %196 = arith.addf %195, %194 : vector<8x128xf32>
    %197 = arith.mulf %191, %196 : vector<8x128xf32>
    %198 = arith.truncf %197 : vector<8x128xf32> to vector<8x128xbf16>
    %c0_86 = arith.constant 0 : index
    %c0_87 = arith.constant 0 : index
    %c0_88 = arith.constant 0 : index
    %199 = vector.load %arg14[%c0_86, %c0_87, %c0_88] : memref<2x128x32xbf16, #tpu.memory_space<vmem>>, vector<1x128x32xbf16>
    %200 = vector.shape_cast %199 : vector<1x128x32xbf16> to vector<128x32xbf16>
    %cst_89 = arith.constant dense<0.000000e+00> : vector<8x32xf32>
    %201 = tpu.matmul %198, %200, %cst_89 {dimension_numbers = #tpu.dot_dimension_numbers<[1], [0], [0], [1], [0, 0, 1, 1], [], []>} : vector<8x128xbf16>, vector<128x32xbf16>, vector<8x32xf32> -> vector<8x32xf32>
    %c0_90 = arith.constant 0 : index
    %c0_91 = arith.constant 0 : index
    %c0_92 = arith.constant 0 : index
    %202 = vector.load %arg15[%c0_90, %c0_91, %c0_92] : memref<2x1x32xf32, #tpu.memory_space<vmem>>, vector<1x1x32xf32>
    %203 = vector.shape_cast %202 : vector<1x1x32xf32> to vector<1x32xf32>
    %204 = vector.broadcast %203 : vector<1x32xf32> to vector<8x32xf32>
    %205 = arith.addf %201, %204 : vector<8x32xf32>
    %206 = arith.addf %153, %205 : vector<8x32xf32>
    %c1_93 = arith.constant 1 : index
    %c0_94 = arith.constant 0 : index
    %c0_95 = arith.constant 0 : index
    %207 = vector.load %arg4[%c1_93, %c0_94, %c0_95] : memref<2x1x32xf32, #tpu.memory_space<vmem>>, vector<1x1x32xf32>
    %208 = vector.shape_cast %207 : vector<1x1x32xf32> to vector<1x32xf32>
    %c1_96 = arith.constant 1 : index
    %c0_97 = arith.constant 0 : index
    %c0_98 = arith.constant 0 : index
    %209 = vector.load %arg5[%c1_96, %c0_97, %c0_98] : memref<2x1x32xf32, #tpu.memory_space<vmem>>, vector<1x1x32xf32>
    %210 = vector.shape_cast %209 : vector<1x1x32xf32> to vector<1x32xf32>
    %cst_99 = arith.constant dense<0.000000e+00> : vector<8xf32>
    %211 = vector.multi_reduction <add>, %206, %cst_99 [1] : vector<8x32xf32> to vector<8xf32>
    %212 = vector.shape_cast %211 : vector<8xf32> to vector<8x1xf32>
    %cst_100 = arith.constant 3.200000e+01 : f32
    %213 = vector.broadcast %cst_100 : f32 to vector<8x1xf32>
    %214 = arith.divf %212, %213 : vector<8x1xf32>
    %215 = vector.broadcast %214 : vector<8x1xf32> to vector<8x32xf32>
    %216 = arith.subf %206, %215 : vector<8x32xf32>
    %217 = vector.broadcast %214 : vector<8x1xf32> to vector<8x32xf32>
    %218 = arith.subf %206, %217 : vector<8x32xf32>
    %219 = arith.mulf %216, %218 : vector<8x32xf32>
    %cst_101 = arith.constant dense<0.000000e+00> : vector<8xf32>
    %220 = vector.multi_reduction <add>, %219, %cst_101 [1] : vector<8x32xf32> to vector<8xf32>
    %221 = vector.shape_cast %220 : vector<8xf32> to vector<8x1xf32>
    %cst_102 = arith.constant 3.200000e+01 : f32
    %222 = vector.broadcast %cst_102 : f32 to vector<8x1xf32>
    %223 = arith.divf %221, %222 : vector<8x1xf32>
    %224 = vector.broadcast %214 : vector<8x1xf32> to vector<8x32xf32>
    %225 = arith.subf %206, %224 : vector<8x32xf32>
    %cst_103 = arith.constant 9.99999996E-13 : f32
    %226 = vector.broadcast %cst_103 : f32 to vector<8x1xf32>
    %227 = arith.addf %223, %226 : vector<8x1xf32>
    %228 = math.rsqrt %227 : vector<8x1xf32>
    %229 = vector.broadcast %228 : vector<8x1xf32> to vector<8x32xf32>
    %230 = arith.mulf %225, %229 : vector<8x32xf32>
    %231 = vector.broadcast %208 : vector<1x32xf32> to vector<8x32xf32>
    %232 = arith.mulf %230, %231 : vector<8x32xf32>
    %233 = vector.broadcast %210 : vector<1x32xf32> to vector<8x32xf32>
    %234 = arith.addf %232, %233 : vector<8x32xf32>
    %235 = arith.truncf %234 : vector<8x32xf32> to vector<8x32xbf16>
    %c1_104 = arith.constant 1 : index
    %c0_105 = arith.constant 0 : index
    %c0_106 = arith.constant 0 : index
    %236 = vector.load %arg6[%c1_104, %c0_105, %c0_106] : memref<2x32x96xbf16, #tpu.memory_space<vmem>>, vector<1x32x96xbf16>
    %237 = vector.shape_cast %236 : vector<1x32x96xbf16> to vector<32x96xbf16>
    %cst_107 = arith.constant dense<0.000000e+00> : vector<8x96xf32>
    %238 = tpu.matmul %235, %237, %cst_107 {dimension_numbers = #tpu.dot_dimension_numbers<[1], [0], [0], [1], [0, 0, 1, 1], [], []>} : vector<8x32xbf16>, vector<32x96xbf16>, vector<8x96xf32> -> vector<8x96xf32>
    %c1_108 = arith.constant 1 : index
    %c0_109 = arith.constant 0 : index
    %c0_110 = arith.constant 0 : index
    %239 = vector.load %arg7[%c1_108, %c0_109, %c0_110] : memref<2x1x96xf32, #tpu.memory_space<vmem>>, vector<1x1x96xf32>
    %240 = vector.shape_cast %239 : vector<1x1x96xf32> to vector<1x96xf32>
    %241 = vector.broadcast %240 : vector<1x96xf32> to vector<8x96xf32>
    %242 = arith.addf %238, %241 : vector<8x96xf32>
    %c1_111 = arith.constant 1 : index
    %c0_112 = arith.constant 0 : index
    %c0_113 = arith.constant 0 : index
    %243 = vector.load %arg9[%c1_111, %c0_112, %c0_113] : memref<2x1x32xf32, #tpu.memory_space<vmem>>, vector<1x1x32xf32>
    %244 = vector.shape_cast %243 : vector<1x1x32xf32> to vector<1x32xf32>
    %245 = vector.extract_strided_slice %242 {offsets = [0, 0], sizes = [8, 8], strides = [1, 1]} : vector<8x96xf32> to vector<8x8xf32>
    %246 = arith.truncf %245 : vector<8x8xf32> to vector<8x8xbf16>
    %247 = vector.extract_strided_slice %242 {offsets = [0, 32], sizes = [8, 8], strides = [1, 1]} : vector<8x96xf32> to vector<8x8xf32>
    %248 = arith.truncf %247 : vector<8x8xf32> to vector<8x8xbf16>
    %249 = vector.extract_strided_slice %242 {offsets = [0, 64], sizes = [8, 8], strides = [1, 1]} : vector<8x96xf32> to vector<8x8xf32>
    %250 = arith.truncf %249 : vector<8x8xf32> to vector<8x8xbf16>
    %cst_114 = arith.constant dense<0.000000e+00> : vector<8x8xf32>
    %251 = tpu.matmul %246, %248, %cst_114 {dimension_numbers = #tpu.dot_dimension_numbers<[1], [1], [0], [0], [0, 0, 1, 0], [], []>} : vector<8x8xbf16>, vector<8x8xbf16>, vector<8x8xf32> -> vector<8x8xf32>
    %cst_115 = arith.constant 0.353553385 : f32
    %252 = vector.broadcast %cst_115 : f32 to vector<8x8xf32>
    %253 = arith.mulf %251, %252 : vector<8x8xf32>
    %254 = arith.addf %253, %5 : vector<8x8xf32>
    %cst_116 = arith.constant dense<0xFF800000> : vector<8xf32>
    %255 = vector.multi_reduction <maximumf>, %254, %cst_116 [1] : vector<8x8xf32> to vector<8xf32>
    %256 = vector.shape_cast %255 : vector<8xf32> to vector<8x1xf32>
    %257 = vector.broadcast %256 : vector<8x1xf32> to vector<8x8xf32>
    %258 = arith.subf %254, %257 : vector<8x8xf32>
    %259 = math.exp %258 : vector<8x8xf32>
    %cst_117 = arith.constant dense<0.000000e+00> : vector<8xf32>
    %260 = vector.multi_reduction <add>, %259, %cst_117 [1] : vector<8x8xf32> to vector<8xf32>
    %261 = vector.shape_cast %260 : vector<8xf32> to vector<8x1xf32>
    %262 = tpu.reciprocal %261 {approx = true} : vector<8x1xf32> -> vector<8x1xf32>
    %263 = vector.broadcast %262 : vector<8x1xf32> to vector<8x8xf32>
    %264 = arith.mulf %259, %263 : vector<8x8xf32>
    %265 = arith.truncf %264 : vector<8x8xf32> to vector<8x8xbf16>
    %cst_118 = arith.constant dense<0.000000e+00> : vector<8x8xf32>
    %266 = tpu.matmul %265, %250, %cst_118 {dimension_numbers = #tpu.dot_dimension_numbers<[1], [0], [0], [1], [0, 0, 1, 1], [], []>} : vector<8x8xbf16>, vector<8x8xbf16>, vector<8x8xf32> -> vector<8x8xf32>
    %267 = arith.truncf %266 : vector<8x8xf32> to vector<8x8xbf16>
    %c1_119 = arith.constant 1 : index
    %c0_120 = arith.constant 0 : index
    %c0_121 = arith.constant 0 : index
    %c0_122 = arith.constant 0 : index
    %268 = vector.load %arg8[%c1_119, %c0_120, %c0_121, %c0_122] : memref<2x4x8x32xbf16, #tpu.memory_space<vmem>>, vector<1x1x8x32xbf16>
    %269 = vector.shape_cast %268 : vector<1x1x8x32xbf16> to vector<8x32xbf16>
    %cst_123 = arith.constant dense<0.000000e+00> : vector<8x32xf32>
    %270 = tpu.matmul %267, %269, %cst_123 {dimension_numbers = #tpu.dot_dimension_numbers<[1], [0], [0], [1], [0, 0, 1, 1], [], []>} : vector<8x8xbf16>, vector<8x32xbf16>, vector<8x32xf32> -> vector<8x32xf32>
    %271 = vector.broadcast %244 : vector<1x32xf32> to vector<8x32xf32>
    %272 = arith.addf %271, %270 : vector<8x32xf32>
    %273 = vector.extract_strided_slice %242 {offsets = [0, 8], sizes = [8, 8], strides = [1, 1]} : vector<8x96xf32> to vector<8x8xf32>
    %274 = arith.truncf %273 : vector<8x8xf32> to vector<8x8xbf16>
    %275 = vector.extract_strided_slice %242 {offsets = [0, 40], sizes = [8, 8], strides = [1, 1]} : vector<8x96xf32> to vector<8x8xf32>
    %276 = arith.truncf %275 : vector<8x8xf32> to vector<8x8xbf16>
    %277 = vector.extract_strided_slice %242 {offsets = [0, 72], sizes = [8, 8], strides = [1, 1]} : vector<8x96xf32> to vector<8x8xf32>
    %278 = arith.truncf %277 : vector<8x8xf32> to vector<8x8xbf16>
    %cst_124 = arith.constant dense<0.000000e+00> : vector<8x8xf32>
    %279 = tpu.matmul %274, %276, %cst_124 {dimension_numbers = #tpu.dot_dimension_numbers<[1], [1], [0], [0], [0, 0, 1, 0], [], []>} : vector<8x8xbf16>, vector<8x8xbf16>, vector<8x8xf32> -> vector<8x8xf32>
    %cst_125 = arith.constant 0.353553385 : f32
    %280 = vector.broadcast %cst_125 : f32 to vector<8x8xf32>
    %281 = arith.mulf %279, %280 : vector<8x8xf32>
    %282 = arith.addf %281, %5 : vector<8x8xf32>
    %cst_126 = arith.constant dense<0xFF800000> : vector<8xf32>
    %283 = vector.multi_reduction <maximumf>, %282, %cst_126 [1] : vector<8x8xf32> to vector<8xf32>
    %284 = vector.shape_cast %283 : vector<8xf32> to vector<8x1xf32>
    %285 = vector.broadcast %284 : vector<8x1xf32> to vector<8x8xf32>
    %286 = arith.subf %282, %285 : vector<8x8xf32>
    %287 = math.exp %286 : vector<8x8xf32>
    %cst_127 = arith.constant dense<0.000000e+00> : vector<8xf32>
    %288 = vector.multi_reduction <add>, %287, %cst_127 [1] : vector<8x8xf32> to vector<8xf32>
    %289 = vector.shape_cast %288 : vector<8xf32> to vector<8x1xf32>
    %290 = tpu.reciprocal %289 {approx = true} : vector<8x1xf32> -> vector<8x1xf32>
    %291 = vector.broadcast %290 : vector<8x1xf32> to vector<8x8xf32>
    %292 = arith.mulf %287, %291 : vector<8x8xf32>
    %293 = arith.truncf %292 : vector<8x8xf32> to vector<8x8xbf16>
    %cst_128 = arith.constant dense<0.000000e+00> : vector<8x8xf32>
    %294 = tpu.matmul %293, %278, %cst_128 {dimension_numbers = #tpu.dot_dimension_numbers<[1], [0], [0], [1], [0, 0, 1, 1], [], []>} : vector<8x8xbf16>, vector<8x8xbf16>, vector<8x8xf32> -> vector<8x8xf32>
    %295 = arith.truncf %294 : vector<8x8xf32> to vector<8x8xbf16>
    %c1_129 = arith.constant 1 : index
    %c1_130 = arith.constant 1 : index
    %c0_131 = arith.constant 0 : index
    %c0_132 = arith.constant 0 : index
    %296 = vector.load %arg8[%c1_129, %c1_130, %c0_131, %c0_132] : memref<2x4x8x32xbf16, #tpu.memory_space<vmem>>, vector<1x1x8x32xbf16>
    %297 = vector.shape_cast %296 : vector<1x1x8x32xbf16> to vector<8x32xbf16>
    %cst_133 = arith.constant dense<0.000000e+00> : vector<8x32xf32>
    %298 = tpu.matmul %295, %297, %cst_133 {dimension_numbers = #tpu.dot_dimension_numbers<[1], [0], [0], [1], [0, 0, 1, 1], [], []>} : vector<8x8xbf16>, vector<8x32xbf16>, vector<8x32xf32> -> vector<8x32xf32>
    %299 = arith.addf %272, %298 : vector<8x32xf32>
    %300 = vector.extract_strided_slice %242 {offsets = [0, 16], sizes = [8, 8], strides = [1, 1]} : vector<8x96xf32> to vector<8x8xf32>
    %301 = arith.truncf %300 : vector<8x8xf32> to vector<8x8xbf16>
    %302 = vector.extract_strided_slice %242 {offsets = [0, 48], sizes = [8, 8], strides = [1, 1]} : vector<8x96xf32> to vector<8x8xf32>
    %303 = arith.truncf %302 : vector<8x8xf32> to vector<8x8xbf16>
    %304 = vector.extract_strided_slice %242 {offsets = [0, 80], sizes = [8, 8], strides = [1, 1]} : vector<8x96xf32> to vector<8x8xf32>
    %305 = arith.truncf %304 : vector<8x8xf32> to vector<8x8xbf16>
    %cst_134 = arith.constant dense<0.000000e+00> : vector<8x8xf32>
    %306 = tpu.matmul %301, %303, %cst_134 {dimension_numbers = #tpu.dot_dimension_numbers<[1], [1], [0], [0], [0, 0, 1, 0], [], []>} : vector<8x8xbf16>, vector<8x8xbf16>, vector<8x8xf32> -> vector<8x8xf32>
    %cst_135 = arith.constant 0.353553385 : f32
    %307 = vector.broadcast %cst_135 : f32 to vector<8x8xf32>
    %308 = arith.mulf %306, %307 : vector<8x8xf32>
    %309 = arith.addf %308, %5 : vector<8x8xf32>
    %cst_136 = arith.constant dense<0xFF800000> : vector<8xf32>
    %310 = vector.multi_reduction <maximumf>, %309, %cst_136 [1] : vector<8x8xf32> to vector<8xf32>
    %311 = vector.shape_cast %310 : vector<8xf32> to vector<8x1xf32>
    %312 = vector.broadcast %311 : vector<8x1xf32> to vector<8x8xf32>
    %313 = arith.subf %309, %312 : vector<8x8xf32>
    %314 = math.exp %313 : vector<8x8xf32>
    %cst_137 = arith.constant dense<0.000000e+00> : vector<8xf32>
    %315 = vector.multi_reduction <add>, %314, %cst_137 [1] : vector<8x8xf32> to vector<8xf32>
    %316 = vector.shape_cast %315 : vector<8xf32> to vector<8x1xf32>
    %317 = tpu.reciprocal %316 {approx = true} : vector<8x1xf32> -> vector<8x1xf32>
    %318 = vector.broadcast %317 : vector<8x1xf32> to vector<8x8xf32>
    %319 = arith.mulf %314, %318 : vector<8x8xf32>
    %320 = arith.truncf %319 : vector<8x8xf32> to vector<8x8xbf16>
    %cst_138 = arith.constant dense<0.000000e+00> : vector<8x8xf32>
    %321 = tpu.matmul %320, %305, %cst_138 {dimension_numbers = #tpu.dot_dimension_numbers<[1], [0], [0], [1], [0, 0, 1, 1], [], []>} : vector<8x8xbf16>, vector<8x8xbf16>, vector<8x8xf32> -> vector<8x8xf32>
    %322 = arith.truncf %321 : vector<8x8xf32> to vector<8x8xbf16>
    %c1_139 = arith.constant 1 : index
    %c2_140 = arith.constant 2 : index
    %c0_141 = arith.constant 0 : index
    %c0_142 = arith.constant 0 : index
    %323 = vector.load %arg8[%c1_139, %c2_140, %c0_141, %c0_142] : memref<2x4x8x32xbf16, #tpu.memory_space<vmem>>, vector<1x1x8x32xbf16>
    %324 = vector.shape_cast %323 : vector<1x1x8x32xbf16> to vector<8x32xbf16>
    %cst_143 = arith.constant dense<0.000000e+00> : vector<8x32xf32>
    %325 = tpu.matmul %322, %324, %cst_143 {dimension_numbers = #tpu.dot_dimension_numbers<[1], [0], [0], [1], [0, 0, 1, 1], [], []>} : vector<8x8xbf16>, vector<8x32xbf16>, vector<8x32xf32> -> vector<8x32xf32>
    %326 = arith.addf %299, %325 : vector<8x32xf32>
    %327 = vector.extract_strided_slice %242 {offsets = [0, 24], sizes = [8, 8], strides = [1, 1]} : vector<8x96xf32> to vector<8x8xf32>
    %328 = arith.truncf %327 : vector<8x8xf32> to vector<8x8xbf16>
    %329 = vector.extract_strided_slice %242 {offsets = [0, 56], sizes = [8, 8], strides = [1, 1]} : vector<8x96xf32> to vector<8x8xf32>
    %330 = arith.truncf %329 : vector<8x8xf32> to vector<8x8xbf16>
    %331 = vector.extract_strided_slice %242 {offsets = [0, 88], sizes = [8, 8], strides = [1, 1]} : vector<8x96xf32> to vector<8x8xf32>
    %332 = arith.truncf %331 : vector<8x8xf32> to vector<8x8xbf16>
    %cst_144 = arith.constant dense<0.000000e+00> : vector<8x8xf32>
    %333 = tpu.matmul %328, %330, %cst_144 {dimension_numbers = #tpu.dot_dimension_numbers<[1], [1], [0], [0], [0, 0, 1, 0], [], []>} : vector<8x8xbf16>, vector<8x8xbf16>, vector<8x8xf32> -> vector<8x8xf32>
    %cst_145 = arith.constant 0.353553385 : f32
    %334 = vector.broadcast %cst_145 : f32 to vector<8x8xf32>
    %335 = arith.mulf %333, %334 : vector<8x8xf32>
    %336 = arith.addf %335, %5 : vector<8x8xf32>
    %cst_146 = arith.constant dense<0xFF800000> : vector<8xf32>
    %337 = vector.multi_reduction <maximumf>, %336, %cst_146 [1] : vector<8x8xf32> to vector<8xf32>
    %338 = vector.shape_cast %337 : vector<8xf32> to vector<8x1xf32>
    %339 = vector.broadcast %338 : vector<8x1xf32> to vector<8x8xf32>
    %340 = arith.subf %336, %339 : vector<8x8xf32>
    %341 = math.exp %340 : vector<8x8xf32>
    %cst_147 = arith.constant dense<0.000000e+00> : vector<8xf32>
    %342 = vector.multi_reduction <add>, %341, %cst_147 [1] : vector<8x8xf32> to vector<8xf32>
    %343 = vector.shape_cast %342 : vector<8xf32> to vector<8x1xf32>
    %344 = tpu.reciprocal %343 {approx = true} : vector<8x1xf32> -> vector<8x1xf32>
    %345 = vector.broadcast %344 : vector<8x1xf32> to vector<8x8xf32>
    %346 = arith.mulf %341, %345 : vector<8x8xf32>
    %347 = arith.truncf %346 : vector<8x8xf32> to vector<8x8xbf16>
    %cst_148 = arith.constant dense<0.000000e+00> : vector<8x8xf32>
    %348 = tpu.matmul %347, %332, %cst_148 {dimension_numbers = #tpu.dot_dimension_numbers<[1], [0], [0], [1], [0, 0, 1, 1], [], []>} : vector<8x8xbf16>, vector<8x8xbf16>, vector<8x8xf32> -> vector<8x8xf32>
    %349 = arith.truncf %348 : vector<8x8xf32> to vector<8x8xbf16>
    %c1_149 = arith.constant 1 : index
    %c3_150 = arith.constant 3 : index
    %c0_151 = arith.constant 0 : index
    %c0_152 = arith.constant 0 : index
    %350 = vector.load %arg8[%c1_149, %c3_150, %c0_151, %c0_152] : memref<2x4x8x32xbf16, #tpu.memory_space<vmem>>, vector<1x1x8x32xbf16>
    %351 = vector.shape_cast %350 : vector<1x1x8x32xbf16> to vector<8x32xbf16>
    %cst_153 = arith.constant dense<0.000000e+00> : vector<8x32xf32>
    %352 = tpu.matmul %349, %351, %cst_153 {dimension_numbers = #tpu.dot_dimension_numbers<[1], [0], [0], [1], [0, 0, 1, 1], [], []>} : vector<8x8xbf16>, vector<8x32xbf16>, vector<8x32xf32> -> vector<8x32xf32>
    %353 = arith.addf %326, %352 : vector<8x32xf32>
    %354 = arith.addf %206, %353 : vector<8x32xf32>
    %c1_154 = arith.constant 1 : index
    %c0_155 = arith.constant 0 : index
    %c0_156 = arith.constant 0 : index
    %355 = vector.load %arg10[%c1_154, %c0_155, %c0_156] : memref<2x1x32xf32, #tpu.memory_space<vmem>>, vector<1x1x32xf32>
    %356 = vector.shape_cast %355 : vector<1x1x32xf32> to vector<1x32xf32>
    %c1_157 = arith.constant 1 : index
    %c0_158 = arith.constant 0 : index
    %c0_159 = arith.constant 0 : index
    %357 = vector.load %arg11[%c1_157, %c0_158, %c0_159] : memref<2x1x32xf32, #tpu.memory_space<vmem>>, vector<1x1x32xf32>
    %358 = vector.shape_cast %357 : vector<1x1x32xf32> to vector<1x32xf32>
    %cst_160 = arith.constant dense<0.000000e+00> : vector<8xf32>
    %359 = vector.multi_reduction <add>, %354, %cst_160 [1] : vector<8x32xf32> to vector<8xf32>
    %360 = vector.shape_cast %359 : vector<8xf32> to vector<8x1xf32>
    %cst_161 = arith.constant 3.200000e+01 : f32
    %361 = vector.broadcast %cst_161 : f32 to vector<8x1xf32>
    %362 = arith.divf %360, %361 : vector<8x1xf32>
    %363 = vector.broadcast %362 : vector<8x1xf32> to vector<8x32xf32>
    %364 = arith.subf %354, %363 : vector<8x32xf32>
    %365 = vector.broadcast %362 : vector<8x1xf32> to vector<8x32xf32>
    %366 = arith.subf %354, %365 : vector<8x32xf32>
    %367 = arith.mulf %364, %366 : vector<8x32xf32>
    %cst_162 = arith.constant dense<0.000000e+00> : vector<8xf32>
    %368 = vector.multi_reduction <add>, %367, %cst_162 [1] : vector<8x32xf32> to vector<8xf32>
    %369 = vector.shape_cast %368 : vector<8xf32> to vector<8x1xf32>
    %cst_163 = arith.constant 3.200000e+01 : f32
    %370 = vector.broadcast %cst_163 : f32 to vector<8x1xf32>
    %371 = arith.divf %369, %370 : vector<8x1xf32>
    %372 = vector.broadcast %362 : vector<8x1xf32> to vector<8x32xf32>
    %373 = arith.subf %354, %372 : vector<8x32xf32>
    %cst_164 = arith.constant 9.99999996E-13 : f32
    %374 = vector.broadcast %cst_164 : f32 to vector<8x1xf32>
    %375 = arith.addf %371, %374 : vector<8x1xf32>
    %376 = math.rsqrt %375 : vector<8x1xf32>
    %377 = vector.broadcast %376 : vector<8x1xf32> to vector<8x32xf32>
    %378 = arith.mulf %373, %377 : vector<8x32xf32>
    %379 = vector.broadcast %356 : vector<1x32xf32> to vector<8x32xf32>
    %380 = arith.mulf %378, %379 : vector<8x32xf32>
    %381 = vector.broadcast %358 : vector<1x32xf32> to vector<8x32xf32>
    %382 = arith.addf %380, %381 : vector<8x32xf32>
    %383 = arith.truncf %382 : vector<8x32xf32> to vector<8x32xbf16>
    %c1_165 = arith.constant 1 : index
    %c0_166 = arith.constant 0 : index
    %c0_167 = arith.constant 0 : index
    %384 = vector.load %arg12[%c1_165, %c0_166, %c0_167] : memref<2x32x128xbf16, #tpu.memory_space<vmem>>, vector<1x32x128xbf16>
    %385 = vector.shape_cast %384 : vector<1x32x128xbf16> to vector<32x128xbf16>
    %cst_168 = arith.constant dense<0.000000e+00> : vector<8x128xf32>
    %386 = tpu.matmul %383, %385, %cst_168 {dimension_numbers = #tpu.dot_dimension_numbers<[1], [0], [0], [1], [0, 0, 1, 1], [], []>} : vector<8x32xbf16>, vector<32x128xbf16>, vector<8x128xf32> -> vector<8x128xf32>
    %c1_169 = arith.constant 1 : index
    %c0_170 = arith.constant 0 : index
    %c0_171 = arith.constant 0 : index
    %387 = vector.load %arg13[%c1_169, %c0_170, %c0_171] : memref<2x1x128xf32, #tpu.memory_space<vmem>>, vector<1x1x128xf32>
    %388 = vector.shape_cast %387 : vector<1x1x128xf32> to vector<1x128xf32>
    %389 = vector.broadcast %388 : vector<1x128xf32> to vector<8x128xf32>
    %390 = arith.addf %386, %389 : vector<8x128xf32>
    %cst_172 = arith.constant 5.000000e-01 : f32
    %391 = vector.broadcast %cst_172 : f32 to vector<8x128xf32>
    %392 = arith.mulf %391, %390 : vector<8x128xf32>
    %cst_173 = arith.constant 0.707106769 : f32
    %393 = vector.broadcast %cst_173 : f32 to vector<8x128xf32>
    %394 = arith.mulf %390, %393 : vector<8x128xf32>
    %395 = math.erf %394 : vector<8x128xf32>
    %cst_174 = arith.constant 1.000000e+00 : f32
    %396 = vector.broadcast %cst_174 : f32 to vector<8x128xf32>
    %397 = arith.addf %396, %395 : vector<8x128xf32>
    %398 = arith.mulf %392, %397 : vector<8x128xf32>
    %399 = arith.truncf %398 : vector<8x128xf32> to vector<8x128xbf16>
    %c1_175 = arith.constant 1 : index
    %c0_176 = arith.constant 0 : index
    %c0_177 = arith.constant 0 : index
    %400 = vector.load %arg14[%c1_175, %c0_176, %c0_177] : memref<2x128x32xbf16, #tpu.memory_space<vmem>>, vector<1x128x32xbf16>
    %401 = vector.shape_cast %400 : vector<1x128x32xbf16> to vector<128x32xbf16>
    %cst_178 = arith.constant dense<0.000000e+00> : vector<8x32xf32>
    %402 = tpu.matmul %399, %401, %cst_178 {dimension_numbers = #tpu.dot_dimension_numbers<[1], [0], [0], [1], [0, 0, 1, 1], [], []>} : vector<8x128xbf16>, vector<128x32xbf16>, vector<8x32xf32> -> vector<8x32xf32>
    %c1_179 = arith.constant 1 : index
    %c0_180 = arith.constant 0 : index
    %c0_181 = arith.constant 0 : index
    %403 = vector.load %arg15[%c1_179, %c0_180, %c0_181] : memref<2x1x32xf32, #tpu.memory_space<vmem>>, vector<1x1x32xf32>
    %404 = vector.shape_cast %403 : vector<1x1x32xf32> to vector<1x32xf32>
    %405 = vector.broadcast %404 : vector<1x32xf32> to vector<8x32xf32>
    %406 = arith.addf %402, %405 : vector<8x32xf32>
    %407 = arith.addf %354, %406 : vector<8x32xf32>
    %c0_182 = arith.constant 0 : index
    %c0_183 = arith.constant 0 : index
    %408 = vector.load %arg16[%c0_182, %c0_183] : memref<1x32xf32, #tpu.memory_space<vmem>>, vector<1x32xf32>
    %c0_184 = arith.constant 0 : index
    %c0_185 = arith.constant 0 : index
    %409 = vector.load %arg17[%c0_184, %c0_185] : memref<1x32xf32, #tpu.memory_space<vmem>>, vector<1x32xf32>
    %cst_186 = arith.constant dense<0.000000e+00> : vector<8xf32>
    %410 = vector.multi_reduction <add>, %407, %cst_186 [1] : vector<8x32xf32> to vector<8xf32>
    %411 = vector.shape_cast %410 : vector<8xf32> to vector<8x1xf32>
    %cst_187 = arith.constant 3.200000e+01 : f32
    %412 = vector.broadcast %cst_187 : f32 to vector<8x1xf32>
    %413 = arith.divf %411, %412 : vector<8x1xf32>
    %414 = vector.broadcast %413 : vector<8x1xf32> to vector<8x32xf32>
    %415 = arith.subf %407, %414 : vector<8x32xf32>
    %416 = vector.broadcast %413 : vector<8x1xf32> to vector<8x32xf32>
    %417 = arith.subf %407, %416 : vector<8x32xf32>
    %418 = arith.mulf %415, %417 : vector<8x32xf32>
    %cst_188 = arith.constant dense<0.000000e+00> : vector<8xf32>
    %419 = vector.multi_reduction <add>, %418, %cst_188 [1] : vector<8x32xf32> to vector<8xf32>
    %420 = vector.shape_cast %419 : vector<8xf32> to vector<8x1xf32>
    %cst_189 = arith.constant 3.200000e+01 : f32
    %421 = vector.broadcast %cst_189 : f32 to vector<8x1xf32>
    %422 = arith.divf %420, %421 : vector<8x1xf32>
    %423 = vector.broadcast %413 : vector<8x1xf32> to vector<8x32xf32>
    %424 = arith.subf %407, %423 : vector<8x32xf32>
    %cst_190 = arith.constant 9.99999996E-13 : f32
    %425 = vector.broadcast %cst_190 : f32 to vector<8x1xf32>
    %426 = arith.addf %422, %425 : vector<8x1xf32>
    %427 = math.rsqrt %426 : vector<8x1xf32>
    %428 = vector.broadcast %427 : vector<8x1xf32> to vector<8x32xf32>
    %429 = arith.mulf %424, %428 : vector<8x32xf32>
    %430 = vector.broadcast %408 : vector<1x32xf32> to vector<8x32xf32>
    %431 = arith.mulf %429, %430 : vector<8x32xf32>
    %432 = vector.broadcast %409 : vector<1x32xf32> to vector<8x32xf32>
    %433 = arith.addf %431, %432 : vector<8x32xf32>
    %c0_191 = arith.constant 0 : index
    %c0_192 = arith.constant 0 : index
    %434 = vector.load %arg19[%c0_191, %c0_192] : memref<1x128xf32, #tpu.memory_space<vmem>>, vector<1x128xf32>
    %435 = vector.extract_strided_slice %433 {offsets = [0, 0], sizes = [1, 32], strides = [1, 1]} : vector<8x32xf32> to vector<1x32xf32>
    %436 = arith.truncf %435 : vector<1x32xf32> to vector<1x32xbf16>
    %c0_193 = arith.constant 0 : index
    %c0_194 = arith.constant 0 : index
    %c0_195 = arith.constant 0 : index
    %437 = vector.load %arg18[%c0_193, %c0_194, %c0_195] : memref<5x32x128xbf16, #tpu.memory_space<vmem>>, vector<1x32x128xbf16>
    %438 = vector.shape_cast %437 : vector<1x32x128xbf16> to vector<32x128xbf16>
    %cst_196 = arith.constant dense<0.000000e+00> : vector<1x128xf32>
    %439 = tpu.matmul %436, %438, %cst_196 {dimension_numbers = #tpu.dot_dimension_numbers<[1], [0], [0], [1], [0, 0, 1, 1], [], []>} : vector<1x32xbf16>, vector<32x128xbf16>, vector<1x128xf32> -> vector<1x128xf32>
    %440 = arith.addf %434, %439 : vector<1x128xf32>
    %441 = vector.extract_strided_slice %433 {offsets = [1, 0], sizes = [1, 32], strides = [1, 1]} : vector<8x32xf32> to vector<1x32xf32>
    %442 = arith.truncf %441 : vector<1x32xf32> to vector<1x32xbf16>
    %c1_197 = arith.constant 1 : index
    %c0_198 = arith.constant 0 : index
    %c0_199 = arith.constant 0 : index
    %443 = vector.load %arg18[%c1_197, %c0_198, %c0_199] : memref<5x32x128xbf16, #tpu.memory_space<vmem>>, vector<1x32x128xbf16>
    %444 = vector.shape_cast %443 : vector<1x32x128xbf16> to vector<32x128xbf16>
    %cst_200 = arith.constant dense<0.000000e+00> : vector<1x128xf32>
    %445 = tpu.matmul %442, %444, %cst_200 {dimension_numbers = #tpu.dot_dimension_numbers<[1], [0], [0], [1], [0, 0, 1, 1], [], []>} : vector<1x32xbf16>, vector<32x128xbf16>, vector<1x128xf32> -> vector<1x128xf32>
    %446 = arith.addf %440, %445 : vector<1x128xf32>
    %447 = vector.extract_strided_slice %433 {offsets = [2, 0], sizes = [1, 32], strides = [1, 1]} : vector<8x32xf32> to vector<1x32xf32>
    %448 = arith.truncf %447 : vector<1x32xf32> to vector<1x32xbf16>
    %c2_201 = arith.constant 2 : index
    %c0_202 = arith.constant 0 : index
    %c0_203 = arith.constant 0 : index
    %449 = vector.load %arg18[%c2_201, %c0_202, %c0_203] : memref<5x32x128xbf16, #tpu.memory_space<vmem>>, vector<1x32x128xbf16>
    %450 = vector.shape_cast %449 : vector<1x32x128xbf16> to vector<32x128xbf16>
    %cst_204 = arith.constant dense<0.000000e+00> : vector<1x128xf32>
    %451 = tpu.matmul %448, %450, %cst_204 {dimension_numbers = #tpu.dot_dimension_numbers<[1], [0], [0], [1], [0, 0, 1, 1], [], []>} : vector<1x32xbf16>, vector<32x128xbf16>, vector<1x128xf32> -> vector<1x128xf32>
    %452 = arith.addf %446, %451 : vector<1x128xf32>
    %453 = vector.extract_strided_slice %433 {offsets = [3, 0], sizes = [1, 32], strides = [1, 1]} : vector<8x32xf32> to vector<1x32xf32>
    %454 = arith.truncf %453 : vector<1x32xf32> to vector<1x32xbf16>
    %c3_205 = arith.constant 3 : index
    %c0_206 = arith.constant 0 : index
    %c0_207 = arith.constant 0 : index
    %455 = vector.load %arg18[%c3_205, %c0_206, %c0_207] : memref<5x32x128xbf16, #tpu.memory_space<vmem>>, vector<1x32x128xbf16>
    %456 = vector.shape_cast %455 : vector<1x32x128xbf16> to vector<32x128xbf16>
    %cst_208 = arith.constant dense<0.000000e+00> : vector<1x128xf32>
    %457 = tpu.matmul %454, %456, %cst_208 {dimension_numbers = #tpu.dot_dimension_numbers<[1], [0], [0], [1], [0, 0, 1, 1], [], []>} : vector<1x32xbf16>, vector<32x128xbf16>, vector<1x128xf32> -> vector<1x128xf32>
    %458 = arith.addf %452, %457 : vector<1x128xf32>
    %459 = vector.extract_strided_slice %433 {offsets = [4, 0], sizes = [1, 32], strides = [1, 1]} : vector<8x32xf32> to vector<1x32xf32>
    %460 = arith.truncf %459 : vector<1x32xf32> to vector<1x32xbf16>
    %c4 = arith.constant 4 : index
    %c0_209 = arith.constant 0 : index
    %c0_210 = arith.constant 0 : index
    %461 = vector.load %arg18[%c4, %c0_209, %c0_210] : memref<5x32x128xbf16, #tpu.memory_space<vmem>>, vector<1x32x128xbf16>
    %462 = vector.shape_cast %461 : vector<1x32x128xbf16> to vector<32x128xbf16>
    %cst_211 = arith.constant dense<0.000000e+00> : vector<1x128xf32>
    %463 = tpu.matmul %460, %462, %cst_211 {dimension_numbers = #tpu.dot_dimension_numbers<[1], [0], [0], [1], [0, 0, 1, 1], [], []>} : vector<1x32xbf16>, vector<32x128xbf16>, vector<1x128xf32> -> vector<1x128xf32>
    %464 = arith.addf %458, %463 : vector<1x128xf32>
    %cst_212 = arith.constant 0.000000e+00 : f32
    %465 = vector.broadcast %cst_212 : f32 to vector<1x128xf32>
    %466 = arith.maximumf %464, %465 : vector<1x128xf32>
    tpu.wait_dma2 semaphore(%arg24 : memref<!tpu.dma_semaphore, #tpu.memory_space<semaphore_mem>>) src(%arg21 : memref<128x1536xbf16, #tpu.memory_space<any>>) dst(%arg23 : memref<128x1536xbf16, #tpu.memory_space<vmem>>)
    %467 = arith.truncf %466 : vector<1x128xf32> to vector<1x128xbf16>
    %c0_213 = arith.constant 0 : index
    %c0_214 = arith.constant 0 : index
    %468 = vector.load %arg23[%c0_213, %c0_214] : memref<128x1536xbf16, #tpu.memory_space<vmem>>, vector<128x1536xbf16>
    %cst_215 = arith.constant dense<0.000000e+00> : vector<1x1536xf32>
    %469 = tpu.matmul %467, %468, %cst_215 {dimension_numbers = #tpu.dot_dimension_numbers<[1], [0], [0], [1], [0, 0, 1, 1], [], []>} : vector<1x128xbf16>, vector<128x1536xbf16>, vector<1x1536xf32> -> vector<1x1536xf32>
    %c0_216 = arith.constant 0 : index
    %c0_217 = arith.constant 0 : index
    %470 = vector.load %arg20[%c0_216, %c0_217] : memref<1x1536xf32, #tpu.memory_space<vmem>>, vector<1x1536xf32>
    %471 = arith.addf %469, %470 : vector<1x1536xf32>
    %c0_218 = arith.constant 0 : index
    %c0_219 = arith.constant 0 : index
    %472 = vector.load %arg22[%c0_218, %c0_219] : memref<1x1536xf32, #tpu.memory_space<vmem>>, vector<1x1536xf32>
    tpu.vector_store %arg22[%c0_218, %c0_219], %471 {strides = array<i32>} : memref<1x1536xf32, #tpu.memory_space<vmem>>, vector<1x1536xf32>,
    return
  }
}

</mosaic_0001>

<llo_original>
// kernel: squeeze.0
$region0: #{squeeze.0}
  %s0 = inlined_call_operand.vmem [shape: bf16[1,3,32,32], index: 0, kind: input, shape index: {}]
  %s1 = inlined_call_operand.vmem [shape: bf16[3,2,16,2,16], index: 1, kind: output, shape index: {}]
  $region1: #{squeeze.0} parent=0
    #allocation0 [shape = 'u8[393216]{0}', space=vmem, size = 0x60000, scoped, tag = 'scoped mem for output reshape']
    #allocation1 [shape = 'u8[49152]{0}', space=vmem, size = 0xc000, scoped, tag = 'scoped mem for input reshape']
    %s3 = smul.u32 4, 2
    %s4 = sshllo.u32 0, %s3
    %s5 = smul.addr 4, 11
    %s6 = scalar_lea.vmem %s0, %s5
    %s7 = sshrl.u32 %s4, 1
    %s8 = sor.u32 %s4, %s7
    %s9 = sand.u32 %s8, 85
    %s10 = sshrl.u32 %s9, 1
    %s11 = sor.u32 %s9, %s10
    %s12 = sand.u32 51, %s11
    %s13 = sshrl.u32 %s12, 2
    %s14 = sor.u32 %s12, %s13
    %s15 = sand.u32 15, %s14
    %v16 = vld [vmem:[%s6] sm:%s15]
    %v17 = vunpack.c.l.bf16 %v16
    %v18 = vunpack.c.h.bf16 %v16
    %s19 = scalar_lea.vmem [#allocation1], 88
    %20 = vst [vmem:[%s19] sm:%s4] %v17
    %s21 = smul.addr 4, 10
    %s22 = scalar_lea.vmem %s0, %s21
    %s23 = sshrl.u32 %s4, 1
    %s24 = sor.u32 %s4, %s23
    %s25 = sand.u32 %s24, 85
    %s26 = sshrl.u32 %s25, 1
    %s27 = sor.u32 %s25, %s26
    %s28 = sand.u32 51, %s27
    %s29 = sshrl.u32 %s28, 2
    %s30 = sor.u32 %s28, %s29
    %s31 = sand.u32 15, %s30
    %v32 = vld [vmem:[%s22] sm:%s31]
    %v33 = vunpack.c.l.bf16 %v32
    %v34 = vunpack.c.h.bf16 %v32
    %s35 = scalar_lea.vmem [#allocation1], 80
    %36 = vst [vmem:[%s35] sm:%s4] %v33
    %s37 = smul.addr 4, 9
    %s38 = scalar_lea.vmem %s0, %s37
    %s39 = sshrl.u32 %s4, 1
    %s40 = sor.u32 %s4, %s39
    %s41 = sand.u32 %s40, 85
    %s42 = sshrl.u32 %s41, 1
    %s43 = sor.u32 %s41, %s42
    %s44 = sand.u32 51, %s43
    %s45 = sshrl.u32 %s44, 2
    %s46 = sor.u32 %s44, %s45
    %s47 = sand.u32 15, %s46
    %v48 = vld [vmem:[%s38] sm:%s47]
    %v49 = vunpack.c.l.bf16 %v48
    %v50 = vunpack.c.h.bf16 %v48
    %s51 = scalar_lea.vmem [#allocation1], 72
    %52 = vst [vmem:[%s51] sm:%s4] %v49
    %s53 = smul.addr 4, 8
    %s54 = scalar_lea.vmem %s0, %s53
    %s55 = sshrl.u32 %s4, 1
    %s56 = sor.u32 %s4, %s55
    %s57 = sand.u32 %s56, 85
    %s58 = sshrl.u32 %s57, 1
    %s59 = sor.u32 %s57, %s58
    %s60 = sand.u32 51, %s59
    %s61 = sshrl.u32 %s60, 2
    %s62 = sor.u32 %s60, %s61
    %s63 = sand.u32 15, %s62
    %v64 = vld [vmem:[%s54] sm:%s63]
    %v65 = vunpack.c.l.bf16 %v64
    %v66 = vunpack.c.h.bf16 %v64
    %s67 = scalar_lea.vmem [#allocation1], 64
    %68 = vst [vmem:[%s67] sm:%s4] %v65
    %s69 = smul.addr 4, 7
    %s70 = scalar_lea.vmem %s0, %s69
    %s71 = sshrl.u32 %s4, 1
    %s72 = sor.u32 %s4, %s71
    %s73 = sand.u32 %s72, 85
    %s74 = sshrl.u32 %s73, 1
    %s75 = sor.u32 %s73, %s74
    %s76 = sand.u32 51, %s75
    %s77 = sshrl.u32 %s76, 2
    %s78 = sor.u32 %s76, %s77
    %s79 = sand.u32 15, %s78
    %v80 = vld [vmem:[%s70] sm:%s79]
    %v81 = vunpack.c.l.bf16 %v80
    %v82 = vunpack.c.h.bf16 %v80
    %s83 = scalar_lea.vmem [#allocation1], 56
    %84 = vst [vmem:[%s83] sm:%s4] %v81
    %s85 = smul.addr 4, 6
    %s86 = scalar_lea.vmem %s0, %s85
    %s87 = sshrl.u32 %s4, 1
    %s88 = sor.u32 %s4, %s87
    %s89 = sand.u32 %s88, 85
    %s90 = sshrl.u32 %s89, 1
    %s91 = sor.u32 %s89, %s90
    %s92 = sand.u32 51, %s91
    %s93 = sshrl.u32 %s92, 2
    %s94 = sor.u32 %s92, %s93
    %s95 = sand.u32 15, %s94
    %v96 = vld [vmem:[%s86] sm:%s95]
    %v97 = vunpack.c.l.bf16 %v96
    %v98 = vunpack.c.h.bf16 %v96
    %s99 = scalar_lea.vmem [#allocation1], 48
    %100 = vst [vmem:[%s99] sm:%s4] %v97
    %s101 = smul.addr 4, 5
    %s102 = scalar_lea.vmem %s0, %s101
    %s103 = sshrl.u32 %s4, 1
    %s104 = sor.u32 %s4, %s103
    %s105 = sand.u32 %s104, 85
    %s106 = sshrl.u32 %s105, 1
    %s107 = sor.u32 %s105, %s106
    %s108 = sand.u32 51, %s107
    %s109 = sshrl.u32 %s108, 2
    %s110 = sor.u32 %s108, %s109
    %s111 = sand.u32 15, %s110
    %v112 = vld [vmem:[%s102] sm:%s111]
    %v113 = vunpack.c.l.bf16 %v112
    %v114 = vunpack.c.h.bf16 %v112
    %s115 = scalar_lea.vmem [#allocation1], 40
    %116 = vst [vmem:[%s115] sm:%s4] %v113
    %s117 = smul.addr 4, 4
    %s118 = scalar_lea.vmem %s0, %s117
    %s119 = sshrl.u32 %s4, 1
    %s120 = sor.u32 %s4, %s119
    %s121 = sand.u32 %s120, 85
    %s122 = sshrl.u32 %s121, 1
    %s123 = sor.u32 %s121, %s122
    %s124 = sand.u32 51, %s123
    %s125 = sshrl.u32 %s124, 2
    %s126 = sor.u32 %s124, %s125
    %s127 = sand.u32 15, %s126
    %v128 = vld [vmem:[%s118] sm:%s127]
    %v129 = vunpack.c.l.bf16 %v128
    %v130 = vunpack.c.h.bf16 %v128
    %s131 = scalar_lea.vmem [#allocation1], 32
    %132 = vst [vmem:[%s131] sm:%s4] %v129
    %s133 = smul.addr 4, 3
    %s134 = scalar_lea.vmem %s0, %s133
    %s135 = sshrl.u32 %s4, 1
    %s136 = sor.u32 %s4, %s135
    %s137 = sand.u32 %s136, 85
    %s138 = sshrl.u32 %s137, 1
    %s139 = sor.u32 %s137, %s138
    %s140 = sand.u32 51, %s139
    %s141 = sshrl.u32 %s140, 2
    %s142 = sor.u32 %s140, %s141
    %s143 = sand.u32 15, %s142
    %v144 = vld [vmem:[%s134] sm:%s143]
    %v145 = vunpack.c.l.bf16 %v144
    %v146 = vunpack.c.h.bf16 %v144
    %s147 = scalar_lea.vmem [#allocation1], 24
    %148 = vst [vmem:[%s147] sm:%s4] %v145
    %s149 = smul.addr 4, 2
    %s150 = scalar_lea.vmem %s0, %s149
    %s151 = sshrl.u32 %s4, 1
    %s152 = sor.u32 %s4, %s151
    %s153 = sand.u32 %s152, 85
    %s154 = sshrl.u32 %s153, 1
    %s155 = sor.u32 %s153, %s154
    %s156 = sand.u32 51, %s155
    %s157 = sshrl.u32 %s156, 2
    %s158 = sor.u32 %s156, %s157
    %s159 = sand.u32 15, %s158
    %v160 = vld [vmem:[%s150] sm:%s159]
    %v161 = vunpack.c.l.bf16 %v160
    %v162 = vunpack.c.h.bf16 %v160
    %s163 = scalar_lea.vmem [#allocation1], 16
    %164 = vst [vmem:[%s163] sm:%s4] %v161
    %s165 = scalar_lea.vmem %s0, 4
    %s166 = sshrl.u32 %s4, 1
    %s167 = sor.u32 %s4, %s166
    %s168 = sand.u32 %s167, 85
    %s169 = sshrl.u32 %s168, 1
    %s170 = sor.u32 %s168, %s169
    %s171 = sand.u32 51, %s170
    %s172 = sshrl.u32 %s171, 2
    %s173 = sor.u32 %s171, %s172
    %s174 = sand.u32 15, %s173
    %v175 = vld [vmem:[%s165] sm:%s174]
    %v176 = vunpack.c.l.bf16 %v175
    %v177 = vunpack.c.h.bf16 %v175
    %s178 = scalar_lea.vmem [#allocation1], 8
    %179 = vst [vmem:[%s178] sm:%s4] %v176
    %s180 = sshrl.u32 %s4, 1
    %s181 = sor.u32 %s4, %s180
    %s182 = sand.u32 %s181, 85
    %s183 = sshrl.u32 %s182, 1
    %s184 = sor.u32 %s182, %s183
    %s185 = sand.u32 51, %s184
    %s186 = sshrl.u32 %s185, 2
    %s187 = sor.u32 %s185, %s186
    %s188 = sand.u32 15, %s187
    %v189 = vld [vmem:[%s0] sm:%s188]
    %v190 = vunpack.c.l.bf16 %v189
    %v191 = vunpack.c.h.bf16 %v189
    %192 = vst [vmem:[#allocation1] sm:%s4] %v190
    %v193 = vld [vmem:[#allocation1] sm:$0xff]
    %vm194 = vcmask 130048
    %195 = vst.msk [vmem:[#allocation0] ss:$8 sm:$0xf] %vm194, %v193
    %196 = vst.msk [vmem:[#allocation0] ss:$8 sm:$0xf0] %vm194, %v193
    %s197 = scalar_lea.vmem [#allocation1], 8
    %v198 = vld [vmem:[%s197] sm:$0xff]
    %vm199 = vcmask 130048
    %s200 = scalar_lea.vmem [#allocation0], 64
    %201 = vst.msk [vmem:[%s200] ss:$8 sm:$0xf] %vm199, %v198
    %s202 = scalar_lea.vmem [#allocation0], 64
    %203 = vst.msk [vmem:[%s202] ss:$8 sm:$0xf0] %vm199, %v198
    %s204 = scalar_lea.vmem [#allocation1], 16
    %v205 = vld [vmem:[%s204] sm:$0xff]
    %vm206 = vcmask 130048
    %s207 = scalar_lea.vmem [#allocation0], 128
    %208 = vst.msk [vmem:[%s207] ss:$8 sm:$0xf] %vm206, %v205
    %s209 = scalar_lea.vmem [#allocation0], 128
    %210 = vst.msk [vmem:[%s209] ss:$8 sm:$0xf0] %vm206, %v205
    %s211 = scalar_lea.vmem [#allocation1], 24
    %v212 = vld [vmem:[%s211] sm:$0xff]
    %vm213 = vcmask 130048
    %s214 = scalar_lea.vmem [#allocation0], 192
    %215 = vst.msk [vmem:[%s214] ss:$8 sm:$0xf] %vm213, %v212
    %s216 = scalar_lea.vmem [#allocation0], 192
    %217 = vst.msk [vmem:[%s216] ss:$8 sm:$0xf0] %vm213, %v212
    %s218 = scalar_lea.vmem [#allocation1], 32
    %v219 = vld [vmem:[%s218] sm:$0xff]
    %vm220 = vcmask 130048
    %s221 = scalar_lea.vmem [#allocation0], 256
    %222 = vst.msk [vmem:[%s221] ss:$8 sm:$0xf] %vm220, %v219
    %s223 = scalar_lea.vmem [#allocation0], 256
    %224 = vst.msk [vmem:[%s223] ss:$8 sm:$0xf0] %vm220, %v219
    %s225 = scalar_lea.vmem [#allocation1], 40
    %v226 = vld [vmem:[%s225] sm:$0xff]
    %vm227 = vcmask 130048
    %s228 = scalar_lea.vmem [#allocation0], 320
    %229 = vst.msk [vmem:[%s228] ss:$8 sm:$0xf] %vm227, %v226
    %s230 = scalar_lea.vmem [#allocation0], 320
    %231 = vst.msk [vmem:[%s230] ss:$8 sm:$0xf0] %vm227, %v226
    %s232 = scalar_lea.vmem [#allocation1], 48
    %v233 = vld [vmem:[%s232] sm:$0xff]
    %vm234 = vcmask 130048
    %s235 = scalar_lea.vmem [#allocation0], 384
    %236 = vst.msk [vmem:[%s235] ss:$8 sm:$0xf] %vm234, %v233
    %s237 = scalar_lea.vmem [#allocation0], 384
    %238 = vst.msk [vmem:[%s237] ss:$8 sm:$0xf0] %vm234, %v233
    %s239 = scalar_lea.vmem [#allocation1], 56
    %v240 = vld [vmem:[%s239] sm:$0xff]
    %vm241 = vcmask 130048
    %s242 = scalar_lea.vmem [#allocation0], 448
    %243 = vst.msk [vmem:[%s242] ss:$8 sm:$0xf] %vm241, %v240
    %s244 = scalar_lea.vmem [#allocation0], 448
    %245 = vst.msk [vmem:[%s244] ss:$8 sm:$0xf0] %vm241, %v240
    %s246 = scalar_lea.vmem [#allocation1], 64
    %v247 = vld [vmem:[%s246] sm:$0xff]
    %vm248 = vcmask 130048
    %s249 = scalar_lea.vmem [#allocation0], 512
    %250 = vst.msk [vmem:[%s249] ss:$8 sm:$0xf] %vm248, %v247
    %s251 = scalar_lea.vmem [#allocation0], 512
    %252 = vst.msk [vmem:[%s251] ss:$8 sm:$0xf0] %vm248, %v247
    %s253 = scalar_lea.vmem [#allocation1], 72
    %v254 = vld [vmem:[%s253] sm:$0xff]
    %vm255 = vcmask 130048
    %s256 = scalar_lea.vmem [#allocation0], 576
    %257 = vst.msk [vmem:[%s256] ss:$8 sm:$0xf] %vm255, %v254
    %s258 = scalar_lea.vmem [#allocation0], 576
    %259 = vst.msk [vmem:[%s258] ss:$8 sm:$0xf0] %vm255, %v254
    %s260 = scalar_lea.vmem [#allocation1], 80
    %v261 = vld [vmem:[%s260] sm:$0xff]
    %vm262 = vcmask 130048
    %s263 = scalar_lea.vmem [#allocation0], 640
    %264 = vst.msk [vmem:[%s263] ss:$8 sm:$0xf] %vm262, %v261
    %s265 = scalar_lea.vmem [#allocation0], 640
    %266 = vst.msk [vmem:[%s265] ss:$8 sm:$0xf0] %vm262, %v261
    %s267 = scalar_lea.vmem [#allocation1], 88
    %v268 = vld [vmem:[%s267] sm:$0xff]
    %vm269 = vcmask 130048
    %s270 = scalar_lea.vmem [#allocation0], 704
    %271 = vst.msk [vmem:[%s270] ss:$8 sm:$0xf] %vm269, %v268
    %s272 = scalar_lea.vmem [#allocation0], 704
    %273 = vst.msk [vmem:[%s272] ss:$8 sm:$0xf0] %vm269, %v268
    %v274 = vld [vmem:[#allocation1] sm:$0xff]
    %275 = vrot.lane.b32.xlu0 %v274, 112
    %v276 = vpop.permute.xlu0 %275
    %vm277 = vcmask 130048
    %s278 = scalar_lea.vmem [#allocation0], 1
    %279 = vst.msk [vmem:[%s278] ss:$8 sm:$0xf] %vm277, %v276
    %s280 = scalar_lea.vmem [#allocation0], 1
    %281 = vst.msk [vmem:[%s280] ss:$8 sm:$0xf0] %vm277, %v276
    %s282 = scalar_lea.vmem [#allocation1], 8
    %v283 = vld [vmem:[%s282] sm:$0xff]
    %284 = vrot.lane.b32.xlu0 %v283, 112
    %v285 = vpop.permute.xlu0 %284
    %vm286 = vcmask 130048
    %s287 = scalar_lea.vmem [#allocation0], 65
    %288 = vst.msk [vmem:[%s287] ss:$8 sm:$0xf] %vm286, %v285
    %s289 = scalar_lea.vmem [#allocation0], 65
    %290 = vst.msk [vmem:[%s289] ss:$8 sm:$0xf0] %vm286, %v285
    %s291 = scalar_lea.vmem [#allocation1], 16
    %v292 = vld [vmem:[%s291] sm:$0xff]
    %293 = vrot.lane.b32.xlu0 %v292, 112
    %v294 = vpop.permute.xlu0 %293
    %vm295 = vcmask 130048
    %s296 = scalar_lea.vmem [#allocation0], 129
    %297 = vst.msk [vmem:[%s296] ss:$8 sm:$0xf] %vm295, %v294
    %s298 = scalar_lea.vmem [#allocation0], 129
    %299 = vst.msk [vmem:[%s298] ss:$8 sm:$0xf0] %vm295, %v294
    %s300 = scalar_lea.vmem [#allocation1], 24
    %v301 = vld [vmem:[%s300] sm:$0xff]
    %302 = vrot.lane.b32.xlu0 %v301, 112
    %v303 = vpop.permute.xlu0 %302
    %vm304 = vcmask 130048
    %s305 = scalar_lea.vmem [#allocation0], 193
    %306 = vst.msk [vmem:[%s305] ss:$8 sm:$0xf] %vm304, %v303
    %s307 = scalar_lea.vmem [#allocation0], 193
    %308 = vst.msk [vmem:[%s307] ss:$8 sm:$0xf0] %vm304, %v303
    %s309 = scalar_lea.vmem [#allocation1], 32
    %v310 = vld [vmem:[%s309] sm:$0xff]
    %311 = vrot.lane.b32.xlu0 %v310, 112
    %v312 = vpop.permute.xlu0 %311
    %vm313 = vcmask 130048
    %s314 = scalar_lea.vmem [#allocation0], 257
    %315 = vst.msk [vmem:[%s314] ss:$8 sm:$0xf] %vm313, %v312
    %s316 = scalar_lea.vmem [#allocation0], 257
    %317 = vst.msk [vmem:[%s316] ss:$8 sm:$0xf0] %vm313, %v312
    %s318 = scalar_lea.vmem [#allocation1], 40
    %v319 = vld [vmem:[%s318] sm:$0xff]
    %320 = vrot.lane.b32.xlu0 %v319, 112
    %v321 = vpop.permute.xlu0 %320
    %vm322 = vcmask 130048
    %s323 = scalar_lea.vmem [#allocation0], 321
    %324 = vst.msk [vmem:[%s323] ss:$8 sm:$0xf] %vm322, %v321
    %s325 = scalar_lea.vmem [#allocation0], 321
    %326 = vst.msk [vmem:[%s325] ss:$8 sm:$0xf0] %vm322, %v321
    %s327 = scalar_lea.vmem [#allocation1], 48
    %v328 = vld [vmem:[%s327] sm:$0xff]
    %329 = vrot.lane.b32.xlu0 %v328, 112
    %v330 = vpop.permute.xlu0 %329
    %vm331 = vcmask 130048
    %s332 = scalar_lea.vmem [#allocation0], 385
    %333 = vst.msk [vmem:[%s332] ss:$8 sm:$0xf] %vm331, %v330
    %s334 = scalar_lea.vmem [#allocation0], 385
    %335 = vst.msk [vmem:[%s334] ss:$8 sm:$0xf0] %vm331, %v330
    %s336 = scalar_lea.vmem [#allocation1], 56
    %v337 = vld [vmem:[%s336] sm:$0xff]
    %338 = vrot.lane.b32.xlu0 %v337, 112
    %v339 = vpop.permute.xlu0 %338
    %vm340 = vcmask 130048
    %s341 = scalar_lea.vmem [#allocation0], 449
    %342 = vst.msk [vmem:[%s341] ss:$8 sm:$0xf] %vm340, %v339
    %s343 = scalar_lea.vmem [#allocation0], 449
    %344 = vst.msk [vmem:[%s343] ss:$8 sm:$0xf0] %vm340, %v339
    %s345 = scalar_lea.vmem [#allocation1], 64
    %v346 = vld [vmem:[%s345] sm:$0xff]
    %347 = vrot.lane.b32.xlu0 %v346, 112
    %v348 = vpop.permute.xlu0 %347
    %vm349 = vcmask 130048
    %s350 = scalar_lea.vmem [#allocation0], 513
    %351 = vst.msk [vmem:[%s350] ss:$8 sm:$0xf] %vm349, %v348
    %s352 = scalar_lea.vmem [#allocation0], 513
    %353 = vst.msk [vmem:[%s352] ss:$8 sm:$0xf0] %vm349, %v348
    %s354 = scalar_lea.vmem [#allocation1], 72
    %v355 = vld [vmem:[%s354] sm:$0xff]
    %356 = vrot.lane.b32.xlu0 %v355, 112
    %v357 = vpop.permute.xlu0 %356
    %vm358 = vcmask 130048
    %s359 = scalar_lea.vmem [#allocation0], 577
    %360 = vst.msk [vmem:[%s359] ss:$8 sm:$0xf] %vm358, %v357
    %s361 = scalar_lea.vmem [#allocation0], 577
    %362 = vst.msk [vmem:[%s361] ss:$8 sm:$0xf0] %vm358, %v357
    %s363 = scalar_lea.vmem [#allocation1], 80
    %v364 = vld [vmem:[%s363] sm:$0xff]
    %365 = vrot.lane.b32.xlu0 %v364, 112
    %v366 = vpop.permute.xlu0 %365
    %vm367 = vcmask 130048
    %s368 = scalar_lea.vmem [#allocation0], 641
    %369 = vst.msk [vmem:[%s368] ss:$8 sm:$0xf] %vm367, %v366
    %s370 = scalar_lea.vmem [#allocation0], 641
    %371 = vst.msk [vmem:[%s370] ss:$8 sm:$0xf0] %vm367, %v366
    %s372 = scalar_lea.vmem [#allocation1], 88
    %v373 = vld [vmem:[%s372] sm:$0xff]
    %374 = vrot.lane.b32.xlu0 %v373, 112
    %v375 = vpop.permute.xlu0 %374
    %vm376 = vcmask 130048
    %s377 = scalar_lea.vmem [#allocation0], 705
    %378 = vst.msk [vmem:[%s377] ss:$8 sm:$0xf] %vm376, %v375
    %s379 = scalar_lea.vmem [#allocation0], 705
    %380 = vst.msk [vmem:[%s379] ss:$8 sm:$0xf0] %vm376, %v375
    %s382 = smul.u32 1, 2
    %s383 = sshllo.u32 0, %s382
    %s384 = sshrl.u32 %s382, 1
    %v385 = vld [vmem:[#allocation0] sm:%s383]
    %v386 = vpack.c.bf16 0.0, %v385
    %s387 = sshllo.u32 0, %s384
    %388 = vst [vmem:[%s1] sm:%s387] %v386
    %s389 = scalar_lea.vmem [#allocation0], 8
    %v390 = vld [vmem:[%s389] sm:%s383]
    %v391 = vpack.c.bf16 0.0, %v390
    %s392 = sshllo.u32 0, %s384
    %s393 = scalar_lea.vmem %s1, 1
    %394 = vst [vmem:[%s393] sm:%s392] %v391
    %s395 = scalar_lea.vmem [#allocation0], 16
    %v396 = vld [vmem:[%s395] sm:%s383]
    %v397 = vpack.c.bf16 0.0, %v396
    %s398 = sshllo.u32 0, %s384
    %s399 = smul.addr 1, 2
    %s400 = scalar_lea.vmem %s1, %s399
    %401 = vst [vmem:[%s400] sm:%s398] %v397
    %s402 = scalar_lea.vmem [#allocation0], 24
    %v403 = vld [vmem:[%s402] sm:%s383]
    %v404 = vpack.c.bf16 0.0, %v403
    %s405 = sshllo.u32 0, %s384
    %s406 = smul.addr 1, 3
    %s407 = scalar_lea.vmem %s1, %s406
    %408 = vst [vmem:[%s407] sm:%s405] %v404
    %s409 = scalar_lea.vmem [#allocation0], 32
    %v410 = vld [vmem:[%s409] sm:%s383]
    %v411 = vpack.c.bf16 0.0, %v410
    %s412 = sshllo.u32 0, %s384
    %s413 = smul.addr 1, 4
    %s414 = scalar_lea.vmem %s1, %s413
    %415 = vst [vmem:[%s414] sm:%s412] %v411
    %s416 = scalar_lea.vmem [#allocation0], 40
    %v417 = vld [vmem:[%s416] sm:%s383]
    %v418 = vpack.c.bf16 0.0, %v417
    %s419 = sshllo.u32 0, %s384
    %s420 = smul.addr 1, 5
    %s421 = scalar_lea.vmem %s1, %s420
    %422 = vst [vmem:[%s421] sm:%s419] %v418
    %s423 = scalar_lea.vmem [#allocation0], 48
    %v424 = vld [vmem:[%s423] sm:%s383]
    %v425 = vpack.c.bf16 0.0, %v424
    %s426 = sshllo.u32 0, %s384
    %s427 = smul.addr 1, 6
    %s428 = scalar_lea.vmem %s1, %s427
    %429 = vst [vmem:[%s428] sm:%s426] %v425
    %s430 = scalar_lea.vmem [#allocation0], 56
    %v431 = vld [vmem:[%s430] sm:%s383]
    %v432 = vpack.c.bf16 0.0, %v431
    %s433 = sshllo.u32 0, %s384
    %s434 = smul.addr 1, 7
    %s435 = scalar_lea.vmem %s1, %s434
    %436 = vst [vmem:[%s435] sm:%s433] %v432
    %s437 = scalar_lea.vmem [#allocation0], 64
    %v438 = vld [vmem:[%s437] sm:%s383]
    %v439 = vpack.c.bf16 0.0, %v438
    %s440 = sshllo.u32 0, %s384
    %s441 = smul.addr 1, 8
    %s442 = scalar_lea.vmem %s1, %s441
    %443 = vst [vmem:[%s442] sm:%s440] %v439
    %s444 = scalar_lea.vmem [#allocation0], 72
    %v445 = vld [vmem:[%s444] sm:%s383]
    %v446 = vpack.c.bf16 0.0, %v445
    %s447 = sshllo.u32 0, %s384
    %s448 = smul.addr 1, 9
    %s449 = scalar_lea.vmem %s1, %s448
    %450 = vst [vmem:[%s449] sm:%s447] %v446
    %s451 = scalar_lea.vmem [#allocation0], 80
    %v452 = vld [vmem:[%s451] sm:%s383]
    %v453 = vpack.c.bf16 0.0, %v452
    %s454 = sshllo.u32 0, %s384
    %s455 = smul.addr 1, 10
    %s456 = scalar_lea.vmem %s1, %s455
    %457 = vst [vmem:[%s456] sm:%s454] %v453
    %s458 = scalar_lea.vmem [#allocation0], 88
    %v459 = vld [vmem:[%s458] sm:%s383]
    %v460 = vpack.c.bf16 0.0, %v459
    %s461 = sshllo.u32 0, %s384
    %s462 = smul.addr 1, 11
    %s463 = scalar_lea.vmem %s1, %s462
    %464 = vst [vmem:[%s463] sm:%s461] %v460
    %s465 = scalar_lea.vmem [#allocation0], 96
    %v466 = vld [vmem:[%s465] sm:%s383]
    %v467 = vpack.c.bf16 0.0, %v466
    %s468 = sshllo.u32 0, %s384
    %s469 = smul.addr 1, 12
    %s470 = scalar_lea.vmem %s1, %s469
    %471 = vst [vmem:[%s470] sm:%s468] %v467
    %s472 = scalar_lea.vmem [#allocation0], 104
    %v473 = vld [vmem:[%s472] sm:%s383]
    %v474 = vpack.c.bf16 0.0, %v473
    %s475 = sshllo.u32 0, %s384
    %s476 = smul.addr 1, 13
    %s477 = scalar_lea.vmem %s1, %s476
    %478 = vst [vmem:[%s477] sm:%s475] %v474
    %s479 = scalar_lea.vmem [#allocation0], 112
    %v480 = vld [vmem:[%s479] sm:%s383]
    %v481 = vpack.c.bf16 0.0, %v480
    %s482 = sshllo.u32 0, %s384
    %s483 = smul.addr 1, 14
    %s484 = scalar_lea.vmem %s1, %s483
    %485 = vst [vmem:[%s484] sm:%s482] %v481
    %s486 = scalar_lea.vmem [#allocation0], 120
    %v487 = vld [vmem:[%s486] sm:%s383]
    %v488 = vpack.c.bf16 0.0, %v487
    %s489 = sshllo.u32 0, %s384
    %s490 = smul.addr 1, 15
    %s491 = scalar_lea.vmem %s1, %s490
    %492 = vst [vmem:[%s491] sm:%s489] %v488
    %s493 = scalar_lea.vmem [#allocation0], 128
    %v494 = vld [vmem:[%s493] sm:%s383]
    %v495 = vpack.c.bf16 0.0, %v494
    %s496 = sshllo.u32 0, %s384
    %s497 = smul.addr 1, 16
    %s498 = scalar_lea.vmem %s1, %s497
    %499 = vst [vmem:[%s498] sm:%s496] %v495
    %s500 = scalar_lea.vmem [#allocation0], 136
    %v501 = vld [vmem:[%s500] sm:%s383]
    %v502 = vpack.c.bf16 0.0, %v501
    %s503 = sshllo.u32 0, %s384
    %s504 = smul.addr 1, 17
    %s505 = scalar_lea.vmem %s1, %s504
    %506 = vst [vmem:[%s505] sm:%s503] %v502
    %s507 = scalar_lea.vmem [#allocation0], 144
    %v508 = vld [vmem:[%s507] sm:%s383]
    %v509 = vpack.c.bf16 0.0, %v508
    %s510 = sshllo.u32 0, %s384
    %s511 = smul.addr 1, 18
    %s512 = scalar_lea.vmem %s1, %s511
    %513 = vst [vmem:[%s512] sm:%s510] %v509
    %s514 = scalar_lea.vmem [#allocation0], 152
    %v515 = vld [vmem:[%s514] sm:%s383]
    %v516 = vpack.c.bf16 0.0, %v515
    %s517 = sshllo.u32 0, %s384
    %s518 = smul.addr 1, 19
    %s519 = scalar_lea.vmem %s1, %s518
    %520 = vst [vmem:[%s519] sm:%s517] %v516
    %s521 = scalar_lea.vmem [#allocation0], 160
    %v522 = vld [vmem:[%s521] sm:%s383]
    %v523 = vpack.c.bf16 0.0, %v522
    %s524 = sshllo.u32 0, %s384
    %s525 = smul.addr 1, 20
    %s526 = scalar_lea.vmem %s1, %s525
    %527 = vst [vmem:[%s526] sm:%s524] %v523
    %s528 = scalar_lea.vmem [#allocation0], 168
    %v529 = vld [vmem:[%s528] sm:%s383]
    %v530 = vpack.c.bf16 0.0, %v529
    %s531 = sshllo.u32 0, %s384
    %s532 = smul.addr 1, 21
    %s533 = scalar_lea.vmem %s1, %s532
    %534 = vst [vmem:[%s533] sm:%s531] %v530
    %s535 = scalar_lea.vmem [#allocation0], 176
    %v536 = vld [vmem:[%s535] sm:%s383]
    %v537 = vpack.c.bf16 0.0, %v536
    %s538 = sshllo.u32 0, %s384
    %s539 = smul.addr 1, 22
    %s540 = scalar_lea.vmem %s1, %s539
    %541 = vst [vmem:[%s540] sm:%s538] %v537
    %s542 = scalar_lea.vmem [#allocation0], 184
    %v543 = vld [vmem:[%s542] sm:%s383]
    %v544 = vpack.c.bf16 0.0, %v543
    %s545 = sshllo.u32 0, %s384
    %s546 = smul.addr 1, 23
    %s547 = scalar_lea.vmem %s1, %s546
    %548 = vst [vmem:[%s547] sm:%s545] %v544
    %s549 = scalar_lea.vmem [#allocation0], 192
    %v550 = vld [vmem:[%s549] sm:%s383]
    %v551 = vpack.c.bf16 0.0, %v550
    %s552 = sshllo.u32 0, %s384
    %s553 = smul.addr 1, 24
    %s554 = scalar_lea.vmem %s1, %s553
    %555 = vst [vmem:[%s554] sm:%s552] %v551
    %s556 = scalar_lea.vmem [#allocation0], 200
    %v557 = vld [vmem:[%s556] sm:%s383]
    %v558 = vpack.c.bf16 0.0, %v557
    %s559 = sshllo.u32 0, %s384
    %s560 = smul.addr 1, 25
    %s561 = scalar_lea.vmem %s1, %s560
    %562 = vst [vmem:[%s561] sm:%s559] %v558
    %s563 = scalar_lea.vmem [#allocation0], 208
    %v564 = vld [vmem:[%s563] sm:%s383]
    %v565 = vpack.c.bf16 0.0, %v564
    %s566 = sshllo.u32 0, %s384
    %s567 = smul.addr 1, 26
    %s568 = scalar_lea.vmem %s1, %s567
    %569 = vst [vmem:[%s568] sm:%s566] %v565
    %s570 = scalar_lea.vmem [#allocation0], 216
    %v571 = vld [vmem:[%s570] sm:%s383]
    %v572 = vpack.c.bf16 0.0, %v571
    %s573 = sshllo.u32 0, %s384
    %s574 = smul.addr 1, 27
    %s575 = scalar_lea.vmem %s1, %s574
    %576 = vst [vmem:[%s575] sm:%s573] %v572
    %s577 = scalar_lea.vmem [#allocation0], 224
    %v578 = vld [vmem:[%s577] sm:%s383]
    %v579 = vpack.c.bf16 0.0, %v578
    %s580 = sshllo.u32 0, %s384
    %s581 = smul.addr 1, 28
    %s582 = scalar_lea.vmem %s1, %s581
    %583 = vst [vmem:[%s582] sm:%s580] %v579
    %s584 = scalar_lea.vmem [#allocation0], 232
    %v585 = vld [vmem:[%s584] sm:%s383]
    %v586 = vpack.c.bf16 0.0, %v585
    %s587 = sshllo.u32 0, %s384
    %s588 = smul.addr 1, 29
    %s589 = scalar_lea.vmem %s1, %s588
    %590 = vst [vmem:[%s589] sm:%s587] %v586
    %s591 = scalar_lea.vmem [#allocation0], 240
    %v592 = vld [vmem:[%s591] sm:%s383]
    %v593 = vpack.c.bf16 0.0, %v592
    %s594 = sshllo.u32 0, %s384
    %s595 = smul.addr 1, 30
    %s596 = scalar_lea.vmem %s1, %s595
    %597 = vst [vmem:[%s596] sm:%s594] %v593
    %s598 = scalar_lea.vmem [#allocation0], 248
    %v599 = vld [vmem:[%s598] sm:%s383]
    %v600 = vpack.c.bf16 0.0, %v599
    %s601 = sshllo.u32 0, %s384
    %s602 = smul.addr 1, 31
    %s603 = scalar_lea.vmem %s1, %s602
    %604 = vst [vmem:[%s603] sm:%s601] %v600
    %s605 = scalar_lea.vmem [#allocation0], 256
    %v606 = vld [vmem:[%s605] sm:%s383]
    %v607 = vpack.c.bf16 0.0, %v606
    %s608 = sshllo.u32 0, %s384
    %s609 = smul.addr 1, 32
    %s610 = scalar_lea.vmem %s1, %s609
    %611 = vst [vmem:[%s610] sm:%s608] %v607
    %s612 = scalar_lea.vmem [#allocation0], 264
    %v613 = vld [vmem:[%s612] sm:%s383]
    %v614 = vpack.c.bf16 0.0, %v613
    %s615 = sshllo.u32 0, %s384
    %s616 = smul.addr 1, 33
    %s617 = scalar_lea.vmem %s1, %s616
    %618 = vst [vmem:[%s617] sm:%s615] %v614
    %s619 = scalar_lea.vmem [#allocation0], 272
    %v620 = vld [vmem:[%s619] sm:%s383]
    %v621 = vpack.c.bf16 0.0, %v620
    %s622 = sshllo.u32 0, %s384
    %s623 = smul.addr 1, 34
    %s624 = scalar_lea.vmem %s1, %s623
    %625 = vst [vmem:[%s624] sm:%s622] %v621
    %s626 = scalar_lea.vmem [#allocation0], 280
    %v627 = vld [vmem:[%s626] sm:%s383]
    %v628 = vpack.c.bf16 0.0, %v627
    %s629 = sshllo.u32 0, %s384
    %s630 = smul.addr 1, 35
    %s631 = scalar_lea.vmem %s1, %s630
    %632 = vst [vmem:[%s631] sm:%s629] %v628
    %s633 = scalar_lea.vmem [#allocation0], 288
    %v634 = vld [vmem:[%s633] sm:%s383]
    %v635 = vpack.c.bf16 0.0, %v634
    %s636 = sshllo.u32 0, %s384
    %s637 = smul.addr 1, 36
    %s638 = scalar_lea.vmem %s1, %s637
    %639 = vst [vmem:[%s638] sm:%s636] %v635
    %s640 = scalar_lea.vmem [#allocation0], 296
    %v641 = vld [vmem:[%s640] sm:%s383]
    %v642 = vpack.c.bf16 0.0, %v641
    %s643 = sshllo.u32 0, %s384
    %s644 = smul.addr 1, 37
    %s645 = scalar_lea.vmem %s1, %s644
    %646 = vst [vmem:[%s645] sm:%s643] %v642
    %s647 = scalar_lea.vmem [#allocation0], 304
    %v648 = vld [vmem:[%s647] sm:%s383]
    %v649 = vpack.c.bf16 0.0, %v648
    %s650 = sshllo.u32 0, %s384
    %s651 = smul.addr 1, 38
    %s652 = scalar_lea.vmem %s1, %s651
    %653 = vst [vmem:[%s652] sm:%s650] %v649
    %s654 = scalar_lea.vmem [#allocation0], 312
    %v655 = vld [vmem:[%s654] sm:%s383]
    %v656 = vpack.c.bf16 0.0, %v655
    %s657 = sshllo.u32 0, %s384
    %s658 = smul.addr 1, 39
    %s659 = scalar_lea.vmem %s1, %s658
    %660 = vst [vmem:[%s659] sm:%s657] %v656
    %s661 = scalar_lea.vmem [#allocation0], 320
    %v662 = vld [vmem:[%s661] sm:%s383]
    %v663 = vpack.c.bf16 0.0, %v662
    %s664 = sshllo.u32 0, %s384
    %s665 = smul.addr 1, 40
    %s666 = scalar_lea.vmem %s1, %s665
    %667 = vst [vmem:[%s666] sm:%s664] %v663
    %s668 = scalar_lea.vmem [#allocation0], 328
    %v669 = vld [vmem:[%s668] sm:%s383]
    %v670 = vpack.c.bf16 0.0, %v669
    %s671 = sshllo.u32 0, %s384
    %s672 = smul.addr 1, 41
    %s673 = scalar_lea.vmem %s1, %s672
    %674 = vst [vmem:[%s673] sm:%s671] %v670
    %s675 = scalar_lea.vmem [#allocation0], 336
    %v676 = vld [vmem:[%s675] sm:%s383]
    %v677 = vpack.c.bf16 0.0, %v676
    %s678 = sshllo.u32 0, %s384
    %s679 = smul.addr 1, 42
    %s680 = scalar_lea.vmem %s1, %s679
    %681 = vst [vmem:[%s680] sm:%s678] %v677
    %s682 = scalar_lea.vmem [#allocation0], 344
    %v683 = vld [vmem:[%s682] sm:%s383]
    %v684 = vpack.c.bf16 0.0, %v683
    %s685 = sshllo.u32 0, %s384
    %s686 = smul.addr 1, 43
    %s687 = scalar_lea.vmem %s1, %s686
    %688 = vst [vmem:[%s687] sm:%s685] %v684
    %s689 = scalar_lea.vmem [#allocation0], 352
    %v690 = vld [vmem:[%s689] sm:%s383]
    %v691 = vpack.c.bf16 0.0, %v690
    %s692 = sshllo.u32 0, %s384
    %s693 = smul.addr 1, 44
    %s694 = scalar_lea.vmem %s1, %s693
    %695 = vst [vmem:[%s694] sm:%s692] %v691
    %s696 = scalar_lea.vmem [#allocation0], 360
    %v697 = vld [vmem:[%s696] sm:%s383]
    %v698 = vpack.c.bf16 0.0, %v697
    %s699 = sshllo.u32 0, %s384
    %s700 = smul.addr 1, 45
    %s701 = scalar_lea.vmem %s1, %s700
    %702 = vst [vmem:[%s701] sm:%s699] %v698
    %s703 = scalar_lea.vmem [#allocation0], 368
    %v704 = vld [vmem:[%s703] sm:%s383]
    %v705 = vpack.c.bf16 0.0, %v704
    %s706 = sshllo.u32 0, %s384
    %s707 = smul.addr 1, 46
    %s708 = scalar_lea.vmem %s1, %s707
    %709 = vst [vmem:[%s708] sm:%s706] %v705
    %s710 = scalar_lea.vmem [#allocation0], 376
    %v711 = vld [vmem:[%s710] sm:%s383]
    %v712 = vpack.c.bf16 0.0, %v711
    %s713 = sshllo.u32 0, %s384
    %s714 = smul.addr 1, 47
    %s715 = scalar_lea.vmem %s1, %s714
    %716 = vst [vmem:[%s715] sm:%s713] %v712
    %s717 = scalar_lea.vmem [#allocation0], 384
    %v718 = vld [vmem:[%s717] sm:%s383]
    %v719 = vpack.c.bf16 0.0, %v718
    %s720 = sshllo.u32 0, %s384
    %s721 = smul.addr 1, 48
    %s722 = scalar_lea.vmem %s1, %s721
    %723 = vst [vmem:[%s722] sm:%s720] %v719
    %s724 = scalar_lea.vmem [#allocation0], 392
    %v725 = vld [vmem:[%s724] sm:%s383]
    %v726 = vpack.c.bf16 0.0, %v725
    %s727 = sshllo.u32 0, %s384
    %s728 = smul.addr 1, 49
    %s729 = scalar_lea.vmem %s1, %s728
    %730 = vst [vmem:[%s729] sm:%s727] %v726
    %s731 = scalar_lea.vmem [#allocation0], 400
    %v732 = vld [vmem:[%s731] sm:%s383]
    %v733 = vpack.c.bf16 0.0, %v732
    %s734 = sshllo.u32 0, %s384
    %s735 = smul.addr 1, 50
    %s736 = scalar_lea.vmem %s1, %s735
    %737 = vst [vmem:[%s736] sm:%s734] %v733
    %s738 = scalar_lea.vmem [#allocation0], 408
    %v739 = vld [vmem:[%s738] sm:%s383]
    %v740 = vpack.c.bf16 0.0, %v739
    %s741 = sshllo.u32 0, %s384
    %s742 = smul.addr 1, 51
    %s743 = scalar_lea.vmem %s1, %s742
    %744 = vst [vmem:[%s743] sm:%s741] %v740
    %s745 = scalar_lea.vmem [#allocation0], 416
    %v746 = vld [vmem:[%s745] sm:%s383]
    %v747 = vpack.c.bf16 0.0, %v746
    %s748 = sshllo.u32 0, %s384
    %s749 = smul.addr 1, 52
    %s750 = scalar_lea.vmem %s1, %s749
    %751 = vst [vmem:[%s750] sm:%s748] %v747
    %s752 = scalar_lea.vmem [#allocation0], 424
    %v753 = vld [vmem:[%s752] sm:%s383]
    %v754 = vpack.c.bf16 0.0, %v753
    %s755 = sshllo.u32 0, %s384
    %s756 = smul.addr 1, 53
    %s757 = scalar_lea.vmem %s1, %s756
    %758 = vst [vmem:[%s757] sm:%s755] %v754
    %s759 = scalar_lea.vmem [#allocation0], 432
    %v760 = vld [vmem:[%s759] sm:%s383]
    %v761 = vpack.c.bf16 0.0, %v760
    %s762 = sshllo.u32 0, %s384
    %s763 = smul.addr 1, 54
    %s764 = scalar_lea.vmem %s1, %s763
    %765 = vst [vmem:[%s764] sm:%s762] %v761
    %s766 = scalar_lea.vmem [#allocation0], 440
    %v767 = vld [vmem:[%s766] sm:%s383]
    %v768 = vpack.c.bf16 0.0, %v767
    %s769 = sshllo.u32 0, %s384
    %s770 = smul.addr 1, 55
    %s771 = scalar_lea.vmem %s1, %s770
    %772 = vst [vmem:[%s771] sm:%s769] %v768
    %s773 = scalar_lea.vmem [#allocation0], 448
    %v774 = vld [vmem:[%s773] sm:%s383]
    %v775 = vpack.c.bf16 0.0, %v774
    %s776 = sshllo.u32 0, %s384
    %s777 = smul.addr 1, 56
    %s778 = scalar_lea.vmem %s1, %s777
    %779 = vst [vmem:[%s778] sm:%s776] %v775
    %s780 = scalar_lea.vmem [#allocation0], 456
    %v781 = vld [vmem:[%s780] sm:%s383]
    %v782 = vpack.c.bf16 0.0, %v781
    %s783 = sshllo.u32 0, %s384
    %s784 = smul.addr 1, 57
    %s785 = scalar_lea.vmem %s1, %s784
    %786 = vst [vmem:[%s785] sm:%s783] %v782
    %s787 = scalar_lea.vmem [#allocation0], 464
    %v788 = vld [vmem:[%s787] sm:%s383]
    %v789 = vpack.c.bf16 0.0, %v788
    %s790 = sshllo.u32 0, %s384
    %s791 = smul.addr 1, 58
    %s792 = scalar_lea.vmem %s1, %s791
    %793 = vst [vmem:[%s792] sm:%s790] %v789
    %s794 = scalar_lea.vmem [#allocation0], 472
    %v795 = vld [vmem:[%s794] sm:%s383]
    %v796 = vpack.c.bf16 0.0, %v795
    %s797 = sshllo.u32 0, %s384
    %s798 = smul.addr 1, 59
    %s799 = scalar_lea.vmem %s1, %s798
    %800 = vst [vmem:[%s799] sm:%s797] %v796
    %s801 = scalar_lea.vmem [#allocation0], 480
    %v802 = vld [vmem:[%s801] sm:%s383]
    %v803 = vpack.c.bf16 0.0, %v802
    %s804 = sshllo.u32 0, %s384
    %s805 = smul.addr 1, 60
    %s806 = scalar_lea.vmem %s1, %s805
    %807 = vst [vmem:[%s806] sm:%s804] %v803
    %s808 = scalar_lea.vmem [#allocation0], 488
    %v809 = vld [vmem:[%s808] sm:%s383]
    %v810 = vpack.c.bf16 0.0, %v809
    %s811 = sshllo.u32 0, %s384
    %s812 = smul.addr 1, 61
    %s813 = scalar_lea.vmem %s1, %s812
    %814 = vst [vmem:[%s813] sm:%s811] %v810
    %s815 = scalar_lea.vmem [#allocation0], 496
    %v816 = vld [vmem:[%s815] sm:%s383]
    %v817 = vpack.c.bf16 0.0, %v816
    %s818 = sshllo.u32 0, %s384
    %s819 = smul.addr 1, 62
    %s820 = scalar_lea.vmem %s1, %s819
    %821 = vst [vmem:[%s820] sm:%s818] %v817
    %s822 = scalar_lea.vmem [#allocation0], 504
    %v823 = vld [vmem:[%s822] sm:%s383]
    %v824 = vpack.c.bf16 0.0, %v823
    %s825 = sshllo.u32 0, %s384
    %s826 = smul.addr 1, 63
    %s827 = scalar_lea.vmem %s1, %s826
    %828 = vst [vmem:[%s827] sm:%s825] %v824
    %s829 = scalar_lea.vmem [#allocation0], 512
    %v830 = vld [vmem:[%s829] sm:%s383]
    %v831 = vpack.c.bf16 0.0, %v830
    %s832 = sshllo.u32 0, %s384
    %s833 = smul.addr 1, 64
    %s834 = scalar_lea.vmem %s1, %s833
    %835 = vst [vmem:[%s834] sm:%s832] %v831
    %s836 = scalar_lea.vmem [#allocation0], 520
    %v837 = vld [vmem:[%s836] sm:%s383]
    %v838 = vpack.c.bf16 0.0, %v837
    %s839 = sshllo.u32 0, %s384
    %s840 = smul.addr 1, 65
    %s841 = scalar_lea.vmem %s1, %s840
    %842 = vst [vmem:[%s841] sm:%s839] %v838
    %s843 = scalar_lea.vmem [#allocation0], 528
    %v844 = vld [vmem:[%s843] sm:%s383]
    %v845 = vpack.c.bf16 0.0, %v844
    %s846 = sshllo.u32 0, %s384
    %s847 = smul.addr 1, 66
    %s848 = scalar_lea.vmem %s1, %s847
    %849 = vst [vmem:[%s848] sm:%s846] %v845
    %s850 = scalar_lea.vmem [#allocation0], 536
    %v851 = vld [vmem:[%s850] sm:%s383]
    %v852 = vpack.c.bf16 0.0, %v851
    %s853 = sshllo.u32 0, %s384
    %s854 = smul.addr 1, 67
    %s855 = scalar_lea.vmem %s1, %s854
    %856 = vst [vmem:[%s855] sm:%s853] %v852
    %s857 = scalar_lea.vmem [#allocation0], 544
    %v858 = vld [vmem:[%s857] sm:%s383]
    %v859 = vpack.c.bf16 0.0, %v858
    %s860 = sshllo.u32 0, %s384
    %s861 = smul.addr 1, 68
    %s862 = scalar_lea.vmem %s1, %s861
    %863 = vst [vmem:[%s862] sm:%s860] %v859
    %s864 = scalar_lea.vmem [#allocation0], 552
    %v865 = vld [vmem:[%s864] sm:%s383]
    %v866 = vpack.c.bf16 0.0, %v865
    %s867 = sshllo.u32 0, %s384
    %s868 = smul.addr 1, 69
    %s869 = scalar_lea.vmem %s1, %s868
    %870 = vst [vmem:[%s869] sm:%s867] %v866
    %s871 = scalar_lea.vmem [#allocation0], 560
    %v872 = vld [vmem:[%s871] sm:%s383]
    %v873 = vpack.c.bf16 0.0, %v872
    %s874 = sshllo.u32 0, %s384
    %s875 = smul.addr 1, 70
    %s876 = scalar_lea.vmem %s1, %s875
    %877 = vst [vmem:[%s876] sm:%s874] %v873
    %s878 = scalar_lea.vmem [#allocation0], 568
    %v879 = vld [vmem:[%s878] sm:%s383]
    %v880 = vpack.c.bf16 0.0, %v879
    %s881 = sshllo.u32 0, %s384
    %s882 = smul.addr 1, 71
    %s883 = scalar_lea.vmem %s1, %s882
    %884 = vst [vmem:[%s883] sm:%s881] %v880
    %s885 = scalar_lea.vmem [#allocation0], 576
    %v886 = vld [vmem:[%s885] sm:%s383]
    %v887 = vpack.c.bf16 0.0, %v886
    %s888 = sshllo.u32 0, %s384
    %s889 = smul.addr 1, 72
    %s890 = scalar_lea.vmem %s1, %s889
    %891 = vst [vmem:[%s890] sm:%s888] %v887
    %s892 = scalar_lea.vmem [#allocation0], 584
    %v893 = vld [vmem:[%s892] sm:%s383]
    %v894 = vpack.c.bf16 0.0, %v893
    %s895 = sshllo.u32 0, %s384
    %s896 = smul.addr 1, 73
    %s897 = scalar_lea.vmem %s1, %s896
    %898 = vst [vmem:[%s897] sm:%s895] %v894
    %s899 = scalar_lea.vmem [#allocation0], 592
    %v900 = vld [vmem:[%s899] sm:%s383]
    %v901 = vpack.c.bf16 0.0, %v900
    %s902 = sshllo.u32 0, %s384
    %s903 = smul.addr 1, 74
    %s904 = scalar_lea.vmem %s1, %s903
    %905 = vst [vmem:[%s904] sm:%s902] %v901
    %s906 = scalar_lea.vmem [#allocation0], 600
    %v907 = vld [vmem:[%s906] sm:%s383]
    %v908 = vpack.c.bf16 0.0, %v907
    %s909 = sshllo.u32 0, %s384
    %s910 = smul.addr 1, 75
    %s911 = scalar_lea.vmem %s1, %s910
    %912 = vst [vmem:[%s911] sm:%s909] %v908
    %s913 = scalar_lea.vmem [#allocation0], 608
    %v914 = vld [vmem:[%s913] sm:%s383]
    %v915 = vpack.c.bf16 0.0, %v914
    %s916 = sshllo.u32 0, %s384
    %s917 = smul.addr 1, 76
    %s918 = scalar_lea.vmem %s1, %s917
    %919 = vst [vmem:[%s918] sm:%s916] %v915
    %s920 = scalar_lea.vmem [#allocation0], 616
    %v921 = vld [vmem:[%s920] sm:%s383]
    %v922 = vpack.c.bf16 0.0, %v921
    %s923 = sshllo.u32 0, %s384
    %s924 = smul.addr 1, 77
    %s925 = scalar_lea.vmem %s1, %s924
    %926 = vst [vmem:[%s925] sm:%s923] %v922
    %s927 = scalar_lea.vmem [#allocation0], 624
    %v928 = vld [vmem:[%s927] sm:%s383]
    %v929 = vpack.c.bf16 0.0, %v928
    %s930 = sshllo.u32 0, %s384
    %s931 = smul.addr 1, 78
    %s932 = scalar_lea.vmem %s1, %s931
    %933 = vst [vmem:[%s932] sm:%s930] %v929
    %s934 = scalar_lea.vmem [#allocation0], 632
    %v935 = vld [vmem:[%s934] sm:%s383]
    %v936 = vpack.c.bf16 0.0, %v935
    %s937 = sshllo.u32 0, %s384
    %s938 = smul.addr 1, 79
    %s939 = scalar_lea.vmem %s1, %s938
    %940 = vst [vmem:[%s939] sm:%s937] %v936
    %s941 = scalar_lea.vmem [#allocation0], 640
    %v942 = vld [vmem:[%s941] sm:%s383]
    %v943 = vpack.c.bf16 0.0, %v942
    %s944 = sshllo.u32 0, %s384
    %s945 = smul.addr 1, 80
    %s946 = scalar_lea.vmem %s1, %s945
    %947 = vst [vmem:[%s946] sm:%s944] %v943
    %s948 = scalar_lea.vmem [#allocation0], 648
    %v949 = vld [vmem:[%s948] sm:%s383]
    %v950 = vpack.c.bf16 0.0, %v949
    %s951 = sshllo.u32 0, %s384
    %s952 = smul.addr 1, 81
    %s953 = scalar_lea.vmem %s1, %s952
    %954 = vst [vmem:[%s953] sm:%s951] %v950
    %s955 = scalar_lea.vmem [#allocation0], 656
    %v956 = vld [vmem:[%s955] sm:%s383]
    %v957 = vpack.c.bf16 0.0, %v956
    %s958 = sshllo.u32 0, %s384
    %s959 = smul.addr 1, 82
    %s960 = scalar_lea.vmem %s1, %s959
    %961 = vst [vmem:[%s960] sm:%s958] %v957
    %s962 = scalar_lea.vmem [#allocation0], 664
    %v963 = vld [vmem:[%s962] sm:%s383]
    %v964 = vpack.c.bf16 0.0, %v963
    %s965 = sshllo.u32 0, %s384
    %s966 = smul.addr 1, 83
    %s967 = scalar_lea.vmem %s1, %s966
    %968 = vst [vmem:[%s967] sm:%s965] %v964
    %s969 = scalar_lea.vmem [#allocation0], 672
    %v970 = vld [vmem:[%s969] sm:%s383]
    %v971 = vpack.c.bf16 0.0, %v970
    %s972 = sshllo.u32 0, %s384
    %s973 = smul.addr 1, 84
    %s974 = scalar_lea.vmem %s1, %s973
    %975 = vst [vmem:[%s974] sm:%s972] %v971
    %s976 = scalar_lea.vmem [#allocation0], 680
    %v977 = vld [vmem:[%s976] sm:%s383]
    %v978 = vpack.c.bf16 0.0, %v977
    %s979 = sshllo.u32 0, %s384
    %s980 = smul.addr 1, 85
    %s981 = scalar_lea.vmem %s1, %s980
    %982 = vst [vmem:[%s981] sm:%s979] %v978
    %s983 = scalar_lea.vmem [#allocation0], 688
    %v984 = vld [vmem:[%s983] sm:%s383]
    %v985 = vpack.c.bf16 0.0, %v984
    %s986 = sshllo.u32 0, %s384
    %s987 = smul.addr 1, 86
    %s988 = scalar_lea.vmem %s1, %s987
    %989 = vst [vmem:[%s988] sm:%s986] %v985
    %s990 = scalar_lea.vmem [#allocation0], 696
    %v991 = vld [vmem:[%s990] sm:%s383]
    %v992 = vpack.c.bf16 0.0, %v991
    %s993 = sshllo.u32 0, %s384
    %s994 = smul.addr 1, 87
    %s995 = scalar_lea.vmem %s1, %s994
    %996 = vst [vmem:[%s995] sm:%s993] %v992
    %s997 = scalar_lea.vmem [#allocation0], 704
    %v998 = vld [vmem:[%s997] sm:%s383]
    %v999 = vpack.c.bf16 0.0, %v998
    %s1000 = sshllo.u32 0, %s384
    %s1001 = smul.addr 1, 88
    %s1002 = scalar_lea.vmem %s1, %s1001
    %1003 = vst [vmem:[%s1002] sm:%s1000] %v999
    %s1004 = scalar_lea.vmem [#allocation0], 712
    %v1005 = vld [vmem:[%s1004] sm:%s383]
    %v1006 = vpack.c.bf16 0.0, %v1005
    %s1007 = sshllo.u32 0, %s384
    %s1008 = smul.addr 1, 89
    %s1009 = scalar_lea.vmem %s1, %s1008
    %1010 = vst [vmem:[%s1009] sm:%s1007] %v1006
    %s1011 = scalar_lea.vmem [#allocation0], 720
    %v1012 = vld [vmem:[%s1011] sm:%s383]
    %v1013 = vpack.c.bf16 0.0, %v1012
    %s1014 = sshllo.u32 0, %s384
    %s1015 = smul.addr 1, 90
    %s1016 = scalar_lea.vmem %s1, %s1015
    %1017 = vst [vmem:[%s1016] sm:%s1014] %v1013
    %s1018 = scalar_lea.vmem [#allocation0], 728
    %v1019 = vld [vmem:[%s1018] sm:%s383]
    %v1020 = vpack.c.bf16 0.0, %v1019
    %s1021 = sshllo.u32 0, %s384
    %s1022 = smul.addr 1, 91
    %s1023 = scalar_lea.vmem %s1, %s1022
    %1024 = vst [vmem:[%s1023] sm:%s1021] %v1020
    %s1025 = scalar_lea.vmem [#allocation0], 736
    %v1026 = vld [vmem:[%s1025] sm:%s383]
    %v1027 = vpack.c.bf16 0.0, %v1026
    %s1028 = sshllo.u32 0, %s384
    %s1029 = smul.addr 1, 92
    %s1030 = scalar_lea.vmem %s1, %s1029
    %1031 = vst [vmem:[%s1030] sm:%s1028] %v1027
    %s1032 = scalar_lea.vmem [#allocation0], 744
    %v1033 = vld [vmem:[%s1032] sm:%s383]
    %v1034 = vpack.c.bf16 0.0, %v1033
    %s1035 = sshllo.u32 0, %s384
    %s1036 = smul.addr 1, 93
    %s1037 = scalar_lea.vmem %s1, %s1036
    %1038 = vst [vmem:[%s1037] sm:%s1035] %v1034
    %s1039 = scalar_lea.vmem [#allocation0], 752
    %v1040 = vld [vmem:[%s1039] sm:%s383]
    %v1041 = vpack.c.bf16 0.0, %v1040
    %s1042 = sshllo.u32 0, %s384
    %s1043 = smul.addr 1, 94
    %s1044 = scalar_lea.vmem %s1, %s1043
    %1045 = vst [vmem:[%s1044] sm:%s1042] %v1041
    %s1046 = scalar_lea.vmem [#allocation0], 760
    %v1047 = vld [vmem:[%s1046] sm:%s383]
    %v1048 = vpack.c.bf16 0.0, %v1047
    %s1049 = sshllo.u32 0, %s384
    %s1050 = smul.addr 1, 95
    %s1051 = scalar_lea.vmem %s1, %s1050
    %1052 = vst [vmem:[%s1051] sm:%s1049] %v1048

// kernel: vit_yolo_forward.1
$region0: #{vit_yolo_forward.1}
  #allocation0 [shape = 'u32[]', space=smem, size = 0x4, offset = 0x4, fixed_abs, tag = 'smem constant byte address 0x4 - core index']
  #allocation1 [shape = 'u32[144,128]{1,0:T(1,128)}', space=vmem, size = 0x12000, scoped, tag = 'internal scratch']
  #allocation2 [shape = 'bf16[128,1536]{1,0:T(16,128)(2,1)}', space=vmem, size = 0x60000, scoped, tag = 'scratch operand']
  #allocation3 [shape = 's32[1]{0}', space=sflag, size = 0x4, scoped, tag = 'scratch operand']
  #allocation4 [shape = 's32[]', space=sflag, size = 0x4, offset = 0, fixed_abs, tag = 'sflag constant byte address 0x0 - dummy sync flag']
  %s0 = inlined_call_operand.vmem [shape: bf16[8,768], index: 0, kind: input, shape index: {}]
  %s1 = inlined_call_operand.vmem [shape: bf16[768,32], index: 1, kind: input, shape index: {}]
  %s2 = inlined_call_operand.vmem [shape: f32[8,32], index: 2, kind: input, shape index: {}]
  %s3 = inlined_call_operand.vmem [shape: f32[8,8], index: 3, kind: input, shape index: {}]
  %s4 = inlined_call_operand.vmem [shape: f32[2,1,32], index: 4, kind: input, shape index: {}]
  %s5 = inlined_call_operand.vmem [shape: f32[2,1,32], index: 5, kind: input, shape index: {}]
  %s6 = inlined_call_operand.vmem [shape: bf16[2,32,96], index: 6, kind: input, shape index: {}]
  %s7 = inlined_call_operand.vmem [shape: f32[2,1,96], index: 7, kind: input, shape index: {}]
  %s8 = inlined_call_operand.vmem [shape: bf16[2,4,8,32], index: 8, kind: input, shape index: {}]
  %s9 = inlined_call_operand.vmem [shape: f32[2,1,32], index: 9, kind: input, shape index: {}]
  %s10 = inlined_call_operand.vmem [shape: f32[2,1,32], index: 10, kind: input, shape index: {}]
  %s11 = inlined_call_operand.vmem [shape: f32[2,1,32], index: 11, kind: input, shape index: {}]
  %s12 = inlined_call_operand.vmem [shape: bf16[2,32,128], index: 12, kind: input, shape index: {}]
  %s13 = inlined_call_operand.vmem [shape: f32[2,1,128], index: 13, kind: input, shape index: {}]
  %s14 = inlined_call_operand.vmem [shape: bf16[2,128,32], index: 14, kind: input, shape index: {}]
  %s15 = inlined_call_operand.vmem [shape: f32[2,1,32], index: 15, kind: input, shape index: {}]
  %s16 = inlined_call_operand.vmem [shape: f32[1,32], index: 16, kind: input, shape index: {}]
  %s17 = inlined_call_operand.vmem [shape: f32[1,32], index: 17, kind: input, shape index: {}]
  %s18 = inlined_call_operand.vmem [shape: bf16[5,32,128], index: 18, kind: input, shape index: {}]
  %s19 = inlined_call_operand.vmem [shape: f32[1,128], index: 19, kind: input, shape index: {}]
  %s20 = inlined_call_operand.vmem [shape: f32[1,1536], index: 20, kind: input, shape index: {}]
  %s21 = inlined_call_operand.vmem [shape: bf16[128,1536], index: 21, kind: input, shape index: {}]
  %s22 = inlined_call_operand.vmem [shape: f32[1,1536], index: 22, kind: output, shape index: {}]
  %s23 = sld [smem:[#allocation0]]
  $region131: #{vit_yolo_forward.1} parent=0
    _
  %s25 = ssub.s32 1, %s23
  %s26 = scalar_select 0, %s25, %s23
  // Predicated region
  $region2: #{vit_yolo_forward.1} parent=0 // pred_check
    _
  $region3: #{vit_yolo_forward.1} parent=0 // pred_check_branch
    %28 = sbr.rel (0) target = $region5
  $region4: #{vit_yolo_forward.1} parent=0 // pred_region
    _
  $region5: #{vit_yolo_forward.1} parent=0 // pred_fallthru
    _
  // Predicated region
  $region6: #{vit_yolo_forward.1} parent=0 // pred_check
    _
  $region7: #{vit_yolo_forward.1} parent=0 // pred_check_branch
    %30 = sbr.rel (0) target = $region9
  $region8: #{vit_yolo_forward.1} parent=0 // pred_region
    _
  $region9: #{vit_yolo_forward.1} parent=0 // pred_fallthru
    _
  // Predicated region
  $region10: #{vit_yolo_forward.1} parent=0 // pred_check
    _
  $region11: #{vit_yolo_forward.1} parent=0 // pred_check_branch
    %32 = sbr.rel (0) target = $region13
  $region12: #{vit_yolo_forward.1} parent=0 // pred_region
    _
  $region13: #{vit_yolo_forward.1} parent=0 // pred_fallthru
    _
  // Predicated region
  $region14: #{vit_yolo_forward.1} parent=0 // pred_check
    _
  $region15: #{vit_yolo_forward.1} parent=0 // pred_check_branch
    %34 = sbr.rel (0) target = $region17
  $region16: #{vit_yolo_forward.1} parent=0 // pred_region
    _
  $region17: #{vit_yolo_forward.1} parent=0 // pred_fallthru
    _
  // Predicated region
  $region18: #{vit_yolo_forward.1} parent=0 // pred_check
    _
  $region19: #{vit_yolo_forward.1} parent=0 // pred_check_branch
    %36 = sbr.rel (0) target = $region21
  $region20: #{vit_yolo_forward.1} parent=0 // pred_region
    _
  $region21: #{vit_yolo_forward.1} parent=0 // pred_fallthru
    _
  // Predicated region
  $region22: #{vit_yolo_forward.1} parent=0 // pred_check
    _
  $region23: #{vit_yolo_forward.1} parent=0 // pred_check_branch
    %38 = sbr.rel (0) target = $region25
  $region24: #{vit_yolo_forward.1} parent=0 // pred_region
    _
  $region25: #{vit_yolo_forward.1} parent=0 // pred_fallthru
    _
  // Predicated region
  $region26: #{vit_yolo_forward.1} parent=0 // pred_check
    _
  $region27: #{vit_yolo_forward.1} parent=0 // pred_check_branch
    %40 = sbr.rel (0) target = $region29
  $region28: #{vit_yolo_forward.1} parent=0 // pred_region
    _
  $region29: #{vit_yolo_forward.1} parent=0 // pred_fallthru
    _
  // Predicated region
  $region30: #{vit_yolo_forward.1} parent=0 // pred_check
    _
  $region31: #{vit_yolo_forward.1} parent=0 // pred_check_branch
    %42 = sbr.rel (0) target = $region33
  $region32: #{vit_yolo_forward.1} parent=0 // pred_region
    _
  $region33: #{vit_yolo_forward.1} parent=0 // pred_fallthru
    _
  // Predicated region
  $region34: #{vit_yolo_forward.1} parent=0 // pred_check
    _
  $region35: #{vit_yolo_forward.1} parent=0 // pred_check_branch
    %44 = sbr.rel (0) target = $region37
  $region36: #{vit_yolo_forward.1} parent=0 // pred_region
    _
  $region37: #{vit_yolo_forward.1} parent=0 // pred_fallthru
    _
  // Predicated region
  $region38: #{vit_yolo_forward.1} parent=0 // pred_check
    _
  $region39: #{vit_yolo_forward.1} parent=0 // pred_check_branch
    %46 = sbr.rel (0) target = $region41
  $region40: #{vit_yolo_forward.1} parent=0 // pred_region
    _
  $region41: #{vit_yolo_forward.1} parent=0 // pred_fallthru
    _
  // Predicated region
  $region42: #{vit_yolo_forward.1} parent=0 // pred_check
    _
  $region43: #{vit_yolo_forward.1} parent=0 // pred_check_branch
    %48 = sbr.rel (0) target = $region45
  $region44: #{vit_yolo_forward.1} parent=0 // pred_region
    _
  $region45: #{vit_yolo_forward.1} parent=0 // pred_fallthru
    _
  // Predicated region
  $region46: #{vit_yolo_forward.1} parent=0 // pred_check
    _
  $region47: #{vit_yolo_forward.1} parent=0 // pred_check_branch
    %50 = sbr.rel (0) target = $region49
  $region48: #{vit_yolo_forward.1} parent=0 // pred_region
    _
  $region49: #{vit_yolo_forward.1} parent=0 // pred_fallthru
    _
  // Predicated region
  $region50: #{vit_yolo_forward.1} parent=0 // pred_check
    _
  $region51: #{vit_yolo_forward.1} parent=0 // pred_check_branch
    %52 = sbr.rel (0) target = $region53
  $region52: #{vit_yolo_forward.1} parent=0 // pred_region
    _
  $region53: #{vit_yolo_forward.1} parent=0 // pred_fallthru
    _
  // Predicated region
  $region54: #{vit_yolo_forward.1} parent=0 // pred_check
    _
  $region55: #{vit_yolo_forward.1} parent=0 // pred_check_branch
    %54 = sbr.rel (0) target = $region57
  $region56: #{vit_yolo_forward.1} parent=0 // pred_region
    _
  $region57: #{vit_yolo_forward.1} parent=0 // pred_fallthru
    _
  // Predicated region
  $region58: #{vit_yolo_forward.1} parent=0 // pred_check
    _
  $region59: #{vit_yolo_forward.1} parent=0 // pred_check_branch
    %56 = sbr.rel (0) target = $region61
  $region60: #{vit_yolo_forward.1} parent=0 // pred_region
    _
  $region61: #{vit_yolo_forward.1} parent=0 // pred_fallthru
    _
  // Predicated region
  $region62: #{vit_yolo_forward.1} parent=0 // pred_check
    _
  $region63: #{vit_yolo_forward.1} parent=0 // pred_check_branch
    %58 = sbr.rel (0) target = $region65
  $region64: #{vit_yolo_forward.1} parent=0 // pred_region
    _
  $region65: #{vit_yolo_forward.1} parent=0 // pred_fallthru
    _
  // Predicated region
  $region66: #{vit_yolo_forward.1} parent=0 // pred_check
    _
  $region67: #{vit_yolo_forward.1} parent=0 // pred_check_branch
    %60 = sbr.rel (0) target = $region69
  $region68: #{vit_yolo_forward.1} parent=0 // pred_region
    _
  $region69: #{vit_yolo_forward.1} parent=0 // pred_fallthru
    _
  // Predicated region
  $region70: #{vit_yolo_forward.1} parent=0 // pred_check
    _
  $region71: #{vit_yolo_forward.1} parent=0 // pred_check_branch
    %62 = sbr.rel (0) target = $region73
  $region72: #{vit_yolo_forward.1} parent=0 // pred_region
    _
  $region73: #{vit_yolo_forward.1} parent=0 // pred_fallthru
    _
  // Predicated region
  $region74: #{vit_yolo_forward.1} parent=0 // pred_check
    _
  $region75: #{vit_yolo_forward.1} parent=0 // pred_check_branch
    %64 = sbr.rel (0) target = $region77
  $region76: #{vit_yolo_forward.1} parent=0 // pred_region
    _
  $region77: #{vit_yolo_forward.1} parent=0 // pred_fallthru
    _
  // Predicated region
  $region78: #{vit_yolo_forward.1} parent=0 // pred_check
    _
  $region79: #{vit_yolo_forward.1} parent=0 // pred_check_branch
    %66 = sbr.rel (0) target = $region81
  $region80: #{vit_yolo_forward.1} parent=0 // pred_region
    _
  $region81: #{vit_yolo_forward.1} parent=0 // pred_fallthru
    _
  // Predicated region
  $region82: #{vit_yolo_forward.1} parent=0 // pred_check
    _
  $region83: #{vit_yolo_forward.1} parent=0 // pred_check_branch
    %68 = sbr.rel (0) target = $region85
  $region84: #{vit_yolo_forward.1} parent=0 // pred_region
    _
  $region85: #{vit_yolo_forward.1} parent=0 // pred_fallthru
    _
  %p71 = scmp.lt.u32.totalorder 4, 8
  %p72 = pneg %p71
  // Predicated region
  $region86: #{vit_yolo_forward.1} parent=0 // pred_check
    _
  $region87: #{vit_yolo_forward.1} parent=0 // pred_check_branch
    %74 = sbr.rel (%p71) target = $region89
  $region88: #{vit_yolo_forward.1} parent=0 // pred_region
    %s471 = sand.u32 4, 7
    %p472 = scmp.eq.s32.totalorder %s471, 0
    %p473 = pneg %p472
    // Predicated region
    $region101: #{vit_yolo_forward.1} parent=88 // pred_check
      _
    $region102: #{vit_yolo_forward.1} parent=88 // pred_check_branch
      %475 = sbr.rel (%p472) target = $region104
    $region103: #{vit_yolo_forward.1} parent=88 // pred_region
      %s476 = sand.u32 4, 7
      %s477 = ssub.s32 4, %s476
      %s478 = scalar_lea.vmem %s21, %s477
      %s479 = ssub.s32 4, %s476
      %s480 = scalar_lea.vmem [#allocation2], %s479
      loop: start=0, step=1, limit=1
      $region105: #{vit_yolo_forward.1} parent=103 // loop_pre_header
        _
      $region106: #{vit_yolo_forward.1} parent=103 // loop_header
        %s482 = sphi 0, %s486
        %p483 = scmp.ge.s32.totalorder %s482, 1
        %s487 = sphi %s21, %s21
        %s488 = sphi [#allocation2], [#allocation2]
      $region107: #{vit_yolo_forward.1} parent=103 // loop_header_branch
        %485 = sbr.rel (%p483) target = $region111
      $region108: #{vit_yolo_forward.1} parent=103 // loop_body
        _
      $region109: #{vit_yolo_forward.1} parent=103 // loop_footer
        %s486 = sadd.s32 1, %s482
      $region110: #{vit_yolo_forward.1} parent=103 // loop_footer_branch
        %481 = sbr.rel target = $region106
      $region111: #{vit_yolo_forward.1} parent=103 // loop_exit
        _
      %s489 = sshllo.u32 0, %s476
      loop: start=0, step=1, limit=1
      $region112: #{vit_yolo_forward.1} parent=103 // loop_pre_header
        _
      $region113: #{vit_yolo_forward.1} parent=103 // loop_header
        %s491 = sphi 0, %s495
        %p492 = scmp.ge.s32.totalorder %s491, 1
        %s496 = sphi %s478, %s478
        %s497 = sphi %s480, %s480
      $region114: #{vit_yolo_forward.1} parent=103 // loop_header_branch
        %494 = sbr.rel (%p492) target = $region118
      $region115: #{vit_yolo_forward.1} parent=103 // loop_body
        %v498 = vld [vmem:[%s496] sm:%s489]
        %499 = vst [vmem:[%s497] sm:%s489] %v498
        %v500 = vld [vmem:[%s496 + $0x30] sm:%s489]
        %501 = vst [vmem:[%s497 + $0x4] sm:%s489] %v500
        %v502 = vld [vmem:[%s496 + $0x4] sm:%s489]
        %503 = vst [vmem:[%s497 + $0x8] sm:%s489] %v502
        %v504 = vld [vmem:[%s496 + $0x34] sm:%s489]
        %505 = vst [vmem:[%s497 + $0xc] sm:%s489] %v504
        %v506 = vld [vmem:[%s496 + $0x8] sm:%s489]
        %507 = vst [vmem:[%s497 + $0x10] sm:%s489] %v506
        %v508 = vld [vmem:[%s496 + $0x38] sm:%s489]
        %509 = vst [vmem:[%s497 + $0x14] sm:%s489] %v508
        %v510 = vld [vmem:[%s496 + $0xc] sm:%s489]
        %511 = vst [vmem:[%s497 + $0x18] sm:%s489] %v510
        %v512 = vld [vmem:[%s496 + $0x3c] sm:%s489]
        %513 = vst [vmem:[%s497 + $0x1c] sm:%s489] %v512
        %v514 = vld [vmem:[%s496 + $0x10] sm:%s489]
        %515 = vst [vmem:[%s497 + $0x20] sm:%s489] %v514
        %v516 = vld [vmem:[%s496 + $0x40] sm:%s489]
        %517 = vst [vmem:[%s497 + $0x24] sm:%s489] %v516
        %v518 = vld [vmem:[%s496 + $0x14] sm:%s489]
        %519 = vst [vmem:[%s497 + $0x28] sm:%s489] %v518
        %v520 = vld [vmem:[%s496 + $0x44] sm:%s489]
        %521 = vst [vmem:[%s497 + $0x2c] sm:%s489] %v520
        %v522 = vld [vmem:[%s496 + $0x18] sm:%s489]
        %523 = vst [vmem:[%s497 + $0x30] sm:%s489] %v522
        %v524 = vld [vmem:[%s496 + $0x48] sm:%s489]
        %525 = vst [vmem:[%s497 + $0x34] sm:%s489] %v524
        %v526 = vld [vmem:[%s496 + $0x1c] sm:%s489]
        %527 = vst [vmem:[%s497 + $0x38] sm:%s489] %v526
        %v528 = vld [vmem:[%s496 + $0x4c] sm:%s489]
        %529 = vst [vmem:[%s497 + $0x3c] sm:%s489] %v528
        %v530 = vld [vmem:[%s496 + $0x20] sm:%s489]
        %531 = vst [vmem:[%s497 + $0x40] sm:%s489] %v530
        %v532 = vld [vmem:[%s496 + $0x50] sm:%s489]
        %533 = vst [vmem:[%s497 + $0x44] sm:%s489] %v532
        %v534 = vld [vmem:[%s496 + $0x24] sm:%s489]
        %535 = vst [vmem:[%s497 + $0x48] sm:%s489] %v534
        %v536 = vld [vmem:[%s496 + $0x54] sm:%s489]
        %537 = vst [vmem:[%s497 + $0x4c] sm:%s489] %v536
        %v538 = vld [vmem:[%s496 + $0x28] sm:%s489]
        %539 = vst [vmem:[%s497 + $0x50] sm:%s489] %v538
        %v540 = vld [vmem:[%s496 + $0x58] sm:%s489]
        %541 = vst [vmem:[%s497 + $0x54] sm:%s489] %v540
        %v542 = vld [vmem:[%s496 + $0x2c] sm:%s489]
        %543 = vst [vmem:[%s497 + $0x58] sm:%s489] %v542
        %v544 = vld [vmem:[%s496 + $0x5c] sm:%s489]
        %545 = vst [vmem:[%s497 + $0x5c] sm:%s489] %v544
        %v546 = vld [vmem:[%s496 + $0x60] sm:%s489]
        %547 = vst [vmem:[%s497 + $0x60] sm:%s489] %v546
        %v548 = vld [vmem:[%s496 + $0x90] sm:%s489]
        %549 = vst [vmem:[%s497 + $0x64] sm:%s489] %v548
        %v550 = vld [vmem:[%s496 + $0x64] sm:%s489]
        %551 = vst [vmem:[%s497 + $0x68] sm:%s489] %v550
        %v552 = vld [vmem:[%s496 + $0x94] sm:%s489]
        %553 = vst [vmem:[%s497 + $0x6c] sm:%s489] %v552
        %v554 = vld [vmem:[%s496 + $0x68] sm:%s489]
        %555 = vst [vmem:[%s497 + $0x70] sm:%s489] %v554
        %v556 = vld [vmem:[%s496 + $0x98] sm:%s489]
        %557 = vst [vmem:[%s497 + $0x74] sm:%s489] %v556
        %v558 = vld [vmem:[%s496 + $0x6c] sm:%s489]
        %559 = vst [vmem:[%s497 + $0x78] sm:%s489] %v558
        %v560 = vld [vmem:[%s496 + $0x9c] sm:%s489]
        %561 = vst [vmem:[%s497 + $0x7c] sm:%s489] %v560
        %v562 = vld [vmem:[%s496 + $0x70] sm:%s489]
        %563 = vst [vmem:[%s497 + $0x80] sm:%s489] %v562
        %v564 = vld [vmem:[%s496 + $0xa0] sm:%s489]
        %565 = vst [vmem:[%s497 + $0x84] sm:%s489] %v564
        %v566 = vld [vmem:[%s496 + $0x74] sm:%s489]
        %567 = vst [vmem:[%s497 + $0x88] sm:%s489] %v566
        %v568 = vld [vmem:[%s496 + $0xa4] sm:%s489]
        %569 = vst [vmem:[%s497 + $0x8c] sm:%s489] %v568
        %v570 = vld [vmem:[%s496 + $0x78] sm:%s489]
        %571 = vst [vmem:[%s497 + $0x90] sm:%s489] %v570
        %v572 = vld [vmem:[%s496 + $0xa8] sm:%s489]
        %573 = vst [vmem:[%s497 + $0x94] sm:%s489] %v572
        %v574 = vld [vmem:[%s496 + $0x7c] sm:%s489]
        %575 = vst [vmem:[%s497 + $0x98] sm:%s489] %v574
        %v576 = vld [vmem:[%s496 + $0xac] sm:%s489]
        %577 = vst [vmem:[%s497 + $0x9c] sm:%s489] %v576
        %v578 = vld [vmem:[%s496 + $0x80] sm:%s489]
        %579 = vst [vmem:[%s497 + $0xa0] sm:%s489] %v578
        %v580 = vld [vmem:[%s496 + $0xb0] sm:%s489]
        %581 = vst [vmem:[%s497 + $0xa4] sm:%s489] %v580
        %v582 = vld [vmem:[%s496 + $0x84] sm:%s489]
        %583 = vst [vmem:[%s497 + $0xa8] sm:%s489] %v582
        %v584 = vld [vmem:[%s496 + $0xb4] sm:%s489]
        %585 = vst [vmem:[%s497 + $0xac] sm:%s489] %v584
        %v586 = vld [vmem:[%s496 + $0x88] sm:%s489]
        %587 = vst [vmem:[%s497 + $0xb0] sm:%s489] %v586
        %v588 = vld [vmem:[%s496 + $0xb8] sm:%s489]
        %589 = vst [vmem:[%s497 + $0xb4] sm:%s489] %v588
        %v590 = vld [vmem:[%s496 + $0x8c] sm:%s489]
        %591 = vst [vmem:[%s497 + $0xb8] sm:%s489] %v590
        %v592 = vld [vmem:[%s496 + $0xbc] sm:%s489]
        %593 = vst [vmem:[%s497 + $0xbc] sm:%s489] %v592
        %v594 = vld [vmem:[%s496 + $0xc0] sm:%s489]
        %595 = vst [vmem:[%s497 + $0xc0] sm:%s489] %v594
        %v596 = vld [vmem:[%s496 + $0xf0] sm:%s489]
        %597 = vst [vmem:[%s497 + $0xc4] sm:%s489] %v596
        %v598 = vld [vmem:[%s496 + $0xc4] sm:%s489]
        %599 = vst [vmem:[%s497 + $0xc8] sm:%s489] %v598
        %v600 = vld [vmem:[%s496 + $0xf4] sm:%s489]
        %601 = vst [vmem:[%s497 + $0xcc] sm:%s489] %v600
        %v602 = vld [vmem:[%s496 + $0xc8] sm:%s489]
        %603 = vst [vmem:[%s497 + $0xd0] sm:%s489] %v602
        %v604 = vld [vmem:[%s496 + $0xf8] sm:%s489]
        %605 = vst [vmem:[%s497 + $0xd4] sm:%s489] %v604
        %v606 = vld [vmem:[%s496 + $0xcc] sm:%s489]
        %607 = vst [vmem:[%s497 + $0xd8] sm:%s489] %v606
        %v608 = vld [vmem:[%s496 + $0xfc] sm:%s489]
        %609 = vst [vmem:[%s497 + $0xdc] sm:%s489] %v608
        %v610 = vld [vmem:[%s496 + $0xd0] sm:%s489]
        %611 = vst [vmem:[%s497 + $0xe0] sm:%s489] %v610
        %v612 = vld [vmem:[%s496 + $0x100] sm:%s489]
        %613 = vst [vmem:[%s497 + $0xe4] sm:%s489] %v612
        %v614 = vld [vmem:[%s496 + $0xd4] sm:%s489]
        %615 = vst [vmem:[%s497 + $0xe8] sm:%s489] %v614
        %v616 = vld [vmem:[%s496 + $0x104] sm:%s489]
        %617 = vst [vmem:[%s497 + $0xec] sm:%s489] %v616
        %v618 = vld [vmem:[%s496 + $0xd8] sm:%s489]
        %619 = vst [vmem:[%s497 + $0xf0] sm:%s489] %v618
        %v620 = vld [vmem:[%s496 + $0x108] sm:%s489]
        %621 = vst [vmem:[%s497 + $0xf4] sm:%s489] %v620
        %v622 = vld [vmem:[%s496 + $0xdc] sm:%s489]
        %623 = vst [vmem:[%s497 + $0xf8] sm:%s489] %v622
        %v624 = vld [vmem:[%s496 + $0x10c] sm:%s489]
        %625 = vst [vmem:[%s497 + $0xfc] sm:%s489] %v624
        %v626 = vld [vmem:[%s496 + $0xe0] sm:%s489]
        %627 = vst [vmem:[%s497 + $0x100] sm:%s489] %v626
        %v628 = vld [vmem:[%s496 + $0x110] sm:%s489]
        %629 = vst [vmem:[%s497 + $0x104] sm:%s489] %v628
        %v630 = vld [vmem:[%s496 + $0xe4] sm:%s489]
        %631 = vst [vmem:[%s497 + $0x108] sm:%s489] %v630
        %v632 = vld [vmem:[%s496 + $0x114] sm:%s489]
        %633 = vst [vmem:[%s497 + $0x10c] sm:%s489] %v632
        %v634 = vld [vmem:[%s496 + $0xe8] sm:%s489]
        %635 = vst [vmem:[%s497 + $0x110] sm:%s489] %v634
        %v636 = vld [vmem:[%s496 + $0x118] sm:%s489]
        %637 = vst [vmem:[%s497 + $0x114] sm:%s489] %v636
        %v638 = vld [vmem:[%s496 + $0xec] sm:%s489]
        %639 = vst [vmem:[%s497 + $0x118] sm:%s489] %v638
        %v640 = vld [vmem:[%s496 + $0x11c] sm:%s489]
        %641 = vst [vmem:[%s497 + $0x11c] sm:%s489] %v640
        %v642 = vld [vmem:[%s496 + $0x120] sm:%s489]
        %643 = vst [vmem:[%s497 + $0x120] sm:%s489] %v642
        %v644 = vld [vmem:[%s496 + $0x150] sm:%s489]
        %645 = vst [vmem:[%s497 + $0x124] sm:%s489] %v644
        %v646 = vld [vmem:[%s496 + $0x124] sm:%s489]
        %647 = vst [vmem:[%s497 + $0x128] sm:%s489] %v646
        %v648 = vld [vmem:[%s496 + $0x154] sm:%s489]
        %649 = vst [vmem:[%s497 + $0x12c] sm:%s489] %v648
        %v650 = vld [vmem:[%s496 + $0x128] sm:%s489]
        %651 = vst [vmem:[%s497 + $0x130] sm:%s489] %v650
        %v652 = vld [vmem:[%s496 + $0x158] sm:%s489]
        %653 = vst [vmem:[%s497 + $0x134] sm:%s489] %v652
        %v654 = vld [vmem:[%s496 + $0x12c] sm:%s489]
        %655 = vst [vmem:[%s497 + $0x138] sm:%s489] %v654
        %v656 = vld [vmem:[%s496 + $0x15c] sm:%s489]
        %657 = vst [vmem:[%s497 + $0x13c] sm:%s489] %v656
        %v658 = vld [vmem:[%s496 + $0x130] sm:%s489]
        %659 = vst [vmem:[%s497 + $0x140] sm:%s489] %v658
        %v660 = vld [vmem:[%s496 + $0x160] sm:%s489]
        %661 = vst [vmem:[%s497 + $0x144] sm:%s489] %v660
        %v662 = vld [vmem:[%s496 + $0x134] sm:%s489]
        %663 = vst [vmem:[%s497 + $0x148] sm:%s489] %v662
        %v664 = vld [vmem:[%s496 + $0x164] sm:%s489]
        %665 = vst [vmem:[%s497 + $0x14c] sm:%s489] %v664
        %v666 = vld [vmem:[%s496 + $0x138] sm:%s489]
        %667 = vst [vmem:[%s497 + $0x150] sm:%s489] %v666
        %v668 = vld [vmem:[%s496 + $0x168] sm:%s489]
        %669 = vst [vmem:[%s497 + $0x154] sm:%s489] %v668
        %v670 = vld [vmem:[%s496 + $0x13c] sm:%s489]
        %671 = vst [vmem:[%s497 + $0x158] sm:%s489] %v670
        %v672 = vld [vmem:[%s496 + $0x16c] sm:%s489]
        %673 = vst [vmem:[%s497 + $0x15c] sm:%s489] %v672
        %v674 = vld [vmem:[%s496 + $0x140] sm:%s489]
        %675 = vst [vmem:[%s497 + $0x160] sm:%s489] %v674
        %v676 = vld [vmem:[%s496 + $0x170] sm:%s489]
        %677 = vst [vmem:[%s497 + $0x164] sm:%s489] %v676
        %v678 = vld [vmem:[%s496 + $0x144] sm:%s489]
        %679 = vst [vmem:[%s497 + $0x168] sm:%s489] %v678
        %v680 = vld [vmem:[%s496 + $0x174] sm:%s489]
        %681 = vst [vmem:[%s497 + $0x16c] sm:%s489] %v680
        %v682 = vld [vmem:[%s496 + $0x148] sm:%s489]
        %683 = vst [vmem:[%s497 + $0x170] sm:%s489] %v682
        %v684 = vld [vmem:[%s496 + $0x178] sm:%s489]
        %685 = vst [vmem:[%s497 + $0x174] sm:%s489] %v684
        %v686 = vld [vmem:[%s496 + $0x14c] sm:%s489]
        %687 = vst [vmem:[%s497 + $0x178] sm:%s489] %v686
        %v688 = vld [vmem:[%s496 + $0x17c] sm:%s489]
        %689 = vst [vmem:[%s497 + $0x17c] sm:%s489] %v688
        %v690 = vld [vmem:[%s496 + $0x180] sm:%s489]
        %691 = vst [vmem:[%s497 + $0x180] sm:%s489] %v690
        %v692 = vld [vmem:[%s496 + $0x1b0] sm:%s489]
        %693 = vst [vmem:[%s497 + $0x184] sm:%s489] %v692
        %v694 = vld [vmem:[%s496 + $0x184] sm:%s489]
        %695 = vst [vmem:[%s497 + $0x188] sm:%s489] %v694
        %v696 = vld [vmem:[%s496 + $0x1b4] sm:%s489]
        %697 = vst [vmem:[%s497 + $0x18c] sm:%s489] %v696
        %v698 = vld [vmem:[%s496 + $0x188] sm:%s489]
        %699 = vst [vmem:[%s497 + $0x190] sm:%s489] %v698
        %v700 = vld [vmem:[%s496 + $0x1b8] sm:%s489]
        %701 = vst [vmem:[%s497 + $0x194] sm:%s489] %v700
        %v702 = vld [vmem:[%s496 + $0x18c] sm:%s489]
        %703 = vst [vmem:[%s497 + $0x198] sm:%s489] %v702
        %v704 = vld [vmem:[%s496 + $0x1bc] sm:%s489]
        %705 = vst [vmem:[%s497 + $0x19c] sm:%s489] %v704
        %v706 = vld [vmem:[%s496 + $0x190] sm:%s489]
        %707 = vst [vmem:[%s497 + $0x1a0] sm:%s489] %v706
        %v708 = vld [vmem:[%s496 + $0x1c0] sm:%s489]
        %709 = vst [vmem:[%s497 + $0x1a4] sm:%s489] %v708
        %v710 = vld [vmem:[%s496 + $0x194] sm:%s489]
        %711 = vst [vmem:[%s497 + $0x1a8] sm:%s489] %v710
        %v712 = vld [vmem:[%s496 + $0x1c4] sm:%s489]
        %713 = vst [vmem:[%s497 + $0x1ac] sm:%s489] %v712
        %v714 = vld [vmem:[%s496 + $0x198] sm:%s489]
        %715 = vst [vmem:[%s497 + $0x1b0] sm:%s489] %v714
        %v716 = vld [vmem:[%s496 + $0x1c8] sm:%s489]
        %717 = vst [vmem:[%s497 + $0x1b4] sm:%s489] %v716
        %v718 = vld [vmem:[%s496 + $0x19c] sm:%s489]
        %719 = vst [vmem:[%s497 + $0x1b8] sm:%s489] %v718
        %v720 = vld [vmem:[%s496 + $0x1cc] sm:%s489]
        %721 = vst [vmem:[%s497 + $0x1bc] sm:%s489] %v720
        %v722 = vld [vmem:[%s496 + $0x1a0] sm:%s489]
        %723 = vst [vmem:[%s497 + $0x1c0] sm:%s489] %v722
        %v724 = vld [vmem:[%s496 + $0x1d0] sm:%s489]
        %725 = vst [vmem:[%s497 + $0x1c4] sm:%s489] %v724
        %v726 = vld [vmem:[%s496 + $0x1a4] sm:%s489]
        %727 = vst [vmem:[%s497 + $0x1c8] sm:%s489] %v726
        %v728 = vld [vmem:[%s496 + $0x1d4] sm:%s489]
        %729 = vst [vmem:[%s497 + $0x1cc] sm:%s489] %v728
        %v730 = vld [vmem:[%s496 + $0x1a8] sm:%s489]
        %731 = vst [vmem:[%s497 + $0x1d0] sm:%s489] %v730
        %v732 = vld [vmem:[%s496 + $0x1d8] sm:%s489]
        %733 = vst [vmem:[%s497 + $0x1d4] sm:%s489] %v732
        %v734 = vld [vmem:[%s496 + $0x1ac] sm:%s489]
        %735 = vst [vmem:[%s497 + $0x1d8] sm:%s489] %v734
        %v736 = vld [vmem:[%s496 + $0x1dc] sm:%s489]
        %737 = vst [vmem:[%s497 + $0x1dc] sm:%s489] %v736
        %v738 = vld [vmem:[%s496 + $0x1e0] sm:%s489]
        %739 = vst [vmem:[%s497 + $0x1e0] sm:%s489] %v738
        %v740 = vld [vmem:[%s496 + $0x210] sm:%s489]
        %741 = vst [vmem:[%s497 + $0x1e4] sm:%s489] %v740
        %v742 = vld [vmem:[%s496 + $0x1e4] sm:%s489]
        %743 = vst [vmem:[%s497 + $0x1e8] sm:%s489] %v742
        %v744 = vld [vmem:[%s496 + $0x214] sm:%s489]
        %745 = vst [vmem:[%s497 + $0x1ec] sm:%s489] %v744
        %v746 = vld [vmem:[%s496 + $0x1e8] sm:%s489]
        %747 = vst [vmem:[%s497 + $0x1f0] sm:%s489] %v746
        %v748 = vld [vmem:[%s496 + $0x218] sm:%s489]
        %749 = vst [vmem:[%s497 + $0x1f4] sm:%s489] %v748
        %v750 = vld [vmem:[%s496 + $0x1ec] sm:%s489]
        %751 = vst [vmem:[%s497 + $0x1f8] sm:%s489] %v750
        %v752 = vld [vmem:[%s496 + $0x21c] sm:%s489]
        %753 = vst [vmem:[%s497 + $0x1fc] sm:%s489] %v752
        %v754 = vld [vmem:[%s496 + $0x1f0] sm:%s489]
        %755 = vst [vmem:[%s497 + $0x200] sm:%s489] %v754
        %v756 = vld [vmem:[%s496 + $0x220] sm:%s489]
        %757 = vst [vmem:[%s497 + $0x204] sm:%s489] %v756
        %v758 = vld [vmem:[%s496 + $0x1f4] sm:%s489]
        %759 = vst [vmem:[%s497 + $0x208] sm:%s489] %v758
        %v760 = vld [vmem:[%s496 + $0x224] sm:%s489]
        %761 = vst [vmem:[%s497 + $0x20c] sm:%s489] %v760
        %v762 = vld [vmem:[%s496 + $0x1f8] sm:%s489]
        %763 = vst [vmem:[%s497 + $0x210] sm:%s489] %v762
        %v764 = vld [vmem:[%s496 + $0x228] sm:%s489]
        %765 = vst [vmem:[%s497 + $0x214] sm:%s489] %v764
        %v766 = vld [vmem:[%s496 + $0x1fc] sm:%s489]
        %767 = vst [vmem:[%s497 + $0x218] sm:%s489] %v766
        %v768 = vld [vmem:[%s496 + $0x22c] sm:%s489]
        %769 = vst [vmem:[%s497 + $0x21c] sm:%s489] %v768
        %v770 = vld [vmem:[%s496 + $0x200] sm:%s489]
        %771 = vst [vmem:[%s497 + $0x220] sm:%s489] %v770
        %v772 = vld [vmem:[%s496 + $0x230] sm:%s489]
        %773 = vst [vmem:[%s497 + $0x224] sm:%s489] %v772
        %v774 = vld [vmem:[%s496 + $0x204] sm:%s489]
        %775 = vst [vmem:[%s497 + $0x228] sm:%s489] %v774
        %v776 = vld [vmem:[%s496 + $0x234] sm:%s489]
        %777 = vst [vmem:[%s497 + $0x22c] sm:%s489] %v776
        %v778 = vld [vmem:[%s496 + $0x208] sm:%s489]
        %779 = vst [vmem:[%s497 + $0x230] sm:%s489] %v778
        %v780 = vld [vmem:[%s496 + $0x238] sm:%s489]
        %781 = vst [vmem:[%s497 + $0x234] sm:%s489] %v780
        %v782 = vld [vmem:[%s496 + $0x20c] sm:%s489]
        %783 = vst [vmem:[%s497 + $0x238] sm:%s489] %v782
        %v784 = vld [vmem:[%s496 + $0x23c] sm:%s489]
        %785 = vst [vmem:[%s497 + $0x23c] sm:%s489] %v784
        %v786 = vld [vmem:[%s496 + $0x240] sm:%s489]
        %787 = vst [vmem:[%s497 + $0x240] sm:%s489] %v786
        %v788 = vld [vmem:[%s496 + $0x270] sm:%s489]
        %789 = vst [vmem:[%s497 + $0x244] sm:%s489] %v788
        %v790 = vld [vmem:[%s496 + $0x244] sm:%s489]
        %791 = vst [vmem:[%s497 + $0x248] sm:%s489] %v790
        %v792 = vld [vmem:[%s496 + $0x274] sm:%s489]
        %793 = vst [vmem:[%s497 + $0x24c] sm:%s489] %v792
        %v794 = vld [vmem:[%s496 + $0x248] sm:%s489]
        %795 = vst [vmem:[%s497 + $0x250] sm:%s489] %v794
        %v796 = vld [vmem:[%s496 + $0x278] sm:%s489]
        %797 = vst [vmem:[%s497 + $0x254] sm:%s489] %v796
        %v798 = vld [vmem:[%s496 + $0x24c] sm:%s489]
        %799 = vst [vmem:[%s497 + $0x258] sm:%s489] %v798
        %v800 = vld [vmem:[%s496 + $0x27c] sm:%s489]
        %801 = vst [vmem:[%s497 + $0x25c] sm:%s489] %v800
        %v802 = vld [vmem:[%s496 + $0x250] sm:%s489]
        %803 = vst [vmem:[%s497 + $0x260] sm:%s489] %v802
        %v804 = vld [vmem:[%s496 + $0x280] sm:%s489]
        %805 = vst [vmem:[%s497 + $0x264] sm:%s489] %v804
        %v806 = vld [vmem:[%s496 + $0x254] sm:%s489]
        %807 = vst [vmem:[%s497 + $0x268] sm:%s489] %v806
        %v808 = vld [vmem:[%s496 + $0x284] sm:%s489]
        %809 = vst [vmem:[%s497 + $0x26c] sm:%s489] %v808
        %v810 = vld [vmem:[%s496 + $0x258] sm:%s489]
        %811 = vst [vmem:[%s497 + $0x270] sm:%s489] %v810
        %v812 = vld [vmem:[%s496 + $0x288] sm:%s489]
        %813 = vst [vmem:[%s497 + $0x274] sm:%s489] %v812
        %v814 = vld [vmem:[%s496 + $0x25c] sm:%s489]
        %815 = vst [vmem:[%s497 + $0x278] sm:%s489] %v814
        %v816 = vld [vmem:[%s496 + $0x28c] sm:%s489]
        %817 = vst [vmem:[%s497 + $0x27c] sm:%s489] %v816
        %v818 = vld [vmem:[%s496 + $0x260] sm:%s489]
        %819 = vst [vmem:[%s497 + $0x280] sm:%s489] %v818
        %v820 = vld [vmem:[%s496 + $0x290] sm:%s489]
        %821 = vst [vmem:[%s497 + $0x284] sm:%s489] %v820
        %v822 = vld [vmem:[%s496 + $0x264] sm:%s489]
        %823 = vst [vmem:[%s497 + $0x288] sm:%s489] %v822
        %v824 = vld [vmem:[%s496 + $0x294] sm:%s489]
        %825 = vst [vmem:[%s497 + $0x28c] sm:%s489] %v824
        %v826 = vld [vmem:[%s496 + $0x268] sm:%s489]
        %827 = vst [vmem:[%s497 + $0x290] sm:%s489] %v826
        %v828 = vld [vmem:[%s496 + $0x298] sm:%s489]
        %829 = vst [vmem:[%s497 + $0x294] sm:%s489] %v828
        %v830 = vld [vmem:[%s496 + $0x26c] sm:%s489]
        %831 = vst [vmem:[%s497 + $0x298] sm:%s489] %v830
        %v832 = vld [vmem:[%s496 + $0x29c] sm:%s489]
        %833 = vst [vmem:[%s497 + $0x29c] sm:%s489] %v832
        %v834 = vld [vmem:[%s496 + $0x2a0] sm:%s489]
        %835 = vst [vmem:[%s497 + $0x2a0] sm:%s489] %v834
        %v836 = vld [vmem:[%s496 + $0x2d0] sm:%s489]
        %837 = vst [vmem:[%s497 + $0x2a4] sm:%s489] %v836
        %v838 = vld [vmem:[%s496 + $0x2a4] sm:%s489]
        %839 = vst [vmem:[%s497 + $0x2a8] sm:%s489] %v838
        %v840 = vld [vmem:[%s496 + $0x2d4] sm:%s489]
        %841 = vst [vmem:[%s497 + $0x2ac] sm:%s489] %v840
        %v842 = vld [vmem:[%s496 + $0x2a8] sm:%s489]
        %843 = vst [vmem:[%s497 + $0x2b0] sm:%s489] %v842
        %v844 = vld [vmem:[%s496 + $0x2d8] sm:%s489]
        %845 = vst [vmem:[%s497 + $0x2b4] sm:%s489] %v844
        %v846 = vld [vmem:[%s496 + $0x2ac] sm:%s489]
        %847 = vst [vmem:[%s497 + $0x2b8] sm:%s489] %v846
        %v848 = vld [vmem:[%s496 + $0x2dc] sm:%s489]
        %849 = vst [vmem:[%s497 + $0x2bc] sm:%s489] %v848
        %v850 = vld [vmem:[%s496 + $0x2b0] sm:%s489]
        %851 = vst [vmem:[%s497 + $0x2c0] sm:%s489] %v850
        %v852 = vld [vmem:[%s496 + $0x2e0] sm:%s489]
        %853 = vst [vmem:[%s497 + $0x2c4] sm:%s489] %v852
        %v854 = vld [vmem:[%s496 + $0x2b4] sm:%s489]
        %855 = vst [vmem:[%s497 + $0x2c8] sm:%s489] %v854
        %v856 = vld [vmem:[%s496 + $0x2e4] sm:%s489]
        %857 = vst [vmem:[%s497 + $0x2cc] sm:%s489] %v856
        %v858 = vld [vmem:[%s496 + $0x2b8] sm:%s489]
        %859 = vst [vmem:[%s497 + $0x2d0] sm:%s489] %v858
        %v860 = vld [vmem:[%s496 + $0x2e8] sm:%s489]
        %861 = vst [vmem:[%s497 + $0x2d4] sm:%s489] %v860
        %v862 = vld [vmem:[%s496 + $0x2bc] sm:%s489]
        %863 = vst [vmem:[%s497 + $0x2d8] sm:%s489] %v862
        %v864 = vld [vmem:[%s496 + $0x2ec] sm:%s489]
        %865 = vst [vmem:[%s497 + $0x2dc] sm:%s489] %v864
        %v866 = vld [vmem:[%s496 + $0x2c0] sm:%s489]
        %867 = vst [vmem:[%s497 + $0x2e0] sm:%s489] %v866
        %v868 = vld [vmem:[%s496 + $0x2f0] sm:%s489]
        %869 = vst [vmem:[%s497 + $0x2e4] sm:%s489] %v868
        %v870 = vld [vmem:[%s496 + $0x2c4] sm:%s489]
        %871 = vst [vmem:[%s497 + $0x2e8] sm:%s489] %v870
        %v872 = vld [vmem:[%s496 + $0x2f4] sm:%s489]
        %873 = vst [vmem:[%s497 + $0x2ec] sm:%s489] %v872
        %v874 = vld [vmem:[%s496 + $0x2c8] sm:%s489]
        %875 = vst [vmem:[%s497 + $0x2f0] sm:%s489] %v874
        %v876 = vld [vmem:[%s496 + $0x2f8] sm:%s489]
        %877 = vst [vmem:[%s497 + $0x2f4] sm:%s489] %v876
        %v878 = vld [vmem:[%s496 + $0x2cc] sm:%s489]
        %879 = vst [vmem:[%s497 + $0x2f8] sm:%s489] %v878
        %v880 = vld [vmem:[%s496 + $0x2fc] sm:%s489]
        %881 = vst [vmem:[%s497 + $0x2fc] sm:%s489] %v880
      $region116: #{vit_yolo_forward.1} parent=103 // loop_footer
        %s495 = sadd.s32 1, %s491
      $region117: #{vit_yolo_forward.1} parent=103 // loop_footer_branch
        %490 = sbr.rel target = $region113
      $region118: #{vit_yolo_forward.1} parent=103 // loop_exit
        _
    $region104: #{vit_yolo_forward.1} parent=88 // pred_fallthru
      _
  $region89: #{vit_yolo_forward.1} parent=0 // pred_fallthru
    _
  // Predicated region
  $region90: #{vit_yolo_forward.1} parent=0 // pred_check
    %p75 = pneg %p71
  $region91: #{vit_yolo_forward.1} parent=0 // pred_check_branch
    %77 = sbr.rel (%p75) target = $region93
  $region92: #{vit_yolo_forward.1} parent=0 // pred_region
    %s78 = sshllo.u32 0, 4
    loop: start=0, step=1, limit=1
    $region94: #{vit_yolo_forward.1} parent=92 // loop_pre_header
      _
    $region95: #{vit_yolo_forward.1} parent=92 // loop_header
      %s80 = sphi 0, %s84
      %p81 = scmp.ge.s32.totalorder %s80, 1
      %s85 = sphi %s21, %s21
      %s86 = sphi [#allocation2], [#allocation2]
    $region96: #{vit_yolo_forward.1} parent=92 // loop_header_branch
      %83 = sbr.rel (%p81) target = $region100
    $region97: #{vit_yolo_forward.1} parent=92 // loop_body
      %v87 = vld [vmem:[%s85] sm:%s78]
      %88 = vst [vmem:[%s86] sm:%s78] %v87
      %v89 = vld [vmem:[%s85 + $0x30] sm:%s78]
      %90 = vst [vmem:[%s86 + $0x4] sm:%s78] %v89
      %v91 = vld [vmem:[%s85 + $0x4] sm:%s78]
      %92 = vst [vmem:[%s86 + $0x8] sm:%s78] %v91
      %v93 = vld [vmem:[%s85 + $0x34] sm:%s78]
      %94 = vst [vmem:[%s86 + $0xc] sm:%s78] %v93
      %v95 = vld [vmem:[%s85 + $0x8] sm:%s78]
      %96 = vst [vmem:[%s86 + $0x10] sm:%s78] %v95
      %v97 = vld [vmem:[%s85 + $0x38] sm:%s78]
      %98 = vst [vmem:[%s86 + $0x14] sm:%s78] %v97
      %v99 = vld [vmem:[%s85 + $0xc] sm:%s78]
      %100 = vst [vmem:[%s86 + $0x18] sm:%s78] %v99
      %v101 = vld [vmem:[%s85 + $0x3c] sm:%s78]
      %102 = vst [vmem:[%s86 + $0x1c] sm:%s78] %v101
      %v103 = vld [vmem:[%s85 + $0x10] sm:%s78]
      %104 = vst [vmem:[%s86 + $0x20] sm:%s78] %v103
      %v105 = vld [vmem:[%s85 + $0x40] sm:%s78]
      %106 = vst [vmem:[%s86 + $0x24] sm:%s78] %v105
      %v107 = vld [vmem:[%s85 + $0x14] sm:%s78]
      %108 = vst [vmem:[%s86 + $0x28] sm:%s78] %v107
      %v109 = vld [vmem:[%s85 + $0x44] sm:%s78]
      %110 = vst [vmem:[%s86 + $0x2c] sm:%s78] %v109
      %v111 = vld [vmem:[%s85 + $0x18] sm:%s78]
      %112 = vst [vmem:[%s86 + $0x30] sm:%s78] %v111
      %v113 = vld [vmem:[%s85 + $0x48] sm:%s78]
      %114 = vst [vmem:[%s86 + $0x34] sm:%s78] %v113
      %v115 = vld [vmem:[%s85 + $0x1c] sm:%s78]
      %116 = vst [vmem:[%s86 + $0x38] sm:%s78] %v115
      %v117 = vld [vmem:[%s85 + $0x4c] sm:%s78]
      %118 = vst [vmem:[%s86 + $0x3c] sm:%s78] %v117
      %v119 = vld [vmem:[%s85 + $0x20] sm:%s78]
      %120 = vst [vmem:[%s86 + $0x40] sm:%s78] %v119
      %v121 = vld [vmem:[%s85 + $0x50] sm:%s78]
      %122 = vst [vmem:[%s86 + $0x44] sm:%s78] %v121
      %v123 = vld [vmem:[%s85 + $0x24] sm:%s78]
      %124 = vst [vmem:[%s86 + $0x48] sm:%s78] %v123
      %v125 = vld [vmem:[%s85 + $0x54] sm:%s78]
      %126 = vst [vmem:[%s86 + $0x4c] sm:%s78] %v125
      %v127 = vld [vmem:[%s85 + $0x28] sm:%s78]
      %128 = vst [vmem:[%s86 + $0x50] sm:%s78] %v127
      %v129 = vld [vmem:[%s85 + $0x58] sm:%s78]
      %130 = vst [vmem:[%s86 + $0x54] sm:%s78] %v129
      %v131 = vld [vmem:[%s85 + $0x2c] sm:%s78]
      %132 = vst [vmem:[%s86 + $0x58] sm:%s78] %v131
      %v133 = vld [vmem:[%s85 + $0x5c] sm:%s78]
      %134 = vst [vmem:[%s86 + $0x5c] sm:%s78] %v133
      %v135 = vld [vmem:[%s85 + $0x60] sm:%s78]
      %136 = vst [vmem:[%s86 + $0x60] sm:%s78] %v135
      %v137 = vld [vmem:[%s85 + $0x90] sm:%s78]
      %138 = vst [vmem:[%s86 + $0x64] sm:%s78] %v137
      %v139 = vld [vmem:[%s85 + $0x64] sm:%s78]
      %140 = vst [vmem:[%s86 + $0x68] sm:%s78] %v139
      %v141 = vld [vmem:[%s85 + $0x94] sm:%s78]
      %142 = vst [vmem:[%s86 + $0x6c] sm:%s78] %v141
      %v143 = vld [vmem:[%s85 + $0x68] sm:%s78]
      %144 = vst [vmem:[%s86 + $0x70] sm:%s78] %v143
      %v145 = vld [vmem:[%s85 + $0x98] sm:%s78]
      %146 = vst [vmem:[%s86 + $0x74] sm:%s78] %v145
      %v147 = vld [vmem:[%s85 + $0x6c] sm:%s78]
      %148 = vst [vmem:[%s86 + $0x78] sm:%s78] %v147
      %v149 = vld [vmem:[%s85 + $0x9c] sm:%s78]
      %150 = vst [vmem:[%s86 + $0x7c] sm:%s78] %v149
      %v151 = vld [vmem:[%s85 + $0x70] sm:%s78]
      %152 = vst [vmem:[%s86 + $0x80] sm:%s78] %v151
      %v153 = vld [vmem:[%s85 + $0xa0] sm:%s78]
      %154 = vst [vmem:[%s86 + $0x84] sm:%s78] %v153
      %v155 = vld [vmem:[%s85 + $0x74] sm:%s78]
      %156 = vst [vmem:[%s86 + $0x88] sm:%s78] %v155
      %v157 = vld [vmem:[%s85 + $0xa4] sm:%s78]
      %158 = vst [vmem:[%s86 + $0x8c] sm:%s78] %v157
      %v159 = vld [vmem:[%s85 + $0x78] sm:%s78]
      %160 = vst [vmem:[%s86 + $0x90] sm:%s78] %v159
      %v161 = vld [vmem:[%s85 + $0xa8] sm:%s78]
      %162 = vst [vmem:[%s86 + $0x94] sm:%s78] %v161
      %v163 = vld [vmem:[%s85 + $0x7c] sm:%s78]
      %164 = vst [vmem:[%s86 + $0x98] sm:%s78] %v163
      %v165 = vld [vmem:[%s85 + $0xac] sm:%s78]
      %166 = vst [vmem:[%s86 + $0x9c] sm:%s78] %v165
      %v167 = vld [vmem:[%s85 + $0x80] sm:%s78]
      %168 = vst [vmem:[%s86 + $0xa0] sm:%s78] %v167
      %v169 = vld [vmem:[%s85 + $0xb0] sm:%s78]
      %170 = vst [vmem:[%s86 + $0xa4] sm:%s78] %v169
      %v171 = vld [vmem:[%s85 + $0x84] sm:%s78]
      %172 = vst [vmem:[%s86 + $0xa8] sm:%s78] %v171
      %v173 = vld [vmem:[%s85 + $0xb4] sm:%s78]
      %174 = vst [vmem:[%s86 + $0xac] sm:%s78] %v173
      %v175 = vld [vmem:[%s85 + $0x88] sm:%s78]
      %176 = vst [vmem:[%s86 + $0xb0] sm:%s78] %v175
      %v177 = vld [vmem:[%s85 + $0xb8] sm:%s78]
      %178 = vst [vmem:[%s86 + $0xb4] sm:%s78] %v177
      %v179 = vld [vmem:[%s85 + $0x8c] sm:%s78]
      %180 = vst [vmem:[%s86 + $0xb8] sm:%s78] %v179
      %v181 = vld [vmem:[%s85 + $0xbc] sm:%s78]
      %182 = vst [vmem:[%s86 + $0xbc] sm:%s78] %v181
      %v183 = vld [vmem:[%s85 + $0xc0] sm:%s78]
      %184 = vst [vmem:[%s86 + $0xc0] sm:%s78] %v183
      %v185 = vld [vmem:[%s85 + $0xf0] sm:%s78]
      %186 = vst [vmem:[%s86 + $0xc4] sm:%s78] %v185
      %v187 = vld [vmem:[%s85 + $0xc4] sm:%s78]
      %188 = vst [vmem:[%s86 + $0xc8] sm:%s78] %v187
      %v189 = vld [vmem:[%s85 + $0xf4] sm:%s78]
      %190 = vst [vmem:[%s86 + $0xcc] sm:%s78] %v189
      %v191 = vld [vmem:[%s85 + $0xc8] sm:%s78]
      %192 = vst [vmem:[%s86 + $0xd0] sm:%s78] %v191
      %v193 = vld [vmem:[%s85 + $0xf8] sm:%s78]
      %194 = vst [vmem:[%s86 + $0xd4] sm:%s78] %v193
      %v195 = vld [vmem:[%s85 + $0xcc] sm:%s78]
      %196 = vst [vmem:[%s86 + $0xd8] sm:%s78] %v195
      %v197 = vld [vmem:[%s85 + $0xfc] sm:%s78]
      %198 = vst [vmem:[%s86 + $0xdc] sm:%s78] %v197
      %v199 = vld [vmem:[%s85 + $0xd0] sm:%s78]
      %200 = vst [vmem:[%s86 + $0xe0] sm:%s78] %v199
      %v201 = vld [vmem:[%s85 + $0x100] sm:%s78]
      %202 = vst [vmem:[%s86 + $0xe4] sm:%s78] %v201
      %v203 = vld [vmem:[%s85 + $0xd4] sm:%s78]
      %204 = vst [vmem:[%s86 + $0xe8] sm:%s78] %v203
      %v205 = vld [vmem:[%s85 + $0x104] sm:%s78]
      %206 = vst [vmem:[%s86 + $0xec] sm:%s78] %v205
      %v207 = vld [vmem:[%s85 + $0xd8] sm:%s78]
      %208 = vst [vmem:[%s86 + $0xf0] sm:%s78] %v207
      %v209 = vld [vmem:[%s85 + $0x108] sm:%s78]
      %210 = vst [vmem:[%s86 + $0xf4] sm:%s78] %v209
      %v211 = vld [vmem:[%s85 + $0xdc] sm:%s78]
      %212 = vst [vmem:[%s86 + $0xf8] sm:%s78] %v211
      %v213 = vld [vmem:[%s85 + $0x10c] sm:%s78]
      %214 = vst [vmem:[%s86 + $0xfc] sm:%s78] %v213
      %v215 = vld [vmem:[%s85 + $0xe0] sm:%s78]
      %216 = vst [vmem:[%s86 + $0x100] sm:%s78] %v215
      %v217 = vld [vmem:[%s85 + $0x110] sm:%s78]
      %218 = vst [vmem:[%s86 + $0x104] sm:%s78] %v217
      %v219 = vld [vmem:[%s85 + $0xe4] sm:%s78]
      %220 = vst [vmem:[%s86 + $0x108] sm:%s78] %v219
      %v221 = vld [vmem:[%s85 + $0x114] sm:%s78]
      %222 = vst [vmem:[%s86 + $0x10c] sm:%s78] %v221
      %v223 = vld [vmem:[%s85 + $0xe8] sm:%s78]
      %224 = vst [vmem:[%s86 + $0x110] sm:%s78] %v223
      %v225 = vld [vmem:[%s85 + $0x118] sm:%s78]
      %226 = vst [vmem:[%s86 + $0x114] sm:%s78] %v225
      %v227 = vld [vmem:[%s85 + $0xec] sm:%s78]
      %228 = vst [vmem:[%s86 + $0x118] sm:%s78] %v227
      %v229 = vld [vmem:[%s85 + $0x11c] sm:%s78]
      %230 = vst [vmem:[%s86 + $0x11c] sm:%s78] %v229
      %v231 = vld [vmem:[%s85 + $0x120] sm:%s78]
      %232 = vst [vmem:[%s86 + $0x120] sm:%s78] %v231
      %v233 = vld [vmem:[%s85 + $0x150] sm:%s78]
      %234 = vst [vmem:[%s86 + $0x124] sm:%s78] %v233
      %v235 = vld [vmem:[%s85 + $0x124] sm:%s78]
      %236 = vst [vmem:[%s86 + $0x128] sm:%s78] %v235
      %v237 = vld [vmem:[%s85 + $0x154] sm:%s78]
      %238 = vst [vmem:[%s86 + $0x12c] sm:%s78] %v237
      %v239 = vld [vmem:[%s85 + $0x128] sm:%s78]
      %240 = vst [vmem:[%s86 + $0x130] sm:%s78] %v239
      %v241 = vld [vmem:[%s85 + $0x158] sm:%s78]
      %242 = vst [vmem:[%s86 + $0x134] sm:%s78] %v241
      %v243 = vld [vmem:[%s85 + $0x12c] sm:%s78]
      %244 = vst [vmem:[%s86 + $0x138] sm:%s78] %v243
      %v245 = vld [vmem:[%s85 + $0x15c] sm:%s78]
      %246 = vst [vmem:[%s86 + $0x13c] sm:%s78] %v245
      %v247 = vld [vmem:[%s85 + $0x130] sm:%s78]
      %248 = vst [vmem:[%s86 + $0x140] sm:%s78] %v247
      %v249 = vld [vmem:[%s85 + $0x160] sm:%s78]
      %250 = vst [vmem:[%s86 + $0x144] sm:%s78] %v249
      %v251 = vld [vmem:[%s85 + $0x134] sm:%s78]
      %252 = vst [vmem:[%s86 + $0x148] sm:%s78] %v251
      %v253 = vld [vmem:[%s85 + $0x164] sm:%s78]
      %254 = vst [vmem:[%s86 + $0x14c] sm:%s78] %v253
      %v255 = vld [vmem:[%s85 + $0x138] sm:%s78]
      %256 = vst [vmem:[%s86 + $0x150] sm:%s78] %v255
      %v257 = vld [vmem:[%s85 + $0x168] sm:%s78]
      %258 = vst [vmem:[%s86 + $0x154] sm:%s78] %v257
      %v259 = vld [vmem:[%s85 + $0x13c] sm:%s78]
      %260 = vst [vmem:[%s86 + $0x158] sm:%s78] %v259
      %v261 = vld [vmem:[%s85 + $0x16c] sm:%s78]
      %262 = vst [vmem:[%s86 + $0x15c] sm:%s78] %v261
      %v263 = vld [vmem:[%s85 + $0x140] sm:%s78]
      %264 = vst [vmem:[%s86 + $0x160] sm:%s78] %v263
      %v265 = vld [vmem:[%s85 + $0x170] sm:%s78]
      %266 = vst [vmem:[%s86 + $0x164] sm:%s78] %v265
      %v267 = vld [vmem:[%s85 + $0x144] sm:%s78]
      %268 = vst [vmem:[%s86 + $0x168] sm:%s78] %v267
      %v269 = vld [vmem:[%s85 + $0x174] sm:%s78]
      %270 = vst [vmem:[%s86 + $0x16c] sm:%s78] %v269
      %v271 = vld [vmem:[%s85 + $0x148] sm:%s78]
      %272 = vst [vmem:[%s86 + $0x170] sm:%s78] %v271
      %v273 = vld [vmem:[%s85 + $0x178] sm:%s78]
      %274 = vst [vmem:[%s86 + $0x174] sm:%s78] %v273
      %v275 = vld [vmem:[%s85 + $0x14c] sm:%s78]
      %276 = vst [vmem:[%s86 + $0x178] sm:%s78] %v275
      %v277 = vld [vmem:[%s85 + $0x17c] sm:%s78]
      %278 = vst [vmem:[%s86 + $0x17c] sm:%s78] %v277
      %v279 = vld [vmem:[%s85 + $0x180] sm:%s78]
      %280 = vst [vmem:[%s86 + $0x180] sm:%s78] %v279
      %v281 = vld [vmem:[%s85 + $0x1b0] sm:%s78]
      %282 = vst [vmem:[%s86 + $0x184] sm:%s78] %v281
      %v283 = vld [vmem:[%s85 + $0x184] sm:%s78]
      %284 = vst [vmem:[%s86 + $0x188] sm:%s78] %v283
      %v285 = vld [vmem:[%s85 + $0x1b4] sm:%s78]
      %286 = vst [vmem:[%s86 + $0x18c] sm:%s78] %v285
      %v287 = vld [vmem:[%s85 + $0x188] sm:%s78]
      %288 = vst [vmem:[%s86 + $0x190] sm:%s78] %v287
      %v289 = vld [vmem:[%s85 + $0x1b8] sm:%s78]
      %290 = vst [vmem:[%s86 + $0x194] sm:%s78] %v289
      %v291 = vld [vmem:[%s85 + $0x18c] sm:%s78]
      %292 = vst [vmem:[%s86 + $0x198] sm:%s78] %v291
      %v293 = vld [vmem:[%s85 + $0x1bc] sm:%s78]
      %294 = vst [vmem:[%s86 + $0x19c] sm:%s78] %v293
      %v295 = vld [vmem:[%s85 + $0x190] sm:%s78]
      %296 = vst [vmem:[%s86 + $0x1a0] sm:%s78] %v295
      %v297 = vld [vmem:[%s85 + $0x1c0] sm:%s78]
      %298 = vst [vmem:[%s86 + $0x1a4] sm:%s78] %v297
      %v299 = vld [vmem:[%s85 + $0x194] sm:%s78]
      %300 = vst [vmem:[%s86 + $0x1a8] sm:%s78] %v299
      %v301 = vld [vmem:[%s85 + $0x1c4] sm:%s78]
      %302 = vst [vmem:[%s86 + $0x1ac] sm:%s78] %v301
      %v303 = vld [vmem:[%s85 + $0x198] sm:%s78]
      %304 = vst [vmem:[%s86 + $0x1b0] sm:%s78] %v303
      %v305 = vld [vmem:[%s85 + $0x1c8] sm:%s78]
      %306 = vst [vmem:[%s86 + $0x1b4] sm:%s78] %v305
      %v307 = vld [vmem:[%s85 + $0x19c] sm:%s78]
      %308 = vst [vmem:[%s86 + $0x1b8] sm:%s78] %v307
      %v309 = vld [vmem:[%s85 + $0x1cc] sm:%s78]
      %310 = vst [vmem:[%s86 + $0x1bc] sm:%s78] %v309
      %v311 = vld [vmem:[%s85 + $0x1a0] sm:%s78]
      %312 = vst [vmem:[%s86 + $0x1c0] sm:%s78] %v311
      %v313 = vld [vmem:[%s85 + $0x1d0] sm:%s78]
      %314 = vst [vmem:[%s86 + $0x1c4] sm:%s78] %v313
      %v315 = vld [vmem:[%s85 + $0x1a4] sm:%s78]
      %316 = vst [vmem:[%s86 + $0x1c8] sm:%s78] %v315
      %v317 = vld [vmem:[%s85 + $0x1d4] sm:%s78]
      %318 = vst [vmem:[%s86 + $0x1cc] sm:%s78] %v317
      %v319 = vld [vmem:[%s85 + $0x1a8] sm:%s78]
      %320 = vst [vmem:[%s86 + $0x1d0] sm:%s78] %v319
      %v321 = vld [vmem:[%s85 + $0x1d8] sm:%s78]
      %322 = vst [vmem:[%s86 + $0x1d4] sm:%s78] %v321
      %v323 = vld [vmem:[%s85 + $0x1ac] sm:%s78]
      %324 = vst [vmem:[%s86 + $0x1d8] sm:%s78] %v323
      %v325 = vld [vmem:[%s85 + $0x1dc] sm:%s78]
      %326 = vst [vmem:[%s86 + $0x1dc] sm:%s78] %v325
      %v327 = vld [vmem:[%s85 + $0x1e0] sm:%s78]
      %328 = vst [vmem:[%s86 + $0x1e0] sm:%s78] %v327
      %v329 = vld [vmem:[%s85 + $0x210] sm:%s78]
      %330 = vst [vmem:[%s86 + $0x1e4] sm:%s78] %v329
      %v331 = vld [vmem:[%s85 + $0x1e4] sm:%s78]
      %332 = vst [vmem:[%s86 + $0x1e8] sm:%s78] %v331
      %v333 = vld [vmem:[%s85 + $0x214] sm:%s78]
      %334 = vst [vmem:[%s86 + $0x1ec] sm:%s78] %v333
      %v335 = vld [vmem:[%s85 + $0x1e8] sm:%s78]
      %336 = vst [vmem:[%s86 + $0x1f0] sm:%s78] %v335
      %v337 = vld [vmem:[%s85 + $0x218] sm:%s78]
      %338 = vst [vmem:[%s86 + $0x1f4] sm:%s78] %v337
      %v339 = vld [vmem:[%s85 + $0x1ec] sm:%s78]
      %340 = vst [vmem:[%s86 + $0x1f8] sm:%s78] %v339
      %v341 = vld [vmem:[%s85 + $0x21c] sm:%s78]
      %342 = vst [vmem:[%s86 + $0x1fc] sm:%s78] %v341
      %v343 = vld [vmem:[%s85 + $0x1f0] sm:%s78]
      %344 = vst [vmem:[%s86 + $0x200] sm:%s78] %v343
      %v345 = vld [vmem:[%s85 + $0x220] sm:%s78]
      %346 = vst [vmem:[%s86 + $0x204] sm:%s78] %v345
      %v347 = vld [vmem:[%s85 + $0x1f4] sm:%s78]
      %348 = vst [vmem:[%s86 + $0x208] sm:%s78] %v347
      %v349 = vld [vmem:[%s85 + $0x224] sm:%s78]
      %350 = vst [vmem:[%s86 + $0x20c] sm:%s78] %v349
      %v351 = vld [vmem:[%s85 + $0x1f8] sm:%s78]
      %352 = vst [vmem:[%s86 + $0x210] sm:%s78] %v351
      %v353 = vld [vmem:[%s85 + $0x228] sm:%s78]
      %354 = vst [vmem:[%s86 + $0x214] sm:%s78] %v353
      %v355 = vld [vmem:[%s85 + $0x1fc] sm:%s78]
      %356 = vst [vmem:[%s86 + $0x218] sm:%s78] %v355
      %v357 = vld [vmem:[%s85 + $0x22c] sm:%s78]
      %358 = vst [vmem:[%s86 + $0x21c] sm:%s78] %v357
      %v359 = vld [vmem:[%s85 + $0x200] sm:%s78]
      %360 = vst [vmem:[%s86 + $0x220] sm:%s78] %v359
      %v361 = vld [vmem:[%s85 + $0x230] sm:%s78]
      %362 = vst [vmem:[%s86 + $0x224] sm:%s78] %v361
      %v363 = vld [vmem:[%s85 + $0x204] sm:%s78]
      %364 = vst [vmem:[%s86 + $0x228] sm:%s78] %v363
      %v365 = vld [vmem:[%s85 + $0x234] sm:%s78]
      %366 = vst [vmem:[%s86 + $0x22c] sm:%s78] %v365
      %v367 = vld [vmem:[%s85 + $0x208] sm:%s78]
      %368 = vst [vmem:[%s86 + $0x230] sm:%s78] %v367
      %v369 = vld [vmem:[%s85 + $0x238] sm:%s78]
      %370 = vst [vmem:[%s86 + $0x234] sm:%s78] %v369
      %v371 = vld [vmem:[%s85 + $0x20c] sm:%s78]
      %372 = vst [vmem:[%s86 + $0x238] sm:%s78] %v371
      %v373 = vld [vmem:[%s85 + $0x23c] sm:%s78]
      %374 = vst [vmem:[%s86 + $0x23c] sm:%s78] %v373
      %v375 = vld [vmem:[%s85 + $0x240] sm:%s78]
      %376 = vst [vmem:[%s86 + $0x240] sm:%s78] %v375
      %v377 = vld [vmem:[%s85 + $0x270] sm:%s78]
      %378 = vst [vmem:[%s86 + $0x244] sm:%s78] %v377
      %v379 = vld [vmem:[%s85 + $0x244] sm:%s78]
      %380 = vst [vmem:[%s86 + $0x248] sm:%s78] %v379
      %v381 = vld [vmem:[%s85 + $0x274] sm:%s78]
      %382 = vst [vmem:[%s86 + $0x24c] sm:%s78] %v381
      %v383 = vld [vmem:[%s85 + $0x248] sm:%s78]
      %384 = vst [vmem:[%s86 + $0x250] sm:%s78] %v383
      %v385 = vld [vmem:[%s85 + $0x278] sm:%s78]
      %386 = vst [vmem:[%s86 + $0x254] sm:%s78] %v385
      %v387 = vld [vmem:[%s85 + $0x24c] sm:%s78]
      %388 = vst [vmem:[%s86 + $0x258] sm:%s78] %v387
      %v389 = vld [vmem:[%s85 + $0x27c] sm:%s78]
      %390 = vst [vmem:[%s86 + $0x25c] sm:%s78] %v389
      %v391 = vld [vmem:[%s85 + $0x250] sm:%s78]
      %392 = vst [vmem:[%s86 + $0x260] sm:%s78] %v391
      %v393 = vld [vmem:[%s85 + $0x280] sm:%s78]
      %394 = vst [vmem:[%s86 + $0x264] sm:%s78] %v393
      %v395 = vld [vmem:[%s85 + $0x254] sm:%s78]
      %396 = vst [vmem:[%s86 + $0x268] sm:%s78] %v395
      %v397 = vld [vmem:[%s85 + $0x284] sm:%s78]
      %398 = vst [vmem:[%s86 + $0x26c] sm:%s78] %v397
      %v399 = vld [vmem:[%s85 + $0x258] sm:%s78]
      %400 = vst [vmem:[%s86 + $0x270] sm:%s78] %v399
      %v401 = vld [vmem:[%s85 + $0x288] sm:%s78]
      %402 = vst [vmem:[%s86 + $0x274] sm:%s78] %v401
      %v403 = vld [vmem:[%s85 + $0x25c] sm:%s78]
      %404 = vst [vmem:[%s86 + $0x278] sm:%s78] %v403
      %v405 = vld [vmem:[%s85 + $0x28c] sm:%s78]
      %406 = vst [vmem:[%s86 + $0x27c] sm:%s78] %v405
      %v407 = vld [vmem:[%s85 + $0x260] sm:%s78]
      %408 = vst [vmem:[%s86 + $0x280] sm:%s78] %v407
      %v409 = vld [vmem:[%s85 + $0x290] sm:%s78]
      %410 = vst [vmem:[%s86 + $0x284] sm:%s78] %v409
      %v411 = vld [vmem:[%s85 + $0x264] sm:%s78]
      %412 = vst [vmem:[%s86 + $0x288] sm:%s78] %v411
      %v413 = vld [vmem:[%s85 + $0x294] sm:%s78]
      %414 = vst [vmem:[%s86 + $0x28c] sm:%s78] %v413
      %v415 = vld [vmem:[%s85 + $0x268] sm:%s78]
      %416 = vst [vmem:[%s86 + $0x290] sm:%s78] %v415
      %v417 = vld [vmem:[%s85 + $0x298] sm:%s78]
      %418 = vst [vmem:[%s86 + $0x294] sm:%s78] %v417
      %v419 = vld [vmem:[%s85 + $0x26c] sm:%s78]
      %420 = vst [vmem:[%s86 + $0x298] sm:%s78] %v419
      %v421 = vld [vmem:[%s85 + $0x29c] sm:%s78]
      %422 = vst [vmem:[%s86 + $0x29c] sm:%s78] %v421
      %v423 = vld [vmem:[%s85 + $0x2a0] sm:%s78]
      %424 = vst [vmem:[%s86 + $0x2a0] sm:%s78] %v423
      %v425 = vld [vmem:[%s85 + $0x2d0] sm:%s78]
      %426 = vst [vmem:[%s86 + $0x2a4] sm:%s78] %v425
      %v427 = vld [vmem:[%s85 + $0x2a4] sm:%s78]
      %428 = vst [vmem:[%s86 + $0x2a8] sm:%s78] %v427
      %v429 = vld [vmem:[%s85 + $0x2d4] sm:%s78]
      %430 = vst [vmem:[%s86 + $0x2ac] sm:%s78] %v429
      %v431 = vld [vmem:[%s85 + $0x2a8] sm:%s78]
      %432 = vst [vmem:[%s86 + $0x2b0] sm:%s78] %v431
      %v433 = vld [vmem:[%s85 + $0x2d8] sm:%s78]
      %434 = vst [vmem:[%s86 + $0x2b4] sm:%s78] %v433
      %v435 = vld [vmem:[%s85 + $0x2ac] sm:%s78]
      %436 = vst [vmem:[%s86 + $0x2b8] sm:%s78] %v435
      %v437 = vld [vmem:[%s85 + $0x2dc] sm:%s78]
      %438 = vst [vmem:[%s86 + $0x2bc] sm:%s78] %v437
      %v439 = vld [vmem:[%s85 + $0x2b0] sm:%s78]
      %440 = vst [vmem:[%s86 + $0x2c0] sm:%s78] %v439
      %v441 = vld [vmem:[%s85 + $0x2e0] sm:%s78]
      %442 = vst [vmem:[%s86 + $0x2c4] sm:%s78] %v441
      %v443 = vld [vmem:[%s85 + $0x2b4] sm:%s78]
      %444 = vst [vmem:[%s86 + $0x2c8] sm:%s78] %v443
      %v445 = vld [vmem:[%s85 + $0x2e4] sm:%s78]
      %446 = vst [vmem:[%s86 + $0x2cc] sm:%s78] %v445
      %v447 = vld [vmem:[%s85 + $0x2b8] sm:%s78]
      %448 = vst [vmem:[%s86 + $0x2d0] sm:%s78] %v447
      %v449 = vld [vmem:[%s85 + $0x2e8] sm:%s78]
      %450 = vst [vmem:[%s86 + $0x2d4] sm:%s78] %v449
      %v451 = vld [vmem:[%s85 + $0x2bc] sm:%s78]
      %452 = vst [vmem:[%s86 + $0x2d8] sm:%s78] %v451
      %v453 = vld [vmem:[%s85 + $0x2ec] sm:%s78]
      %454 = vst [vmem:[%s86 + $0x2dc] sm:%s78] %v453
      %v455 = vld [vmem:[%s85 + $0x2c0] sm:%s78]
      %456 = vst [vmem:[%s86 + $0x2e0] sm:%s78] %v455
      %v457 = vld [vmem:[%s85 + $0x2f0] sm:%s78]
      %458 = vst [vmem:[%s86 + $0x2e4] sm:%s78] %v457
      %v459 = vld [vmem:[%s85 + $0x2c4] sm:%s78]
      %460 = vst [vmem:[%s86 + $0x2e8] sm:%s78] %v459
      %v461 = vld [vmem:[%s85 + $0x2f4] sm:%s78]
      %462 = vst [vmem:[%s86 + $0x2ec] sm:%s78] %v461
      %v463 = vld [vmem:[%s85 + $0x2c8] sm:%s78]
      %464 = vst [vmem:[%s86 + $0x2f0] sm:%s78] %v463
      %v465 = vld [vmem:[%s85 + $0x2f8] sm:%s78]
      %466 = vst [vmem:[%s86 + $0x2f4] sm:%s78] %v465
      %v467 = vld [vmem:[%s85 + $0x2cc] sm:%s78]
      %468 = vst [vmem:[%s86 + $0x2f8] sm:%s78] %v467
      %v469 = vld [vmem:[%s85 + $0x2fc] sm:%s78]
      %470 = vst [vmem:[%s86 + $0x2fc] sm:%s78] %v469
    $region98: #{vit_yolo_forward.1} parent=92 // loop_footer
      %s84 = sadd.s32 1, %s80
    $region99: #{vit_yolo_forward.1} parent=92 // loop_footer_branch
      %79 = sbr.rel target = $region95
    $region100: #{vit_yolo_forward.1} parent=92 // loop_exit
      _
  $region93: #{vit_yolo_forward.1} parent=0 // pred_fallthru
    _
  // Predicated region
  $region119: #{vit_yolo_forward.1} parent=0 // pred_check
    _
  $region120: #{vit_yolo_forward.1} parent=0 // pred_check_branch
    %884 = sbr.rel (0) target = $region122
  $region121: #{vit_yolo_forward.1} parent=0 // pred_region
    %885 = vsyncadd [#allocation3], 12288
  $region122: #{vit_yolo_forward.1} parent=0 // pred_fallthru
    _
  %v886 = vld [vmem:[%s0] sm:$0xff]
  %v887 = vld [vmem:[%s0 + $0x8] sm:$0xff]
  %v888 = vld [vmem:[%s0 + $0x10] sm:$0xff]
  %v889 = vld [vmem:[%s1] sm:$0xf]
  %v890 = vld [vmem:[%s1 + $0x4] sm:$0xf]
  %v891 = vld [vmem:[%s1 + $0x8] sm:$0xf]
  %v892 = vld [vmem:[%s1 + $0xc] sm:$0xf]
  %v893 = vld [vmem:[%s1 + $0x10] sm:$0xf]
  %v894 = vld [vmem:[%s1 + $0x14] sm:$0xf]
  %v895 = vld [vmem:[%s1 + $0x18] sm:$0xf]
  %v896 = vld [vmem:[%s1 + $0x1c] sm:$0xf]
  %v897 = vld [vmem:[%s1 + $0x20] sm:$0xf]
  %v898 = vld [vmem:[%s1 + $0x24] sm:$0xf]
  %v899 = vld [vmem:[%s1 + $0x28] sm:$0xf]
  %v900 = vld [vmem:[%s1 + $0x2c] sm:$0xf]
  %v901 = vld [vmem:[%s1 + $0x30] sm:$0xf]
  %v902 = vld [vmem:[%s1 + $0x34] sm:$0xf]
  %v903 = vld [vmem:[%s1 + $0x38] sm:$0xf]
  %v904 = vld [vmem:[%s1 + $0x3c] sm:$0xf]
  %v905 = vld [vmem:[%s1 + $0x40] sm:$0xf]
  %v906 = vld [vmem:[%s1 + $0x44] sm:$0xf]
  %v907 = vld [vmem:[%s1 + $0x48] sm:$0xf]
  %v908 = vld [vmem:[%s1 + $0x4c] sm:$0xf]
  %v909 = vld [vmem:[%s1 + $0x50] sm:$0xf]
  %v910 = vld [vmem:[%s1 + $0x54] sm:$0xf]
  %v911 = vld [vmem:[%s1 + $0x58] sm:$0xf]
  %v912 = vld [vmem:[%s1 + $0x5c] sm:$0xf]
  %v913 = vld [vmem:[%s1 + $0x60] sm:$0xf]
  %v914 = vld [vmem:[%s1 + $0x64] sm:$0xf]
  %v915 = vld [vmem:[%s1 + $0x68] sm:$0xf]
  %v916 = vld [vmem:[%s1 + $0x6c] sm:$0xf]
  %v917 = vld [vmem:[%s1 + $0x70] sm:$0xf]
  %v918 = vld [vmem:[%s1 + $0x74] sm:$0xf]
  %v919 = vld [vmem:[%s1 + $0x78] sm:$0xf]
  %v920 = vld [vmem:[%s1 + $0x7c] sm:$0xf]
  %v921 = vld [vmem:[%s1 + $0x80] sm:$0xf]
  %v922 = vld [vmem:[%s1 + $0x84] sm:$0xf]
  %v923 = vld [vmem:[%s1 + $0x88] sm:$0xf]
  %v924 = vld [vmem:[%s1 + $0x8c] sm:$0xf]
  %v925 = vld [vmem:[%s1 + $0x90] sm:$0xf]
  %v926 = vld [vmem:[%s1 + $0x94] sm:$0xf]
  %v927 = vld [vmem:[%s1 + $0x98] sm:$0xf]
  %v928 = vld [vmem:[%s1 + $0x9c] sm:$0xf]
  %v929 = vld [vmem:[%s1 + $0xa0] sm:$0xf]
  %v930 = vld [vmem:[%s1 + $0xa4] sm:$0xf]
  %v931 = vld [vmem:[%s1 + $0xa8] sm:$0xf]
  %v932 = vld [vmem:[%s1 + $0xac] sm:$0xf]
  %v933 = vld [vmem:[%s1 + $0xb0] sm:$0xf]
  %v934 = vld [vmem:[%s1 + $0xb4] sm:$0xf]
  %v935 = vld [vmem:[%s1 + $0xb8] sm:$0xf]
  %v936 = vld [vmem:[%s1 + $0xbc] sm:$0xf]
  %v937 = vld [vmem:[%s1 + $0xc0] sm:$0xf]
  %v938 = vld [vmem:[%s1 + $0xc4] sm:$0xf]
  %v939 = vld [vmem:[%s1 + $0xc8] sm:$0xf]
  %v940 = vld [vmem:[%s1 + $0xcc] sm:$0xf]
  %v941 = vld [vmem:[%s1 + $0xd0] sm:$0xf]
  %v942 = vld [vmem:[%s1 + $0xd4] sm:$0xf]
  %v943 = vld [vmem:[%s1 + $0xd8] sm:$0xf]
  %v944 = vld [vmem:[%s1 + $0xdc] sm:$0xf]
  %v945 = vld [vmem:[%s1 + $0xe0] sm:$0xf]
  %v946 = vld [vmem:[%s1 + $0xe4] sm:$0xf]
  %v947 = vld [vmem:[%s1 + $0xe8] sm:$0xf]
  %v948 = vld [vmem:[%s1 + $0xec] sm:$0xf]
  %v949 = vld [vmem:[%s1 + $0xf0] sm:$0xf]
  %v950 = vld [vmem:[%s1 + $0xf4] sm:$0xf]
  %v951 = vld [vmem:[%s1 + $0xf8] sm:$0xf]
  %v952 = vld [vmem:[%s1 + $0xfc] sm:$0xf]
  %v953 = vld [vmem:[%s1 + $0x100] sm:$0xf]
  %v954 = vld [vmem:[%s1 + $0x104] sm:$0xf]
  %v955 = vld [vmem:[%s1 + $0x108] sm:$0xf]
  %v956 = vld [vmem:[%s1 + $0x10c] sm:$0xf]
  %v957 = vld [vmem:[%s1 + $0x110] sm:$0xf]
  %v958 = vld [vmem:[%s1 + $0x114] sm:$0xf]
  %v959 = vld [vmem:[%s1 + $0x118] sm:$0xf]
  %v960 = vld [vmem:[%s1 + $0x11c] sm:$0xf]
  %v961 = vld [vmem:[%s1 + $0x120] sm:$0xf]
  %v962 = vld [vmem:[%s1 + $0x124] sm:$0xf]
  %v963 = vld [vmem:[%s1 + $0x128] sm:$0xf]
  %v964 = vld [vmem:[%s1 + $0x12c] sm:$0xf]
  %v965 = vld [vmem:[%s1 + $0x130] sm:$0xf]
  %v966 = vld [vmem:[%s1 + $0x134] sm:$0xf]
  %v967 = vld [vmem:[%s1 + $0x138] sm:$0xf]
  %v968 = vld [vmem:[%s1 + $0x13c] sm:$0xf]
  %v969 = vld [vmem:[%s1 + $0x140] sm:$0xf]
  %v970 = vld [vmem:[%s1 + $0x144] sm:$0xf]
  %v971 = vld [vmem:[%s1 + $0x148] sm:$0xf]
  %v972 = vld [vmem:[%s1 + $0x14c] sm:$0xf]
  %v973 = vld [vmem:[%s1 + $0x150] sm:$0xf]
  %v974 = vld [vmem:[%s1 + $0x154] sm:$0xf]
  %v975 = vld [vmem:[%s1 + $0x158] sm:$0xf]
  %v976 = vld [vmem:[%s1 + $0x15c] sm:$0xf]
  %v977 = vld [vmem:[%s1 + $0x160] sm:$0xf]
  %v978 = vld [vmem:[%s1 + $0x164] sm:$0xf]
  %v979 = vld [vmem:[%s1 + $0x168] sm:$0xf]
  %v980 = vld [vmem:[%s1 + $0x16c] sm:$0xf]
  %v981 = vld [vmem:[%s1 + $0x170] sm:$0xf]
  %v982 = vld [vmem:[%s1 + $0x174] sm:$0xf]
  %v983 = vld [vmem:[%s1 + $0x178] sm:$0xf]
  %v984 = vld [vmem:[%s1 + $0x17c] sm:$0xf]
  %v985 = vld [vmem:[%s2] sm:$0xff]
  %v989 = vunpack.c.l.b16 %v886
  %v990 = vunpack.c.h.b16 %v886
  %v991 = vunpack.c.l.b16 %v887
  %v992 = vunpack.c.h.b16 %v887
  %v993 = vunpack.c.l.b16 %v888
  %v994 = vunpack.c.h.b16 %v888
  %v995 = vpack.c.b16 %v989, %v989
  %v996 = vpack.c.b16 %v990, %v990
  %v997 = vpack.c.b16 %v991, %v991
  %v998 = vpack.c.b16 %v992, %v992
  %v999 = vpack.c.b16 %v993, %v993
  %v1000 = vpack.c.b16 %v994, %v994
  %v1103 = vunpack.c.l.b16 %v889
  %v1104 = vunpack.c.l.b16 %v890
  %v1105 = vunpack.c.l.b16 %v891
  %v1106 = vunpack.c.l.b16 %v892
  %v1107 = vunpack.c.l.b16 %v893
  %v1108 = vunpack.c.l.b16 %v894
  %v1109 = vunpack.c.l.b16 %v895
  %v1110 = vunpack.c.l.b16 %v896
  %v1111 = vunpack.c.l.b16 %v897
  %v1112 = vunpack.c.l.b16 %v898
  %v1113 = vunpack.c.l.b16 %v899
  %v1114 = vunpack.c.l.b16 %v900
  %v1115 = vunpack.c.l.b16 %v901
  %v1116 = vunpack.c.l.b16 %v902
  %v1117 = vunpack.c.l.b16 %v903
  %v1118 = vunpack.c.l.b16 %v904
  %v1119 = vunpack.c.l.b16 %v905
  %v1120 = vunpack.c.l.b16 %v906
  %v1121 = vunpack.c.l.b16 %v907
  %v1122 = vunpack.c.l.b16 %v908
  %v1123 = vunpack.c.l.b16 %v909
  %v1124 = vunpack.c.l.b16 %v910
  %v1125 = vunpack.c.l.b16 %v911
  %v1126 = vunpack.c.l.b16 %v912
  %v1127 = vunpack.c.l.b16 %v913
  %v1128 = vunpack.c.l.b16 %v914
  %v1129 = vunpack.c.l.b16 %v915
  %v1130 = vunpack.c.l.b16 %v916
  %v1131 = vunpack.c.l.b16 %v917
  %v1132 = vunpack.c.l.b16 %v918
  %v1133 = vunpack.c.l.b16 %v919
  %v1134 = vunpack.c.l.b16 %v920
  %v1135 = vunpack.c.l.b16 %v921
  %v1136 = vunpack.c.l.b16 %v922
  %v1137 = vunpack.c.l.b16 %v923
  %v1138 = vunpack.c.l.b16 %v924
  %v1139 = vunpack.c.l.b16 %v925
  %v1140 = vunpack.c.l.b16 %v926
  %v1141 = vunpack.c.l.b16 %v927
  %v1142 = vunpack.c.l.b16 %v928
  %v1143 = vunpack.c.l.b16 %v929
  %v1144 = vunpack.c.l.b16 %v930
  %v1145 = vunpack.c.l.b16 %v931
  %v1146 = vunpack.c.l.b16 %v932
  %v1147 = vunpack.c.l.b16 %v933
  %v1148 = vunpack.c.l.b16 %v934
  %v1149 = vunpack.c.l.b16 %v935
  %v1150 = vunpack.c.l.b16 %v936
  %v1151 = vunpack.c.l.b16 %v937
  %v1152 = vunpack.c.l.b16 %v938
  %v1153 = vunpack.c.l.b16 %v939
  %v1154 = vunpack.c.l.b16 %v940
  %v1155 = vunpack.c.l.b16 %v941
  %v1156 = vunpack.c.l.b16 %v942
  %v1157 = vunpack.c.l.b16 %v943
  %v1158 = vunpack.c.l.b16 %v944
  %v1159 = vunpack.c.l.b16 %v945
  %v1160 = vunpack.c.l.b16 %v946
  %v1161 = vunpack.c.l.b16 %v947
  %v1162 = vunpack.c.l.b16 %v948
  %v1163 = vunpack.c.l.b16 %v949
  %v1164 = vunpack.c.l.b16 %v950
  %v1165 = vunpack.c.l.b16 %v951
  %v1166 = vunpack.c.l.b16 %v952
  %v1167 = vunpack.c.l.b16 %v953
  %v1168 = vunpack.c.l.b16 %v954
  %v1169 = vunpack.c.l.b16 %v955
  %v1170 = vunpack.c.l.b16 %v956
  %v1171 = vunpack.c.l.b16 %v957
  %v1172 = vunpack.c.l.b16 %v958
  %v1173 = vunpack.c.l.b16 %v959
  %v1174 = vunpack.c.l.b16 %v960
  %v1175 = vunpack.c.l.b16 %v961
  %v1176 = vunpack.c.l.b16 %v962
  %v1177 = vunpack.c.l.b16 %v963
  %v1178 = vunpack.c.l.b16 %v964
  %v1179 = vunpack.c.l.b16 %v965
  %v1180 = vunpack.c.l.b16 %v966
  %v1181 = vunpack.c.l.b16 %v967
  %v1182 = vunpack.c.l.b16 %v968
  %v1183 = vunpack.c.l.b16 %v969
  %v1184 = vunpack.c.l.b16 %v970
  %v1185 = vunpack.c.l.b16 %v971
  %v1186 = vunpack.c.l.b16 %v972
  %v1187 = vunpack.c.l.b16 %v973
  %v1188 = vunpack.c.l.b16 %v974
  %v1189 = vunpack.c.l.b16 %v975
  %v1190 = vunpack.c.l.b16 %v976
  %v1191 = vunpack.c.l.b16 %v977
  %v1192 = vunpack.c.l.b16 %v978
  %v1193 = vunpack.c.l.b16 %v979
  %v1194 = vunpack.c.l.b16 %v980
  %v1195 = vunpack.c.l.b16 %v981
  %v1196 = vunpack.c.l.b16 %v982
  %v1197 = vunpack.c.l.b16 %v983
  %v1198 = vunpack.c.l.b16 %v984
  %v1199 = vpack.c.b16 %v1104, %v1103
  %v1200 = vpack.c.b16 %v1106, %v1105
  %v1201 = vpack.c.b16 %v1108, %v1107
  %v1202 = vpack.c.b16 %v1110, %v1109
  %v1203 = vpack.c.b16 %v1112, %v1111
  %v1204 = vpack.c.b16 %v1114, %v1113
  %v1205 = vpack.c.b16 %v1116, %v1115
  %v1206 = vpack.c.b16 %v1118, %v1117
  %v1207 = vpack.c.b16 %v1120, %v1119
  %v1208 = vpack.c.b16 %v1122, %v1121
  %v1209 = vpack.c.b16 %v1124, %v1123
  %v1210 = vpack.c.b16 %v1126, %v1125
  %v1211 = vpack.c.b16 %v1128, %v1127
  %v1212 = vpack.c.b16 %v1130, %v1129
  %v1213 = vpack.c.b16 %v1132, %v1131
  %v1214 = vpack.c.b16 %v1134, %v1133
  %v1215 = vpack.c.b16 %v1136, %v1135
  %v1216 = vpack.c.b16 %v1138, %v1137
  %v1217 = vpack.c.b16 %v1140, %v1139
  %v1218 = vpack.c.b16 %v1142, %v1141
  %v1219 = vpack.c.b16 %v1144, %v1143
  %v1220 = vpack.c.b16 %v1146, %v1145
  %v1221 = vpack.c.b16 %v1148, %v1147
  %v1222 = vpack.c.b16 %v1150, %v1149
  %v1223 = vpack.c.b16 %v1152, %v1151
  %v1224 = vpack.c.b16 %v1154, %v1153
  %v1225 = vpack.c.b16 %v1156, %v1155
  %v1226 = vpack.c.b16 %v1158, %v1157
  %v1227 = vpack.c.b16 %v1160, %v1159
  %v1228 = vpack.c.b16 %v1162, %v1161
  %v1229 = vpack.c.b16 %v1164, %v1163
  %v1230 = vpack.c.b16 %v1166, %v1165
  %v1231 = vpack.c.b16 %v1168, %v1167
  %v1232 = vpack.c.b16 %v1170, %v1169
  %v1233 = vpack.c.b16 %v1172, %v1171
  %v1234 = vpack.c.b16 %v1174, %v1173
  %v1235 = vpack.c.b16 %v1176, %v1175
  %v1236 = vpack.c.b16 %v1178, %v1177
  %v1237 = vpack.c.b16 %v1180, %v1179
  %v1238 = vpack.c.b16 %v1182, %v1181
  %v1239 = vpack.c.b16 %v1184, %v1183
  %v1240 = vpack.c.b16 %v1186, %v1185
  %v1241 = vpack.c.b16 %v1188, %v1187
  %v1242 = vpack.c.b16 %v1190, %v1189
  %v1243 = vpack.c.b16 %v1192, %v1191
  %v1244 = vpack.c.b16 %v1194, %v1193
  %v1245 = vpack.c.b16 %v1196, %v1195
  %v1246 = vpack.c.b16 %v1198, %v1197
  %1295 = vmatprep.subr.bf16.mxu0 0
  %1296 = vmatpush1.bf16.msra.mxu0 %v1199
  %1297 = vmatprep.subr.bf16.mxu0 0
  %1298 = vmatpush1.bf16.msra.mxu0 %v1200
  %1299 = vmatprep.subr.bf16.mxu0 0
  %1300 = vmatpush1.bf16.msra.mxu0 %v1201
  %1301 = vmatprep.subr.bf16.mxu0 0
  %1302 = vmatpush1.bf16.msra.mxu0 %v1202
  %1303 = vmatprep.subr.bf16.mxu0 0
  %1304 = vmatpush1.bf16.msra.mxu0 %v1203
  %1305 = vmatprep.subr.bf16.mxu0 0
  %1306 = vmatpush1.bf16.msra.mxu0 %v1204
  %1307 = vmatprep.subr.bf16.mxu0 0
  %1308 = vmatpush1.bf16.msra.mxu0 %v1205
  %1309 = vmatprep.subr.bf16.mxu0 0
  %1310 = vmatpush1.bf16.msra.mxu0 %v1206
  %1311 = vmatprep.subr.bf16.mxu0 0
  %1312 = vmatpush1.bf16.msra.mxu0 %v1207
  %1313 = vmatprep.subr.bf16.mxu0 0
  %1314 = vmatpush1.bf16.msra.mxu0 %v1208
  %1315 = vmatprep.subr.bf16.mxu0 0
  %1316 = vmatpush1.bf16.msra.mxu0 %v1209
  %1317 = vmatprep.subr.bf16.mxu0 0
  %1318 = vmatpush1.bf16.msra.mxu0 %v1210
  %1319 = vmatprep.subr.bf16.mxu0 0
  %1320 = vmatpush1.bf16.msra.mxu0 %v1211
  %1321 = vmatprep.subr.bf16.mxu0 0
  %1322 = vmatpush1.bf16.msra.mxu0 %v1212
  %1323 = vmatprep.subr.bf16.mxu0 0
  %1324 = vmatpush1.bf16.msra.mxu0 %v1213
  %1325 = vmatprep.subr.bf16.mxu0 0
  %1326 = vmatpush1.bf16.msra.mxu0 %v1214
  %1327 = vmatprep.mubr.bf16.mxu0 %v996
  %1328 = vmatmul.mubr.bf16.gmra.mrb[0].mxu0 %v995
  %v1329 = vpop.f32.mrb[0].mxu0
  %v1330 = vadd.f32 %v985, %v1329
  %v1331 = vpop.f32.mrb[0].mxu0
  %v1332 = vpop.f32.mrb[0].mxu0
  %v1333 = vpop.f32.mrb[0].mxu0
  %1334 = vdwg.mxu0
  %1335 = vmatprep.subr.bf16.mxu0 0
  %1336 = vmatpush1.bf16.msra.mxu0 %v1215
  %1337 = vmatprep.subr.bf16.mxu0 0
  %1338 = vmatpush1.bf16.msra.mxu0 %v1216
  %1339 = vmatprep.subr.bf16.mxu0 0
  %1340 = vmatpush1.bf16.msra.mxu0 %v1217
  %1341 = vmatprep.subr.bf16.mxu0 0
  %1342 = vmatpush1.bf16.msra.mxu0 %v1218
  %1343 = vmatprep.subr.bf16.mxu0 0
  %1344 = vmatpush1.bf16.msra.mxu0 %v1219
  %1345 = vmatprep.subr.bf16.mxu0 0
  %1346 = vmatpush1.bf16.msra.mxu0 %v1220
  %1347 = vmatprep.subr.bf16.mxu0 0
  %1348 = vmatpush1.bf16.msra.mxu0 %v1221
  %1349 = vmatprep.subr.bf16.mxu0 0
  %1350 = vmatpush1.bf16.msra.mxu0 %v1222
  %1351 = vmatprep.subr.bf16.mxu0 0
  %1352 = vmatpush1.bf16.msra.mxu0 %v1223
  %1353 = vmatprep.subr.bf16.mxu0 0
  %1354 = vmatpush1.bf16.msra.mxu0 %v1224
  %1355 = vmatprep.subr.bf16.mxu0 0
  %1356 = vmatpush1.bf16.msra.mxu0 %v1225
  %1357 = vmatprep.subr.bf16.mxu0 0
  %1358 = vmatpush1.bf16.msra.mxu0 %v1226
  %1359 = vmatprep.subr.bf16.mxu0 0
  %1360 = vmatpush1.bf16.msra.mxu0 %v1227
  %1361 = vmatprep.subr.bf16.mxu0 0
  %1362 = vmatpush1.bf16.msra.mxu0 %v1228
  %1363 = vmatprep.subr.bf16.mxu0 0
  %1364 = vmatpush1.bf16.msra.mxu0 %v1229
  %1365 = vmatprep.subr.bf16.mxu0 0
  %1366 = vmatpush1.bf16.msra.mxu0 %v1230
  %1367 = vmatprep.mubr.bf16.mxu0 %v998
  %1368 = vmatmul.mubr.bf16.gmra.mrb[0].mxu0 %v997
  %v1369 = vpop.f32.mrb[0].mxu0
  %v1370 = vadd.f32 %v1330, %v1369
  %v1371 = vpop.f32.mrb[0].mxu0
  %v1372 = vpop.f32.mrb[0].mxu0
  %v1373 = vpop.f32.mrb[0].mxu0
  %1374 = vdwg.mxu0
  %1375 = vmatprep.subr.bf16.mxu0 0
  %1376 = vmatpush1.bf16.msra.mxu0 %v1231
  %1377 = vmatprep.subr.bf16.mxu0 0
  %1378 = vmatpush1.bf16.msra.mxu0 %v1232
  %1379 = vmatprep.subr.bf16.mxu0 0
  %1380 = vmatpush1.bf16.msra.mxu0 %v1233
  %1381 = vmatprep.subr.bf16.mxu0 0
  %1382 = vmatpush1.bf16.msra.mxu0 %v1234
  %1383 = vmatprep.subr.bf16.mxu0 0
  %1384 = vmatpush1.bf16.msra.mxu0 %v1235
  %1385 = vmatprep.subr.bf16.mxu0 0
  %1386 = vmatpush1.bf16.msra.mxu0 %v1236
  %1387 = vmatprep.subr.bf16.mxu0 0
  %1388 = vmatpush1.bf16.msra.mxu0 %v1237
  %1389 = vmatprep.subr.bf16.mxu0 0
  %1390 = vmatpush1.bf16.msra.mxu0 %v1238
  %1391 = vmatprep.subr.bf16.mxu0 0
  %1392 = vmatpush1.bf16.msra.mxu0 %v1239
  %1393 = vmatprep.subr.bf16.mxu0 0
  %1394 = vmatpush1.bf16.msra.mxu0 %v1240
  %1395 = vmatprep.subr.bf16.mxu0 0
  %1396 = vmatpush1.bf16.msra.mxu0 %v1241
  %1397 = vmatprep.subr.bf16.mxu0 0
  %1398 = vmatpush1.bf16.msra.mxu0 %v1242
  %1399 = vmatprep.subr.bf16.mxu0 0
  %1400 = vmatpush1.bf16.msra.mxu0 %v1243
  %1401 = vmatprep.subr.bf16.mxu0 0
  %1402 = vmatpush1.bf16.msra.mxu0 %v1244
  %1403 = vmatprep.subr.bf16.mxu0 0
  %1404 = vmatpush1.bf16.msra.mxu0 %v1245
  %1405 = vmatprep.subr.bf16.mxu0 0
  %1406 = vmatpush1.bf16.msra.mxu0 %v1246
  %1407 = vmatprep.mubr.bf16.mxu0 %v1000
  %1408 = vmatmul.mubr.bf16.gmra.mrb[0].mxu0 %v999
  %v1409 = vpop.f32.mrb[0].mxu0
  %v1410 = vadd.f32 %v1370, %v1409
  %v1411 = vpop.f32.mrb[0].mxu0
  %v1412 = vpop.f32.mrb[0].mxu0
  %v1413 = vpop.f32.mrb[0].mxu0
  %1414 = vdwg.mxu0
  %v1415 = vld [vmem:[%s3] sm:$0xff]
  %v1416 = vld [vmem:[%s4] sm:$0x1]
  %v1417 = vld [vmem:[%s5] sm:$0x1]
  %vm1418 = vcmask 261120
  %v1419 = vsel %vm1418, %v1410, 0.0
  %1420 = vadd.xlane.f32.xlu0 %v1419
  %v1421 = vpop.xlane.xlu0 %1420
  %v1422 = vrcp.pop 32.0
  %v1423 = vmul.f32 %v1421, %v1422
  %v1424 = vsub.f32 %v1410, %v1423
  %v1425 = vmul.f32 %v1424, %v1424
  %v1426 = vsel %vm1418, %v1425, 0.0
  %1427 = vadd.xlane.f32.xlu0 %v1426
  %v1428 = vpop.xlane.xlu0 %1427
  %v1429 = vmul.f32 %v1428, %v1422
  %v1430 = vadd.f32 %v1429, 1e-12
  %v1431 = vrsqrt.pop %v1430
  %v1432 = vmul.f32 %v1424, %v1431
  %v1434 = vlaneseq
  %v1435 = vshrl.u32 %v1434, 7
  %v1436 = vsub.s32 0, %v1435
  %v1437 = vrot.slane %v1416, %v1436
  %v1439 = vmul.f32 %v1432, %v1437
  %v1441 = vlaneseq
  %v1442 = vshrl.u32 %v1441, 7
  %v1443 = vsub.s32 0, %v1442
  %v1444 = vrot.slane %v1417, %v1443
  %v1446 = vadd.f32 %v1439, %v1444
  %v1447 = vpack.c.bf16 %v1446, %v1446
  %v1448 = vld [vmem:[%s6] sm:$0xf]
  %v1449 = vld [vmem:[%s6 + $0x4] sm:$0xf]
  %v1450 = vld [vmem:[%s6 + $0x8] sm:$0xf]
  %v1451 = vld [vmem:[%s6 + $0xc] sm:$0xf]
  %v1452 = vld [vmem:[%s7] sm:$0x1]
  %v1454 = vlaneseq
  %v1455 = vshrl.u32 %v1454, 7
  %v1456 = vsub.s32 0, %v1455
  %v1457 = vrot.slane %v1452, %v1456
  %v1463 = vunpack.c.l.b16 %v1448
  %v1464 = vunpack.c.l.b16 %v1449
  %v1465 = vunpack.c.l.b16 %v1450
  %v1466 = vunpack.c.l.b16 %v1451
  %v1467 = vpack.c.b16 %v1464, %v1463
  %v1468 = vpack.c.b16 %v1466, %v1465
  %v1472 = vsel %vm1418, %v1447, 0
  %1474 = vmatprep.subr.bf16.mxu0 0
  %1475 = vmatpush1.bf16.msra.mxu0 %v1467
  %1476 = vmatprep.subr.bf16.mxu0 0
  %1477 = vmatpush1.bf16.msra.mxu0 %v1468
  %1478 = vmatprep.subr.bf16.mxu0 0
  %1479 = vmatpush1.bf16.msra.mxu0 0
  %1480 = vmatprep.subr.bf16.mxu0 0
  %1481 = vmatpush1.bf16.msra.mxu0 0
  %1482 = vmatprep.subr.bf16.mxu0 0
  %1483 = vmatpush1.bf16.msra.mxu0 0
  %1484 = vmatprep.subr.bf16.mxu0 0
  %1485 = vmatpush1.bf16.msra.mxu0 0
  %1486 = vmatprep.subr.bf16.mxu0 0
  %1487 = vmatpush1.bf16.msra.mxu0 0
  %1488 = vmatprep.subr.bf16.mxu0 0
  %1489 = vmatpush1.bf16.msra.mxu0 0
  %1490 = vmatprep.subr.bf16.mxu0 0
  %1491 = vmatpush1.bf16.msra.mxu0 0
  %1492 = vmatprep.subr.bf16.mxu0 0
  %1493 = vmatpush1.bf16.msra.mxu0 0
  %1494 = vmatprep.subr.bf16.mxu0 0
  %1495 = vmatpush1.bf16.msra.mxu0 0
  %1496 = vmatprep.subr.bf16.mxu0 0
  %1497 = vmatpush1.bf16.msra.mxu0 0
  %1498 = vmatprep.subr.bf16.mxu0 0
  %1499 = vmatpush1.bf16.msra.mxu0 0
  %1500 = vmatprep.subr.bf16.mxu0 0
  %1501 = vmatpush1.bf16.msra.mxu0 0
  %1502 = vmatprep.subr.bf16.mxu0 0
  %1503 = vmatpush1.bf16.msra.mxu0 0
  %1504 = vmatprep.subr.bf16.mxu0 0
  %1505 = vmatpush1.bf16.msra.mxu0 0
  %1506 = vmatprep.mubr.bf16.mxu0 0
  %1507 = vmatmul.mubr.bf16.gmra.mrb[0].mxu0 %v1472
  %v1508 = vpop.f32.mrb[0].mxu0
  %v1509 = vadd.f32 %v1457, %v1508
  %v1510 = vpop.f32.mrb[0].mxu0
  %v1511 = vpop.f32.mrb[0].mxu0
  %v1512 = vpop.f32.mrb[0].mxu0
  %1513 = vdwg.mxu0
  %v1514 = vld [vmem:[%s9] sm:$0x1]
  %v1515 = vpack.c.bf16 %v1509, %v1509
  %1517 = vrot.lane.b32.xlu0 %v1515, 96
  %v1518 = vpop.permute.xlu0 %1517
  %vm1519 = vcmask 64512
  %v1521 = vsel %vm1519, %v1515, 0
  %v1524 = vsel %vm1519, %v1518, 0
  %1526 = vmatprep.subr.bf16.mxu0 0
  %1527 = vmatpush1.bf16.xpose.msra.mxu0 %v1524
  %1528 = vmatprep.subr.bf16.mxu0 0
  %1529 = vmatpush1.bf16.xpose.msra.mxu0 0
  %1530 = vmatprep.subr.bf16.mxu0 0
  %1531 = vmatpush1.bf16.xpose.msra.mxu0 0
  %1532 = vmatprep.subr.bf16.mxu0 0
  %1533 = vmatpush1.bf16.xpose.msra.mxu0 0
  %1534 = vmatprep.subr.bf16.mxu0 0
  %1535 = vmatpush1.bf16.xpose.msra.mxu0 0
  %1536 = vmatprep.subr.bf16.mxu0 0
  %1537 = vmatpush1.bf16.xpose.msra.mxu0 0
  %1538 = vmatprep.subr.bf16.mxu0 0
  %1539 = vmatpush1.bf16.xpose.msra.mxu0 0
  %1540 = vmatprep.subr.bf16.mxu0 0
  %1541 = vmatpush1.bf16.xpose.msra.mxu0 0
  %1542 = vmatprep.subr.bf16.mxu0 0
  %1543 = vmatpush1.bf16.xpose.msra.mxu0 0
  %1544 = vmatprep.subr.bf16.mxu0 0
  %1545 = vmatpush1.bf16.xpose.msra.mxu0 0
  %1546 = vmatprep.subr.bf16.mxu0 0
  %1547 = vmatpush1.bf16.xpose.msra.mxu0 0
  %1548 = vmatprep.subr.bf16.mxu0 0
  %1549 = vmatpush1.bf16.xpose.msra.mxu0 0
  %1550 = vmatprep.subr.bf16.mxu0 0
  %1551 = vmatpush1.bf16.xpose.msra.mxu0 0
  %1552 = vmatprep.subr.bf16.mxu0 0
  %1553 = vmatpush1.bf16.xpose.msra.mxu0 0
  %1554 = vmatprep.subr.bf16.mxu0 0
  %1555 = vmatpush1.bf16.xpose.msra.mxu0 0
  %1556 = vmatprep.subr.bf16.mxu0 0
  %1557 = vmatpush1.bf16.xpose.msra.mxu0 0
  %1558 = vmatprep.mubr.bf16.mxu0 0
  %1559 = vmatmul.mubr.bf16.gmra.mrb[0].mxu0 %v1521
  %v1560 = vpop.f32.mrb[0].mxu0
  %v1561 = vadd.f32 0.0, %v1560
  %v1562 = vpop.f32.mrb[0].mxu0
  %v1563 = vpop.f32.mrb[0].mxu0
  %v1564 = vpop.f32.mrb[0].mxu0
  %1565 = vdwg.mxu0
  %v1566 = vmul.f32 %v1561, 0.35355338
  %v1567 = vadd.f32 %v1566, %v1415
  %v1568 = vsel %vm1519, %v1567, -inf
  %1569 = vmax.xlane.f32.xlu0 %v1568
  %v1570 = vpop.xlane.xlu0 %1569
  %v1571 = vsub.f32 %v1567, %v1570
  %v1572 = vmul.f32 %v1571, 1.442695
  %v1573 = vpow.pop %v1572
  %v1574 = vsel %vm1519, %v1573, 0.0
  %1575 = vadd.xlane.f32.xlu0 %v1574
  %v1576 = vpop.xlane.xlu0 %1575
  %v1577 = vrcp.pop %v1576
  %v1578 = vmul.f32 %v1573, %v1577
  %v1579 = vpack.c.bf16 %v1578, %v1578
  %1580 = vrot.lane.b32.xlu0 %v1515, 64
  %v1581 = vpop.permute.xlu0 %1580
  %v1583 = vsel %vm1519, %v1579, 0
  %vm1585 = vcmask 1043456
  %v1587 = vsel %vm1585, %v1581, 0
  %1589 = vmatprep.subr.bf16.mxu0 0
  %1590 = vmatpush1.bf16.msra.mxu0 %v1587
  %1591 = vmatprep.subr.bf16.mxu0 0
  %1592 = vmatpush1.bf16.msra.mxu0 0
  %1593 = vmatprep.subr.bf16.mxu0 0
  %1594 = vmatpush1.bf16.msra.mxu0 0
  %1595 = vmatprep.subr.bf16.mxu0 0
  %1596 = vmatpush1.bf16.msra.mxu0 0
  %1597 = vmatprep.subr.bf16.mxu0 0
  %1598 = vmatpush1.bf16.msra.mxu0 0
  %1599 = vmatprep.subr.bf16.mxu0 0
  %1600 = vmatpush1.bf16.msra.mxu0 0
  %1601 = vmatprep.subr.bf16.mxu0 0
  %1602 = vmatpush1.bf16.msra.mxu0 0
  %1603 = vmatprep.subr.bf16.mxu0 0
  %1604 = vmatpush1.bf16.msra.mxu0 0
  %1605 = vmatprep.subr.bf16.mxu0 0
  %1606 = vmatpush1.bf16.msra.mxu0 0
  %1607 = vmatprep.subr.bf16.mxu0 0
  %1608 = vmatpush1.bf16.msra.mxu0 0
  %1609 = vmatprep.subr.bf16.mxu0 0
  %1610 = vmatpush1.bf16.msra.mxu0 0
  %1611 = vmatprep.subr.bf16.mxu0 0
  %1612 = vmatpush1.bf16.msra.mxu0 0
  %1613 = vmatprep.subr.bf16.mxu0 0
  %1614 = vmatpush1.bf16.msra.mxu0 0
  %1615 = vmatprep.subr.bf16.mxu0 0
  %1616 = vmatpush1.bf16.msra.mxu0 0
  %1617 = vmatprep.subr.bf16.mxu0 0
  %1618 = vmatpush1.bf16.msra.mxu0 0
  %1619 = vmatprep.subr.bf16.mxu0 0
  %1620 = vmatpush1.bf16.msra.mxu0 0
  %1621 = vmatprep.mubr.bf16.mxu0 0
  %1622 = vmatmul.mubr.bf16.gmra.mrb[0].mxu0 %v1583
  %v1623 = vpop.f32.mrb[0].mxu0
  %v1624 = vadd.f32 0.0, %v1623
  %v1625 = vpop.f32.mrb[0].mxu0
  %v1626 = vpop.f32.mrb[0].mxu0
  %v1627 = vpop.f32.mrb[0].mxu0
  %1628 = vdwg.mxu0
  %v1629 = vpack.c.bf16 %v1624, %v1624
  %v1630 = vld [vmem:[%s8] sm:$0xf]
  %v1632 = vsel %vm1519, %v1629, 0
  %v1635 = vsel %vm1585, %v1630, 0
  %1637 = vmatprep.subr.bf16.mxu0 0
  %1638 = vmatpush1.bf16.msra.mxu0 %v1635
  %1639 = vmatprep.subr.bf16.mxu0 0
  %1640 = vmatpush1.bf16.msra.mxu0 0
  %1641 = vmatprep.subr.bf16.mxu0 0
  %1642 = vmatpush1.bf16.msra.mxu0 0
  %1643 = vmatprep.subr.bf16.mxu0 0
  %1644 = vmatpush1.bf16.msra.mxu0 0
  %1645 = vmatprep.subr.bf16.mxu0 0
  %1646 = vmatpush1.bf16.msra.mxu0 0
  %1647 = vmatprep.subr.bf16.mxu0 0
  %1648 = vmatpush1.bf16.msra.mxu0 0
  %1649 = vmatprep.subr.bf16.mxu0 0
  %1650 = vmatpush1.bf16.msra.mxu0 0
  %1651 = vmatprep.subr.bf16.mxu0 0
  %1652 = vmatpush1.bf16.msra.mxu0 0
  %1653 = vmatprep.subr.bf16.mxu0 0
  %1654 = vmatpush1.bf16.msra.mxu0 0
  %1655 = vmatprep.subr.bf16.mxu0 0
  %1656 = vmatpush1.bf16.msra.mxu0 0
  %1657 = vmatprep.subr.bf16.mxu0 0
  %1658 = vmatpush1.bf16.msra.mxu0 0
  %1659 = vmatprep.subr.bf16.mxu0 0
  %1660 = vmatpush1.bf16.msra.mxu0 0
  %1661 = vmatprep.subr.bf16.mxu0 0
  %1662 = vmatpush1.bf16.msra.mxu0 0
  %1663 = vmatprep.subr.bf16.mxu0 0
  %1664 = vmatpush1.bf16.msra.mxu0 0
  %1665 = vmatprep.subr.bf16.mxu0 0
  %1666 = vmatpush1.bf16.msra.mxu0 0
  %1667 = vmatprep.subr.bf16.mxu0 0
  %1668 = vmatpush1.bf16.msra.mxu0 0
  %1669 = vmatprep.mubr.bf16.mxu0 0
  %1670 = vmatmul.mubr.bf16.gmra.mrb[0].mxu0 %v1632
  %v1671 = vpop.f32.mrb[0].mxu0
  %v1672 = vadd.f32 0.0, %v1671
  %v1673 = vpop.f32.mrb[0].mxu0
  %v1674 = vpop.f32.mrb[0].mxu0
  %v1675 = vpop.f32.mrb[0].mxu0
  %1676 = vdwg.mxu0
  %v1678 = vlaneseq
  %v1679 = vshrl.u32 %v1678, 7
  %v1680 = vsub.s32 0, %v1679
  %v1681 = vrot.slane %v1514, %v1680
  %v1683 = vadd.f32 %v1681, %v1672
  %1684 = vrot.lane.b32.xlu0 %v1515, 120
  %v1685 = vpop.permute.xlu0 %1684
  %1686 = vrot.lane.b32.xlu0 %v1515, 88
  %v1687 = vpop.permute.xlu0 %1686
  %v1689 = vsel %vm1519, %v1685, 0
  %v1692 = vsel %vm1519, %v1687, 0
  %1694 = vmatprep.subr.bf16.mxu0 0
  %1695 = vmatpush1.bf16.xpose.msra.mxu0 %v1692
  %1696 = vmatprep.subr.bf16.mxu0 0
  %1697 = vmatpush1.bf16.xpose.msra.mxu0 0
  %1698 = vmatprep.subr.bf16.mxu0 0
  %1699 = vmatpush1.bf16.xpose.msra.mxu0 0
  %1700 = vmatprep.subr.bf16.mxu0 0
  %1701 = vmatpush1.bf16.xpose.msra.mxu0 0
  %1702 = vmatprep.subr.bf16.mxu0 0
  %1703 = vmatpush1.bf16.xpose.msra.mxu0 0
  %1704 = vmatprep.subr.bf16.mxu0 0
  %1705 = vmatpush1.bf16.xpose.msra.mxu0 0
  %1706 = vmatprep.subr.bf16.mxu0 0
  %1707 = vmatpush1.bf16.xpose.msra.mxu0 0
  %1708 = vmatprep.subr.bf16.mxu0 0
  %1709 = vmatpush1.bf16.xpose.msra.mxu0 0
  %1710 = vmatprep.subr.bf16.mxu0 0
  %1711 = vmatpush1.bf16.xpose.msra.mxu0 0
  %1712 = vmatprep.subr.bf16.mxu0 0
  %1713 = vmatpush1.bf16.xpose.msra.mxu0 0
  %1714 = vmatprep.subr.bf16.mxu0 0
  %1715 = vmatpush1.bf16.xpose.msra.mxu0 0
  %1716 = vmatprep.subr.bf16.mxu0 0
  %1717 = vmatpush1.bf16.xpose.msra.mxu0 0
  %1718 = vmatprep.subr.bf16.mxu0 0
  %1719 = vmatpush1.bf16.xpose.msra.mxu0 0
  %1720 = vmatprep.subr.bf16.mxu0 0
  %1721 = vmatpush1.bf16.xpose.msra.mxu0 0
  %1722 = vmatprep.subr.bf16.mxu0 0
  %1723 = vmatpush1.bf16.xpose.msra.mxu0 0
  %1724 = vmatprep.subr.bf16.mxu0 0
  %1725 = vmatpush1.bf16.xpose.msra.mxu0 0
  %1726 = vmatprep.mubr.bf16.mxu0 0
  %1727 = vmatmul.mubr.bf16.gmra.mrb[0].mxu0 %v1689
  %v1728 = vpop.f32.mrb[0].mxu0
  %v1729 = vadd.f32 0.0, %v1728
  %v1730 = vpop.f32.mrb[0].mxu0
  %v1731 = vpop.f32.mrb[0].mxu0
  %v1732 = vpop.f32.mrb[0].mxu0
  %1733 = vdwg.mxu0
  %v1734 = vmul.f32 %v1729, 0.35355338
  %v1735 = vadd.f32 %v1734, %v1415
  %v1736 = vsel %vm1519, %v1735, -inf
  %1737 = vmax.xlane.f32.xlu0 %v1736
  %v1738 = vpop.xlane.xlu0 %1737
  %v1739 = vsub.f32 %v1735, %v1738
  %v1740 = vmul.f32 %v1739, 1.442695
  %v1741 = vpow.pop %v1740
  %v1742 = vsel %vm1519, %v1741, 0.0
  %1743 = vadd.xlane.f32.xlu0 %v1742
  %v1744 = vpop.xlane.xlu0 %1743
  %v1745 = vrcp.pop %v1744
  %v1746 = vmul.f32 %v1741, %v1745
  %v1747 = vpack.c.bf16 %v1746, %v1746
  %1748 = vrot.lane.b32.xlu0 %v1515, 56
  %v1749 = vpop.permute.xlu0 %1748
  %v1751 = vsel %vm1519, %v1747, 0
  %v1754 = vsel %vm1585, %v1749, 0
  %1756 = vmatprep.subr.bf16.mxu0 0
  %1757 = vmatpush1.bf16.msra.mxu0 %v1754
  %1758 = vmatprep.subr.bf16.mxu0 0
  %1759 = vmatpush1.bf16.msra.mxu0 0
  %1760 = vmatprep.subr.bf16.mxu0 0
  %1761 = vmatpush1.bf16.msra.mxu0 0
  %1762 = vmatprep.subr.bf16.mxu0 0
  %1763 = vmatpush1.bf16.msra.mxu0 0
  %1764 = vmatprep.subr.bf16.mxu0 0
  %1765 = vmatpush1.bf16.msra.mxu0 0
  %1766 = vmatprep.subr.bf16.mxu0 0
  %1767 = vmatpush1.bf16.msra.mxu0 0
  %1768 = vmatprep.subr.bf16.mxu0 0
  %1769 = vmatpush1.bf16.msra.mxu0 0
  %1770 = vmatprep.subr.bf16.mxu0 0
  %1771 = vmatpush1.bf16.msra.mxu0 0
  %1772 = vmatprep.subr.bf16.mxu0 0
  %1773 = vmatpush1.bf16.msra.mxu0 0
  %1774 = vmatprep.subr.bf16.mxu0 0
  %1775 = vmatpush1.bf16.msra.mxu0 0
  %1776 = vmatprep.subr.bf16.mxu0 0
  %1777 = vmatpush1.bf16.msra.mxu0 0
  %1778 = vmatprep.subr.bf16.mxu0 0
  %1779 = vmatpush1.bf16.msra.mxu0 0
  %1780 = vmatprep.subr.bf16.mxu0 0
  %1781 = vmatpush1.bf16.msra.mxu0 0
  %1782 = vmatprep.subr.bf16.mxu0 0
  %1783 = vmatpush1.bf16.msra.mxu0 0
  %1784 = vmatprep.subr.bf16.mxu0 0
  %1785 = vmatpush1.bf16.msra.mxu0 0
  %1786 = vmatprep.subr.bf16.mxu0 0
  %1787 = vmatpush1.bf16.msra.mxu0 0
  %1788 = vmatprep.mubr.bf16.mxu0 0
  %1789 = vmatmul.mubr.bf16.gmra.mrb[0].mxu0 %v1751
  %v1790 = vpop.f32.mrb[0].mxu0
  %v1791 = vadd.f32 0.0, %v1790
  %v1792 = vpop.f32.mrb[0].mxu0
  %v1793 = vpop.f32.mrb[0].mxu0
  %v1794 = vpop.f32.mrb[0].mxu0
  %1795 = vdwg.mxu0
  %v1796 = vpack.c.bf16 %v1791, %v1791
  %s1797 = scalar_lea.vmem %s8, 4
  %v1798 = vld [vmem:[%s1797] sm:$0xf]
  %v1800 = vsel %vm1519, %v1796, 0
  %v1803 = vsel %vm1585, %v1798, 0
  %1805 = vmatprep.subr.bf16.mxu0 0
  %1806 = vmatpush1.bf16.msra.mxu0 %v1803
  %1807 = vmatprep.subr.bf16.mxu0 0
  %1808 = vmatpush1.bf16.msra.mxu0 0
  %1809 = vmatprep.subr.bf16.mxu0 0
  %1810 = vmatpush1.bf16.msra.mxu0 0
  %1811 = vmatprep.subr.bf16.mxu0 0
  %1812 = vmatpush1.bf16.msra.mxu0 0
  %1813 = vmatprep.subr.bf16.mxu0 0
  %1814 = vmatpush1.bf16.msra.mxu0 0
  %1815 = vmatprep.subr.bf16.mxu0 0
  %1816 = vmatpush1.bf16.msra.mxu0 0
  %1817 = vmatprep.subr.bf16.mxu0 0
  %1818 = vmatpush1.bf16.msra.mxu0 0
  %1819 = vmatprep.subr.bf16.mxu0 0
  %1820 = vmatpush1.bf16.msra.mxu0 0
  %1821 = vmatprep.subr.bf16.mxu0 0
  %1822 = vmatpush1.bf16.msra.mxu0 0
  %1823 = vmatprep.subr.bf16.mxu0 0
  %1824 = vmatpush1.bf16.msra.mxu0 0
  %1825 = vmatprep.subr.bf16.mxu0 0
  %1826 = vmatpush1.bf16.msra.mxu0 0
  %1827 = vmatprep.subr.bf16.mxu0 0
  %1828 = vmatpush1.bf16.msra.mxu0 0
  %1829 = vmatprep.subr.bf16.mxu0 0
  %1830 = vmatpush1.bf16.msra.mxu0 0
  %1831 = vmatprep.subr.bf16.mxu0 0
  %1832 = vmatpush1.bf16.msra.mxu0 0
  %1833 = vmatprep.subr.bf16.mxu0 0
  %1834 = vmatpush1.bf16.msra.mxu0 0
  %1835 = vmatprep.subr.bf16.mxu0 0
  %1836 = vmatpush1.bf16.msra.mxu0 0
  %1837 = vmatprep.mubr.bf16.mxu0 0
  %1838 = vmatmul.mubr.bf16.gmra.mrb[0].mxu0 %v1800
  %v1839 = vpop.f32.mrb[0].mxu0
  %v1840 = vadd.f32 0.0, %v1839
  %v1841 = vpop.f32.mrb[0].mxu0
  %v1842 = vpop.f32.mrb[0].mxu0
  %v1843 = vpop.f32.mrb[0].mxu0
  %1844 = vdwg.mxu0
  %v1845 = vadd.f32 %v1683, %v1840
  %1846 = vrot.lane.b32.xlu0 %v1515, 112
  %v1847 = vpop.permute.xlu0 %1846
  %1848 = vrot.lane.b32.xlu0 %v1515, 80
  %v1849 = vpop.permute.xlu0 %1848
  %v1851 = vsel %vm1519, %v1847, 0
  %v1854 = vsel %vm1519, %v1849, 0
  %1856 = vmatprep.subr.bf16.mxu0 0
  %1857 = vmatpush1.bf16.xpose.msra.mxu0 %v1854
  %1858 = vmatprep.subr.bf16.mxu0 0
  %1859 = vmatpush1.bf16.xpose.msra.mxu0 0
  %1860 = vmatprep.subr.bf16.mxu0 0
  %1861 = vmatpush1.bf16.xpose.msra.mxu0 0
  %1862 = vmatprep.subr.bf16.mxu0 0
  %1863 = vmatpush1.bf16.xpose.msra.mxu0 0
  %1864 = vmatprep.subr.bf16.mxu0 0
  %1865 = vmatpush1.bf16.xpose.msra.mxu0 0
  %1866 = vmatprep.subr.bf16.mxu0 0
  %1867 = vmatpush1.bf16.xpose.msra.mxu0 0
  %1868 = vmatprep.subr.bf16.mxu0 0
  %1869 = vmatpush1.bf16.xpose.msra.mxu0 0
  %1870 = vmatprep.subr.bf16.mxu0 0
  %1871 = vmatpush1.bf16.xpose.msra.mxu0 0
  %1872 = vmatprep.subr.bf16.mxu0 0
  %1873 = vmatpush1.bf16.xpose.msra.mxu0 0
  %1874 = vmatprep.subr.bf16.mxu0 0
  %1875 = vmatpush1.bf16.xpose.msra.mxu0 0
  %1876 = vmatprep.subr.bf16.mxu0 0
  %1877 = vmatpush1.bf16.xpose.msra.mxu0 0
  %1878 = vmatprep.subr.bf16.mxu0 0
  %1879 = vmatpush1.bf16.xpose.msra.mxu0 0
  %1880 = vmatprep.subr.bf16.mxu0 0
  %1881 = vmatpush1.bf16.xpose.msra.mxu0 0
  %1882 = vmatprep.subr.bf16.mxu0 0
  %1883 = vmatpush1.bf16.xpose.msra.mxu0 0
  %1884 = vmatprep.subr.bf16.mxu0 0
  %1885 = vmatpush1.bf16.xpose.msra.mxu0 0
  %1886 = vmatprep.subr.bf16.mxu0 0
  %1887 = vmatpush1.bf16.xpose.msra.mxu0 0
  %1888 = vmatprep.mubr.bf16.mxu0 0
  %1889 = vmatmul.mubr.bf16.gmra.mrb[0].mxu0 %v1851
  %v1890 = vpop.f32.mrb[0].mxu0
  %v1891 = vadd.f32 0.0, %v1890
  %v1892 = vpop.f32.mrb[0].mxu0
  %v1893 = vpop.f32.mrb[0].mxu0
  %v1894 = vpop.f32.mrb[0].mxu0
  %1895 = vdwg.mxu0
  %v1896 = vmul.f32 %v1891, 0.35355338
  %v1897 = vadd.f32 %v1896, %v1415
  %v1898 = vsel %vm1519, %v1897, -inf
  %1899 = vmax.xlane.f32.xlu0 %v1898
  %v1900 = vpop.xlane.xlu0 %1899
  %v1901 = vsub.f32 %v1897, %v1900
  %v1902 = vmul.f32 %v1901, 1.442695
  %v1903 = vpow.pop %v1902
  %v1904 = vsel %vm1519, %v1903, 0.0
  %1905 = vadd.xlane.f32.xlu0 %v1904
  %v1906 = vpop.xlane.xlu0 %1905
  %v1907 = vrcp.pop %v1906
  %v1908 = vmul.f32 %v1903, %v1907
  %v1909 = vpack.c.bf16 %v1908, %v1908
  %1910 = vrot.lane.b32.xlu0 %v1515, 48
  %v1911 = vpop.permute.xlu0 %1910
  %v1913 = vsel %vm1519, %v1909, 0
  %v1916 = vsel %vm1585, %v1911, 0
  %1918 = vmatprep.subr.bf16.mxu0 0
  %1919 = vmatpush1.bf16.msra.mxu0 %v1916
  %1920 = vmatprep.subr.bf16.mxu0 0
  %1921 = vmatpush1.bf16.msra.mxu0 0
  %1922 = vmatprep.subr.bf16.mxu0 0
  %1923 = vmatpush1.bf16.msra.mxu0 0
  %1924 = vmatprep.subr.bf16.mxu0 0
  %1925 = vmatpush1.bf16.msra.mxu0 0
  %1926 = vmatprep.subr.bf16.mxu0 0
  %1927 = vmatpush1.bf16.msra.mxu0 0
  %1928 = vmatprep.subr.bf16.mxu0 0
  %1929 = vmatpush1.bf16.msra.mxu0 0
  %1930 = vmatprep.subr.bf16.mxu0 0
  %1931 = vmatpush1.bf16.msra.mxu0 0
  %1932 = vmatprep.subr.bf16.mxu0 0
  %1933 = vmatpush1.bf16.msra.mxu0 0
  %1934 = vmatprep.subr.bf16.mxu0 0
  %1935 = vmatpush1.bf16.msra.mxu0 0
  %1936 = vmatprep.subr.bf16.mxu0 0
  %1937 = vmatpush1.bf16.msra.mxu0 0
  %1938 = vmatprep.subr.bf16.mxu0 0
  %1939 = vmatpush1.bf16.msra.mxu0 0
  %1940 = vmatprep.subr.bf16.mxu0 0
  %1941 = vmatpush1.bf16.msra.mxu0 0
  %1942 = vmatprep.subr.bf16.mxu0 0
  %1943 = vmatpush1.bf16.msra.mxu0 0
  %1944 = vmatprep.subr.bf16.mxu0 0
  %1945 = vmatpush1.bf16.msra.mxu0 0
  %1946 = vmatprep.subr.bf16.mxu0 0
  %1947 = vmatpush1.bf16.msra.mxu0 0
  %1948 = vmatprep.subr.bf16.mxu0 0
  %1949 = vmatpush1.bf16.msra.mxu0 0
  %1950 = vmatprep.mubr.bf16.mxu0 0
  %1951 = vmatmul.mubr.bf16.gmra.mrb[0].mxu0 %v1913
  %v1952 = vpop.f32.mrb[0].mxu0
  %v1953 = vadd.f32 0.0, %v1952
  %v1954 = vpop.f32.mrb[0].mxu0
  %v1955 = vpop.f32.mrb[0].mxu0
  %v1956 = vpop.f32.mrb[0].mxu0
  %1957 = vdwg.mxu0
  %v1958 = vpack.c.bf16 %v1953, %v1953
  %s1959 = scalar_lea.vmem %s8, 8
  %v1960 = vld [vmem:[%s1959] sm:$0xf]
  %v1962 = vsel %vm1519, %v1958, 0
  %v1965 = vsel %vm1585, %v1960, 0
  %1967 = vmatprep.subr.bf16.mxu0 0
  %1968 = vmatpush1.bf16.msra.mxu0 %v1965
  %1969 = vmatprep.subr.bf16.mxu0 0
  %1970 = vmatpush1.bf16.msra.mxu0 0
  %1971 = vmatprep.subr.bf16.mxu0 0
  %1972 = vmatpush1.bf16.msra.mxu0 0
  %1973 = vmatprep.subr.bf16.mxu0 0
  %1974 = vmatpush1.bf16.msra.mxu0 0
  %1975 = vmatprep.subr.bf16.mxu0 0
  %1976 = vmatpush1.bf16.msra.mxu0 0
  %1977 = vmatprep.subr.bf16.mxu0 0
  %1978 = vmatpush1.bf16.msra.mxu0 0
  %1979 = vmatprep.subr.bf16.mxu0 0
  %1980 = vmatpush1.bf16.msra.mxu0 0
  %1981 = vmatprep.subr.bf16.mxu0 0
  %1982 = vmatpush1.bf16.msra.mxu0 0
  %1983 = vmatprep.subr.bf16.mxu0 0
  %1984 = vmatpush1.bf16.msra.mxu0 0
  %1985 = vmatprep.subr.bf16.mxu0 0
  %1986 = vmatpush1.bf16.msra.mxu0 0
  %1987 = vmatprep.subr.bf16.mxu0 0
  %1988 = vmatpush1.bf16.msra.mxu0 0
  %1989 = vmatprep.subr.bf16.mxu0 0
  %1990 = vmatpush1.bf16.msra.mxu0 0
  %1991 = vmatprep.subr.bf16.mxu0 0
  %1992 = vmatpush1.bf16.msra.mxu0 0
  %1993 = vmatprep.subr.bf16.mxu0 0
  %1994 = vmatpush1.bf16.msra.mxu0 0
  %1995 = vmatprep.subr.bf16.mxu0 0
  %1996 = vmatpush1.bf16.msra.mxu0 0
  %1997 = vmatprep.subr.bf16.mxu0 0
  %1998 = vmatpush1.bf16.msra.mxu0 0
  %1999 = vmatprep.mubr.bf16.mxu0 0
  %2000 = vmatmul.mubr.bf16.gmra.mrb[0].mxu0 %v1962
  %v2001 = vpop.f32.mrb[0].mxu0
  %v2002 = vadd.f32 0.0, %v2001
  %v2003 = vpop.f32.mrb[0].mxu0
  %v2004 = vpop.f32.mrb[0].mxu0
  %v2005 = vpop.f32.mrb[0].mxu0
  %2006 = vdwg.mxu0
  %v2007 = vadd.f32 %v1845, %v2002
  %2008 = vrot.lane.b32.xlu0 %v1515, 104
  %v2009 = vpop.permute.xlu0 %2008
  %2010 = vrot.lane.b32.xlu0 %v1515, 72
  %v2011 = vpop.permute.xlu0 %2010
  %v2013 = vsel %vm1519, %v2009, 0
  %v2016 = vsel %vm1519, %v2011, 0
  %2018 = vmatprep.subr.bf16.mxu0 0
  %2019 = vmatpush1.bf16.xpose.msra.mxu0 %v2016
  %2020 = vmatprep.subr.bf16.mxu0 0
  %2021 = vmatpush1.bf16.xpose.msra.mxu0 0
  %2022 = vmatprep.subr.bf16.mxu0 0
  %2023 = vmatpush1.bf16.xpose.msra.mxu0 0
  %2024 = vmatprep.subr.bf16.mxu0 0
  %2025 = vmatpush1.bf16.xpose.msra.mxu0 0
  %2026 = vmatprep.subr.bf16.mxu0 0
  %2027 = vmatpush1.bf16.xpose.msra.mxu0 0
  %2028 = vmatprep.subr.bf16.mxu0 0
  %2029 = vmatpush1.bf16.xpose.msra.mxu0 0
  %2030 = vmatprep.subr.bf16.mxu0 0
  %2031 = vmatpush1.bf16.xpose.msra.mxu0 0
  %2032 = vmatprep.subr.bf16.mxu0 0
  %2033 = vmatpush1.bf16.xpose.msra.mxu0 0
  %2034 = vmatprep.subr.bf16.mxu0 0
  %2035 = vmatpush1.bf16.xpose.msra.mxu0 0
  %2036 = vmatprep.subr.bf16.mxu0 0
  %2037 = vmatpush1.bf16.xpose.msra.mxu0 0
  %2038 = vmatprep.subr.bf16.mxu0 0
  %2039 = vmatpush1.bf16.xpose.msra.mxu0 0
  %2040 = vmatprep.subr.bf16.mxu0 0
  %2041 = vmatpush1.bf16.xpose.msra.mxu0 0
  %2042 = vmatprep.subr.bf16.mxu0 0
  %2043 = vmatpush1.bf16.xpose.msra.mxu0 0
  %2044 = vmatprep.subr.bf16.mxu0 0
  %2045 = vmatpush1.bf16.xpose.msra.mxu0 0
  %2046 = vmatprep.subr.bf16.mxu0 0
  %2047 = vmatpush1.bf16.xpose.msra.mxu0 0
  %2048 = vmatprep.subr.bf16.mxu0 0
  %2049 = vmatpush1.bf16.xpose.msra.mxu0 0
  %2050 = vmatprep.mubr.bf16.mxu0 0
  %2051 = vmatmul.mubr.bf16.gmra.mrb[0].mxu0 %v2013
  %v2052 = vpop.f32.mrb[0].mxu0
  %v2053 = vadd.f32 0.0, %v2052
  %v2054 = vpop.f32.mrb[0].mxu0
  %v2055 = vpop.f32.mrb[0].mxu0
  %v2056 = vpop.f32.mrb[0].mxu0
  %2057 = vdwg.mxu0
  %v2058 = vmul.f32 %v2053, 0.35355338
  %v2059 = vadd.f32 %v2058, %v1415
  %v2060 = vsel %vm1519, %v2059, -inf
  %2061 = vmax.xlane.f32.xlu0 %v2060
  %v2062 = vpop.xlane.xlu0 %2061
  %v2063 = vsub.f32 %v2059, %v2062
  %v2064 = vmul.f32 %v2063, 1.442695
  %v2065 = vpow.pop %v2064
  %v2066 = vsel %vm1519, %v2065, 0.0
  %2067 = vadd.xlane.f32.xlu0 %v2066
  %v2068 = vpop.xlane.xlu0 %2067
  %v2069 = vrcp.pop %v2068
  %v2070 = vmul.f32 %v2065, %v2069
  %v2071 = vpack.c.bf16 %v2070, %v2070
  %2072 = vrot.lane.b32.xlu0 %v1515, 40
  %v2073 = vpop.permute.xlu0 %2072
  %v2075 = vsel %vm1519, %v2071, 0
  %v2078 = vsel %vm1585, %v2073, 0
  %2080 = vmatprep.subr.bf16.mxu0 0
  %2081 = vmatpush1.bf16.msra.mxu0 %v2078
  %2082 = vmatprep.subr.bf16.mxu0 0
  %2083 = vmatpush1.bf16.msra.mxu0 0
  %2084 = vmatprep.subr.bf16.mxu0 0
  %2085 = vmatpush1.bf16.msra.mxu0 0
  %2086 = vmatprep.subr.bf16.mxu0 0
  %2087 = vmatpush1.bf16.msra.mxu0 0
  %2088 = vmatprep.subr.bf16.mxu0 0
  %2089 = vmatpush1.bf16.msra.mxu0 0
  %2090 = vmatprep.subr.bf16.mxu0 0
  %2091 = vmatpush1.bf16.msra.mxu0 0
  %2092 = vmatprep.subr.bf16.mxu0 0
  %2093 = vmatpush1.bf16.msra.mxu0 0
  %2094 = vmatprep.subr.bf16.mxu0 0
  %2095 = vmatpush1.bf16.msra.mxu0 0
  %2096 = vmatprep.subr.bf16.mxu0 0
  %2097 = vmatpush1.bf16.msra.mxu0 0
  %2098 = vmatprep.subr.bf16.mxu0 0
  %2099 = vmatpush1.bf16.msra.mxu0 0
  %2100 = vmatprep.subr.bf16.mxu0 0
  %2101 = vmatpush1.bf16.msra.mxu0 0
  %2102 = vmatprep.subr.bf16.mxu0 0
  %2103 = vmatpush1.bf16.msra.mxu0 0
  %2104 = vmatprep.subr.bf16.mxu0 0
  %2105 = vmatpush1.bf16.msra.mxu0 0
  %2106 = vmatprep.subr.bf16.mxu0 0
  %2107 = vmatpush1.bf16.msra.mxu0 0
  %2108 = vmatprep.subr.bf16.mxu0 0
  %2109 = vmatpush1.bf16.msra.mxu0 0
  %2110 = vmatprep.subr.bf16.mxu0 0
  %2111 = vmatpush1.bf16.msra.mxu0 0
  %2112 = vmatprep.mubr.bf16.mxu0 0
  %2113 = vmatmul.mubr.bf16.gmra.mrb[0].mxu0 %v2075
  %v2114 = vpop.f32.mrb[0].mxu0
  %v2115 = vadd.f32 0.0, %v2114
  %v2116 = vpop.f32.mrb[0].mxu0
  %v2117 = vpop.f32.mrb[0].mxu0
  %v2118 = vpop.f32.mrb[0].mxu0
  %2119 = vdwg.mxu0
  %v2120 = vpack.c.bf16 %v2115, %v2115
  %s2121 = scalar_lea.vmem %s8, 12
  %v2122 = vld [vmem:[%s2121] sm:$0xf]
  %v2124 = vsel %vm1519, %v2120, 0
  %v2127 = vsel %vm1585, %v2122, 0
  %2129 = vmatprep.subr.bf16.mxu0 0
  %2130 = vmatpush1.bf16.msra.mxu0 %v2127
  %2131 = vmatprep.subr.bf16.mxu0 0
  %2132 = vmatpush1.bf16.msra.mxu0 0
  %2133 = vmatprep.subr.bf16.mxu0 0
  %2134 = vmatpush1.bf16.msra.mxu0 0
  %2135 = vmatprep.subr.bf16.mxu0 0
  %2136 = vmatpush1.bf16.msra.mxu0 0
  %2137 = vmatprep.subr.bf16.mxu0 0
  %2138 = vmatpush1.bf16.msra.mxu0 0
  %2139 = vmatprep.subr.bf16.mxu0 0
  %2140 = vmatpush1.bf16.msra.mxu0 0
  %2141 = vmatprep.subr.bf16.mxu0 0
  %2142 = vmatpush1.bf16.msra.mxu0 0
  %2143 = vmatprep.subr.bf16.mxu0 0
  %2144 = vmatpush1.bf16.msra.mxu0 0
  %2145 = vmatprep.subr.bf16.mxu0 0
  %2146 = vmatpush1.bf16.msra.mxu0 0
  %2147 = vmatprep.subr.bf16.mxu0 0
  %2148 = vmatpush1.bf16.msra.mxu0 0
  %2149 = vmatprep.subr.bf16.mxu0 0
  %2150 = vmatpush1.bf16.msra.mxu0 0
  %2151 = vmatprep.subr.bf16.mxu0 0
  %2152 = vmatpush1.bf16.msra.mxu0 0
  %2153 = vmatprep.subr.bf16.mxu0 0
  %2154 = vmatpush1.bf16.msra.mxu0 0
  %2155 = vmatprep.subr.bf16.mxu0 0
  %2156 = vmatpush1.bf16.msra.mxu0 0
  %2157 = vmatprep.subr.bf16.mxu0 0
  %2158 = vmatpush1.bf16.msra.mxu0 0
  %2159 = vmatprep.subr.bf16.mxu0 0
  %2160 = vmatpush1.bf16.msra.mxu0 0
  %2161 = vmatprep.mubr.bf16.mxu0 0
  %2162 = vmatmul.mubr.bf16.gmra.mrb[0].mxu0 %v2124
  %v2163 = vpop.f32.mrb[0].mxu0
  %v2164 = vadd.f32 0.0, %v2163
  %v2165 = vpop.f32.mrb[0].mxu0
  %v2166 = vpop.f32.mrb[0].mxu0
  %v2167 = vpop.f32.mrb[0].mxu0
  %2168 = vdwg.mxu0
  %v2169 = vadd.f32 %v2007, %v2164
  %v2170 = vadd.f32 %v1410, %v2169
  %v2171 = vld [vmem:[%s10] sm:$0x1]
  %v2172 = vld [vmem:[%s11] sm:$0x1]
  %v2173 = vsel %vm1418, %v2170, 0.0
  %2174 = vadd.xlane.f32.xlu0 %v2173
  %v2175 = vpop.xlane.xlu0 %2174
  %v2176 = vmul.f32 %v2175, %v1422
  %v2177 = vsub.f32 %v2170, %v2176
  %v2178 = vmul.f32 %v2177, %v2177
  %v2179 = vsel %vm1418, %v2178, 0.0
  %2180 = vadd.xlane.f32.xlu0 %v2179
  %v2181 = vpop.xlane.xlu0 %2180
  %v2182 = vmul.f32 %v2181, %v1422
  %v2183 = vadd.f32 %v2182, 1e-12
  %v2184 = vrsqrt.pop %v2183
  %v2185 = vmul.f32 %v2177, %v2184
  %v2187 = vlaneseq
  %v2188 = vshrl.u32 %v2187, 7
  %v2189 = vsub.s32 0, %v2188
  %v2190 = vrot.slane %v2171, %v2189
  %v2192 = vmul.f32 %v2185, %v2190
  %v2194 = vlaneseq
  %v2195 = vshrl.u32 %v2194, 7
  %v2196 = vsub.s32 0, %v2195
  %v2197 = vrot.slane %v2172, %v2196
  %v2199 = vadd.f32 %v2192, %v2197
  %v2200 = vpack.c.bf16 %v2199, %v2199
  %v2201 = vld [vmem:[%s12] sm:$0xf]
  %v2202 = vld [vmem:[%s12 + $0x4] sm:$0xf]
  %v2203 = vld [vmem:[%s12 + $0x8] sm:$0xf]
  %v2204 = vld [vmem:[%s12 + $0xc] sm:$0xf]
  %v2205 = vld [vmem:[%s13] sm:$0x1]
  %v2207 = vlaneseq
  %v2208 = vshrl.u32 %v2207, 7
  %v2209 = vsub.s32 0, %v2208
  %v2210 = vrot.slane %v2205, %v2209
  %v2216 = vunpack.c.l.b16 %v2201
  %v2217 = vunpack.c.l.b16 %v2202
  %v2218 = vunpack.c.l.b16 %v2203
  %v2219 = vunpack.c.l.b16 %v2204
  %v2220 = vpack.c.b16 %v2217, %v2216
  %v2221 = vpack.c.b16 %v2219, %v2218
  %v2225 = vsel %vm1418, %v2200, 0
  %2227 = vmatprep.subr.bf16.mxu0 0
  %2228 = vmatpush1.bf16.msra.mxu0 %v2220
  %2229 = vmatprep.subr.bf16.mxu0 0
  %2230 = vmatpush1.bf16.msra.mxu0 %v2221
  %2231 = vmatprep.subr.bf16.mxu0 0
  %2232 = vmatpush1.bf16.msra.mxu0 0
  %2233 = vmatprep.subr.bf16.mxu0 0
  %2234 = vmatpush1.bf16.msra.mxu0 0
  %2235 = vmatprep.subr.bf16.mxu0 0
  %2236 = vmatpush1.bf16.msra.mxu0 0
  %2237 = vmatprep.subr.bf16.mxu0 0
  %2238 = vmatpush1.bf16.msra.mxu0 0
  %2239 = vmatprep.subr.bf16.mxu0 0
  %2240 = vmatpush1.bf16.msra.mxu0 0
  %2241 = vmatprep.subr.bf16.mxu0 0
  %2242 = vmatpush1.bf16.msra.mxu0 0
  %2243 = vmatprep.subr.bf16.mxu0 0
  %2244 = vmatpush1.bf16.msra.mxu0 0
  %2245 = vmatprep.subr.bf16.mxu0 0
  %2246 = vmatpush1.bf16.msra.mxu0 0
  %2247 = vmatprep.subr.bf16.mxu0 0
  %2248 = vmatpush1.bf16.msra.mxu0 0
  %2249 = vmatprep.subr.bf16.mxu0 0
  %2250 = vmatpush1.bf16.msra.mxu0 0
  %2251 = vmatprep.subr.bf16.mxu0 0
  %2252 = vmatpush1.bf16.msra.mxu0 0
  %2253 = vmatprep.subr.bf16.mxu0 0
  %2254 = vmatpush1.bf16.msra.mxu0 0
  %2255 = vmatprep.subr.bf16.mxu0 0
  %2256 = vmatpush1.bf16.msra.mxu0 0
  %2257 = vmatprep.subr.bf16.mxu0 0
  %2258 = vmatpush1.bf16.msra.mxu0 0
  %2259 = vmatprep.mubr.bf16.mxu0 0
  %2260 = vmatmul.mubr.bf16.gmra.mrb[0].mxu0 %v2225
  %v2261 = vpop.f32.mrb[0].mxu0
  %v2262 = vadd.f32 %v2210, %v2261
  %v2263 = vpop.f32.mrb[0].mxu0
  %v2264 = vpop.f32.mrb[0].mxu0
  %v2265 = vpop.f32.mrb[0].mxu0
  %2266 = vdwg.mxu0
  %v2267 = vmul.f32 %v2262, 0.5
  %v2268 = vmul.f32 %v2262, 0.70710677
  %v2269 = verf.f32.pop %v2268
  %v2270 = vadd.f32 %v2269, 1.0
  %v2271 = vmul.f32 %v2267, %v2270
  %v2272 = vpack.c.bf16 %v2271, %v2271
  %v2273 = vld [vmem:[%s14] sm:$0xf]
  %v2274 = vld [vmem:[%s14 + $0x4] sm:$0xf]
  %v2275 = vld [vmem:[%s14 + $0x8] sm:$0xf]
  %v2276 = vld [vmem:[%s14 + $0xc] sm:$0xf]
  %v2277 = vld [vmem:[%s14 + $0x10] sm:$0xf]
  %v2278 = vld [vmem:[%s14 + $0x14] sm:$0xf]
  %v2279 = vld [vmem:[%s14 + $0x18] sm:$0xf]
  %v2280 = vld [vmem:[%s14 + $0x1c] sm:$0xf]
  %v2281 = vld [vmem:[%s14 + $0x20] sm:$0xf]
  %v2282 = vld [vmem:[%s14 + $0x24] sm:$0xf]
  %v2283 = vld [vmem:[%s14 + $0x28] sm:$0xf]
  %v2284 = vld [vmem:[%s14 + $0x2c] sm:$0xf]
  %v2285 = vld [vmem:[%s14 + $0x30] sm:$0xf]
  %v2286 = vld [vmem:[%s14 + $0x34] sm:$0xf]
  %v2287 = vld [vmem:[%s14 + $0x38] sm:$0xf]
  %v2288 = vld [vmem:[%s14 + $0x3c] sm:$0xf]
  %v2289 = vld [vmem:[%s15] sm:$0x1]
  %v2291 = vlaneseq
  %v2292 = vshrl.u32 %v2291, 7
  %v2293 = vsub.s32 0, %v2292
  %v2294 = vrot.slane %v2289, %v2293
  %v2312 = vunpack.c.l.b16 %v2273
  %v2313 = vunpack.c.l.b16 %v2274
  %v2314 = vunpack.c.l.b16 %v2275
  %v2315 = vunpack.c.l.b16 %v2276
  %v2316 = vunpack.c.l.b16 %v2277
  %v2317 = vunpack.c.l.b16 %v2278
  %v2318 = vunpack.c.l.b16 %v2279
  %v2319 = vunpack.c.l.b16 %v2280
  %v2320 = vunpack.c.l.b16 %v2281
  %v2321 = vunpack.c.l.b16 %v2282
  %v2322 = vunpack.c.l.b16 %v2283
  %v2323 = vunpack.c.l.b16 %v2284
  %v2324 = vunpack.c.l.b16 %v2285
  %v2325 = vunpack.c.l.b16 %v2286
  %v2326 = vunpack.c.l.b16 %v2287
  %v2327 = vunpack.c.l.b16 %v2288
  %v2328 = vpack.c.b16 %v2313, %v2312
  %v2329 = vpack.c.b16 %v2315, %v2314
  %v2330 = vpack.c.b16 %v2317, %v2316
  %v2331 = vpack.c.b16 %v2319, %v2318
  %v2332 = vpack.c.b16 %v2321, %v2320
  %v2333 = vpack.c.b16 %v2323, %v2322
  %v2334 = vpack.c.b16 %v2325, %v2324
  %v2335 = vpack.c.b16 %v2327, %v2326
  %2344 = vmatprep.subr.bf16.mxu0 0
  %2345 = vmatpush1.bf16.msra.mxu0 %v2328
  %2346 = vmatprep.subr.bf16.mxu0 0
  %2347 = vmatpush1.bf16.msra.mxu0 %v2329
  %2348 = vmatprep.subr.bf16.mxu0 0
  %2349 = vmatpush1.bf16.msra.mxu0 %v2330
  %2350 = vmatprep.subr.bf16.mxu0 0
  %2351 = vmatpush1.bf16.msra.mxu0 %v2331
  %2352 = vmatprep.subr.bf16.mxu0 0
  %2353 = vmatpush1.bf16.msra.mxu0 %v2332
  %2354 = vmatprep.subr.bf16.mxu0 0
  %2355 = vmatpush1.bf16.msra.mxu0 %v2333
  %2356 = vmatprep.subr.bf16.mxu0 0
  %2357 = vmatpush1.bf16.msra.mxu0 %v2334
  %2358 = vmatprep.subr.bf16.mxu0 0
  %2359 = vmatpush1.bf16.msra.mxu0 %v2335
  %2360 = vmatprep.subr.bf16.mxu0 0
  %2361 = vmatpush1.bf16.msra.mxu0 0
  %2362 = vmatprep.subr.bf16.mxu0 0
  %2363 = vmatpush1.bf16.msra.mxu0 0
  %2364 = vmatprep.subr.bf16.mxu0 0
  %2365 = vmatpush1.bf16.msra.mxu0 0
  %2366 = vmatprep.subr.bf16.mxu0 0
  %2367 = vmatpush1.bf16.msra.mxu0 0
  %2368 = vmatprep.subr.bf16.mxu0 0
  %2369 = vmatpush1.bf16.msra.mxu0 0
  %2370 = vmatprep.subr.bf16.mxu0 0
  %2371 = vmatpush1.bf16.msra.mxu0 0
  %2372 = vmatprep.subr.bf16.mxu0 0
  %2373 = vmatpush1.bf16.msra.mxu0 0
  %2374 = vmatprep.subr.bf16.mxu0 0
  %2375 = vmatpush1.bf16.msra.mxu0 0
  %2376 = vmatprep.mubr.bf16.mxu0 0
  %2377 = vmatmul.mubr.bf16.gmra.mrb[0].mxu0 %v2272
  %v2378 = vpop.f32.mrb[0].mxu0
  %v2379 = vadd.f32 %v2294, %v2378
  %v2380 = vpop.f32.mrb[0].mxu0
  %v2381 = vpop.f32.mrb[0].mxu0
  %v2382 = vpop.f32.mrb[0].mxu0
  %2383 = vdwg.mxu0
  %v2384 = vadd.f32 %v2170, %v2379
  %s2385 = scalar_lea.vmem %s4, 1
  %v2386 = vld [vmem:[%s2385] sm:$0x1]
  %s2387 = scalar_lea.vmem %s5, 1
  %v2388 = vld [vmem:[%s2387] sm:$0x1]
  %v2389 = vsel %vm1418, %v2384, 0.0
  %2390 = vadd.xlane.f32.xlu0 %v2389
  %v2391 = vpop.xlane.xlu0 %2390
  %v2392 = vmul.f32 %v2391, %v1422
  %v2393 = vsub.f32 %v2384, %v2392
  %v2394 = vmul.f32 %v2393, %v2393
  %v2395 = vsel %vm1418, %v2394, 0.0
  %2396 = vadd.xlane.f32.xlu0 %v2395
  %v2397 = vpop.xlane.xlu0 %2396
  %v2398 = vmul.f32 %v2397, %v1422
  %v2399 = vadd.f32 %v2398, 1e-12
  %v2400 = vrsqrt.pop %v2399
  %v2401 = vmul.f32 %v2393, %v2400
  %v2403 = vlaneseq
  %v2404 = vshrl.u32 %v2403, 7
  %v2405 = vsub.s32 0, %v2404
  %v2406 = vrot.slane %v2386, %v2405
  %v2408 = vmul.f32 %v2401, %v2406
  %v2410 = vlaneseq
  %v2411 = vshrl.u32 %v2410, 7
  %v2412 = vsub.s32 0, %v2411
  %v2413 = vrot.slane %v2388, %v2412
  %v2415 = vadd.f32 %v2408, %v2413
  %v2416 = vpack.c.bf16 %v2415, %v2415
  %s2417 = scalar_lea.vmem %s6, 16
  %v2418 = vld [vmem:[%s2417] sm:$0xf]
  %v2419 = vld [vmem:[%s2417 + $0x4] sm:$0xf]
  %v2420 = vld [vmem:[%s2417 + $0x8] sm:$0xf]
  %v2421 = vld [vmem:[%s2417 + $0xc] sm:$0xf]
  %s2422 = scalar_lea.vmem %s7, 1
  %v2423 = vld [vmem:[%s2422] sm:$0x1]
  %v2425 = vlaneseq
  %v2426 = vshrl.u32 %v2425, 7
  %v2427 = vsub.s32 0, %v2426
  %v2428 = vrot.slane %v2423, %v2427
  %v2434 = vunpack.c.l.b16 %v2418
  %v2435 = vunpack.c.l.b16 %v2419
  %v2436 = vunpack.c.l.b16 %v2420
  %v2437 = vunpack.c.l.b16 %v2421
  %v2438 = vpack.c.b16 %v2435, %v2434
  %v2439 = vpack.c.b16 %v2437, %v2436
  %v2443 = vsel %vm1418, %v2416, 0
  %2445 = vmatprep.subr.bf16.mxu0 0
  %2446 = vmatpush1.bf16.msra.mxu0 %v2438
  %2447 = vmatprep.subr.bf16.mxu0 0
  %2448 = vmatpush1.bf16.msra.mxu0 %v2439
  %2449 = vmatprep.subr.bf16.mxu0 0
  %2450 = vmatpush1.bf16.msra.mxu0 0
  %2451 = vmatprep.subr.bf16.mxu0 0
  %2452 = vmatpush1.bf16.msra.mxu0 0
  %2453 = vmatprep.subr.bf16.mxu0 0
  %2454 = vmatpush1.bf16.msra.mxu0 0
  %2455 = vmatprep.subr.bf16.mxu0 0
  %2456 = vmatpush1.bf16.msra.mxu0 0
  %2457 = vmatprep.subr.bf16.mxu0 0
  %2458 = vmatpush1.bf16.msra.mxu0 0
  %2459 = vmatprep.subr.bf16.mxu0 0
  %2460 = vmatpush1.bf16.msra.mxu0 0
  %2461 = vmatprep.subr.bf16.mxu0 0
  %2462 = vmatpush1.bf16.msra.mxu0 0
  %2463 = vmatprep.subr.bf16.mxu0 0
  %2464 = vmatpush1.bf16.msra.mxu0 0
  %2465 = vmatprep.subr.bf16.mxu0 0
  %2466 = vmatpush1.bf16.msra.mxu0 0
  %2467 = vmatprep.subr.bf16.mxu0 0
  %2468 = vmatpush1.bf16.msra.mxu0 0
  %2469 = vmatprep.subr.bf16.mxu0 0
  %2470 = vmatpush1.bf16.msra.mxu0 0
  %2471 = vmatprep.subr.bf16.mxu0 0
  %2472 = vmatpush1.bf16.msra.mxu0 0
  %2473 = vmatprep.subr.bf16.mxu0 0
  %2474 = vmatpush1.bf16.msra.mxu0 0
  %2475 = vmatprep.subr.bf16.mxu0 0
  %2476 = vmatpush1.bf16.msra.mxu0 0
  %2477 = vmatprep.mubr.bf16.mxu0 0
  %2478 = vmatmul.mubr.bf16.gmra.mrb[0].mxu0 %v2443
  %v2479 = vpop.f32.mrb[0].mxu0
  %v2480 = vadd.f32 %v2428, %v2479
  %v2481 = vpop.f32.mrb[0].mxu0
  %v2482 = vpop.f32.mrb[0].mxu0
  %v2483 = vpop.f32.mrb[0].mxu0
  %2484 = vdwg.mxu0
  %s2485 = scalar_lea.vmem %s9, 1
  %v2486 = vld [vmem:[%s2485] sm:$0x1]
  %v2487 = vpack.c.bf16 %v2480, %v2480
  %2489 = vrot.lane.b32.xlu0 %v2487, 96
  %v2490 = vpop.permute.xlu0 %2489
  %v2492 = vsel %vm1519, %v2487, 0
  %v2495 = vsel %vm1519, %v2490, 0
  %2497 = vmatprep.subr.bf16.mxu0 0
  %2498 = vmatpush1.bf16.xpose.msra.mxu0 %v2495
  %2499 = vmatprep.subr.bf16.mxu0 0
  %2500 = vmatpush1.bf16.xpose.msra.mxu0 0
  %2501 = vmatprep.subr.bf16.mxu0 0
  %2502 = vmatpush1.bf16.xpose.msra.mxu0 0
  %2503 = vmatprep.subr.bf16.mxu0 0
  %2504 = vmatpush1.bf16.xpose.msra.mxu0 0
  %2505 = vmatprep.subr.bf16.mxu0 0
  %2506 = vmatpush1.bf16.xpose.msra.mxu0 0
  %2507 = vmatprep.subr.bf16.mxu0 0
  %2508 = vmatpush1.bf16.xpose.msra.mxu0 0
  %2509 = vmatprep.subr.bf16.mxu0 0
  %2510 = vmatpush1.bf16.xpose.msra.mxu0 0
  %2511 = vmatprep.subr.bf16.mxu0 0
  %2512 = vmatpush1.bf16.xpose.msra.mxu0 0
  %2513 = vmatprep.subr.bf16.mxu0 0
  %2514 = vmatpush1.bf16.xpose.msra.mxu0 0
  %2515 = vmatprep.subr.bf16.mxu0 0
  %2516 = vmatpush1.bf16.xpose.msra.mxu0 0
  %2517 = vmatprep.subr.bf16.mxu0 0
  %2518 = vmatpush1.bf16.xpose.msra.mxu0 0
  %2519 = vmatprep.subr.bf16.mxu0 0
  %2520 = vmatpush1.bf16.xpose.msra.mxu0 0
  %2521 = vmatprep.subr.bf16.mxu0 0
  %2522 = vmatpush1.bf16.xpose.msra.mxu0 0
  %2523 = vmatprep.subr.bf16.mxu0 0
  %2524 = vmatpush1.bf16.xpose.msra.mxu0 0
  %2525 = vmatprep.subr.bf16.mxu0 0
  %2526 = vmatpush1.bf16.xpose.msra.mxu0 0
  %2527 = vmatprep.subr.bf16.mxu0 0
  %2528 = vmatpush1.bf16.xpose.msra.mxu0 0
  %2529 = vmatprep.mubr.bf16.mxu0 0
  %2530 = vmatmul.mubr.bf16.gmra.mrb[0].mxu0 %v2492
  %v2531 = vpop.f32.mrb[0].mxu0
  %v2532 = vadd.f32 0.0, %v2531
  %v2533 = vpop.f32.mrb[0].mxu0
  %v2534 = vpop.f32.mrb[0].mxu0
  %v2535 = vpop.f32.mrb[0].mxu0
  %2536 = vdwg.mxu0
  %v2537 = vmul.f32 %v2532, 0.35355338
  %v2538 = vadd.f32 %v2537, %v1415
  %v2539 = vsel %vm1519, %v2538, -inf
  %2540 = vmax.xlane.f32.xlu0 %v2539
  %v2541 = vpop.xlane.xlu0 %2540
  %v2542 = vsub.f32 %v2538, %v2541
  %v2543 = vmul.f32 %v2542, 1.442695
  %v2544 = vpow.pop %v2543
  %v2545 = vsel %vm1519, %v2544, 0.0
  %2546 = vadd.xlane.f32.xlu0 %v2545
  %v2547 = vpop.xlane.xlu0 %2546
  %v2548 = vrcp.pop %v2547
  %v2549 = vmul.f32 %v2544, %v2548
  %v2550 = vpack.c.bf16 %v2549, %v2549
  %2551 = vrot.lane.b32.xlu0 %v2487, 64
  %v2552 = vpop.permute.xlu0 %2551
  %v2554 = vsel %vm1519, %v2550, 0
  %v2557 = vsel %vm1585, %v2552, 0
  %2559 = vmatprep.subr.bf16.mxu0 0
  %2560 = vmatpush1.bf16.msra.mxu0 %v2557
  %2561 = vmatprep.subr.bf16.mxu0 0
  %2562 = vmatpush1.bf16.msra.mxu0 0
  %2563 = vmatprep.subr.bf16.mxu0 0
  %2564 = vmatpush1.bf16.msra.mxu0 0
  %2565 = vmatprep.subr.bf16.mxu0 0
  %2566 = vmatpush1.bf16.msra.mxu0 0
  %2567 = vmatprep.subr.bf16.mxu0 0
  %2568 = vmatpush1.bf16.msra.mxu0 0
  %2569 = vmatprep.subr.bf16.mxu0 0
  %2570 = vmatpush1.bf16.msra.mxu0 0
  %2571 = vmatprep.subr.bf16.mxu0 0
  %2572 = vmatpush1.bf16.msra.mxu0 0
  %2573 = vmatprep.subr.bf16.mxu0 0
  %2574 = vmatpush1.bf16.msra.mxu0 0
  %2575 = vmatprep.subr.bf16.mxu0 0
  %2576 = vmatpush1.bf16.msra.mxu0 0
  %2577 = vmatprep.subr.bf16.mxu0 0
  %2578 = vmatpush1.bf16.msra.mxu0 0
  %2579 = vmatprep.subr.bf16.mxu0 0
  %2580 = vmatpush1.bf16.msra.mxu0 0
  %2581 = vmatprep.subr.bf16.mxu0 0
  %2582 = vmatpush1.bf16.msra.mxu0 0
  %2583 = vmatprep.subr.bf16.mxu0 0
  %2584 = vmatpush1.bf16.msra.mxu0 0
  %2585 = vmatprep.subr.bf16.mxu0 0
  %2586 = vmatpush1.bf16.msra.mxu0 0
  %2587 = vmatprep.subr.bf16.mxu0 0
  %2588 = vmatpush1.bf16.msra.mxu0 0
  %2589 = vmatprep.subr.bf16.mxu0 0
  %2590 = vmatpush1.bf16.msra.mxu0 0
  %2591 = vmatprep.mubr.bf16.mxu0 0
  %2592 = vmatmul.mubr.bf16.gmra.mrb[0].mxu0 %v2554
  %v2593 = vpop.f32.mrb[0].mxu0
  %v2594 = vadd.f32 0.0, %v2593
  %v2595 = vpop.f32.mrb[0].mxu0
  %v2596 = vpop.f32.mrb[0].mxu0
  %v2597 = vpop.f32.mrb[0].mxu0
  %2598 = vdwg.mxu0
  %v2599 = vpack.c.bf16 %v2594, %v2594
  %s2600 = scalar_lea.vmem %s8, 16
  %v2601 = vld [vmem:[%s2600] sm:$0xf]
  %v2603 = vsel %vm1519, %v2599, 0
  %v2606 = vsel %vm1585, %v2601, 0
  %2608 = vmatprep.subr.bf16.mxu0 0
  %2609 = vmatpush1.bf16.msra.mxu0 %v2606
  %2610 = vmatprep.subr.bf16.mxu0 0
  %2611 = vmatpush1.bf16.msra.mxu0 0
  %2612 = vmatprep.subr.bf16.mxu0 0
  %2613 = vmatpush1.bf16.msra.mxu0 0
  %2614 = vmatprep.subr.bf16.mxu0 0
  %2615 = vmatpush1.bf16.msra.mxu0 0
  %2616 = vmatprep.subr.bf16.mxu0 0
  %2617 = vmatpush1.bf16.msra.mxu0 0
  %2618 = vmatprep.subr.bf16.mxu0 0
  %2619 = vmatpush1.bf16.msra.mxu0 0
  %2620 = vmatprep.subr.bf16.mxu0 0
  %2621 = vmatpush1.bf16.msra.mxu0 0
  %2622 = vmatprep.subr.bf16.mxu0 0
  %2623 = vmatpush1.bf16.msra.mxu0 0
  %2624 = vmatprep.subr.bf16.mxu0 0
  %2625 = vmatpush1.bf16.msra.mxu0 0
  %2626 = vmatprep.subr.bf16.mxu0 0
  %2627 = vmatpush1.bf16.msra.mxu0 0
  %2628 = vmatprep.subr.bf16.mxu0 0
  %2629 = vmatpush1.bf16.msra.mxu0 0
  %2630 = vmatprep.subr.bf16.mxu0 0
  %2631 = vmatpush1.bf16.msra.mxu0 0
  %2632 = vmatprep.subr.bf16.mxu0 0
  %2633 = vmatpush1.bf16.msra.mxu0 0
  %2634 = vmatprep.subr.bf16.mxu0 0
  %2635 = vmatpush1.bf16.msra.mxu0 0
  %2636 = vmatprep.subr.bf16.mxu0 0
  %2637 = vmatpush1.bf16.msra.mxu0 0
  %2638 = vmatprep.subr.bf16.mxu0 0
  %2639 = vmatpush1.bf16.msra.mxu0 0
  %2640 = vmatprep.mubr.bf16.mxu0 0
  %2641 = vmatmul.mubr.bf16.gmra.mrb[0].mxu0 %v2603
  %v2642 = vpop.f32.mrb[0].mxu0
  %v2643 = vadd.f32 0.0, %v2642
  %v2644 = vpop.f32.mrb[0].mxu0
  %v2645 = vpop.f32.mrb[0].mxu0
  %v2646 = vpop.f32.mrb[0].mxu0
  %2647 = vdwg.mxu0
  %v2649 = vlaneseq
  %v2650 = vshrl.u32 %v2649, 7
  %v2651 = vsub.s32 0, %v2650
  %v2652 = vrot.slane %v2486, %v2651
  %v2654 = vadd.f32 %v2652, %v2643
  %2655 = vrot.lane.b32.xlu0 %v2487, 120
  %v2656 = vpop.permute.xlu0 %2655
  %2657 = vrot.lane.b32.xlu0 %v2487, 88
  %v2658 = vpop.permute.xlu0 %2657
  %v2660 = vsel %vm1519, %v2656, 0
  %v2663 = vsel %vm1519, %v2658, 0
  %2665 = vmatprep.subr.bf16.mxu0 0
  %2666 = vmatpush1.bf16.xpose.msra.mxu0 %v2663
  %2667 = vmatprep.subr.bf16.mxu0 0
  %2668 = vmatpush1.bf16.xpose.msra.mxu0 0
  %2669 = vmatprep.subr.bf16.mxu0 0
  %2670 = vmatpush1.bf16.xpose.msra.mxu0 0
  %2671 = vmatprep.subr.bf16.mxu0 0
  %2672 = vmatpush1.bf16.xpose.msra.mxu0 0
  %2673 = vmatprep.subr.bf16.mxu0 0
  %2674 = vmatpush1.bf16.xpose.msra.mxu0 0
  %2675 = vmatprep.subr.bf16.mxu0 0
  %2676 = vmatpush1.bf16.xpose.msra.mxu0 0
  %2677 = vmatprep.subr.bf16.mxu0 0
  %2678 = vmatpush1.bf16.xpose.msra.mxu0 0
  %2679 = vmatprep.subr.bf16.mxu0 0
  %2680 = vmatpush1.bf16.xpose.msra.mxu0 0
  %2681 = vmatprep.subr.bf16.mxu0 0
  %2682 = vmatpush1.bf16.xpose.msra.mxu0 0
  %2683 = vmatprep.subr.bf16.mxu0 0
  %2684 = vmatpush1.bf16.xpose.msra.mxu0 0
  %2685 = vmatprep.subr.bf16.mxu0 0
  %2686 = vmatpush1.bf16.xpose.msra.mxu0 0
  %2687 = vmatprep.subr.bf16.mxu0 0
  %2688 = vmatpush1.bf16.xpose.msra.mxu0 0
  %2689 = vmatprep.subr.bf16.mxu0 0
  %2690 = vmatpush1.bf16.xpose.msra.mxu0 0
  %2691 = vmatprep.subr.bf16.mxu0 0
  %2692 = vmatpush1.bf16.xpose.msra.mxu0 0
  %2693 = vmatprep.subr.bf16.mxu0 0
  %2694 = vmatpush1.bf16.xpose.msra.mxu0 0
  %2695 = vmatprep.subr.bf16.mxu0 0
  %2696 = vmatpush1.bf16.xpose.msra.mxu0 0
  %2697 = vmatprep.mubr.bf16.mxu0 0
  %2698 = vmatmul.mubr.bf16.gmra.mrb[0].mxu0 %v2660
  %v2699 = vpop.f32.mrb[0].mxu0
  %v2700 = vadd.f32 0.0, %v2699
  %v2701 = vpop.f32.mrb[0].mxu0
  %v2702 = vpop.f32.mrb[0].mxu0
  %v2703 = vpop.f32.mrb[0].mxu0
  %2704 = vdwg.mxu0
  %v2705 = vmul.f32 %v2700, 0.35355338
  %v2706 = vadd.f32 %v2705, %v1415
  %v2707 = vsel %vm1519, %v2706, -inf
  %2708 = vmax.xlane.f32.xlu0 %v2707
  %v2709 = vpop.xlane.xlu0 %2708
  %v2710 = vsub.f32 %v2706, %v2709
  %v2711 = vmul.f32 %v2710, 1.442695
  %v2712 = vpow.pop %v2711
  %v2713 = vsel %vm1519, %v2712, 0.0
  %2714 = vadd.xlane.f32.xlu0 %v2713
  %v2715 = vpop.xlane.xlu0 %2714
  %v2716 = vrcp.pop %v2715
  %v2717 = vmul.f32 %v2712, %v2716
  %v2718 = vpack.c.bf16 %v2717, %v2717
  %2719 = vrot.lane.b32.xlu0 %v2487, 56
  %v2720 = vpop.permute.xlu0 %2719
  %v2722 = vsel %vm1519, %v2718, 0
  %v2725 = vsel %vm1585, %v2720, 0
  %2727 = vmatprep.subr.bf16.mxu0 0
  %2728 = vmatpush1.bf16.msra.mxu0 %v2725
  %2729 = vmatprep.subr.bf16.mxu0 0
  %2730 = vmatpush1.bf16.msra.mxu0 0
  %2731 = vmatprep.subr.bf16.mxu0 0
  %2732 = vmatpush1.bf16.msra.mxu0 0
  %2733 = vmatprep.subr.bf16.mxu0 0
  %2734 = vmatpush1.bf16.msra.mxu0 0
  %2735 = vmatprep.subr.bf16.mxu0 0
  %2736 = vmatpush1.bf16.msra.mxu0 0
  %2737 = vmatprep.subr.bf16.mxu0 0
  %2738 = vmatpush1.bf16.msra.mxu0 0
  %2739 = vmatprep.subr.bf16.mxu0 0
  %2740 = vmatpush1.bf16.msra.mxu0 0
  %2741 = vmatprep.subr.bf16.mxu0 0
  %2742 = vmatpush1.bf16.msra.mxu0 0
  %2743 = vmatprep.subr.bf16.mxu0 0
  %2744 = vmatpush1.bf16.msra.mxu0 0
  %2745 = vmatprep.subr.bf16.mxu0 0
  %2746 = vmatpush1.bf16.msra.mxu0 0
  %2747 = vmatprep.subr.bf16.mxu0 0
  %2748 = vmatpush1.bf16.msra.mxu0 0
  %2749 = vmatprep.subr.bf16.mxu0 0
  %2750 = vmatpush1.bf16.msra.mxu0 0
  %2751 = vmatprep.subr.bf16.mxu0 0
  %2752 = vmatpush1.bf16.msra.mxu0 0
  %2753 = vmatprep.subr.bf16.mxu0 0
  %2754 = vmatpush1.bf16.msra.mxu0 0
  %2755 = vmatprep.subr.bf16.mxu0 0
  %2756 = vmatpush1.bf16.msra.mxu0 0
  %2757 = vmatprep.subr.bf16.mxu0 0
  %2758 = vmatpush1.bf16.msra.mxu0 0
  %2759 = vmatprep.mubr.bf16.mxu0 0
  %2760 = vmatmul.mubr.bf16.gmra.mrb[0].mxu0 %v2722
  %v2761 = vpop.f32.mrb[0].mxu0
  %v2762 = vadd.f32 0.0, %v2761
  %v2763 = vpop.f32.mrb[0].mxu0
  %v2764 = vpop.f32.mrb[0].mxu0
  %v2765 = vpop.f32.mrb[0].mxu0
  %2766 = vdwg.mxu0
  %v2767 = vpack.c.bf16 %v2762, %v2762
  %s2768 = scalar_lea.vmem %s8, 20
  %v2769 = vld [vmem:[%s2768] sm:$0xf]
  %v2771 = vsel %vm1519, %v2767, 0
  %v2774 = vsel %vm1585, %v2769, 0
  %2776 = vmatprep.subr.bf16.mxu0 0
  %2777 = vmatpush1.bf16.msra.mxu0 %v2774
  %2778 = vmatprep.subr.bf16.mxu0 0
  %2779 = vmatpush1.bf16.msra.mxu0 0
  %2780 = vmatprep.subr.bf16.mxu0 0
  %2781 = vmatpush1.bf16.msra.mxu0 0
  %2782 = vmatprep.subr.bf16.mxu0 0
  %2783 = vmatpush1.bf16.msra.mxu0 0
  %2784 = vmatprep.subr.bf16.mxu0 0
  %2785 = vmatpush1.bf16.msra.mxu0 0
  %2786 = vmatprep.subr.bf16.mxu0 0
  %2787 = vmatpush1.bf16.msra.mxu0 0
  %2788 = vmatprep.subr.bf16.mxu0 0
  %2789 = vmatpush1.bf16.msra.mxu0 0
  %2790 = vmatprep.subr.bf16.mxu0 0
  %2791 = vmatpush1.bf16.msra.mxu0 0
  %2792 = vmatprep.subr.bf16.mxu0 0
  %2793 = vmatpush1.bf16.msra.mxu0 0
  %2794 = vmatprep.subr.bf16.mxu0 0
  %2795 = vmatpush1.bf16.msra.mxu0 0
  %2796 = vmatprep.subr.bf16.mxu0 0
  %2797 = vmatpush1.bf16.msra.mxu0 0
  %2798 = vmatprep.subr.bf16.mxu0 0
  %2799 = vmatpush1.bf16.msra.mxu0 0
  %2800 = vmatprep.subr.bf16.mxu0 0
  %2801 = vmatpush1.bf16.msra.mxu0 0
  %2802 = vmatprep.subr.bf16.mxu0 0
  %2803 = vmatpush1.bf16.msra.mxu0 0
  %2804 = vmatprep.subr.bf16.mxu0 0
  %2805 = vmatpush1.bf16.msra.mxu0 0
  %2806 = vmatprep.subr.bf16.mxu0 0
  %2807 = vmatpush1.bf16.msra.mxu0 0
  %2808 = vmatprep.mubr.bf16.mxu0 0
  %2809 = vmatmul.mubr.bf16.gmra.mrb[0].mxu0 %v2771
  %v2810 = vpop.f32.mrb[0].mxu0
  %v2811 = vadd.f32 0.0, %v2810
  %v2812 = vpop.f32.mrb[0].mxu0
  %v2813 = vpop.f32.mrb[0].mxu0
  %v2814 = vpop.f32.mrb[0].mxu0
  %2815 = vdwg.mxu0
  %v2816 = vadd.f32 %v2654, %v2811
  %2817 = vrot.lane.b32.xlu0 %v2487, 112
  %v2818 = vpop.permute.xlu0 %2817
  %2819 = vrot.lane.b32.xlu0 %v2487, 80
  %v2820 = vpop.permute.xlu0 %2819
  %v2822 = vsel %vm1519, %v2818, 0
  %v2825 = vsel %vm1519, %v2820, 0
  %2827 = vmatprep.subr.bf16.mxu0 0
  %2828 = vmatpush1.bf16.xpose.msra.mxu0 %v2825
  %2829 = vmatprep.subr.bf16.mxu0 0
  %2830 = vmatpush1.bf16.xpose.msra.mxu0 0
  %2831 = vmatprep.subr.bf16.mxu0 0
  %2832 = vmatpush1.bf16.xpose.msra.mxu0 0
  %2833 = vmatprep.subr.bf16.mxu0 0
  %2834 = vmatpush1.bf16.xpose.msra.mxu0 0
  %2835 = vmatprep.subr.bf16.mxu0 0
  %2836 = vmatpush1.bf16.xpose.msra.mxu0 0
  %2837 = vmatprep.subr.bf16.mxu0 0
  %2838 = vmatpush1.bf16.xpose.msra.mxu0 0
  %2839 = vmatprep.subr.bf16.mxu0 0
  %2840 = vmatpush1.bf16.xpose.msra.mxu0 0
  %2841 = vmatprep.subr.bf16.mxu0 0
  %2842 = vmatpush1.bf16.xpose.msra.mxu0 0
  %2843 = vmatprep.subr.bf16.mxu0 0
  %2844 = vmatpush1.bf16.xpose.msra.mxu0 0
  %2845 = vmatprep.subr.bf16.mxu0 0
  %2846 = vmatpush1.bf16.xpose.msra.mxu0 0
  %2847 = vmatprep.subr.bf16.mxu0 0
  %2848 = vmatpush1.bf16.xpose.msra.mxu0 0
  %2849 = vmatprep.subr.bf16.mxu0 0
  %2850 = vmatpush1.bf16.xpose.msra.mxu0 0
  %2851 = vmatprep.subr.bf16.mxu0 0
  %2852 = vmatpush1.bf16.xpose.msra.mxu0 0
  %2853 = vmatprep.subr.bf16.mxu0 0
  %2854 = vmatpush1.bf16.xpose.msra.mxu0 0
  %2855 = vmatprep.subr.bf16.mxu0 0
  %2856 = vmatpush1.bf16.xpose.msra.mxu0 0
  %2857 = vmatprep.subr.bf16.mxu0 0
  %2858 = vmatpush1.bf16.xpose.msra.mxu0 0
  %2859 = vmatprep.mubr.bf16.mxu0 0
  %2860 = vmatmul.mubr.bf16.gmra.mrb[0].mxu0 %v2822
  %v2861 = vpop.f32.mrb[0].mxu0
  %v2862 = vadd.f32 0.0, %v2861
  %v2863 = vpop.f32.mrb[0].mxu0
  %v2864 = vpop.f32.mrb[0].mxu0
  %v2865 = vpop.f32.mrb[0].mxu0
  %2866 = vdwg.mxu0
  %v2867 = vmul.f32 %v2862, 0.35355338
  %v2868 = vadd.f32 %v2867, %v1415
  %v2869 = vsel %vm1519, %v2868, -inf
  %2870 = vmax.xlane.f32.xlu0 %v2869
  %v2871 = vpop.xlane.xlu0 %2870
  %v2872 = vsub.f32 %v2868, %v2871
  %v2873 = vmul.f32 %v2872, 1.442695
  %v2874 = vpow.pop %v2873
  %v2875 = vsel %vm1519, %v2874, 0.0
  %2876 = vadd.xlane.f32.xlu0 %v2875
  %v2877 = vpop.xlane.xlu0 %2876
  %v2878 = vrcp.pop %v2877
  %v2879 = vmul.f32 %v2874, %v2878
  %v2880 = vpack.c.bf16 %v2879, %v2879
  %2881 = vrot.lane.b32.xlu0 %v2487, 48
  %v2882 = vpop.permute.xlu0 %2881
  %v2884 = vsel %vm1519, %v2880, 0
  %v2887 = vsel %vm1585, %v2882, 0
  %2889 = vmatprep.subr.bf16.mxu0 0
  %2890 = vmatpush1.bf16.msra.mxu0 %v2887
  %2891 = vmatprep.subr.bf16.mxu0 0
  %2892 = vmatpush1.bf16.msra.mxu0 0
  %2893 = vmatprep.subr.bf16.mxu0 0
  %2894 = vmatpush1.bf16.msra.mxu0 0
  %2895 = vmatprep.subr.bf16.mxu0 0
  %2896 = vmatpush1.bf16.msra.mxu0 0
  %2897 = vmatprep.subr.bf16.mxu0 0
  %2898 = vmatpush1.bf16.msra.mxu0 0
  %2899 = vmatprep.subr.bf16.mxu0 0
  %2900 = vmatpush1.bf16.msra.mxu0 0
  %2901 = vmatprep.subr.bf16.mxu0 0
  %2902 = vmatpush1.bf16.msra.mxu0 0
  %2903 = vmatprep.subr.bf16.mxu0 0
  %2904 = vmatpush1.bf16.msra.mxu0 0
  %2905 = vmatprep.subr.bf16.mxu0 0
  %2906 = vmatpush1.bf16.msra.mxu0 0
  %2907 = vmatprep.subr.bf16.mxu0 0
  %2908 = vmatpush1.bf16.msra.mxu0 0
  %2909 = vmatprep.subr.bf16.mxu0 0
  %2910 = vmatpush1.bf16.msra.mxu0 0
  %2911 = vmatprep.subr.bf16.mxu0 0
  %2912 = vmatpush1.bf16.msra.mxu0 0
  %2913 = vmatprep.subr.bf16.mxu0 0
  %2914 = vmatpush1.bf16.msra.mxu0 0
  %2915 = vmatprep.subr.bf16.mxu0 0
  %2916 = vmatpush1.bf16.msra.mxu0 0
  %2917 = vmatprep.subr.bf16.mxu0 0
  %2918 = vmatpush1.bf16.msra.mxu0 0
  %2919 = vmatprep.subr.bf16.mxu0 0
  %2920 = vmatpush1.bf16.msra.mxu0 0
  %2921 = vmatprep.mubr.bf16.mxu0 0
  %2922 = vmatmul.mubr.bf16.gmra.mrb[0].mxu0 %v2884
  %v2923 = vpop.f32.mrb[0].mxu0
  %v2924 = vadd.f32 0.0, %v2923
  %v2925 = vpop.f32.mrb[0].mxu0
  %v2926 = vpop.f32.mrb[0].mxu0
  %v2927 = vpop.f32.mrb[0].mxu0
  %2928 = vdwg.mxu0
  %v2929 = vpack.c.bf16 %v2924, %v2924
  %s2930 = scalar_lea.vmem %s8, 24
  %v2931 = vld [vmem:[%s2930] sm:$0xf]
  %v2933 = vsel %vm1519, %v2929, 0
  %v2936 = vsel %vm1585, %v2931, 0
  %2938 = vmatprep.subr.bf16.mxu0 0
  %2939 = vmatpush1.bf16.msra.mxu0 %v2936
  %2940 = vmatprep.subr.bf16.mxu0 0
  %2941 = vmatpush1.bf16.msra.mxu0 0
  %2942 = vmatprep.subr.bf16.mxu0 0
  %2943 = vmatpush1.bf16.msra.mxu0 0
  %2944 = vmatprep.subr.bf16.mxu0 0
  %2945 = vmatpush1.bf16.msra.mxu0 0
  %2946 = vmatprep.subr.bf16.mxu0 0
  %2947 = vmatpush1.bf16.msra.mxu0 0
  %2948 = vmatprep.subr.bf16.mxu0 0
  %2949 = vmatpush1.bf16.msra.mxu0 0
  %2950 = vmatprep.subr.bf16.mxu0 0
  %2951 = vmatpush1.bf16.msra.mxu0 0
  %2952 = vmatprep.subr.bf16.mxu0 0
  %2953 = vmatpush1.bf16.msra.mxu0 0
  %2954 = vmatprep.subr.bf16.mxu0 0
  %2955 = vmatpush1.bf16.msra.mxu0 0
  %2956 = vmatprep.subr.bf16.mxu0 0
  %2957 = vmatpush1.bf16.msra.mxu0 0
  %2958 = vmatprep.subr.bf16.mxu0 0
  %2959 = vmatpush1.bf16.msra.mxu0 0
  %2960 = vmatprep.subr.bf16.mxu0 0
  %2961 = vmatpush1.bf16.msra.mxu0 0
  %2962 = vmatprep.subr.bf16.mxu0 0
  %2963 = vmatpush1.bf16.msra.mxu0 0
  %2964 = vmatprep.subr.bf16.mxu0 0
  %2965 = vmatpush1.bf16.msra.mxu0 0
  %2966 = vmatprep.subr.bf16.mxu0 0
  %2967 = vmatpush1.bf16.msra.mxu0 0
  %2968 = vmatprep.subr.bf16.mxu0 0
  %2969 = vmatpush1.bf16.msra.mxu0 0
  %2970 = vmatprep.mubr.bf16.mxu0 0
  %2971 = vmatmul.mubr.bf16.gmra.mrb[0].mxu0 %v2933
  %v2972 = vpop.f32.mrb[0].mxu0
  %v2973 = vadd.f32 0.0, %v2972
  %v2974 = vpop.f32.mrb[0].mxu0
  %v2975 = vpop.f32.mrb[0].mxu0
  %v2976 = vpop.f32.mrb[0].mxu0
  %2977 = vdwg.mxu0
  %v2978 = vadd.f32 %v2816, %v2973
  %2979 = vrot.lane.b32.xlu0 %v2487, 104
  %v2980 = vpop.permute.xlu0 %2979
  %2981 = vrot.lane.b32.xlu0 %v2487, 72
  %v2982 = vpop.permute.xlu0 %2981
  %v2984 = vsel %vm1519, %v2980, 0
  %v2987 = vsel %vm1519, %v2982, 0
  %2989 = vmatprep.subr.bf16.mxu0 0
  %2990 = vmatpush1.bf16.xpose.msra.mxu0 %v2987
  %2991 = vmatprep.subr.bf16.mxu0 0
  %2992 = vmatpush1.bf16.xpose.msra.mxu0 0
  %2993 = vmatprep.subr.bf16.mxu0 0
  %2994 = vmatpush1.bf16.xpose.msra.mxu0 0
  %2995 = vmatprep.subr.bf16.mxu0 0
  %2996 = vmatpush1.bf16.xpose.msra.mxu0 0
  %2997 = vmatprep.subr.bf16.mxu0 0
  %2998 = vmatpush1.bf16.xpose.msra.mxu0 0
  %2999 = vmatprep.subr.bf16.mxu0 0
  %3000 = vmatpush1.bf16.xpose.msra.mxu0 0
  %3001 = vmatprep.subr.bf16.mxu0 0
  %3002 = vmatpush1.bf16.xpose.msra.mxu0 0
  %3003 = vmatprep.subr.bf16.mxu0 0
  %3004 = vmatpush1.bf16.xpose.msra.mxu0 0
  %3005 = vmatprep.subr.bf16.mxu0 0
  %3006 = vmatpush1.bf16.xpose.msra.mxu0 0
  %3007 = vmatprep.subr.bf16.mxu0 0
  %3008 = vmatpush1.bf16.xpose.msra.mxu0 0
  %3009 = vmatprep.subr.bf16.mxu0 0
  %3010 = vmatpush1.bf16.xpose.msra.mxu0 0
  %3011 = vmatprep.subr.bf16.mxu0 0
  %3012 = vmatpush1.bf16.xpose.msra.mxu0 0
  %3013 = vmatprep.subr.bf16.mxu0 0
  %3014 = vmatpush1.bf16.xpose.msra.mxu0 0
  %3015 = vmatprep.subr.bf16.mxu0 0
  %3016 = vmatpush1.bf16.xpose.msra.mxu0 0
  %3017 = vmatprep.subr.bf16.mxu0 0
  %3018 = vmatpush1.bf16.xpose.msra.mxu0 0
  %3019 = vmatprep.subr.bf16.mxu0 0
  %3020 = vmatpush1.bf16.xpose.msra.mxu0 0
  %3021 = vmatprep.mubr.bf16.mxu0 0
  %3022 = vmatmul.mubr.bf16.gmra.mrb[0].mxu0 %v2984
  %v3023 = vpop.f32.mrb[0].mxu0
  %v3024 = vadd.f32 0.0, %v3023
  %v3025 = vpop.f32.mrb[0].mxu0
  %v3026 = vpop.f32.mrb[0].mxu0
  %v3027 = vpop.f32.mrb[0].mxu0
  %3028 = vdwg.mxu0
  %v3029 = vmul.f32 %v3024, 0.35355338
  %v3030 = vadd.f32 %v3029, %v1415
  %v3031 = vsel %vm1519, %v3030, -inf
  %3032 = vmax.xlane.f32.xlu0 %v3031
  %v3033 = vpop.xlane.xlu0 %3032
  %v3034 = vsub.f32 %v3030, %v3033
  %v3035 = vmul.f32 %v3034, 1.442695
  %v3036 = vpow.pop %v3035
  %v3037 = vsel %vm1519, %v3036, 0.0
  %3038 = vadd.xlane.f32.xlu0 %v3037
  %v3039 = vpop.xlane.xlu0 %3038
  %v3040 = vrcp.pop %v3039
  %v3041 = vmul.f32 %v3036, %v3040
  %v3042 = vpack.c.bf16 %v3041, %v3041
  %3043 = vrot.lane.b32.xlu0 %v2487, 40
  %v3044 = vpop.permute.xlu0 %3043
  %v3046 = vsel %vm1519, %v3042, 0
  %v3049 = vsel %vm1585, %v3044, 0
  %3051 = vmatprep.subr.bf16.mxu0 0
  %3052 = vmatpush1.bf16.msra.mxu0 %v3049
  %3053 = vmatprep.subr.bf16.mxu0 0
  %3054 = vmatpush1.bf16.msra.mxu0 0
  %3055 = vmatprep.subr.bf16.mxu0 0
  %3056 = vmatpush1.bf16.msra.mxu0 0
  %3057 = vmatprep.subr.bf16.mxu0 0
  %3058 = vmatpush1.bf16.msra.mxu0 0
  %3059 = vmatprep.subr.bf16.mxu0 0
  %3060 = vmatpush1.bf16.msra.mxu0 0
  %3061 = vmatprep.subr.bf16.mxu0 0
  %3062 = vmatpush1.bf16.msra.mxu0 0
  %3063 = vmatprep.subr.bf16.mxu0 0
  %3064 = vmatpush1.bf16.msra.mxu0 0
  %3065 = vmatprep.subr.bf16.mxu0 0
  %3066 = vmatpush1.bf16.msra.mxu0 0
  %3067 = vmatprep.subr.bf16.mxu0 0
  %3068 = vmatpush1.bf16.msra.mxu0 0
  %3069 = vmatprep.subr.bf16.mxu0 0
  %3070 = vmatpush1.bf16.msra.mxu0 0
  %3071 = vmatprep.subr.bf16.mxu0 0
  %3072 = vmatpush1.bf16.msra.mxu0 0
  %3073 = vmatprep.subr.bf16.mxu0 0
  %3074 = vmatpush1.bf16.msra.mxu0 0
  %3075 = vmatprep.subr.bf16.mxu0 0
  %3076 = vmatpush1.bf16.msra.mxu0 0
  %3077 = vmatprep.subr.bf16.mxu0 0
  %3078 = vmatpush1.bf16.msra.mxu0 0
  %3079 = vmatprep.subr.bf16.mxu0 0
  %3080 = vmatpush1.bf16.msra.mxu0 0
  %3081 = vmatprep.subr.bf16.mxu0 0
  %3082 = vmatpush1.bf16.msra.mxu0 0
  %3083 = vmatprep.mubr.bf16.mxu0 0
  %3084 = vmatmul.mubr.bf16.gmra.mrb[0].mxu0 %v3046
  %v3085 = vpop.f32.mrb[0].mxu0
  %v3086 = vadd.f32 0.0, %v3085
  %v3087 = vpop.f32.mrb[0].mxu0
  %v3088 = vpop.f32.mrb[0].mxu0
  %v3089 = vpop.f32.mrb[0].mxu0
  %3090 = vdwg.mxu0
  %v3091 = vpack.c.bf16 %v3086, %v3086
  %s3092 = scalar_lea.vmem %s8, 28
  %v3093 = vld [vmem:[%s3092] sm:$0xf]
  %v3095 = vsel %vm1519, %v3091, 0
  %v3098 = vsel %vm1585, %v3093, 0
  %3100 = vmatprep.subr.bf16.mxu0 0
  %3101 = vmatpush1.bf16.msra.mxu0 %v3098
  %3102 = vmatprep.subr.bf16.mxu0 0
  %3103 = vmatpush1.bf16.msra.mxu0 0
  %3104 = vmatprep.subr.bf16.mxu0 0
  %3105 = vmatpush1.bf16.msra.mxu0 0
  %3106 = vmatprep.subr.bf16.mxu0 0
  %3107 = vmatpush1.bf16.msra.mxu0 0
  %3108 = vmatprep.subr.bf16.mxu0 0
  %3109 = vmatpush1.bf16.msra.mxu0 0
  %3110 = vmatprep.subr.bf16.mxu0 0
  %3111 = vmatpush1.bf16.msra.mxu0 0
  %3112 = vmatprep.subr.bf16.mxu0 0
  %3113 = vmatpush1.bf16.msra.mxu0 0
  %3114 = vmatprep.subr.bf16.mxu0 0
  %3115 = vmatpush1.bf16.msra.mxu0 0
  %3116 = vmatprep.subr.bf16.mxu0 0
  %3117 = vmatpush1.bf16.msra.mxu0 0
  %3118 = vmatprep.subr.bf16.mxu0 0
  %3119 = vmatpush1.bf16.msra.mxu0 0
  %3120 = vmatprep.subr.bf16.mxu0 0
  %3121 = vmatpush1.bf16.msra.mxu0 0
  %3122 = vmatprep.subr.bf16.mxu0 0
  %3123 = vmatpush1.bf16.msra.mxu0 0
  %3124 = vmatprep.subr.bf16.mxu0 0
  %3125 = vmatpush1.bf16.msra.mxu0 0
  %3126 = vmatprep.subr.bf16.mxu0 0
  %3127 = vmatpush1.bf16.msra.mxu0 0
  %3128 = vmatprep.subr.bf16.mxu0 0
  %3129 = vmatpush1.bf16.msra.mxu0 0
  %3130 = vmatprep.subr.bf16.mxu0 0
  %3131 = vmatpush1.bf16.msra.mxu0 0
  %3132 = vmatprep.mubr.bf16.mxu0 0
  %3133 = vmatmul.mubr.bf16.gmra.mrb[0].mxu0 %v3095
  %v3134 = vpop.f32.mrb[0].mxu0
  %v3135 = vadd.f32 0.0, %v3134
  %v3136 = vpop.f32.mrb[0].mxu0
  %v3137 = vpop.f32.mrb[0].mxu0
  %v3138 = vpop.f32.mrb[0].mxu0
  %3139 = vdwg.mxu0
  %v3140 = vadd.f32 %v2978, %v3135
  %v3141 = vadd.f32 %v2384, %v3140
  %s3142 = scalar_lea.vmem %s10, 1
  %v3143 = vld [vmem:[%s3142] sm:$0x1]
  %s3144 = scalar_lea.vmem %s11, 1
  %v3145 = vld [vmem:[%s3144] sm:$0x1]
  %v3146 = vsel %vm1418, %v3141, 0.0
  %3147 = vadd.xlane.f32.xlu0 %v3146
  %v3148 = vpop.xlane.xlu0 %3147
  %v3149 = vmul.f32 %v3148, %v1422
  %v3150 = vsub.f32 %v3141, %v3149
  %v3151 = vmul.f32 %v3150, %v3150
  %v3152 = vsel %vm1418, %v3151, 0.0
  %3153 = vadd.xlane.f32.xlu0 %v3152
  %v3154 = vpop.xlane.xlu0 %3153
  %v3155 = vmul.f32 %v3154, %v1422
  %v3156 = vadd.f32 %v3155, 1e-12
  %v3157 = vrsqrt.pop %v3156
  %v3158 = vmul.f32 %v3150, %v3157
  %v3160 = vlaneseq
  %v3161 = vshrl.u32 %v3160, 7
  %v3162 = vsub.s32 0, %v3161
  %v3163 = vrot.slane %v3143, %v3162
  %v3165 = vmul.f32 %v3158, %v3163
  %v3167 = vlaneseq
  %v3168 = vshrl.u32 %v3167, 7
  %v3169 = vsub.s32 0, %v3168
  %v3170 = vrot.slane %v3145, %v3169
  %v3172 = vadd.f32 %v3165, %v3170
  %v3173 = vpack.c.bf16 %v3172, %v3172
  %s3174 = scalar_lea.vmem %s12, 16
  %v3175 = vld [vmem:[%s3174] sm:$0xf]
  %v3176 = vld [vmem:[%s3174 + $0x4] sm:$0xf]
  %v3177 = vld [vmem:[%s3174 + $0x8] sm:$0xf]
  %v3178 = vld [vmem:[%s3174 + $0xc] sm:$0xf]
  %s3179 = scalar_lea.vmem %s13, 1
  %v3180 = vld [vmem:[%s3179] sm:$0x1]
  %v3182 = vlaneseq
  %v3183 = vshrl.u32 %v3182, 7
  %v3184 = vsub.s32 0, %v3183
  %v3185 = vrot.slane %v3180, %v3184
  %v3191 = vunpack.c.l.b16 %v3175
  %v3192 = vunpack.c.l.b16 %v3176
  %v3193 = vunpack.c.l.b16 %v3177
  %v3194 = vunpack.c.l.b16 %v3178
  %v3195 = vpack.c.b16 %v3192, %v3191
  %v3196 = vpack.c.b16 %v3194, %v3193
  %v3200 = vsel %vm1418, %v3173, 0
  %3202 = vmatprep.subr.bf16.mxu0 0
  %3203 = vmatpush1.bf16.msra.mxu0 %v3195
  %3204 = vmatprep.subr.bf16.mxu0 0
  %3205 = vmatpush1.bf16.msra.mxu0 %v3196
  %3206 = vmatprep.subr.bf16.mxu0 0
  %3207 = vmatpush1.bf16.msra.mxu0 0
  %3208 = vmatprep.subr.bf16.mxu0 0
  %3209 = vmatpush1.bf16.msra.mxu0 0
  %3210 = vmatprep.subr.bf16.mxu0 0
  %3211 = vmatpush1.bf16.msra.mxu0 0
  %3212 = vmatprep.subr.bf16.mxu0 0
  %3213 = vmatpush1.bf16.msra.mxu0 0
  %3214 = vmatprep.subr.bf16.mxu0 0
  %3215 = vmatpush1.bf16.msra.mxu0 0
  %3216 = vmatprep.subr.bf16.mxu0 0
  %3217 = vmatpush1.bf16.msra.mxu0 0
  %3218 = vmatprep.subr.bf16.mxu0 0
  %3219 = vmatpush1.bf16.msra.mxu0 0
  %3220 = vmatprep.subr.bf16.mxu0 0
  %3221 = vmatpush1.bf16.msra.mxu0 0
  %3222 = vmatprep.subr.bf16.mxu0 0
  %3223 = vmatpush1.bf16.msra.mxu0 0
  %3224 = vmatprep.subr.bf16.mxu0 0
  %3225 = vmatpush1.bf16.msra.mxu0 0
  %3226 = vmatprep.subr.bf16.mxu0 0
  %3227 = vmatpush1.bf16.msra.mxu0 0
  %3228 = vmatprep.subr.bf16.mxu0 0
  %3229 = vmatpush1.bf16.msra.mxu0 0
  %3230 = vmatprep.subr.bf16.mxu0 0
  %3231 = vmatpush1.bf16.msra.mxu0 0
  %3232 = vmatprep.subr.bf16.mxu0 0
  %3233 = vmatpush1.bf16.msra.mxu0 0
  %3234 = vmatprep.mubr.bf16.mxu0 0
  %3235 = vmatmul.mubr.bf16.gmra.mrb[0].mxu0 %v3200
  %v3236 = vpop.f32.mrb[0].mxu0
  %v3237 = vadd.f32 %v3185, %v3236
  %v3238 = vpop.f32.mrb[0].mxu0
  %v3239 = vpop.f32.mrb[0].mxu0
  %v3240 = vpop.f32.mrb[0].mxu0
  %3241 = vdwg.mxu0
  %v3242 = vmul.f32 %v3237, 0.5
  %v3243 = vmul.f32 %v3237, 0.70710677
  %v3244 = verf.f32.pop %v3243
  %v3245 = vadd.f32 %v3244, 1.0
  %v3246 = vmul.f32 %v3242, %v3245
  %v3247 = vpack.c.bf16 %v3246, %v3246
  %s3248 = scalar_lea.vmem %s14, 64
  %v3249 = vld [vmem:[%s3248] sm:$0xf]
  %v3250 = vld [vmem:[%s3248 + $0x4] sm:$0xf]
  %v3251 = vld [vmem:[%s3248 + $0x8] sm:$0xf]
  %v3252 = vld [vmem:[%s3248 + $0xc] sm:$0xf]
  %v3253 = vld [vmem:[%s3248 + $0x10] sm:$0xf]
  %v3254 = vld [vmem:[%s3248 + $0x14] sm:$0xf]
  %v3255 = vld [vmem:[%s3248 + $0x18] sm:$0xf]
  %v3256 = vld [vmem:[%s3248 + $0x1c] sm:$0xf]
  %v3257 = vld [vmem:[%s3248 + $0x20] sm:$0xf]
  %v3258 = vld [vmem:[%s3248 + $0x24] sm:$0xf]
  %v3259 = vld [vmem:[%s3248 + $0x28] sm:$0xf]
  %v3260 = vld [vmem:[%s3248 + $0x2c] sm:$0xf]
  %v3261 = vld [vmem:[%s3248 + $0x30] sm:$0xf]
  %v3262 = vld [vmem:[%s3248 + $0x34] sm:$0xf]
  %v3263 = vld [vmem:[%s3248 + $0x38] sm:$0xf]
  %v3264 = vld [vmem:[%s3248 + $0x3c] sm:$0xf]
  %s3265 = scalar_lea.vmem %s15, 1
  %v3266 = vld [vmem:[%s3265] sm:$0x1]
  %v3268 = vlaneseq
  %v3269 = vshrl.u32 %v3268, 7
  %v3270 = vsub.s32 0, %v3269
  %v3271 = vrot.slane %v3266, %v3270
  %v3289 = vunpack.c.l.b16 %v3249
  %v3290 = vunpack.c.l.b16 %v3250
  %v3291 = vunpack.c.l.b16 %v3251
  %v3292 = vunpack.c.l.b16 %v3252
  %v3293 = vunpack.c.l.b16 %v3253
  %v3294 = vunpack.c.l.b16 %v3254
  %v3295 = vunpack.c.l.b16 %v3255
  %v3296 = vunpack.c.l.b16 %v3256
  %v3297 = vunpack.c.l.b16 %v3257
  %v3298 = vunpack.c.l.b16 %v3258
  %v3299 = vunpack.c.l.b16 %v3259
  %v3300 = vunpack.c.l.b16 %v3260
  %v3301 = vunpack.c.l.b16 %v3261
  %v3302 = vunpack.c.l.b16 %v3262
  %v3303 = vunpack.c.l.b16 %v3263
  %v3304 = vunpack.c.l.b16 %v3264
  %v3305 = vpack.c.b16 %v3290, %v3289
  %v3306 = vpack.c.b16 %v3292, %v3291
  %v3307 = vpack.c.b16 %v3294, %v3293
  %v3308 = vpack.c.b16 %v3296, %v3295
  %v3309 = vpack.c.b16 %v3298, %v3297
  %v3310 = vpack.c.b16 %v3300, %v3299
  %v3311 = vpack.c.b16 %v3302, %v3301
  %v3312 = vpack.c.b16 %v3304, %v3303
  %3321 = vmatprep.subr.bf16.mxu0 0
  %3322 = vmatpush1.bf16.msra.mxu0 %v3305
  %3323 = vmatprep.subr.bf16.mxu0 0
  %3324 = vmatpush1.bf16.msra.mxu0 %v3306
  %3325 = vmatprep.subr.bf16.mxu0 0
  %3326 = vmatpush1.bf16.msra.mxu0 %v3307
  %3327 = vmatprep.subr.bf16.mxu0 0
  %3328 = vmatpush1.bf16.msra.mxu0 %v3308
  %3329 = vmatprep.subr.bf16.mxu0 0
  %3330 = vmatpush1.bf16.msra.mxu0 %v3309
  %3331 = vmatprep.subr.bf16.mxu0 0
  %3332 = vmatpush1.bf16.msra.mxu0 %v3310
  %3333 = vmatprep.subr.bf16.mxu0 0
  %3334 = vmatpush1.bf16.msra.mxu0 %v3311
  %3335 = vmatprep.subr.bf16.mxu0 0
  %3336 = vmatpush1.bf16.msra.mxu0 %v3312
  %3337 = vmatprep.subr.bf16.mxu0 0
  %3338 = vmatpush1.bf16.msra.mxu0 0
  %3339 = vmatprep.subr.bf16.mxu0 0
  %3340 = vmatpush1.bf16.msra.mxu0 0
  %3341 = vmatprep.subr.bf16.mxu0 0
  %3342 = vmatpush1.bf16.msra.mxu0 0
  %3343 = vmatprep.subr.bf16.mxu0 0
  %3344 = vmatpush1.bf16.msra.mxu0 0
  %3345 = vmatprep.subr.bf16.mxu0 0
  %3346 = vmatpush1.bf16.msra.mxu0 0
  %3347 = vmatprep.subr.bf16.mxu0 0
  %3348 = vmatpush1.bf16.msra.mxu0 0
  %3349 = vmatprep.subr.bf16.mxu0 0
  %3350 = vmatpush1.bf16.msra.mxu0 0
  %3351 = vmatprep.subr.bf16.mxu0 0
  %3352 = vmatpush1.bf16.msra.mxu0 0
  %3353 = vmatprep.mubr.bf16.mxu0 0
  %3354 = vmatmul.mubr.bf16.gmra.mrb[0].mxu0 %v3247
  %v3355 = vpop.f32.mrb[0].mxu0
  %v3356 = vadd.f32 %v3271, %v3355
  %v3357 = vpop.f32.mrb[0].mxu0
  %v3358 = vpop.f32.mrb[0].mxu0
  %v3359 = vpop.f32.mrb[0].mxu0
  %3360 = vdwg.mxu0
  %v3361 = vadd.f32 %v3141, %v3356
  %v3362 = vld [vmem:[%s16] sm:$0x1]
  %v3363 = vld [vmem:[%s17] sm:$0x1]
  %v3364 = vsel %vm1418, %v3361, 0.0
  %3365 = vadd.xlane.f32.xlu0 %v3364
  %v3366 = vpop.xlane.xlu0 %3365
  %v3367 = vmul.f32 %v3366, %v1422
  %v3368 = vsub.f32 %v3361, %v3367
  %v3369 = vmul.f32 %v3368, %v3368
  %v3370 = vsel %vm1418, %v3369, 0.0
  %3371 = vadd.xlane.f32.xlu0 %v3370
  %v3372 = vpop.xlane.xlu0 %3371
  %v3373 = vmul.f32 %v3372, %v1422
  %v3374 = vadd.f32 %v3373, 1e-12
  %v3375 = vrsqrt.pop %v3374
  %v3376 = vmul.f32 %v3368, %v3375
  %v3378 = vlaneseq
  %v3379 = vshrl.u32 %v3378, 7
  %v3380 = vsub.s32 0, %v3379
  %v3381 = vrot.slane %v3362, %v3380
  %v3383 = vmul.f32 %v3376, %v3381
  %v3385 = vlaneseq
  %v3386 = vshrl.u32 %v3385, 7
  %v3387 = vsub.s32 0, %v3386
  %v3388 = vrot.slane %v3363, %v3387
  %v3390 = vadd.f32 %v3383, %v3388
  %v3391 = vld [vmem:[%s19] sm:$0x1]
  %v3392 = vpack.c.bf16 %v3390, %v3390
  %v3393 = vld [vmem:[%s18] sm:$0xf]
  %v3394 = vld [vmem:[%s18 + $0x4] sm:$0xf]
  %v3395 = vld [vmem:[%s18 + $0x8] sm:$0xf]
  %v3396 = vld [vmem:[%s18 + $0xc] sm:$0xf]
  %v3401 = vunpack.c.l.b16 %v3393
  %v3402 = vunpack.c.l.b16 %v3394
  %v3403 = vunpack.c.l.b16 %v3395
  %v3404 = vunpack.c.l.b16 %v3396
  %v3405 = vpack.c.b16 %v3402, %v3401
  %v3406 = vpack.c.b16 %v3404, %v3403
  %v3410 = vsel %vm1418, %v3392, 0
  %3412 = vmatprep.subr.bf16.mxu0 0
  %3413 = vmatpush1.bf16.msra.mxu0 %v3405
  %3414 = vmatprep.subr.bf16.mxu0 0
  %3415 = vmatpush1.bf16.msra.mxu0 %v3406
  %3416 = vmatprep.subr.bf16.mxu0 0
  %3417 = vmatpush1.bf16.msra.mxu0 0
  %3418 = vmatprep.subr.bf16.mxu0 0
  %3419 = vmatpush1.bf16.msra.mxu0 0
  %3420 = vmatprep.subr.bf16.mxu0 0
  %3421 = vmatpush1.bf16.msra.mxu0 0
  %3422 = vmatprep.subr.bf16.mxu0 0
  %3423 = vmatpush1.bf16.msra.mxu0 0
  %3424 = vmatprep.subr.bf16.mxu0 0
  %3425 = vmatpush1.bf16.msra.mxu0 0
  %3426 = vmatprep.subr.bf16.mxu0 0
  %3427 = vmatpush1.bf16.msra.mxu0 0
  %3428 = vmatprep.subr.bf16.mxu0 0
  %3429 = vmatpush1.bf16.msra.mxu0 0
  %3430 = vmatprep.subr.bf16.mxu0 0
  %3431 = vmatpush1.bf16.msra.mxu0 0
  %3432 = vmatprep.subr.bf16.mxu0 0
  %3433 = vmatpush1.bf16.msra.mxu0 0
  %3434 = vmatprep.subr.bf16.mxu0 0
  %3435 = vmatpush1.bf16.msra.mxu0 0
  %3436 = vmatprep.subr.bf16.mxu0 0
  %3437 = vmatpush1.bf16.msra.mxu0 0
  %3438 = vmatprep.subr.bf16.mxu0 0
  %3439 = vmatpush1.bf16.msra.mxu0 0
  %3440 = vmatprep.subr.bf16.mxu0 0
  %3441 = vmatpush1.bf16.msra.mxu0 0
  %3442 = vmatprep.subr.bf16.mxu0 0
  %3443 = vmatpush1.bf16.msra.mxu0 0
  %3444 = vmatprep.mubr.bf16.mxu0 0
  %3445 = vmatmul.mubr.bf16.gmra.mrb[0].mxu0 %v3410
  %v3446 = vpop.f32.mrb[0].mxu0
  %v3447 = vadd.f32 0.0, %v3446
  %v3448 = vpop.f32.mrb[0].mxu0
  %v3449 = vpop.f32.mrb[0].mxu0
  %v3450 = vpop.f32.mrb[0].mxu0
  %3451 = vdwg.mxu0
  %v3452 = vadd.f32 %v3391, %v3447
  %s3453 = scalar_lea.vmem %s18, 16
  %v3454 = vld [vmem:[%s3453] sm:$0xf]
  %v3455 = vld [vmem:[%s3453 + $0x4] sm:$0xf]
  %v3456 = vld [vmem:[%s3453 + $0x8] sm:$0xf]
  %v3457 = vld [vmem:[%s3453 + $0xc] sm:$0xf]
  %v3458 = vshrl.u32 %v3392, 16
  %v3464 = vunpack.c.l.b16 %v3454
  %v3465 = vunpack.c.l.b16 %v3455
  %v3466 = vunpack.c.l.b16 %v3456
  %v3467 = vunpack.c.l.b16 %v3457
  %v3468 = vpack.c.b16 %v3465, %v3464
  %v3469 = vpack.c.b16 %v3467, %v3466
  %v3473 = vsel %vm1418, %v3458, 0
  %3475 = vmatprep.subr.bf16.mxu0 0
  %3476 = vmatpush1.bf16.msra.mxu0 %v3468
  %3477 = vmatprep.subr.bf16.mxu0 0
  %3478 = vmatpush1.bf16.msra.mxu0 %v3469
  %3479 = vmatprep.subr.bf16.mxu0 0
  %3480 = vmatpush1.bf16.msra.mxu0 0
  %3481 = vmatprep.subr.bf16.mxu0 0
  %3482 = vmatpush1.bf16.msra.mxu0 0
  %3483 = vmatprep.subr.bf16.mxu0 0
  %3484 = vmatpush1.bf16.msra.mxu0 0
  %3485 = vmatprep.subr.bf16.mxu0 0
  %3486 = vmatpush1.bf16.msra.mxu0 0
  %3487 = vmatprep.subr.bf16.mxu0 0
  %3488 = vmatpush1.bf16.msra.mxu0 0
  %3489 = vmatprep.subr.bf16.mxu0 0
  %3490 = vmatpush1.bf16.msra.mxu0 0
  %3491 = vmatprep.subr.bf16.mxu0 0
  %3492 = vmatpush1.bf16.msra.mxu0 0
  %3493 = vmatprep.subr.bf16.mxu0 0
  %3494 = vmatpush1.bf16.msra.mxu0 0
  %3495 = vmatprep.subr.bf16.mxu0 0
  %3496 = vmatpush1.bf16.msra.mxu0 0
  %3497 = vmatprep.subr.bf16.mxu0 0
  %3498 = vmatpush1.bf16.msra.mxu0 0
  %3499 = vmatprep.subr.bf16.mxu0 0
  %3500 = vmatpush1.bf16.msra.mxu0 0
  %3501 = vmatprep.subr.bf16.mxu0 0
  %3502 = vmatpush1.bf16.msra.mxu0 0
  %3503 = vmatprep.subr.bf16.mxu0 0
  %3504 = vmatpush1.bf16.msra.mxu0 0
  %3505 = vmatprep.subr.bf16.mxu0 0
  %3506 = vmatpush1.bf16.msra.mxu0 0
  %3507 = vmatprep.mubr.bf16.mxu0 0
  %3508 = vmatmul.mubr.bf16.gmra.mrb[0].mxu0 %v3473
  %v3509 = vpop.f32.mrb[0].mxu0
  %v3510 = vadd.f32 0.0, %v3509
  %v3511 = vpop.f32.mrb[0].mxu0
  %v3512 = vpop.f32.mrb[0].mxu0
  %v3513 = vpop.f32.mrb[0].mxu0
  %3514 = vdwg.mxu0
  %v3515 = vadd.f32 %v3452, %v3510
  %s3516 = scalar_lea.vmem %s18, 32
  %v3517 = vld [vmem:[%s3516] sm:$0xf]
  %v3518 = vld [vmem:[%s3516 + $0x4] sm:$0xf]
  %v3519 = vld [vmem:[%s3516 + $0x8] sm:$0xf]
  %v3520 = vld [vmem:[%s3516 + $0xc] sm:$0xf]
  %v3522 = vrot.slane %v3392, 1
  %v3527 = vunpack.c.l.b16 %v3517
  %v3528 = vunpack.c.l.b16 %v3518
  %v3529 = vunpack.c.l.b16 %v3519
  %v3530 = vunpack.c.l.b16 %v3520
  %v3531 = vpack.c.b16 %v3528, %v3527
  %v3532 = vpack.c.b16 %v3530, %v3529
  %v3536 = vsel %vm1418, %v3522, 0
  %3538 = vmatprep.subr.bf16.mxu0 0
  %3539 = vmatpush1.bf16.msra.mxu0 %v3531
  %3540 = vmatprep.subr.bf16.mxu0 0
  %3541 = vmatpush1.bf16.msra.mxu0 %v3532
  %3542 = vmatprep.subr.bf16.mxu0 0
  %3543 = vmatpush1.bf16.msra.mxu0 0
  %3544 = vmatprep.subr.bf16.mxu0 0
  %3545 = vmatpush1.bf16.msra.mxu0 0
  %3546 = vmatprep.subr.bf16.mxu0 0
  %3547 = vmatpush1.bf16.msra.mxu0 0
  %3548 = vmatprep.subr.bf16.mxu0 0
  %3549 = vmatpush1.bf16.msra.mxu0 0
  %3550 = vmatprep.subr.bf16.mxu0 0
  %3551 = vmatpush1.bf16.msra.mxu0 0
  %3552 = vmatprep.subr.bf16.mxu0 0
  %3553 = vmatpush1.bf16.msra.mxu0 0
  %3554 = vmatprep.subr.bf16.mxu0 0
  %3555 = vmatpush1.bf16.msra.mxu0 0
  %3556 = vmatprep.subr.bf16.mxu0 0
  %3557 = vmatpush1.bf16.msra.mxu0 0
  %3558 = vmatprep.subr.bf16.mxu0 0
  %3559 = vmatpush1.bf16.msra.mxu0 0
  %3560 = vmatprep.subr.bf16.mxu0 0
  %3561 = vmatpush1.bf16.msra.mxu0 0
  %3562 = vmatprep.subr.bf16.mxu0 0
  %3563 = vmatpush1.bf16.msra.mxu0 0
  %3564 = vmatprep.subr.bf16.mxu0 0
  %3565 = vmatpush1.bf16.msra.mxu0 0
  %3566 = vmatprep.subr.bf16.mxu0 0
  %3567 = vmatpush1.bf16.msra.mxu0 0
  %3568 = vmatprep.subr.bf16.mxu0 0
  %3569 = vmatpush1.bf16.msra.mxu0 0
  %3570 = vmatprep.mubr.bf16.mxu0 0
  %3571 = vmatmul.mubr.bf16.gmra.mrb[0].mxu0 %v3536
  %v3572 = vpop.f32.mrb[0].mxu0
  %v3573 = vadd.f32 0.0, %v3572
  %v3574 = vpop.f32.mrb[0].mxu0
  %v3575 = vpop.f32.mrb[0].mxu0
  %v3576 = vpop.f32.mrb[0].mxu0
  %3577 = vdwg.mxu0
  %v3578 = vadd.f32 %v3515, %v3573
  %s3579 = scalar_lea.vmem %s18, 48
  %v3580 = vld [vmem:[%s3579] sm:$0xf]
  %v3581 = vld [vmem:[%s3579 + $0x4] sm:$0xf]
  %v3582 = vld [vmem:[%s3579 + $0x8] sm:$0xf]
  %v3583 = vld [vmem:[%s3579 + $0xc] sm:$0xf]
  %v3584 = vrot.slane %v3458, 1
  %v3589 = vunpack.c.l.b16 %v3580
  %v3590 = vunpack.c.l.b16 %v3581
  %v3591 = vunpack.c.l.b16 %v3582
  %v3592 = vunpack.c.l.b16 %v3583
  %v3593 = vpack.c.b16 %v3590, %v3589
  %v3594 = vpack.c.b16 %v3592, %v3591
  %v3598 = vsel %vm1418, %v3584, 0
  %3600 = vmatprep.subr.bf16.mxu0 0
  %3601 = vmatpush1.bf16.msra.mxu0 %v3593
  %3602 = vmatprep.subr.bf16.mxu0 0
  %3603 = vmatpush1.bf16.msra.mxu0 %v3594
  %3604 = vmatprep.subr.bf16.mxu0 0
  %3605 = vmatpush1.bf16.msra.mxu0 0
  %3606 = vmatprep.subr.bf16.mxu0 0
  %3607 = vmatpush1.bf16.msra.mxu0 0
  %3608 = vmatprep.subr.bf16.mxu0 0
  %3609 = vmatpush1.bf16.msra.mxu0 0
  %3610 = vmatprep.subr.bf16.mxu0 0
  %3611 = vmatpush1.bf16.msra.mxu0 0
  %3612 = vmatprep.subr.bf16.mxu0 0
  %3613 = vmatpush1.bf16.msra.mxu0 0
  %3614 = vmatprep.subr.bf16.mxu0 0
  %3615 = vmatpush1.bf16.msra.mxu0 0
  %3616 = vmatprep.subr.bf16.mxu0 0
  %3617 = vmatpush1.bf16.msra.mxu0 0
  %3618 = vmatprep.subr.bf16.mxu0 0
  %3619 = vmatpush1.bf16.msra.mxu0 0
  %3620 = vmatprep.subr.bf16.mxu0 0
  %3621 = vmatpush1.bf16.msra.mxu0 0
  %3622 = vmatprep.subr.bf16.mxu0 0
  %3623 = vmatpush1.bf16.msra.mxu0 0
  %3624 = vmatprep.subr.bf16.mxu0 0
  %3625 = vmatpush1.bf16.msra.mxu0 0
  %3626 = vmatprep.subr.bf16.mxu0 0
  %3627 = vmatpush1.bf16.msra.mxu0 0
  %3628 = vmatprep.subr.bf16.mxu0 0
  %3629 = vmatpush1.bf16.msra.mxu0 0
  %3630 = vmatprep.subr.bf16.mxu0 0
  %3631 = vmatpush1.bf16.msra.mxu0 0
  %3632 = vmatprep.mubr.bf16.mxu0 0
  %3633 = vmatmul.mubr.bf16.gmra.mrb[0].mxu0 %v3598
  %v3634 = vpop.f32.mrb[0].mxu0
  %v3635 = vadd.f32 0.0, %v3634
  %v3636 = vpop.f32.mrb[0].mxu0
  %v3637 = vpop.f32.mrb[0].mxu0
  %v3638 = vpop.f32.mrb[0].mxu0
  %3639 = vdwg.mxu0
  %v3640 = vadd.f32 %v3578, %v3635
  %s3641 = scalar_lea.vmem %s18, 64
  %v3642 = vld [vmem:[%s3641] sm:$0xf]
  %v3643 = vld [vmem:[%s3641 + $0x4] sm:$0xf]
  %v3644 = vld [vmem:[%s3641 + $0x8] sm:$0xf]
  %v3645 = vld [vmem:[%s3641 + $0xc] sm:$0xf]
  %v3646 = vrot.slane %v3392, 2
  %v3651 = vunpack.c.l.b16 %v3642
  %v3652 = vunpack.c.l.b16 %v3643
  %v3653 = vunpack.c.l.b16 %v3644
  %v3654 = vunpack.c.l.b16 %v3645
  %v3655 = vpack.c.b16 %v3652, %v3651
  %v3656 = vpack.c.b16 %v3654, %v3653
  %v3660 = vsel %vm1418, %v3646, 0
  %3662 = vmatprep.subr.bf16.mxu0 0
  %3663 = vmatpush1.bf16.msra.mxu0 %v3655
  %3664 = vmatprep.subr.bf16.mxu0 0
  %3665 = vmatpush1.bf16.msra.mxu0 %v3656
  %3666 = vmatprep.subr.bf16.mxu0 0
  %3667 = vmatpush1.bf16.msra.mxu0 0
  %3668 = vmatprep.subr.bf16.mxu0 0
  %3669 = vmatpush1.bf16.msra.mxu0 0
  %3670 = vmatprep.subr.bf16.mxu0 0
  %3671 = vmatpush1.bf16.msra.mxu0 0
  %3672 = vmatprep.subr.bf16.mxu0 0
  %3673 = vmatpush1.bf16.msra.mxu0 0
  %3674 = vmatprep.subr.bf16.mxu0 0
  %3675 = vmatpush1.bf16.msra.mxu0 0
  %3676 = vmatprep.subr.bf16.mxu0 0
  %3677 = vmatpush1.bf16.msra.mxu0 0
  %3678 = vmatprep.subr.bf16.mxu0 0
  %3679 = vmatpush1.bf16.msra.mxu0 0
  %3680 = vmatprep.subr.bf16.mxu0 0
  %3681 = vmatpush1.bf16.msra.mxu0 0
  %3682 = vmatprep.subr.bf16.mxu0 0
  %3683 = vmatpush1.bf16.msra.mxu0 0
  %3684 = vmatprep.subr.bf16.mxu0 0
  %3685 = vmatpush1.bf16.msra.mxu0 0
  %3686 = vmatprep.subr.bf16.mxu0 0
  %3687 = vmatpush1.bf16.msra.mxu0 0
  %3688 = vmatprep.subr.bf16.mxu0 0
  %3689 = vmatpush1.bf16.msra.mxu0 0
  %3690 = vmatprep.subr.bf16.mxu0 0
  %3691 = vmatpush1.bf16.msra.mxu0 0
  %3692 = vmatprep.subr.bf16.mxu0 0
  %3693 = vmatpush1.bf16.msra.mxu0 0
  %3694 = vmatprep.mubr.bf16.mxu0 0
  %3695 = vmatmul.mubr.bf16.gmra.mrb[0].mxu0 %v3660
  %v3696 = vpop.f32.mrb[0].mxu0
  %v3697 = vadd.f32 0.0, %v3696
  %v3698 = vpop.f32.mrb[0].mxu0
  %v3699 = vpop.f32.mrb[0].mxu0
  %v3700 = vpop.f32.mrb[0].mxu0
  %3701 = vdwg.mxu0
  %v3702 = vadd.f32 %v3640, %v3697
  %v3703 = vmax.f32 %v3702, 0.0
  %s3704 = smul.u32 4, 16
  %s3705 = smul.u32 %s3704, 12
  %s3706 = sshll.u32 %s3705, 4
  %3707 = dma.done [#allocation3], %s3706
  %v3708 = vpack.c.bf16 %v3703, %v3703
  %v3709 = vld [vmem:[#allocation2] sm:$0xff]
  %v3710 = vld [vmem:[#allocation2 + $0x8] sm:$0xff]
  %v3711 = vld [vmem:[#allocation2 + $0x10] sm:$0xff]
  %v3712 = vld [vmem:[#allocation2 + $0x18] sm:$0xff]
  %v3713 = vld [vmem:[#allocation2 + $0x20] sm:$0xff]
  %v3714 = vld [vmem:[#allocation2 + $0x28] sm:$0xff]
  %v3715 = vld [vmem:[#allocation2 + $0x30] sm:$0xff]
  %v3716 = vld [vmem:[#allocation2 + $0x38] sm:$0xff]
  %v3717 = vld [vmem:[#allocation2 + $0x40] sm:$0xff]
  %v3718 = vld [vmem:[#allocation2 + $0x48] sm:$0xff]
  %v3719 = vld [vmem:[#allocation2 + $0x50] sm:$0xff]
  %v3720 = vld [vmem:[#allocation2 + $0x58] sm:$0xff]
  %v3721 = vld [vmem:[#allocation2 + $0x60] sm:$0xff]
  %v3722 = vld [vmem:[#allocation2 + $0x68] sm:$0xff]
  %v3723 = vld [vmem:[#allocation2 + $0x70] sm:$0xff]
  %v3724 = vld [vmem:[#allocation2 + $0x78] sm:$0xff]
  %v3725 = vld [vmem:[#allocation2 + $0x80] sm:$0xff]
  %v3726 = vld [vmem:[#allocation2 + $0x88] sm:$0xff]
  %v3727 = vld [vmem:[#allocation2 + $0x90] sm:$0xff]
  %v3728 = vld [vmem:[#allocation2 + $0x98] sm:$0xff]
  %v3729 = vld [vmem:[#allocation2 + $0xa0] sm:$0xff]
  %v3730 = vld [vmem:[#allocation2 + $0xa8] sm:$0xff]
  %v3731 = vld [vmem:[#allocation2 + $0xb0] sm:$0xff]
  %v3732 = vld [vmem:[#allocation2 + $0xb8] sm:$0xff]
  %v3733 = vld [vmem:[#allocation2 + $0xc0] sm:$0xff]
  %v3734 = vld [vmem:[#allocation2 + $0xc8] sm:$0xff]
  %v3735 = vld [vmem:[#allocation2 + $0xd0] sm:$0xff]
  %v3736 = vld [vmem:[#allocation2 + $0xd8] sm:$0xff]
  %v3737 = vld [vmem:[#allocation2 + $0xe0] sm:$0xff]
  %v3738 = vld [vmem:[#allocation2 + $0xe8] sm:$0xff]
  %v3739 = vld [vmem:[#allocation2 + $0xf0] sm:$0xff]
  %v3740 = vld [vmem:[#allocation2 + $0xf8] sm:$0xff]
  %v3741 = vld [vmem:[#allocation2 + $0x100] sm:$0xff]
  %v3742 = vld [vmem:[#allocation2 + $0x108] sm:$0xff]
  %v3743 = vld [vmem:[#allocation2 + $0x110] sm:$0xff]
  %v3744 = vld [vmem:[#allocation2 + $0x118] sm:$0xff]
  %v3745 = vld [vmem:[#allocation2 + $0x120] sm:$0xff]
  %v3746 = vld [vmem:[#allocation2 + $0x128] sm:$0xff]
  %v3747 = vld [vmem:[#allocation2 + $0x130] sm:$0xff]
  %v3748 = vld [vmem:[#allocation2 + $0x138] sm:$0xff]
  %v3749 = vld [vmem:[#allocation2 + $0x140] sm:$0xff]
  %v3750 = vld [vmem:[#allocation2 + $0x148] sm:$0xff]
  %v3751 = vld [vmem:[#allocation2 + $0x150] sm:$0xff]
  %v3752 = vld [vmem:[#allocation2 + $0x158] sm:$0xff]
  %v3753 = vld [vmem:[#allocation2 + $0x160] sm:$0xff]
  %v3754 = vld [vmem:[#allocation2 + $0x168] sm:$0xff]
  %v3755 = vld [vmem:[#allocation2 + $0x170] sm:$0xff]
  %v3756 = vld [vmem:[#allocation2 + $0x178] sm:$0xff]
  %v3757 = vld [vmem:[#allocation2 + $0x180] sm:$0xff]
  %v3758 = vld [vmem:[#allocation2 + $0x188] sm:$0xff]
  %v3759 = vld [vmem:[#allocation2 + $0x190] sm:$0xff]
  %v3760 = vld [vmem:[#allocation2 + $0x198] sm:$0xff]
  %v3761 = vld [vmem:[#allocation2 + $0x1a0] sm:$0xff]
  %v3762 = vld [vmem:[#allocation2 + $0x1a8] sm:$0xff]
  %v3763 = vld [vmem:[#allocation2 + $0x1b0] sm:$0xff]
  %v3764 = vld [vmem:[#allocation2 + $0x1b8] sm:$0xff]
  %v3765 = vld [vmem:[#allocation2 + $0x1c0] sm:$0xff]
  %v3766 = vld [vmem:[#allocation2 + $0x1c8] sm:$0xff]
  %v3767 = vld [vmem:[#allocation2 + $0x1d0] sm:$0xff]
  %v3768 = vld [vmem:[#allocation2 + $0x1d8] sm:$0xff]
  %v3769 = vld [vmem:[#allocation2 + $0x1e0] sm:$0xff]
  %v3770 = vld [vmem:[#allocation2 + $0x1e8] sm:$0xff]
  %v3771 = vld [vmem:[#allocation2 + $0x1f0] sm:$0xff]
  %v3772 = vld [vmem:[#allocation2 + $0x1f8] sm:$0xff]
  %v3773 = vld [vmem:[#allocation2 + $0x200] sm:$0xff]
  %v3774 = vld [vmem:[#allocation2 + $0x208] sm:$0xff]
  %v3775 = vld [vmem:[#allocation2 + $0x210] sm:$0xff]
  %v3776 = vld [vmem:[#allocation2 + $0x218] sm:$0xff]
  %v3777 = vld [vmem:[#allocation2 + $0x220] sm:$0xff]
  %v3778 = vld [vmem:[#allocation2 + $0x228] sm:$0xff]
  %v3779 = vld [vmem:[#allocation2 + $0x230] sm:$0xff]
  %v3780 = vld [vmem:[#allocation2 + $0x238] sm:$0xff]
  %v3781 = vld [vmem:[#allocation2 + $0x240] sm:$0xff]
  %v3782 = vld [vmem:[#allocation2 + $0x248] sm:$0xff]
  %v3783 = vld [vmem:[#allocation2 + $0x250] sm:$0xff]
  %v3784 = vld [vmem:[#allocation2 + $0x258] sm:$0xff]
  %v3785 = vld [vmem:[#allocation2 + $0x260] sm:$0xff]
  %v3786 = vld [vmem:[#allocation2 + $0x268] sm:$0xff]
  %v3787 = vld [vmem:[#allocation2 + $0x270] sm:$0xff]
  %v3788 = vld [vmem:[#allocation2 + $0x278] sm:$0xff]
  %v3789 = vld [vmem:[#allocation2 + $0x280] sm:$0xff]
  %v3790 = vld [vmem:[#allocation2 + $0x288] sm:$0xff]
  %v3791 = vld [vmem:[#allocation2 + $0x290] sm:$0xff]
  %v3792 = vld [vmem:[#allocation2 + $0x298] sm:$0xff]
  %v3793 = vld [vmem:[#allocation2 + $0x2a0] sm:$0xff]
  %v3794 = vld [vmem:[#allocation2 + $0x2a8] sm:$0xff]
  %v3795 = vld [vmem:[#allocation2 + $0x2b0] sm:$0xff]
  %v3796 = vld [vmem:[#allocation2 + $0x2b8] sm:$0xff]
  %v3797 = vld [vmem:[#allocation2 + $0x2c0] sm:$0xff]
  %v3798 = vld [vmem:[#allocation2 + $0x2c8] sm:$0xff]
  %v3799 = vld [vmem:[#allocation2 + $0x2d0] sm:$0xff]
  %v3800 = vld [vmem:[#allocation2 + $0x2d8] sm:$0xff]
  %v3801 = vld [vmem:[#allocation2 + $0x2e0] sm:$0xff]
  %v3802 = vld [vmem:[#allocation2 + $0x2e8] sm:$0xff]
  %v3803 = vld [vmem:[#allocation2 + $0x2f0] sm:$0xff]
  %v3804 = vld [vmem:[#allocation2 + $0x2f8] sm:$0xff]
  %v3805 = vld [vmem:[%s20] sm:$0xff]
  %v3806 = vld [vmem:[%s20 + $0x8] sm:$0xf]
  %v3809 = vlaneseq
  %v3810 = vshrl.u32 %v3809, 7
  %v3811 = vsub.s32 0, %v3810
  %v3812 = vrot.slane %v3805, %v3811
  %v3813 = vlaneseq
  %v3814 = vshrl.u32 %v3813, 7
  %v3815 = vsub.s32 1, %v3814
  %v3816 = vrot.slane %v3805, %v3815
  %v3817 = vlaneseq
  %v3818 = vshrl.u32 %v3817, 7
  %v3819 = vsub.s32 2, %v3818
  %v3820 = vrot.slane %v3805, %v3819
  %v3821 = vlaneseq
  %v3822 = vshrl.u32 %v3821, 7
  %v3823 = vsub.s32 3, %v3822
  %v3824 = vrot.slane %v3805, %v3823
  %v3825 = vlaneseq
  %v3826 = vshrl.u32 %v3825, 7
  %v3827 = vsub.s32 4, %v3826
  %v3828 = vrot.slane %v3805, %v3827
  %v3829 = vlaneseq
  %v3830 = vshrl.u32 %v3829, 7
  %v3831 = vsub.s32 5, %v3830
  %v3832 = vrot.slane %v3805, %v3831
  %v3833 = vlaneseq
  %v3834 = vshrl.u32 %v3833, 7
  %v3835 = vsub.s32 6, %v3834
  %v3836 = vrot.slane %v3805, %v3835
  %v3837 = vlaneseq
  %v3838 = vshrl.u32 %v3837, 7
  %v3839 = vsub.s32 7, %v3838
  %v3840 = vrot.slane %v3805, %v3839
  %v3841 = vlaneseq
  %v3842 = vshrl.u32 %v3841, 7
  %v3843 = vsub.s32 0, %v3842
  %v3844 = vrot.slane %v3806, %v3843
  %v3845 = vlaneseq
  %v3846 = vshrl.u32 %v3845, 7
  %v3847 = vsub.s32 1, %v3846
  %v3848 = vrot.slane %v3806, %v3847
  %v3849 = vlaneseq
  %v3850 = vshrl.u32 %v3849, 7
  %v3851 = vsub.s32 2, %v3850
  %v3852 = vrot.slane %v3806, %v3851
  %v3853 = vlaneseq
  %v3854 = vshrl.u32 %v3853, 7
  %v3855 = vsub.s32 3, %v3854
  %v3856 = vrot.slane %v3806, %v3855
  %3869 = vmatprep.subr.bf16.mxu0 %v3710
  %3870 = vmatpush1.bf16.msra.mxu0 %v3709
  %3871 = vmatprep.subr.bf16.mxu0 %v3722
  %3872 = vmatpush1.bf16.msra.mxu0 %v3721
  %3873 = vmatprep.subr.bf16.mxu0 %v3734
  %3874 = vmatpush1.bf16.msra.mxu0 %v3733
  %3875 = vmatprep.subr.bf16.mxu0 %v3746
  %3876 = vmatpush1.bf16.msra.mxu0 %v3745
  %3877 = vmatprep.subr.bf16.mxu0 %v3758
  %3878 = vmatpush1.bf16.msra.mxu0 %v3757
  %3879 = vmatprep.subr.bf16.mxu0 %v3770
  %3880 = vmatpush1.bf16.msra.mxu0 %v3769
  %3881 = vmatprep.subr.bf16.mxu0 %v3782
  %3882 = vmatpush1.bf16.msra.mxu0 %v3781
  %3883 = vmatprep.subr.bf16.mxu0 %v3794
  %3884 = vmatpush1.bf16.msra.mxu0 %v3793
  %3885 = vmatprep.subr.bf16.mxu0 0
  %3886 = vmatpush1.bf16.msra.mxu0 0
  %3887 = vmatprep.subr.bf16.mxu0 0
  %3888 = vmatpush1.bf16.msra.mxu0 0
  %3889 = vmatprep.subr.bf16.mxu0 0
  %3890 = vmatpush1.bf16.msra.mxu0 0
  %3891 = vmatprep.subr.bf16.mxu0 0
  %3892 = vmatpush1.bf16.msra.mxu0 0
  %3893 = vmatprep.subr.bf16.mxu0 0
  %3894 = vmatpush1.bf16.msra.mxu0 0
  %3895 = vmatprep.subr.bf16.mxu0 0
  %3896 = vmatpush1.bf16.msra.mxu0 0
  %3897 = vmatprep.subr.bf16.mxu0 0
  %3898 = vmatpush1.bf16.msra.mxu0 0
  %3899 = vmatprep.subr.bf16.mxu0 0
  %3900 = vmatpush1.bf16.msra.mxu0 0
  %3901 = vmatprep.mubr.bf16.mxu0 0
  %3902 = vmatmul.mubr.bf16.gmra.mrb[0].mxu0 %v3708
  %v3903 = vpop.f32.mrb[0].mxu0
  %v3904 = vadd.f32 %v3812, %v3903
  %v3905 = vpop.f32.mrb[0].mxu0
  %v3906 = vadd.f32 %v3816, %v3905
  %v3907 = vpop.f32.mrb[0].mxu0
  %v3908 = vpop.f32.mrb[0].mxu0
  %3909 = vdwg.mxu0
  %3910 = vmatprep.subr.bf16.mxu0 %v3712
  %3911 = vmatpush1.bf16.msra.mxu0 %v3711
  %3912 = vmatprep.subr.bf16.mxu0 %v3724
  %3913 = vmatpush1.bf16.msra.mxu0 %v3723
  %3914 = vmatprep.subr.bf16.mxu0 %v3736
  %3915 = vmatpush1.bf16.msra.mxu0 %v3735
  %3916 = vmatprep.subr.bf16.mxu0 %v3748
  %3917 = vmatpush1.bf16.msra.mxu0 %v3747
  %3918 = vmatprep.subr.bf16.mxu0 %v3760
  %3919 = vmatpush1.bf16.msra.mxu0 %v3759
  %3920 = vmatprep.subr.bf16.mxu0 %v3772
  %3921 = vmatpush1.bf16.msra.mxu0 %v3771
  %3922 = vmatprep.subr.bf16.mxu0 %v3784
  %3923 = vmatpush1.bf16.msra.mxu0 %v3783
  %3924 = vmatprep.subr.bf16.mxu0 %v3796
  %3925 = vmatpush1.bf16.msra.mxu0 %v3795
  %3926 = vmatprep.subr.bf16.mxu0 0
  %3927 = vmatpush1.bf16.msra.mxu0 0
  %3928 = vmatprep.subr.bf16.mxu0 0
  %3929 = vmatpush1.bf16.msra.mxu0 0
  %3930 = vmatprep.subr.bf16.mxu0 0
  %3931 = vmatpush1.bf16.msra.mxu0 0
  %3932 = vmatprep.subr.bf16.mxu0 0
  %3933 = vmatpush1.bf16.msra.mxu0 0
  %3934 = vmatprep.subr.bf16.mxu0 0
  %3935 = vmatpush1.bf16.msra.mxu0 0
  %3936 = vmatprep.subr.bf16.mxu0 0
  %3937 = vmatpush1.bf16.msra.mxu0 0
  %3938 = vmatprep.subr.bf16.mxu0 0
  %3939 = vmatpush1.bf16.msra.mxu0 0
  %3940 = vmatprep.subr.bf16.mxu0 0
  %3941 = vmatpush1.bf16.msra.mxu0 0
  %3942 = vmatprep.mubr.bf16.mxu0 0
  %3943 = vmatmul.mubr.bf16.gmra.mrb[0].mxu0 %v3708
  %v3944 = vpop.f32.mrb[0].mxu0
  %v3945 = vadd.f32 %v3820, %v3944
  %v3946 = vpop.f32.mrb[0].mxu0
  %v3947 = vadd.f32 %v3824, %v3946
  %v3948 = vpop.f32.mrb[0].mxu0
  %v3949 = vpop.f32.mrb[0].mxu0
  %3950 = vdwg.mxu0
  %3951 = vmatprep.subr.bf16.mxu0 %v3714
  %3952 = vmatpush1.bf16.msra.mxu0 %v3713
  %3953 = vmatprep.subr.bf16.mxu0 %v3726
  %3954 = vmatpush1.bf16.msra.mxu0 %v3725
  %3955 = vmatprep.subr.bf16.mxu0 %v3738
  %3956 = vmatpush1.bf16.msra.mxu0 %v3737
  %3957 = vmatprep.subr.bf16.mxu0 %v3750
  %3958 = vmatpush1.bf16.msra.mxu0 %v3749
  %3959 = vmatprep.subr.bf16.mxu0 %v3762
  %3960 = vmatpush1.bf16.msra.mxu0 %v3761
  %3961 = vmatprep.subr.bf16.mxu0 %v3774
  %3962 = vmatpush1.bf16.msra.mxu0 %v3773
  %3963 = vmatprep.subr.bf16.mxu0 %v3786
  %3964 = vmatpush1.bf16.msra.mxu0 %v3785
  %3965 = vmatprep.subr.bf16.mxu0 %v3798
  %3966 = vmatpush1.bf16.msra.mxu0 %v3797
  %3967 = vmatprep.subr.bf16.mxu0 0
  %3968 = vmatpush1.bf16.msra.mxu0 0
  %3969 = vmatprep.subr.bf16.mxu0 0
  %3970 = vmatpush1.bf16.msra.mxu0 0
  %3971 = vmatprep.subr.bf16.mxu0 0
  %3972 = vmatpush1.bf16.msra.mxu0 0
  %3973 = vmatprep.subr.bf16.mxu0 0
  %3974 = vmatpush1.bf16.msra.mxu0 0
  %3975 = vmatprep.subr.bf16.mxu0 0
  %3976 = vmatpush1.bf16.msra.mxu0 0
  %3977 = vmatprep.subr.bf16.mxu0 0
  %3978 = vmatpush1.bf16.msra.mxu0 0
  %3979 = vmatprep.subr.bf16.mxu0 0
  %3980 = vmatpush1.bf16.msra.mxu0 0
  %3981 = vmatprep.subr.bf16.mxu0 0
  %3982 = vmatpush1.bf16.msra.mxu0 0
  %3983 = vmatprep.mubr.bf16.mxu0 0
  %3984 = vmatmul.mubr.bf16.gmra.mrb[0].mxu0 %v3708
  %v3985 = vpop.f32.mrb[0].mxu0
  %v3986 = vadd.f32 %v3828, %v3985
  %v3987 = vpop.f32.mrb[0].mxu0
  %v3988 = vadd.f32 %v3832, %v3987
  %v3989 = vpop.f32.mrb[0].mxu0
  %v3990 = vpop.f32.mrb[0].mxu0
  %3991 = vdwg.mxu0
  %3992 = vmatprep.subr.bf16.mxu0 %v3716
  %3993 = vmatpush1.bf16.msra.mxu0 %v3715
  %3994 = vmatprep.subr.bf16.mxu0 %v3728
  %3995 = vmatpush1.bf16.msra.mxu0 %v3727
  %3996 = vmatprep.subr.bf16.mxu0 %v3740
  %3997 = vmatpush1.bf16.msra.mxu0 %v3739
  %3998 = vmatprep.subr.bf16.mxu0 %v3752
  %3999 = vmatpush1.bf16.msra.mxu0 %v3751
  %4000 = vmatprep.subr.bf16.mxu0 %v3764
  %4001 = vmatpush1.bf16.msra.mxu0 %v3763
  %4002 = vmatprep.subr.bf16.mxu0 %v3776
  %4003 = vmatpush1.bf16.msra.mxu0 %v3775
  %4004 = vmatprep.subr.bf16.mxu0 %v3788
  %4005 = vmatpush1.bf16.msra.mxu0 %v3787
  %4006 = vmatprep.subr.bf16.mxu0 %v3800
  %4007 = vmatpush1.bf16.msra.mxu0 %v3799
  %4008 = vmatprep.subr.bf16.mxu0 0
  %4009 = vmatpush1.bf16.msra.mxu0 0
  %4010 = vmatprep.subr.bf16.mxu0 0
  %4011 = vmatpush1.bf16.msra.mxu0 0
  %4012 = vmatprep.subr.bf16.mxu0 0
  %4013 = vmatpush1.bf16.msra.mxu0 0
  %4014 = vmatprep.subr.bf16.mxu0 0
  %4015 = vmatpush1.bf16.msra.mxu0 0
  %4016 = vmatprep.subr.bf16.mxu0 0
  %4017 = vmatpush1.bf16.msra.mxu0 0
  %4018 = vmatprep.subr.bf16.mxu0 0
  %4019 = vmatpush1.bf16.msra.mxu0 0
  %4020 = vmatprep.subr.bf16.mxu0 0
  %4021 = vmatpush1.bf16.msra.mxu0 0
  %4022 = vmatprep.subr.bf16.mxu0 0
  %4023 = vmatpush1.bf16.msra.mxu0 0
  %4024 = vmatprep.mubr.bf16.mxu0 0
  %4025 = vmatmul.mubr.bf16.gmra.mrb[0].mxu0 %v3708
  %v4026 = vpop.f32.mrb[0].mxu0
  %v4027 = vadd.f32 %v3836, %v4026
  %v4028 = vpop.f32.mrb[0].mxu0
  %v4029 = vadd.f32 %v3840, %v4028
  %v4030 = vpop.f32.mrb[0].mxu0
  %v4031 = vpop.f32.mrb[0].mxu0
  %4032 = vdwg.mxu0
  %4033 = vmatprep.subr.bf16.mxu0 %v3718
  %4034 = vmatpush1.bf16.msra.mxu0 %v3717
  %4035 = vmatprep.subr.bf16.mxu0 %v3730
  %4036 = vmatpush1.bf16.msra.mxu0 %v3729
  %4037 = vmatprep.subr.bf16.mxu0 %v3742
  %4038 = vmatpush1.bf16.msra.mxu0 %v3741
  %4039 = vmatprep.subr.bf16.mxu0 %v3754
  %4040 = vmatpush1.bf16.msra.mxu0 %v3753
  %4041 = vmatprep.subr.bf16.mxu0 %v3766
  %4042 = vmatpush1.bf16.msra.mxu0 %v3765
  %4043 = vmatprep.subr.bf16.mxu0 %v3778
  %4044 = vmatpush1.bf16.msra.mxu0 %v3777
  %4045 = vmatprep.subr.bf16.mxu0 %v3790
  %4046 = vmatpush1.bf16.msra.mxu0 %v3789
  %4047 = vmatprep.subr.bf16.mxu0 %v3802
  %4048 = vmatpush1.bf16.msra.mxu0 %v3801
  %4049 = vmatprep.subr.bf16.mxu0 0
  %4050 = vmatpush1.bf16.msra.mxu0 0
  %4051 = vmatprep.subr.bf16.mxu0 0
  %4052 = vmatpush1.bf16.msra.mxu0 0
  %4053 = vmatprep.subr.bf16.mxu0 0
  %4054 = vmatpush1.bf16.msra.mxu0 0
  %4055 = vmatprep.subr.bf16.mxu0 0
  %4056 = vmatpush1.bf16.msra.mxu0 0
  %4057 = vmatprep.subr.bf16.mxu0 0
  %4058 = vmatpush1.bf16.msra.mxu0 0
  %4059 = vmatprep.subr.bf16.mxu0 0
  %4060 = vmatpush1.bf16.msra.mxu0 0
  %4061 = vmatprep.subr.bf16.mxu0 0
  %4062 = vmatpush1.bf16.msra.mxu0 0
  %4063 = vmatprep.subr.bf16.mxu0 0
  %4064 = vmatpush1.bf16.msra.mxu0 0
  %4065 = vmatprep.mubr.bf16.mxu0 0
  %4066 = vmatmul.mubr.bf16.gmra.mrb[0].mxu0 %v3708
  %v4067 = vpop.f32.mrb[0].mxu0
  %v4068 = vadd.f32 %v3844, %v4067
  %v4069 = vpop.f32.mrb[0].mxu0
  %v4070 = vadd.f32 %v3848, %v4069
  %v4071 = vpop.f32.mrb[0].mxu0
  %v4072 = vpop.f32.mrb[0].mxu0
  %4073 = vdwg.mxu0
  %4074 = vmatprep.subr.bf16.mxu0 %v3720
  %4075 = vmatpush1.bf16.msra.mxu0 %v3719
  %4076 = vmatprep.subr.bf16.mxu0 %v3732
  %4077 = vmatpush1.bf16.msra.mxu0 %v3731
  %4078 = vmatprep.subr.bf16.mxu0 %v3744
  %4079 = vmatpush1.bf16.msra.mxu0 %v3743
  %4080 = vmatprep.subr.bf16.mxu0 %v3756
  %4081 = vmatpush1.bf16.msra.mxu0 %v3755
  %4082 = vmatprep.subr.bf16.mxu0 %v3768
  %4083 = vmatpush1.bf16.msra.mxu0 %v3767
  %4084 = vmatprep.subr.bf16.mxu0 %v3780
  %4085 = vmatpush1.bf16.msra.mxu0 %v3779
  %4086 = vmatprep.subr.bf16.mxu0 %v3792
  %4087 = vmatpush1.bf16.msra.mxu0 %v3791
  %4088 = vmatprep.subr.bf16.mxu0 %v3804
  %4089 = vmatpush1.bf16.msra.mxu0 %v3803
  %4090 = vmatprep.subr.bf16.mxu0 0
  %4091 = vmatpush1.bf16.msra.mxu0 0
  %4092 = vmatprep.subr.bf16.mxu0 0
  %4093 = vmatpush1.bf16.msra.mxu0 0
  %4094 = vmatprep.subr.bf16.mxu0 0
  %4095 = vmatpush1.bf16.msra.mxu0 0
  %4096 = vmatprep.subr.bf16.mxu0 0
  %4097 = vmatpush1.bf16.msra.mxu0 0
  %4098 = vmatprep.subr.bf16.mxu0 0
  %4099 = vmatpush1.bf16.msra.mxu0 0
  %4100 = vmatprep.subr.bf16.mxu0 0
  %4101 = vmatpush1.bf16.msra.mxu0 0
  %4102 = vmatprep.subr.bf16.mxu0 0
  %4103 = vmatpush1.bf16.msra.mxu0 0
  %4104 = vmatprep.subr.bf16.mxu0 0
  %4105 = vmatpush1.bf16.msra.mxu0 0
  %4106 = vmatprep.mubr.bf16.mxu0 0
  %4107 = vmatmul.mubr.bf16.gmra.mrb[0].mxu0 %v3708
  %v4108 = vpop.f32.mrb[0].mxu0
  %v4109 = vadd.f32 %v3852, %v4108
  %v4110 = vpop.f32.mrb[0].mxu0
  %v4111 = vadd.f32 %v3856, %v4110
  %v4112 = vpop.f32.mrb[0].mxu0
  %v4113 = vpop.f32.mrb[0].mxu0
  %4114 = vdwg.mxu0
  %v4127 = vcombine.low %v3904, %v3906
  %v4128 = vcombine.low %v3945, %v3947
  %v4129 = vcombine.low %v3986, %v3988
  %v4130 = vcombine.low %v4027, %v4029
  %v4132 = vunpack.c.l.s4 1966171168
  %v4133 = vunpack.c.0.s8 %v4132
  %v4134 = vlaneseq
  %v4135 = vshrl.u32 %v4134, 7
  %v4136 = vsub.s32 %v4133, %v4135
  %v4137 = vrot.slane %v4127, %v4136
  %v4139 = vunpack.c.l.s4 1966171168
  %v4140 = vunpack.c.0.s8 %v4139
  %v4141 = vlaneseq
  %v4142 = vshrl.u32 %v4141, 7
  %v4143 = vsub.s32 %v4140, %v4142
  %v4144 = vrot.slane %v4128, %v4143
  %v4146 = vunpack.c.l.s4 1966171168
  %v4147 = vunpack.c.0.s8 %v4146
  %v4148 = vlaneseq
  %v4149 = vshrl.u32 %v4148, 7
  %v4150 = vsub.s32 %v4147, %v4149
  %v4151 = vrot.slane %v4129, %v4150
  %v4153 = vunpack.c.l.s4 1966171168
  %v4154 = vunpack.c.0.s8 %v4153
  %v4155 = vlaneseq
  %v4156 = vshrl.u32 %v4155, 7
  %v4157 = vsub.s32 %v4154, %v4156
  %v4158 = vrot.slane %v4130, %v4157
  %v4159 = vcombine.low %v4137, %v4144
  %v4160 = vcombine.low %v4151, %v4158
  %v4162 = vunpack.c.l.s4 1966171168
  %v4163 = vunpack.c.0.s8 %v4162
  %v4164 = vlaneseq
  %v4165 = vshrl.u32 %v4164, 7
  %v4166 = vsub.s32 %v4163, %v4165
  %v4167 = vrot.slane %v4159, %v4166
  %v4169 = vunpack.c.l.s4 1966171168
  %v4170 = vunpack.c.0.s8 %v4169
  %v4171 = vlaneseq
  %v4172 = vshrl.u32 %v4171, 7
  %v4173 = vsub.s32 %v4170, %v4172
  %v4174 = vrot.slane %v4160, %v4173
  %v4175 = vcombine.low %v4167, %v4174
  %v4176 = vcombine.low %v4068, %v4070
  %v4177 = vcombine.low %v4109, %v4111
  %v4179 = vunpack.c.l.s4 1966171168
  %v4180 = vunpack.c.0.s8 %v4179
  %v4181 = vlaneseq
  %v4182 = vshrl.u32 %v4181, 7
  %v4183 = vsub.s32 %v4180, %v4182
  %v4184 = vrot.slane %v4176, %v4183
  %v4186 = vunpack.c.l.s4 1966171168
  %v4187 = vunpack.c.0.s8 %v4186
  %v4188 = vlaneseq
  %v4189 = vshrl.u32 %v4188, 7
  %v4190 = vsub.s32 %v4187, %v4189
  %v4191 = vrot.slane %v4177, %v4190
  %v4192 = vcombine.low %v4184, %v4191
  %v4194 = vunpack.c.l.s4 1966171168
  %v4195 = vunpack.c.0.s8 %v4194
  %v4196 = vlaneseq
  %v4197 = vshrl.u32 %v4196, 7
  %v4198 = vsub.s32 %v4195, %v4197
  %v4199 = vrot.slane %v4192, %v4198
  %4202 = vst [vmem:[%s22] sm:$0xff] %v4175
  %v4203 = vlaneseq
  %vm4204 = vcmp.ge.s32.totalorder %v4203, 0
  %vm4205 = vcmp.lt.s32.totalorder %v4203, 512
  %vm4206 = vmand %vm4204, %vm4205
  %4207 = vst.msk [vmem:[%s22 + $0x8] sm:$0xf] %vm4206, %v4199
  // Predicated region
  $region123: #{vit_yolo_forward.1} parent=0 // pred_check
    _
  $region124: #{vit_yolo_forward.1} parent=0 // pred_check_branch
    %4209 = sbr.rel (0) target = $region126
  $region125: #{vit_yolo_forward.1} parent=0 // pred_region
    _
  $region126: #{vit_yolo_forward.1} parent=0 // pred_fallthru
    _
  // Predicated region
  $region127: #{vit_yolo_forward.1} parent=0 // pred_check
    _
  $region128: #{vit_yolo_forward.1} parent=0 // pred_check_branch
    %4211 = sbr.rel (0) target = $region130
  $region129: #{vit_yolo_forward.1} parent=0 // pred_region
    _
  $region130: #{vit_yolo_forward.1} parent=0 // pred_fallthru
    _
  %4212 = vsyncmov [#allocation3]
  %s4213 = vpop.sfrf %4212
  %p4214 = scmp.eq.s32.totalorder %s4213, 0
  %p4215 = pneg %p4214
  %4217 = shalt.err (%p4215)

</llo_original>
